<compile_context>
chip_gen: v5e
topology: v5e:2x2
jax: 0.10.0
libtpu: 0.0.40
codegen_flags: <defaults>
</compile_context>

<pallas_src>
import functools

import jax
import jax.numpy as jnp
from jax.experimental import pallas as pl
from jax.experimental.pallas import tpu as pltpu

EPS = 1e-5
NEG_SLOPE = 0.01
LANE = 128
VMEM_LIMIT = 48 * 1024 * 1024


def _tap_matmul(load_tap, w_ref, Cp):
    """Accumulate 9 per-tap MXU dots: sum_t load_tap(t) @ w_ref[t*Cp:(t+1)*Cp]."""
    mxu_dtype = w_ref.dtype
    y = None
    for t in range(9):
        lhs = load_tap(t).astype(mxu_dtype)
        part = jnp.dot(lhs, w_ref[t * Cp:(t + 1) * Cp, :],
                       preferred_element_type=jnp.float32)
        y = part if y is None else y + part
    return y


def _masked_stats(y, mask):
    """Per-channel [sum, sum-of-squares] over valid (non-junk) rows only."""
    ym = y * mask
    return jnp.concatenate([jnp.sum(ym, axis=0, keepdims=True),
                            jnp.sum(ym * y, axis=0, keepdims=True)], axis=0)


def _conv1_kernel(xpad_ref, w_ref, mask_ref, y_ref, stats_ref, *, H, W, Cp):
    """3x3 'same' conv on a pre-padded, flattened image (+ per-channel stats).

    xpad_ref:  (1, (H+2)*(W+2)+2, Cp) f32  zero-padded activation (flat, +2 overhang rows)
    w_ref:     (9*Cp, Cp)                  tap-major conv weights (MXU dtype)
    mask_ref:  (H*(W+2), 1) f32            1 for valid columns, 0 for junk columns
    y_ref:     (1, H*(W+2), Cp)            extended conv output (junk cols included)
    stats_ref: (1, 2, Cp) f32              per-image per-channel [sum, sum of squares]
    """
    Wp = W + 2
    Mext = H * Wp

    def load_tap(t):
        dy, dx = divmod(t, 3)
        off = dy * Wp + dx
        return xpad_ref[0, off:off + Mext, :]

    y = _tap_matmul(load_tap, w_ref, Cp)                  # (Mext, Cp) f32
    stats_ref[0] = _masked_stats(y, mask_ref[...])
    y_ref[0] = y.astype(y_ref.dtype)


def _conv2_kernel(y1_ref, w_ref, scale_ref, shift_ref, mask_ref,
                  y_ref, stats_ref, pad_ref, *, H, W, Cp, A):
    """BN1-affine + LeakyReLU -> 3x3 'same' conv (+ per-channel stats).

    y1_ref:  (1, H*(W+2), Cp)  extended conv1 output (compute dtype)
    pad_ref: (A + (H+2)*(W+2) + 2, Cp) f32 scratch; A aligns the interior store to 8 rows.
    """
    Wp = W + 2
    Mext = H * Wp
    mask = mask_ref[...]

    # BN1 as a single FMA, then LeakyReLU(0.01); zero the junk/halo columns so the flat
    # copy below lands exact halo zeros in the padded buffer.
    z = y1_ref[0].astype(jnp.float32) * scale_ref[...] + shift_ref[...]
    a = jnp.where(z > 0, z, NEG_SLOPE * z) * mask

    head = A + Wp + 1                                     # multiple of 8 by construction
    pad_ref[0:head, :] = jnp.zeros((head, Cp), pad_ref.dtype)
    pad_ref[head:head + Mext, :] = a
    pad_ref[head + Mext:head + Mext + Wp + 1, :] = jnp.zeros((Wp + 1, Cp), pad_ref.dtype)

    def load_tap(t):
        dy, dx = divmod(t, 3)
        off = A + dy * Wp + dx
        return pad_ref[off:off + Mext, :]

    y = _tap_matmul(load_tap, w_ref, Cp)
    stats_ref[0] = _masked_stats(y, mask)
    y_ref[0] = y.astype(y_ref.dtype)


def _finalize_kernel(y2_ref, xpad_ref, scale_ref, shift_ref, o_ref, *, H, W, Cp):
    """out = LeakyReLU(BN2(conv2_out) + identity), one image (extended layout)."""
    Wp = W + 2
    Mext = H * Wp
    # Rows [Wp+1, Wp+1+Mext) of the flat padded input are exactly the identity in the
    # extended layout (junk columns hold halo zeros / neighbours — sliced away outside).
    identity = xpad_ref[0, Wp + 1:Wp + 1 + Mext, :]
    z = y2_ref[0].astype(jnp.float32) * scale_ref[...] + shift_ref[...] + identity
    o_ref[0] = jnp.where(z > 0, z, NEG_SLOPE * z)


@functools.partial(jax.jit, static_argnames=("compute_dtype",))
def residual_block_pallas(x_nchw, w1, b1, g1, bt1, w2, b2, g2, bt2,
                          compute_dtype=jnp.bfloat16):
    """x_nchw: (N, C, H, W) f32.  w*: torch conv weights (Cout, Cin, 3, 3).

    b1 / b2 are accepted for signature compatibility but intentionally unused: under
    training-mode BatchNorm a per-channel conv bias is exactly cancelled by the mean
    subtraction.
    """
    N, C, H, W = x_nchw.shape
    Cp = max(LANE, ((C + LANE - 1) // LANE) * LANE)       # lane-dense channel dim
    Wp = W + 2
    Mext = H * Wp                                          # extended (junk-col) row count
    Lpad = (H + 2) * Wp                                    # flat padded-buffer row count
    LpadE = Lpad + 2                                       # +2 overhang rows for last taps
    A = (-(W + 3)) % 8                                     # aligns pass-2 interior store

    # NHWC, zero-pad spatially by 1 and channels to Cp, flatten spatial dims, add overhang.
    x = jnp.transpose(x_nchw, (0, 2, 3, 1)).astype(jnp.float32)
    xpad = jnp.pad(x, ((0, 0), (1, 1), (1, 1), (0, Cp - C)))
    xpad = jnp.pad(xpad.reshape(N, Lpad, Cp), ((0, 0), (0, 2), (0, 0)))   # (N, LpadE, Cp)

    # Valid-column mask in the extended layout (column index mod (W+2) < W).
    mask = (jnp.arange(Mext, dtype=jnp.int32) % Wp < W)
    mask = mask.astype(jnp.float32).reshape(Mext, 1)

    def prep_w(w):   # (Cout, Cin, 3, 3) -> (9*Cp, Cp), tap-major, channel-padded
        wt = jnp.transpose(w, (2, 3, 1, 0)).reshape(9, C, C)       # (9, Cin, Cout)
        wt = jnp.pad(wt, ((0, 0), (0, Cp - C), (0, Cp - C)))
        return wt.reshape(9 * Cp, Cp).astype(compute_dtype)

    def prep_v(v):   # (C,) -> (1, Cp)
        return jnp.pad(v.astype(jnp.float32), (0, Cp - C)).reshape(1, Cp)

    cparams = pltpu.CompilerParams(dimension_semantics=("parallel",),
                                   vmem_limit_bytes=VMEM_LIMIT)

    # ---- pass 1: conv1 on the pre-padded input (+ per-image BN1 partial stats) ----
    kern1 = functools.partial(_conv1_kernel, H=H, W=W, Cp=Cp)
    y1, st1 = pl.pallas_call(
        kern1,
        out_shape=(jax.ShapeDtypeStruct((N, Mext, Cp), compute_dtype),
                   jax.ShapeDtypeStruct((N, 2, Cp), jnp.float32)),
        grid=(N,),
        in_specs=[pl.BlockSpec((1, LpadE, Cp), lambda n: (n, 0, 0)),
                  pl.BlockSpec((9 * Cp, Cp), lambda n: (0, 0)),
                  pl.BlockSpec((Mext, 1), lambda n: (0, 0))],
        out_specs=(pl.BlockSpec((1, Mext, Cp), lambda n: (n, 0, 0)),
                   pl.BlockSpec((1, 2, Cp), lambda n: (n, 0, 0))),
        compiler_params=cparams,
    )(xpad, prep_w(w1), mask)

    m_total = N * H * W

    def bn_scale_shift(stats, gamma, beta):
        # Tiny (Cp,)-sized ops: fold full-batch BN stats into per-channel scale/shift.
        # Note: E[y^2]-E[y]^2 in f32; fine at these magnitudes (see review for Welford).
        s = jnp.sum(stats, axis=0)                                  # (2, Cp)
        mean = s[0] / m_total
        var = jnp.maximum(s[1] / m_total - mean * mean, 0.0)        # biased (training-mode)
        scale = gamma[0] * jax.lax.rsqrt(var + EPS)
        shift = beta[0] - mean * scale
        return scale.reshape(1, Cp), shift.reshape(1, Cp)

    sc1, sh1 = bn_scale_shift(st1, prep_v(g1), prep_v(bt1))

    # ---- pass 2: BN1 + LeakyReLU fused into conv2 (+ per-image BN2 partial stats) ----
    kern2 = functools.partial(_conv2_kernel, H=H, W=W, Cp=Cp, A=A)
    scratch_rows = A + Mext + 2 * Wp + 2                            # = A + LpadE
    y2, st2 = pl.pallas_call(
        kern2,
        out_shape=(jax.ShapeDtypeStruct((N, Mext, Cp), compute_dtype),
                   jax.ShapeDtypeStruct((N, 2, Cp), jnp.float32)),
        grid=(N,),
        in_specs=[pl.BlockSpec((1, Mext, Cp), lambda n: (n, 0, 0)),
                  pl.BlockSpec((9 * Cp, Cp), lambda n: (0, 0)),
                  pl.BlockSpec((1, Cp), lambda n: (0, 0)),
                  pl.BlockSpec((1, Cp), lambda n: (0, 0)),
                  pl.BlockSpec((Mext, 1), lambda n: (0, 0))],
        out_specs=(pl.BlockSpec((1, Mext, Cp), lambda n: (n, 0, 0)),
                   pl.BlockSpec((1, 2, Cp), lambda n: (n, 0, 0))),
        scratch_shapes=[pltpu.VMEM((scratch_rows, Cp), jnp.float32)],
        compiler_params=cparams,
    )(y1, prep_w(w2), sc1, sh1, mask)

    sc2, sh2 = bn_scale_shift(st2, prep_v(g2), prep_v(bt2))

    # ---- pass 3: BN2 + residual add + LeakyReLU ----
    kern3 = functools.partial(_finalize_kernel, H=H, W=W, Cp=Cp)
    out = pl.pallas_call(
        kern3,
        out_shape=jax.ShapeDtypeStruct((N, Mext, Cp), jnp.float32),
        grid=(N,),
        in_specs=[pl.BlockSpec((1, Mext, Cp), lambda n: (n, 0, 0)),
                  pl.BlockSpec((1, LpadE, Cp), lambda n: (n, 0, 0)),
                  pl.BlockSpec((1, Cp), lambda n: (0, 0)),
                  pl.BlockSpec((1, Cp), lambda n: (0, 0))],
        out_specs=pl.BlockSpec((1, Mext, Cp), lambda n: (n, 0, 0)),
        compiler_params=cparams,
    )(y2, xpad, sc2, sh2)

    # Drop junk columns + channel padding, back to NCHW.
    out = out.reshape(N, H, Wp, Cp)[:, :, :W, :C]
    return jnp.transpose(out, (0, 3, 1, 2))


def residual_block_ref(x, w1, b1, g1, bt1, w2, b2, g2, bt2):
    """Pure-JAX NCHW reference mirroring the PyTorch forward (training-mode BN)."""
    def conv(x, w, b):
        y = jax.lax.conv_general_dilated(
            x, w, window_strides=(1, 1), padding="SAME",
            dimension_numbers=("NCHW", "OIHW", "NCHW"))
        return y + b[None, :, None, None]

    def bn(y, g, bt):
        mean = jnp.mean(y, axis=(0, 2, 3), keepdims=True)
        var = jnp.mean((y - mean) ** 2, axis=(0, 2, 3), keepdims=True)
        return (y - mean) / jnp.sqrt(var + EPS) * g[None, :, None, None] \
            + bt[None, :, None, None]

    def lrelu(y):
        return jnp.where(y > 0, y, NEG_SLOPE * y)

    h = lrelu(bn(conv(x, w1, b1), g1, bt1))
    out = bn(conv(h, w2, b2), g2, bt2) + x
    return lrelu(out)


if __name__ == "__main__":
    # Small shapes; residual add requires in_channels == out_channels.
    N, C, H, W = 2, 4, 16, 16

    key = jax.random.PRNGKey(0)
    kx, kw1, kb1, kw2, kb2, kg1, kt1, kg2, kt2 = jax.random.split(key, 9)

    x = jax.random.normal(kx, (N, C, H, W), dtype=jnp.float32)

    # Parameter shapes match nn.Conv2d / nn.BatchNorm2d.
    w1 = jax.random.normal(kw1, (C, C, 3, 3), dtype=jnp.float32) * 0.1
    b1 = jax.random.normal(kb1, (C,), dtype=jnp.float32) * 0.05
    w2 = jax.random.normal(kw2, (C, C, 3, 3), dtype=jnp.float32) * 0.1
    b2 = jax.random.normal(kb2, (C,), dtype=jnp.float32) * 0.05
    g1 = 1.0 + 0.1 * jax.random.normal(kg1, (C,), dtype=jnp.float32)
    bt1 = 0.1 * jax.random.normal(kt1, (C,), dtype=jnp.float32)
    g2 = 1.0 + 0.1 * jax.random.normal(kg2, (C,), dtype=jnp.float32)
    bt2 = 0.1 * jax.random.normal(kt2, (C,), dtype=jnp.float32)

    params = (w1, b1, g1, bt1, w2, b2, g2, bt2)

    ref = jax.block_until_ready(residual_block_ref(x, *params))

    # f32 path: bit-tight check of the kernel math (f32 MXU, f32 intermediates).
    out_f32 = jax.block_until_ready(
        residual_block_pallas(x, *params, compute_dtype=jnp.float32))
    assert out_f32.shape == (N, C, H, W)
    assert jnp.allclose(out_f32, ref, rtol=1e-4, atol=1e-4), (
        f"f32 max abs err {jnp.max(jnp.abs(out_f32 - ref))}")

    # Default bf16 path (bf16 MXU inputs + bf16 HBM intermediates): small numeric drift.
    out_bf16 = jax.block_until_ready(residual_block_pallas(x, *params))
    assert out_bf16.shape == (N, C, H, W)
    assert jnp.allclose(out_bf16, ref, rtol=5e-2, atol=5e-2), (
        f"bf16 max abs err {jnp.max(jnp.abs(out_bf16 - ref))}")

    print("KERNEL_OK")
</pallas_src>

<mosaic_0001>
module attributes {stable_mosaic.version = 11 : i64} {
  func.func @_conv1_kernel(%arg0: i32, %arg1: memref<1x326x128xf32, #tpu.memory_space<vmem>>, %arg2: memref<1152x128xf32, #tpu.memory_space<vmem>>, %arg3: memref<288x1xf32, #tpu.memory_space<vmem>>, %arg4: memref<1x288x128xf32, #tpu.memory_space<vmem>>, %arg5: memref<1x2x128xf32, #tpu.memory_space<vmem>>) attributes {dimension_semantics = [#tpu.dimension_semantics<parallel>], iteration_bounds = array<i64: 2>, scalar_prefetch = 0 : i64, scratch_operands = 0 : i64, tpu.core_type = #tpu.core_type<tc>, window_params = [{transform_indices = @transform_0, window_bounds = array<i64: 1, 326, 128>}, {pipeline_mode = #tpu.pipeline_mode<synchronous>, transform_indices = @transform_1, window_bounds = array<i64: 1152, 128>}, {pipeline_mode = #tpu.pipeline_mode<synchronous>, transform_indices = @transform_2, window_bounds = array<i64: 288, 1>}, {transform_indices = @transform_3, window_bounds = array<i64: 1, 288, 128>}, {transform_indices = @transform_4, window_bounds = array<i64: 1, 2, 128>}]} {
    %c0 = arith.constant 0 : index
    %c0_0 = arith.constant 0 : index
    %c0_1 = arith.constant 0 : index
    %0 = vector.load %arg1[%c0, %c0_0, %c0_1] : memref<1x326x128xf32, #tpu.memory_space<vmem>>, vector<1x288x128xf32>
    %1 = vector.shape_cast %0 : vector<1x288x128xf32> to vector<288x128xf32>
    %c0_2 = arith.constant 0 : index
    %c0_3 = arith.constant 0 : index
    %2 = vector.load %arg2[%c0_2, %c0_3] : memref<1152x128xf32, #tpu.memory_space<vmem>>, vector<128x128xf32>
    %cst = arith.constant dense<0.000000e+00> : vector<288x128xf32>
    %3 = tpu.matmul %1, %2, %cst {dimension_numbers = #tpu.dot_dimension_numbers<[1], [0], [0], [1], [0, 0, 1, 1], [], []>} : vector<288x128xf32>, vector<128x128xf32>, vector<288x128xf32> -> vector<288x128xf32>
    %c0_4 = arith.constant 0 : index
    %c1 = arith.constant 1 : index
    %c0_5 = arith.constant 0 : index
    %4 = vector.load %arg1[%c0_4, %c1, %c0_5] : memref<1x326x128xf32, #tpu.memory_space<vmem>>, vector<1x288x128xf32>
    %5 = vector.shape_cast %4 : vector<1x288x128xf32> to vector<288x128xf32>
    %c128 = arith.constant 128 : index
    %c0_6 = arith.constant 0 : index
    %6 = vector.load %arg2[%c128, %c0_6] : memref<1152x128xf32, #tpu.memory_space<vmem>>, vector<128x128xf32>
    %cst_7 = arith.constant dense<0.000000e+00> : vector<288x128xf32>
    %7 = tpu.matmul %5, %6, %cst_7 {dimension_numbers = #tpu.dot_dimension_numbers<[1], [0], [0], [1], [0, 0, 1, 1], [], []>} : vector<288x128xf32>, vector<128x128xf32>, vector<288x128xf32> -> vector<288x128xf32>
    %8 = arith.addf %3, %7 : vector<288x128xf32>
    %c0_8 = arith.constant 0 : index
    %c2 = arith.constant 2 : index
    %c0_9 = arith.constant 0 : index
    %9 = vector.load %arg1[%c0_8, %c2, %c0_9] : memref<1x326x128xf32, #tpu.memory_space<vmem>>, vector<1x288x128xf32>
    %10 = vector.shape_cast %9 : vector<1x288x128xf32> to vector<288x128xf32>
    %c256 = arith.constant 256 : index
    %c0_10 = arith.constant 0 : index
    %11 = vector.load %arg2[%c256, %c0_10] : memref<1152x128xf32, #tpu.memory_space<vmem>>, vector<128x128xf32>
    %cst_11 = arith.constant dense<0.000000e+00> : vector<288x128xf32>
    %12 = tpu.matmul %10, %11, %cst_11 {dimension_numbers = #tpu.dot_dimension_numbers<[1], [0], [0], [1], [0, 0, 1, 1], [], []>} : vector<288x128xf32>, vector<128x128xf32>, vector<288x128xf32> -> vector<288x128xf32>
    %13 = arith.addf %8, %12 : vector<288x128xf32>
    %c0_12 = arith.constant 0 : index
    %c18 = arith.constant 18 : index
    %c0_13 = arith.constant 0 : index
    %14 = vector.load %arg1[%c0_12, %c18, %c0_13] : memref<1x326x128xf32, #tpu.memory_space<vmem>>, vector<1x288x128xf32>
    %15 = vector.shape_cast %14 : vector<1x288x128xf32> to vector<288x128xf32>
    %c384 = arith.constant 384 : index
    %c0_14 = arith.constant 0 : index
    %16 = vector.load %arg2[%c384, %c0_14] : memref<1152x128xf32, #tpu.memory_space<vmem>>, vector<128x128xf32>
    %cst_15 = arith.constant dense<0.000000e+00> : vector<288x128xf32>
    %17 = tpu.matmul %15, %16, %cst_15 {dimension_numbers = #tpu.dot_dimension_numbers<[1], [0], [0], [1], [0, 0, 1, 1], [], []>} : vector<288x128xf32>, vector<128x128xf32>, vector<288x128xf32> -> vector<288x128xf32>
    %18 = arith.addf %13, %17 : vector<288x128xf32>
    %c0_16 = arith.constant 0 : index
    %c19 = arith.constant 19 : index
    %c0_17 = arith.constant 0 : index
    %19 = vector.load %arg1[%c0_16, %c19, %c0_17] : memref<1x326x128xf32, #tpu.memory_space<vmem>>, vector<1x288x128xf32>
    %20 = vector.shape_cast %19 : vector<1x288x128xf32> to vector<288x128xf32>
    %c512 = arith.constant 512 : index
    %c0_18 = arith.constant 0 : index
    %21 = vector.load %arg2[%c512, %c0_18] : memref<1152x128xf32, #tpu.memory_space<vmem>>, vector<128x128xf32>
    %cst_19 = arith.constant dense<0.000000e+00> : vector<288x128xf32>
    %22 = tpu.matmul %20, %21, %cst_19 {dimension_numbers = #tpu.dot_dimension_numbers<[1], [0], [0], [1], [0, 0, 1, 1], [], []>} : vector<288x128xf32>, vector<128x128xf32>, vector<288x128xf32> -> vector<288x128xf32>
    %23 = arith.addf %18, %22 : vector<288x128xf32>
    %c0_20 = arith.constant 0 : index
    %c20 = arith.constant 20 : index
    %c0_21 = arith.constant 0 : index
    %24 = vector.load %arg1[%c0_20, %c20, %c0_21] : memref<1x326x128xf32, #tpu.memory_space<vmem>>, vector<1x288x128xf32>
    %25 = vector.shape_cast %24 : vector<1x288x128xf32> to vector<288x128xf32>
    %c640 = arith.constant 640 : index
    %c0_22 = arith.constant 0 : index
    %26 = vector.load %arg2[%c640, %c0_22] : memref<1152x128xf32, #tpu.memory_space<vmem>>, vector<128x128xf32>
    %cst_23 = arith.constant dense<0.000000e+00> : vector<288x128xf32>
    %27 = tpu.matmul %25, %26, %cst_23 {dimension_numbers = #tpu.dot_dimension_numbers<[1], [0], [0], [1], [0, 0, 1, 1], [], []>} : vector<288x128xf32>, vector<128x128xf32>, vector<288x128xf32> -> vector<288x128xf32>
    %28 = arith.addf %23, %27 : vector<288x128xf32>
    %c0_24 = arith.constant 0 : index
    %c36 = arith.constant 36 : index
    %c0_25 = arith.constant 0 : index
    %29 = vector.load %arg1[%c0_24, %c36, %c0_25] : memref<1x326x128xf32, #tpu.memory_space<vmem>>, vector<1x288x128xf32>
    %30 = vector.shape_cast %29 : vector<1x288x128xf32> to vector<288x128xf32>
    %c768 = arith.constant 768 : index
    %c0_26 = arith.constant 0 : index
    %31 = vector.load %arg2[%c768, %c0_26] : memref<1152x128xf32, #tpu.memory_space<vmem>>, vector<128x128xf32>
    %cst_27 = arith.constant dense<0.000000e+00> : vector<288x128xf32>
    %32 = tpu.matmul %30, %31, %cst_27 {dimension_numbers = #tpu.dot_dimension_numbers<[1], [0], [0], [1], [0, 0, 1, 1], [], []>} : vector<288x128xf32>, vector<128x128xf32>, vector<288x128xf32> -> vector<288x128xf32>
    %33 = arith.addf %28, %32 : vector<288x128xf32>
    %c0_28 = arith.constant 0 : index
    %c37 = arith.constant 37 : index
    %c0_29 = arith.constant 0 : index
    %34 = vector.load %arg1[%c0_28, %c37, %c0_29] : memref<1x326x128xf32, #tpu.memory_space<vmem>>, vector<1x288x128xf32>
    %35 = vector.shape_cast %34 : vector<1x288x128xf32> to vector<288x128xf32>
    %c896 = arith.constant 896 : index
    %c0_30 = arith.constant 0 : index
    %36 = vector.load %arg2[%c896, %c0_30] : memref<1152x128xf32, #tpu.memory_space<vmem>>, vector<128x128xf32>
    %cst_31 = arith.constant dense<0.000000e+00> : vector<288x128xf32>
    %37 = tpu.matmul %35, %36, %cst_31 {dimension_numbers = #tpu.dot_dimension_numbers<[1], [0], [0], [1], [0, 0, 1, 1], [], []>} : vector<288x128xf32>, vector<128x128xf32>, vector<288x128xf32> -> vector<288x128xf32>
    %38 = arith.addf %33, %37 : vector<288x128xf32>
    %c0_32 = arith.constant 0 : index
    %c38 = arith.constant 38 : index
    %c0_33 = arith.constant 0 : index
    %39 = vector.load %arg1[%c0_32, %c38, %c0_33] : memref<1x326x128xf32, #tpu.memory_space<vmem>>, vector<1x288x128xf32>
    %40 = vector.shape_cast %39 : vector<1x288x128xf32> to vector<288x128xf32>
    %c1024 = arith.constant 1024 : index
    %c0_34 = arith.constant 0 : index
    %41 = vector.load %arg2[%c1024, %c0_34] : memref<1152x128xf32, #tpu.memory_space<vmem>>, vector<128x128xf32>
    %cst_35 = arith.constant dense<0.000000e+00> : vector<288x128xf32>
    %42 = tpu.matmul %40, %41, %cst_35 {dimension_numbers = #tpu.dot_dimension_numbers<[1], [0], [0], [1], [0, 0, 1, 1], [], []>} : vector<288x128xf32>, vector<128x128xf32>, vector<288x128xf32> -> vector<288x128xf32>
    %43 = arith.addf %38, %42 : vector<288x128xf32>
    %c0_36 = arith.constant 0 : index
    %c0_37 = arith.constant 0 : index
    %44 = vector.load %arg3[%c0_36, %c0_37] : memref<288x1xf32, #tpu.memory_space<vmem>>, vector<288x1xf32>
    %45 = vector.broadcast %44 : vector<288x1xf32> to vector<288x128xf32>
    %46 = arith.mulf %43, %45 : vector<288x128xf32>
    %cst_38 = arith.constant dense<0.000000e+00> : vector<128xf32>
    %47 = vector.multi_reduction <add>, %46, %cst_38 [0] : vector<288x128xf32> to vector<128xf32>
    %48 = vector.shape_cast %47 : vector<128xf32> to vector<1x128xf32>
    %49 = arith.mulf %46, %43 : vector<288x128xf32>
    %cst_39 = arith.constant dense<0.000000e+00> : vector<128xf32>
    %50 = vector.multi_reduction <add>, %49, %cst_39 [0] : vector<288x128xf32> to vector<128xf32>
    %51 = vector.shape_cast %50 : vector<128xf32> to vector<1x128xf32>
    %52 = tpu.concatenate %48, %51 in 0 : vector<1x128xf32>, vector<1x128xf32> -> vector<2x128xf32>
    %c0_40 = arith.constant 0 : index
    %c0_41 = arith.constant 0 : index
    %c0_42 = arith.constant 0 : index
    %53 = vector.load %arg5[%c0_40, %c0_41, %c0_42] : memref<1x2x128xf32, #tpu.memory_space<vmem>>, vector<1x2x128xf32>
    %54 = vector.shape_cast %53 : vector<1x2x128xf32> to vector<2x128xf32>
    %55 = vector.shape_cast %52 : vector<2x128xf32> to vector<1x2x128xf32>
    tpu.vector_store %arg5[%c0_40, %c0_41, %c0_42], %55 {strides = array<i32>} : memref<1x2x128xf32, #tpu.memory_space<vmem>>, vector<1x2x128xf32>,
    %c0_43 = arith.constant 0 : index
    %c0_44 = arith.constant 0 : index
    %c0_45 = arith.constant 0 : index
    %56 = vector.load %arg4[%c0_43, %c0_44, %c0_45] : memref<1x288x128xf32, #tpu.memory_space<vmem>>, vector<1x288x128xf32>
    %57 = vector.shape_cast %56 : vector<1x288x128xf32> to vector<288x128xf32>
    %58 = vector.shape_cast %43 : vector<288x128xf32> to vector<1x288x128xf32>
    tpu.vector_store %arg4[%c0_43, %c0_44, %c0_45], %58 {strides = array<i32>} : memref<1x288x128xf32, #tpu.memory_space<vmem>>, vector<1x288x128xf32>,
    return
  }
  func.func @transform_0(%arg0: i32) -> (i32, i32, i32) {
    %c0_i32 = arith.constant 0 : i32
    %c0_i32_0 = arith.constant 0 : i32
    %c0_i32_1 = arith.constant 0 : i32
    return %arg0, %c0_i32, %c0_i32_0 : i32, i32, i32
  }
  func.func @transform_1(%arg0: i32) -> (i32, i32) {
    %c0_i32 = arith.constant 0 : i32
    %c0_i32_0 = arith.constant 0 : i32
    %c0_i32_1 = arith.constant 0 : i32
    return %c0_i32, %c0_i32_0 : i32, i32
  }
  func.func @transform_2(%arg0: i32) -> (i32, i32) {
    %c0_i32 = arith.constant 0 : i32
    %c0_i32_0 = arith.constant 0 : i32
    %c0_i32_1 = arith.constant 0 : i32
    return %c0_i32, %c0_i32_0 : i32, i32
  }
  func.func @transform_3(%arg0: i32) -> (i32, i32, i32) {
    %c0_i32 = arith.constant 0 : i32
    %c0_i32_0 = arith.constant 0 : i32
    %c0_i32_1 = arith.constant 0 : i32
    return %arg0, %c0_i32, %c0_i32_0 : i32, i32, i32
  }
  func.func @transform_4(%arg0: i32) -> (i32, i32, i32) {
    %c0_i32 = arith.constant 0 : i32
    %c0_i32_0 = arith.constant 0 : i32
    %c0_i32_1 = arith.constant 0 : i32
    return %arg0, %c0_i32, %c0_i32_0 : i32, i32, i32
  }
}

module attributes {stable_mosaic.version = 11 : i64} {
  func.func @_conv2_kernel(%arg0: i32, %arg1: memref<1x288x128xf32, #tpu.memory_space<vmem>>, %arg2: memref<1152x128xf32, #tpu.memory_space<vmem>>, %arg3: memref<1x128xf32, #tpu.memory_space<vmem>>, %arg4: memref<1x128xf32, #tpu.memory_space<vmem>>, %arg5: memref<288x1xf32, #tpu.memory_space<vmem>>, %arg6: memref<1x288x128xf32, #tpu.memory_space<vmem>>, %arg7: memref<1x2x128xf32, #tpu.memory_space<vmem>>, %arg8: memref<331x128xf32, #tpu.memory_space<vmem>>) attributes {dimension_semantics = [#tpu.dimension_semantics<parallel>], iteration_bounds = array<i64: 2>, scalar_prefetch = 0 : i64, scratch_operands = 1 : i64, tpu.core_type = #tpu.core_type<tc>, window_params = [{transform_indices = @transform_0, window_bounds = array<i64: 1, 288, 128>}, {pipeline_mode = #tpu.pipeline_mode<synchronous>, transform_indices = @transform_1, window_bounds = array<i64: 1152, 128>}, {pipeline_mode = #tpu.pipeline_mode<synchronous>, transform_indices = @transform_2, window_bounds = array<i64: 1, 128>}, {pipeline_mode = #tpu.pipeline_mode<synchronous>, transform_indices = @transform_3, window_bounds = array<i64: 1, 128>}, {pipeline_mode = #tpu.pipeline_mode<synchronous>, transform_indices = @transform_4, window_bounds = array<i64: 288, 1>}, {transform_indices = @transform_5, window_bounds = array<i64: 1, 288, 128>}, {transform_indices = @transform_6, window_bounds = array<i64: 1, 2, 128>}]} {
    %c0 = arith.constant 0 : index
    %c0_0 = arith.constant 0 : index
    %0 = vector.load %arg5[%c0, %c0_0] : memref<288x1xf32, #tpu.memory_space<vmem>>, vector<288x1xf32>
    %c0_1 = arith.constant 0 : index
    %c0_2 = arith.constant 0 : index
    %c0_3 = arith.constant 0 : index
    %1 = vector.load %arg1[%c0_1, %c0_2, %c0_3] : memref<1x288x128xf32, #tpu.memory_space<vmem>>, vector<1x288x128xf32>
    %2 = vector.shape_cast %1 : vector<1x288x128xf32> to vector<288x128xf32>
    %c0_4 = arith.constant 0 : index
    %c0_5 = arith.constant 0 : index
    %3 = vector.load %arg3[%c0_4, %c0_5] : memref<1x128xf32, #tpu.memory_space<vmem>>, vector<1x128xf32>
    %4 = vector.broadcast %3 : vector<1x128xf32> to vector<288x128xf32>
    %5 = arith.mulf %2, %4 : vector<288x128xf32>
    %c0_6 = arith.constant 0 : index
    %c0_7 = arith.constant 0 : index
    %6 = vector.load %arg4[%c0_6, %c0_7] : memref<1x128xf32, #tpu.memory_space<vmem>>, vector<1x128xf32>
    %7 = vector.broadcast %6 : vector<1x128xf32> to vector<288x128xf32>
    %8 = arith.addf %5, %7 : vector<288x128xf32>
    %cst = arith.constant 0.000000e+00 : f32
    %9 = vector.broadcast %cst : f32 to vector<288x128xf32>
    %10 = arith.cmpf ogt, %8, %9 : vector<288x128xf32>
    %cst_8 = arith.constant 0.00999999977 : f32
    %11 = vector.broadcast %cst_8 : f32 to vector<288x128xf32>
    %12 = arith.mulf %11, %8 : vector<288x128xf32>
    %13 = arith.select %10, %8, %12 : vector<288x128xi1>, vector<288x128xf32>
    %14 = vector.broadcast %0 : vector<288x1xf32> to vector<288x128xf32>
    %15 = arith.mulf %13, %14 : vector<288x128xf32>
    %cst_9 = arith.constant 0.000000e+00 : f32
    %16 = vector.broadcast %cst_9 : f32 to vector<24x128xf32>
    %c0_10 = arith.constant 0 : index
    %c0_11 = arith.constant 0 : index
    %17 = vector.load %arg8[%c0_10, %c0_11] : memref<331x128xf32, #tpu.memory_space<vmem>>, vector<24x128xf32>
    tpu.vector_store %arg8[%c0_10, %c0_11], %16 {strides = array<i32>} : memref<331x128xf32, #tpu.memory_space<vmem>>, vector<24x128xf32>,
    %c24 = arith.constant 24 : index
    %c0_12 = arith.constant 0 : index
    %18 = vector.load %arg8[%c24, %c0_12] : memref<331x128xf32, #tpu.memory_space<vmem>>, vector<288x128xf32>
    tpu.vector_store %arg8[%c24, %c0_12], %15 {strides = array<i32>} : memref<331x128xf32, #tpu.memory_space<vmem>>, vector<288x128xf32>,
    %cst_13 = arith.constant 0.000000e+00 : f32
    %19 = vector.broadcast %cst_13 : f32 to vector<19x128xf32>
    %c312 = arith.constant 312 : index
    %c0_14 = arith.constant 0 : index
    %20 = vector.load %arg8[%c312, %c0_14] : memref<331x128xf32, #tpu.memory_space<vmem>>, vector<19x128xf32>
    tpu.vector_store %arg8[%c312, %c0_14], %19 {strides = array<i32>} : memref<331x128xf32, #tpu.memory_space<vmem>>, vector<19x128xf32>,
    %c5 = arith.constant 5 : index
    %c0_15 = arith.constant 0 : index
    %21 = vector.load %arg8[%c5, %c0_15] : memref<331x128xf32, #tpu.memory_space<vmem>>, vector<288x128xf32>
    %c0_16 = arith.constant 0 : index
    %c0_17 = arith.constant 0 : index
    %22 = vector.load %arg2[%c0_16, %c0_17] : memref<1152x128xf32, #tpu.memory_space<vmem>>, vector<128x128xf32>
    %cst_18 = arith.constant dense<0.000000e+00> : vector<288x128xf32>
    %23 = tpu.matmul %21, %22, %cst_18 {dimension_numbers = #tpu.dot_dimension_numbers<[1], [0], [0], [1], [0, 0, 1, 1], [], []>} : vector<288x128xf32>, vector<128x128xf32>, vector<288x128xf32> -> vector<288x128xf32>
    %c6 = arith.constant 6 : index
    %c0_19 = arith.constant 0 : index
    %24 = vector.load %arg8[%c6, %c0_19] : memref<331x128xf32, #tpu.memory_space<vmem>>, vector<288x128xf32>
    %c128 = arith.constant 128 : index
    %c0_20 = arith.constant 0 : index
    %25 = vector.load %arg2[%c128, %c0_20] : memref<1152x128xf32, #tpu.memory_space<vmem>>, vector<128x128xf32>
    %cst_21 = arith.constant dense<0.000000e+00> : vector<288x128xf32>
    %26 = tpu.matmul %24, %25, %cst_21 {dimension_numbers = #tpu.dot_dimension_numbers<[1], [0], [0], [1], [0, 0, 1, 1], [], []>} : vector<288x128xf32>, vector<128x128xf32>, vector<288x128xf32> -> vector<288x128xf32>
    %27 = arith.addf %23, %26 : vector<288x128xf32>
    %c7 = arith.constant 7 : index
    %c0_22 = arith.constant 0 : index
    %28 = vector.load %arg8[%c7, %c0_22] : memref<331x128xf32, #tpu.memory_space<vmem>>, vector<288x128xf32>
    %c256 = arith.constant 256 : index
    %c0_23 = arith.constant 0 : index
    %29 = vector.load %arg2[%c256, %c0_23] : memref<1152x128xf32, #tpu.memory_space<vmem>>, vector<128x128xf32>
    %cst_24 = arith.constant dense<0.000000e+00> : vector<288x128xf32>
    %30 = tpu.matmul %28, %29, %cst_24 {dimension_numbers = #tpu.dot_dimension_numbers<[1], [0], [0], [1], [0, 0, 1, 1], [], []>} : vector<288x128xf32>, vector<128x128xf32>, vector<288x128xf32> -> vector<288x128xf32>
    %31 = arith.addf %27, %30 : vector<288x128xf32>
    %c23 = arith.constant 23 : index
    %c0_25 = arith.constant 0 : index
    %32 = vector.load %arg8[%c23, %c0_25] : memref<331x128xf32, #tpu.memory_space<vmem>>, vector<288x128xf32>
    %c384 = arith.constant 384 : index
    %c0_26 = arith.constant 0 : index
    %33 = vector.load %arg2[%c384, %c0_26] : memref<1152x128xf32, #tpu.memory_space<vmem>>, vector<128x128xf32>
    %cst_27 = arith.constant dense<0.000000e+00> : vector<288x128xf32>
    %34 = tpu.matmul %32, %33, %cst_27 {dimension_numbers = #tpu.dot_dimension_numbers<[1], [0], [0], [1], [0, 0, 1, 1], [], []>} : vector<288x128xf32>, vector<128x128xf32>, vector<288x128xf32> -> vector<288x128xf32>
    %35 = arith.addf %31, %34 : vector<288x128xf32>
    %c24_28 = arith.constant 24 : index
    %c0_29 = arith.constant 0 : index
    %36 = vector.load %arg8[%c24_28, %c0_29] : memref<331x128xf32, #tpu.memory_space<vmem>>, vector<288x128xf32>
    %c512 = arith.constant 512 : index
    %c0_30 = arith.constant 0 : index
    %37 = vector.load %arg2[%c512, %c0_30] : memref<1152x128xf32, #tpu.memory_space<vmem>>, vector<128x128xf32>
    %cst_31 = arith.constant dense<0.000000e+00> : vector<288x128xf32>
    %38 = tpu.matmul %36, %37, %cst_31 {dimension_numbers = #tpu.dot_dimension_numbers<[1], [0], [0], [1], [0, 0, 1, 1], [], []>} : vector<288x128xf32>, vector<128x128xf32>, vector<288x128xf32> -> vector<288x128xf32>
    %39 = arith.addf %35, %38 : vector<288x128xf32>
    %c25 = arith.constant 25 : index
    %c0_32 = arith.constant 0 : index
    %40 = vector.load %arg8[%c25, %c0_32] : memref<331x128xf32, #tpu.memory_space<vmem>>, vector<288x128xf32>
    %c640 = arith.constant 640 : index
    %c0_33 = arith.constant 0 : index
    %41 = vector.load %arg2[%c640, %c0_33] : memref<1152x128xf32, #tpu.memory_space<vmem>>, vector<128x128xf32>
    %cst_34 = arith.constant dense<0.000000e+00> : vector<288x128xf32>
    %42 = tpu.matmul %40, %41, %cst_34 {dimension_numbers = #tpu.dot_dimension_numbers<[1], [0], [0], [1], [0, 0, 1, 1], [], []>} : vector<288x128xf32>, vector<128x128xf32>, vector<288x128xf32> -> vector<288x128xf32>
    %43 = arith.addf %39, %42 : vector<288x128xf32>
    %c41 = arith.constant 41 : index
    %c0_35 = arith.constant 0 : index
    %44 = vector.load %arg8[%c41, %c0_35] : memref<331x128xf32, #tpu.memory_space<vmem>>, vector<288x128xf32>
    %c768 = arith.constant 768 : index
    %c0_36 = arith.constant 0 : index
    %45 = vector.load %arg2[%c768, %c0_36] : memref<1152x128xf32, #tpu.memory_space<vmem>>, vector<128x128xf32>
    %cst_37 = arith.constant dense<0.000000e+00> : vector<288x128xf32>
    %46 = tpu.matmul %44, %45, %cst_37 {dimension_numbers = #tpu.dot_dimension_numbers<[1], [0], [0], [1], [0, 0, 1, 1], [], []>} : vector<288x128xf32>, vector<128x128xf32>, vector<288x128xf32> -> vector<288x128xf32>
    %47 = arith.addf %43, %46 : vector<288x128xf32>
    %c42 = arith.constant 42 : index
    %c0_38 = arith.constant 0 : index
    %48 = vector.load %arg8[%c42, %c0_38] : memref<331x128xf32, #tpu.memory_space<vmem>>, vector<288x128xf32>
    %c896 = arith.constant 896 : index
    %c0_39 = arith.constant 0 : index
    %49 = vector.load %arg2[%c896, %c0_39] : memref<1152x128xf32, #tpu.memory_space<vmem>>, vector<128x128xf32>
    %cst_40 = arith.constant dense<0.000000e+00> : vector<288x128xf32>
    %50 = tpu.matmul %48, %49, %cst_40 {dimension_numbers = #tpu.dot_dimension_numbers<[1], [0], [0], [1], [0, 0, 1, 1], [], []>} : vector<288x128xf32>, vector<128x128xf32>, vector<288x128xf32> -> vector<288x128xf32>
    %51 = arith.addf %47, %50 : vector<288x128xf32>
    %c43 = arith.constant 43 : index
    %c0_41 = arith.constant 0 : index
    %52 = vector.load %arg8[%c43, %c0_41] : memref<331x128xf32, #tpu.memory_space<vmem>>, vector<288x128xf32>
    %c1024 = arith.constant 1024 : index
    %c0_42 = arith.constant 0 : index
    %53 = vector.load %arg2[%c1024, %c0_42] : memref<1152x128xf32, #tpu.memory_space<vmem>>, vector<128x128xf32>
    %cst_43 = arith.constant dense<0.000000e+00> : vector<288x128xf32>
    %54 = tpu.matmul %52, %53, %cst_43 {dimension_numbers = #tpu.dot_dimension_numbers<[1], [0], [0], [1], [0, 0, 1, 1], [], []>} : vector<288x128xf32>, vector<128x128xf32>, vector<288x128xf32> -> vector<288x128xf32>
    %55 = arith.addf %51, %54 : vector<288x128xf32>
    %56 = vector.broadcast %0 : vector<288x1xf32> to vector<288x128xf32>
    %57 = arith.mulf %55, %56 : vector<288x128xf32>
    %cst_44 = arith.constant dense<0.000000e+00> : vector<128xf32>
    %58 = vector.multi_reduction <add>, %57, %cst_44 [0] : vector<288x128xf32> to vector<128xf32>
    %59 = vector.shape_cast %58 : vector<128xf32> to vector<1x128xf32>
    %60 = arith.mulf %57, %55 : vector<288x128xf32>
    %cst_45 = arith.constant dense<0.000000e+00> : vector<128xf32>
    %61 = vector.multi_reduction <add>, %60, %cst_45 [0] : vector<288x128xf32> to vector<128xf32>
    %62 = vector.shape_cast %61 : vector<128xf32> to vector<1x128xf32>
    %63 = tpu.concatenate %59, %62 in 0 : vector<1x128xf32>, vector<1x128xf32> -> vector<2x128xf32>
    %c0_46 = arith.constant 0 : index
    %c0_47 = arith.constant 0 : index
    %c0_48 = arith.constant 0 : index
    %64 = vector.load %arg7[%c0_46, %c0_47, %c0_48] : memref<1x2x128xf32, #tpu.memory_space<vmem>>, vector<1x2x128xf32>
    %65 = vector.shape_cast %64 : vector<1x2x128xf32> to vector<2x128xf32>
    %66 = vector.shape_cast %63 : vector<2x128xf32> to vector<1x2x128xf32>
    tpu.vector_store %arg7[%c0_46, %c0_47, %c0_48], %66 {strides = array<i32>} : memref<1x2x128xf32, #tpu.memory_space<vmem>>, vector<1x2x128xf32>,
    %c0_49 = arith.constant 0 : index
    %c0_50 = arith.constant 0 : index
    %c0_51 = arith.constant 0 : index
    %67 = vector.load %arg6[%c0_49, %c0_50, %c0_51] : memref<1x288x128xf32, #tpu.memory_space<vmem>>, vector<1x288x128xf32>
    %68 = vector.shape_cast %67 : vector<1x288x128xf32> to vector<288x128xf32>
    %69 = vector.shape_cast %55 : vector<288x128xf32> to vector<1x288x128xf32>
    tpu.vector_store %arg6[%c0_49, %c0_50, %c0_51], %69 {strides = array<i32>} : memref<1x288x128xf32, #tpu.memory_space<vmem>>, vector<1x288x128xf32>,
    return
  }
  func.func @transform_0(%arg0: i32) -> (i32, i32, i32) {
    %c0_i32 = arith.constant 0 : i32
    %c0_i32_0 = arith.constant 0 : i32
    %c0_i32_1 = arith.constant 0 : i32
    return %arg0, %c0_i32, %c0_i32_0 : i32, i32, i32
  }
  func.func @transform_1(%arg0: i32) -> (i32, i32) {
    %c0_i32 = arith.constant 0 : i32
    %c0_i32_0 = arith.constant 0 : i32
    %c0_i32_1 = arith.constant 0 : i32
    return %c0_i32, %c0_i32_0 : i32, i32
  }
  func.func @transform_2(%arg0: i32) -> (i32, i32) {
    %c0_i32 = arith.constant 0 : i32
    %c0_i32_0 = arith.constant 0 : i32
    %c0_i32_1 = arith.constant 0 : i32
    return %c0_i32, %c0_i32_0 : i32, i32
  }
  func.func @transform_3(%arg0: i32) -> (i32, i32) {
    %c0_i32 = arith.constant 0 : i32
    %c0_i32_0 = arith.constant 0 : i32
    %c0_i32_1 = arith.constant 0 : i32
    return %c0_i32, %c0_i32_0 : i32, i32
  }
  func.func @transform_4(%arg0: i32) -> (i32, i32) {
    %c0_i32 = arith.constant 0 : i32
    %c0_i32_0 = arith.constant 0 : i32
    %c0_i32_1 = arith.constant 0 : i32
    return %c0_i32, %c0_i32_0 : i32, i32
  }
  func.func @transform_5(%arg0: i32) -> (i32, i32, i32) {
    %c0_i32 = arith.constant 0 : i32
    %c0_i32_0 = arith.constant 0 : i32
    %c0_i32_1 = arith.constant 0 : i32
    return %arg0, %c0_i32, %c0_i32_0 : i32, i32, i32
  }
  func.func @transform_6(%arg0: i32) -> (i32, i32, i32) {
    %c0_i32 = arith.constant 0 : i32
    %c0_i32_0 = arith.constant 0 : i32
    %c0_i32_1 = arith.constant 0 : i32
    return %arg0, %c0_i32, %c0_i32_0 : i32, i32, i32
  }
}

module attributes {stable_mosaic.version = 11 : i64} {
  func.func @_finalize_kernel(%arg0: i32, %arg1: memref<1x288x128xf32, #tpu.memory_space<vmem>>, %arg2: memref<1x326x128xf32, #tpu.memory_space<vmem>>, %arg3: memref<1x128xf32, #tpu.memory_space<vmem>>, %arg4: memref<1x128xf32, #tpu.memory_space<vmem>>, %arg5: memref<1x288x128xf32, #tpu.memory_space<vmem>>) attributes {dimension_semantics = [#tpu.dimension_semantics<parallel>], iteration_bounds = array<i64: 2>, scalar_prefetch = 0 : i64, scratch_operands = 0 : i64, tpu.core_type = #tpu.core_type<tc>, window_params = [{transform_indices = @transform_0, window_bounds = array<i64: 1, 288, 128>}, {transform_indices = @transform_1, window_bounds = array<i64: 1, 326, 128>}, {pipeline_mode = #tpu.pipeline_mode<synchronous>, transform_indices = @transform_2, window_bounds = array<i64: 1, 128>}, {pipeline_mode = #tpu.pipeline_mode<synchronous>, transform_indices = @transform_3, window_bounds = array<i64: 1, 128>}, {transform_indices = @transform_4, window_bounds = array<i64: 1, 288, 128>}]} {
    %c0 = arith.constant 0 : index
    %c19 = arith.constant 19 : index
    %c0_0 = arith.constant 0 : index
    %0 = vector.load %arg2[%c0, %c19, %c0_0] : memref<1x326x128xf32, #tpu.memory_space<vmem>>, vector<1x288x128xf32>
    %1 = vector.shape_cast %0 : vector<1x288x128xf32> to vector<288x128xf32>
    %c0_1 = arith.constant 0 : index
    %c0_2 = arith.constant 0 : index
    %c0_3 = arith.constant 0 : index
    %2 = vector.load %arg1[%c0_1, %c0_2, %c0_3] : memref<1x288x128xf32, #tpu.memory_space<vmem>>, vector<1x288x128xf32>
    %3 = vector.shape_cast %2 : vector<1x288x128xf32> to vector<288x128xf32>
    %c0_4 = arith.constant 0 : index
    %c0_5 = arith.constant 0 : index
    %4 = vector.load %arg3[%c0_4, %c0_5] : memref<1x128xf32, #tpu.memory_space<vmem>>, vector<1x128xf32>
    %5 = vector.broadcast %4 : vector<1x128xf32> to vector<288x128xf32>
    %6 = arith.mulf %3, %5 : vector<288x128xf32>
    %c0_6 = arith.constant 0 : index
    %c0_7 = arith.constant 0 : index
    %7 = vector.load %arg4[%c0_6, %c0_7] : memref<1x128xf32, #tpu.memory_space<vmem>>, vector<1x128xf32>
    %8 = vector.broadcast %7 : vector<1x128xf32> to vector<288x128xf32>
    %9 = arith.addf %6, %8 : vector<288x128xf32>
    %10 = arith.addf %9, %1 : vector<288x128xf32>
    %cst = arith.constant 0.000000e+00 : f32
    %11 = vector.broadcast %cst : f32 to vector<288x128xf32>
    %12 = arith.cmpf ogt, %10, %11 : vector<288x128xf32>
    %cst_8 = arith.constant 0.00999999977 : f32
    %13 = vector.broadcast %cst_8 : f32 to vector<288x128xf32>
    %14 = arith.mulf %13, %10 : vector<288x128xf32>
    %15 = arith.select %12, %10, %14 : vector<288x128xi1>, vector<288x128xf32>
    %c0_9 = arith.constant 0 : index
    %c0_10 = arith.constant 0 : index
    %c0_11 = arith.constant 0 : index
    %16 = vector.load %arg5[%c0_9, %c0_10, %c0_11] : memref<1x288x128xf32, #tpu.memory_space<vmem>>, vector<1x288x128xf32>
    %17 = vector.shape_cast %16 : vector<1x288x128xf32> to vector<288x128xf32>
    %18 = vector.shape_cast %15 : vector<288x128xf32> to vector<1x288x128xf32>
    tpu.vector_store %arg5[%c0_9, %c0_10, %c0_11], %18 {strides = array<i32>} : memref<1x288x128xf32, #tpu.memory_space<vmem>>, vector<1x288x128xf32>,
    return
  }
  func.func @transform_0(%arg0: i32) -> (i32, i32, i32) {
    %c0_i32 = arith.constant 0 : i32
    %c0_i32_0 = arith.constant 0 : i32
    %c0_i32_1 = arith.constant 0 : i32
    return %arg0, %c0_i32, %c0_i32_0 : i32, i32, i32
  }
  func.func @transform_1(%arg0: i32) -> (i32, i32, i32) {
    %c0_i32 = arith.constant 0 : i32
    %c0_i32_0 = arith.constant 0 : i32
    %c0_i32_1 = arith.constant 0 : i32
    return %arg0, %c0_i32, %c0_i32_0 : i32, i32, i32
  }
  func.func @transform_2(%arg0: i32) -> (i32, i32) {
    %c0_i32 = arith.constant 0 : i32
    %c0_i32_0 = arith.constant 0 : i32
    %c0_i32_1 = arith.constant 0 : i32
    return %c0_i32, %c0_i32_0 : i32, i32
  }
  func.func @transform_3(%arg0: i32) -> (i32, i32) {
    %c0_i32 = arith.constant 0 : i32
    %c0_i32_0 = arith.constant 0 : i32
    %c0_i32_1 = arith.constant 0 : i32
    return %c0_i32, %c0_i32_0 : i32, i32
  }
  func.func @transform_4(%arg0: i32) -> (i32, i32, i32) {
    %c0_i32 = arith.constant 0 : i32
    %c0_i32_0 = arith.constant 0 : i32
    %c0_i32_1 = arith.constant 0 : i32
    return %arg0, %c0_i32, %c0_i32_0 : i32, i32, i32
  }
}

</mosaic_0001>

<llo_original>
// kernel: residual_block_pallas.5
$region0: #{residual_block_pallas.5}
  #allocation0 [shape = 'u32[]', space=smem, size = 0x4, offset = 0x4, fixed_abs, tag = 'smem constant byte address 0x4 - core index']
  #allocation1 [shape = 'u32[72,128]{1,0:T(1,128)}', space=vmem, size = 0x9000, scoped, tag = 'internal scratch']
  %s0 = inlined_call_operand.vmem [shape: f32[2,288,128], index: 0, kind: input, shape index: {}]
  %s1 = inlined_call_operand.vmem [shape: f32[2,326,128], index: 1, kind: input, shape index: {}]
  %s2 = inlined_call_operand.vmem [shape: f32[1,128], index: 2, kind: input, shape index: {}]
  %s3 = inlined_call_operand.vmem [shape: f32[1,128], index: 3, kind: input, shape index: {}]
  %s4 = inlined_call_operand.vmem [shape: f32[2,288,128], index: 4, kind: output, shape index: {}]
  %s5 = sld [smem:[#allocation0]]
  $region49: #{residual_block_pallas.5} parent=0
    _
  %s7 = ssub.s32 1, %s5
  %s8 = scalar_select 0, %s7, %s5
  loop: start=0, step=1, limit=4
  $region2: #{residual_block_pallas.5} parent=0 // loop_pre_header
    _
  $region3: #{residual_block_pallas.5} parent=0 // loop_header
    %s10 = sphi 0, %s14
    %p11 = scmp.ge.s32.totalorder %s10, 4
    %s20 = sphi 0, %s22
    %s23 = sphi 0, %s20
    %s24 = sphi 0, %s23
    %s40 = sphi 0, %s24
    %s46 = sphi 0, %s48
    %s49 = sphi 0, %s46
    %s50 = sphi 0, %s49
    %s66 = sphi 0, %s50
    %s70 = sphi 0, %s70
    %s72 = sphi 0, %s70
    %s73 = sphi 0, %s72
    %s87 = sphi 0, %s73
    %s91 = sphi 0, %s91
    %s93 = sphi 0, %s91
    %s94 = sphi 0, %s93
    %s108 = sphi 0, %s94
    %s114 = sphi 0, %s116
    %s117 = sphi 0, %s114
    %s118 = sphi 0, %s117
    %s134 = sphi 0, %s118
  $region4: #{residual_block_pallas.5} parent=0 // loop_header_branch
    %13 = sbr.rel (%p11) target = $region8
  $region5: #{residual_block_pallas.5} parent=0 // loop_body
    %s15 = ssub.s32 %s10, 1
    %s16 = ssub.s32 %s10, 2
    %s17 = sadd.s32 %s10, 1
    %s18 = ssub.s32 %s10, %s17
    %p19 = scmp.eq.s32.totalorder %s18, 0
    %s21 = sadd.s32 %s20, 1
    %s22 = scalar_select %p19, %s20, %s21
    %p25 = pneg %p19
    %p26 = scmp.eq.s32.totalorder %s10, 1
    %p27 = por %p25, %p26
    %p28 = scmp.ne.s32.totalorder %s20, %s23
    %p29 = scmp.eq.s32.totalorder %s10, 0
    %p30 = por %p28, %p29
    %p31 = scmp.ne.s32.totalorder %s20, %s23
    %p32 = scmp.eq.s32.totalorder %s15, 1
    %p33 = por %p31, %p32
    %p34 = scmp.ne.s32.totalorder %s23, %s24
    %p35 = scmp.eq.s32.totalorder %s15, 0
    %p36 = por %p34, %p35
    %p37 = scmp.ne.s32.totalorder %s23, %s24
    %p38 = scmp.eq.s32.totalorder %s16, 1
    %p39 = por %p37, %p38
    %p41 = scmp.ne.s32.totalorder %s24, %s40
    %p42 = scmp.eq.s32.totalorder %s16, 0
    %p43 = por %p41, %p42
    %s44 = ssub.s32 %s10, %s17
    %p45 = scmp.eq.s32.totalorder %s44, 0
    %s47 = sadd.s32 %s46, 1
    %s48 = scalar_select %p45, %s46, %s47
    %p51 = pneg %p45
    %p52 = scmp.eq.s32.totalorder %s10, 1
    %p53 = por %p51, %p52
    %p54 = scmp.ne.s32.totalorder %s46, %s49
    %p55 = scmp.eq.s32.totalorder %s10, 0
    %p56 = por %p54, %p55
    %p57 = scmp.ne.s32.totalorder %s46, %s49
    %p58 = scmp.eq.s32.totalorder %s15, 1
    %p59 = por %p57, %p58
    %p60 = scmp.ne.s32.totalorder %s49, %s50
    %p61 = scmp.eq.s32.totalorder %s15, 0
    %p62 = por %p60, %p61
    %p63 = scmp.ne.s32.totalorder %s49, %s50
    %p64 = scmp.eq.s32.totalorder %s16, 1
    %p65 = por %p63, %p64
    %p67 = scmp.ne.s32.totalorder %s50, %s66
    %p68 = scmp.eq.s32.totalorder %s16, 0
    %p69 = por %p67, %p68
    %s71 = sadd.s32 %s70, 1
    %p74 = scmp.eq.s32.totalorder %s10, 1
    %p75 = scmp.ne.s32.totalorder %s70, %s72
    %p76 = scmp.eq.s32.totalorder %s10, 0
    %p77 = por %p75, %p76
    %p78 = scmp.ne.s32.totalorder %s70, %s72
    %p79 = scmp.eq.s32.totalorder %s15, 1
    %p80 = por %p78, %p79
    %p81 = scmp.ne.s32.totalorder %s72, %s73
    %p82 = scmp.eq.s32.totalorder %s15, 0
    %p83 = por %p81, %p82
    %p84 = scmp.ne.s32.totalorder %s72, %s73
    %p85 = scmp.eq.s32.totalorder %s16, 1
    %p86 = por %p84, %p85
    %p88 = scmp.ne.s32.totalorder %s73, %s87
    %p89 = scmp.eq.s32.totalorder %s16, 0
    %p90 = por %p88, %p89
    %s92 = sadd.s32 %s91, 1
    %p95 = scmp.eq.s32.totalorder %s10, 1
    %p96 = scmp.ne.s32.totalorder %s91, %s93
    %p97 = scmp.eq.s32.totalorder %s10, 0
    %p98 = por %p96, %p97
    %p99 = scmp.ne.s32.totalorder %s91, %s93
    %p100 = scmp.eq.s32.totalorder %s15, 1
    %p101 = por %p99, %p100
    %p102 = scmp.ne.s32.totalorder %s93, %s94
    %p103 = scmp.eq.s32.totalorder %s15, 0
    %p104 = por %p102, %p103
    %p105 = scmp.ne.s32.totalorder %s93, %s94
    %p106 = scmp.eq.s32.totalorder %s16, 1
    %p107 = por %p105, %p106
    %p109 = scmp.ne.s32.totalorder %s94, %s108
    %p110 = scmp.eq.s32.totalorder %s16, 0
    %p111 = por %p109, %p110
    %s112 = ssub.s32 %s10, %s17
    %p113 = scmp.eq.s32.totalorder %s112, 0
    %s115 = sadd.s32 %s114, 1
    %s116 = scalar_select %p113, %s114, %s115
    %p119 = pneg %p113
    %p120 = scmp.eq.s32.totalorder %s10, 1
    %p121 = por %p119, %p120
    %p122 = scmp.ne.s32.totalorder %s114, %s117
    %p123 = scmp.eq.s32.totalorder %s10, 0
    %p124 = por %p122, %p123
    %p125 = scmp.ne.s32.totalorder %s114, %s117
    %p126 = scmp.eq.s32.totalorder %s15, 1
    %p127 = por %p125, %p126
    %p128 = scmp.ne.s32.totalorder %s117, %s118
    %p129 = scmp.eq.s32.totalorder %s15, 0
    %p130 = por %p128, %p129
    %p131 = scmp.ne.s32.totalorder %s117, %s118
    %p132 = scmp.eq.s32.totalorder %s16, 1
    %p133 = por %p131, %p132
    %p135 = scmp.ne.s32.totalorder %s118, %s134
    %p136 = scmp.eq.s32.totalorder %s16, 0
    %p137 = por %p135, %p136
    %p138 = scmp.le.s32.totalorder 1, %s10
    %p139 = scmp.lt.s32.totalorder %s10, 3
    %p140 = pnand %p138, %p139
    %p141 = pneg %p140
    // Predicated region
    $region9: #{residual_block_pallas.5} parent=5 // pred_check
      _
    $region10: #{residual_block_pallas.5} parent=5 // pred_check_branch
      %143 = sbr.rel (%p140) target = $region12
    $region11: #{residual_block_pallas.5} parent=5 // pred_region
      %s144 = ssub.s32 %s10, 1
      // Predicated region
      $region13: #{residual_block_pallas.5} parent=11 // pred_check
        %p145 = pneg %p83
      $region14: #{residual_block_pallas.5} parent=11 // pred_check_branch
        %147 = sbr.rel (%p145) target = $region16
      $region15: #{residual_block_pallas.5} parent=11 // pred_region
        _
      $region16: #{residual_block_pallas.5} parent=11 // pred_fallthru
        _
      // Predicated region
      $region17: #{residual_block_pallas.5} parent=11 // pred_check
        %p148 = pneg %p104
      $region18: #{residual_block_pallas.5} parent=11 // pred_check_branch
        %150 = sbr.rel (%p148) target = $region20
      $region19: #{residual_block_pallas.5} parent=11 // pred_region
        _
      $region20: #{residual_block_pallas.5} parent=11 // pred_fallthru
        _
    $region12: #{residual_block_pallas.5} parent=5 // pred_fallthru
      _
    %p151 = scmp.lt.s32.totalorder %s10, 2
    // Predicated region
    $region21: #{residual_block_pallas.5} parent=5 // pred_check
      %p152 = pneg %p151
    $region22: #{residual_block_pallas.5} parent=5 // pred_check_branch
      %154 = sbr.rel (%p152) target = $region24
    $region23: #{residual_block_pallas.5} parent=5 // pred_region
      // Predicated region
      $region25: #{residual_block_pallas.5} parent=23 // pred_check
        %p155 = pneg %p30
      $region26: #{residual_block_pallas.5} parent=23 // pred_check_branch
        %157 = sbr.rel (%p155) target = $region28
      $region27: #{residual_block_pallas.5} parent=23 // pred_region
        %p158 = scmp.lt.s32.totalorder %s10, 1
        %s159 = scalar_select %p158, %s10, 1
        %s160 = smul.addr %s159, 36
        %s161 = smul.addr %s160, 8
        %s162 = scalar_lea.vmem %s0, %s161
      $region28: #{residual_block_pallas.5} parent=23 // pred_fallthru
        _
      // Predicated region
      $region29: #{residual_block_pallas.5} parent=23 // pred_check
        %p163 = pneg %p56
      $region30: #{residual_block_pallas.5} parent=23 // pred_check_branch
        %165 = sbr.rel (%p163) target = $region32
      $region31: #{residual_block_pallas.5} parent=23 // pred_region
        %p166 = scmp.lt.s32.totalorder %s10, 1
        %s167 = scalar_select %p166, %s10, 1
        %s168 = smul.addr %s167, 41
        %s169 = smul.addr %s168, 8
        %s170 = scalar_lea.vmem %s1, %s169
      $region32: #{residual_block_pallas.5} parent=23 // pred_fallthru
        _
    $region24: #{residual_block_pallas.5} parent=5 // pred_fallthru
      _
    %p171 = scmp.le.s32.totalorder 1, %s10
    %p172 = scmp.lt.s32.totalorder %s10, 3
    %p173 = pnand %p171, %p172
    %p174 = pneg %p173
    // Predicated region
    $region33: #{residual_block_pallas.5} parent=5 // pred_check
      _
    $region34: #{residual_block_pallas.5} parent=5 // pred_check_branch
      %176 = sbr.rel (%p173) target = $region36
    $region35: #{residual_block_pallas.5} parent=5 // pred_region
      %s177 = ssub.s32 %s10, 1
      %p178 = scmp.lt.s32.totalorder %s15, 1
      %s179 = scalar_select %p178, %s15, 1
      %s180 = smul.addr %s179, 36
      %s181 = smul.addr %s180, 8
      %s182 = scalar_lea.vmem %s0, %s181
      %p183 = pneg %p36
      %p184 = pneg %p33
      %p185 = scmp.lt.s32.totalorder %s15, 1
      %s186 = scalar_select %p185, %s15, 1
      %s187 = smul.addr %s186, 41
      %s188 = smul.addr %s187, 8
      %s189 = scalar_lea.vmem %s1, %s188
      %p190 = pneg %p62
      %p191 = pneg %p59
      %p192 = pneg %p83
      %p193 = pneg %p80
      %p194 = pneg %p104
      %p195 = pneg %p101
      %p196 = pneg %p130
      %p197 = pneg %p127
      %p198 = scmp.lt.s32.totalorder %s15, 1
      %s199 = scalar_select %p198, %s15, 1
      %s200 = smul.addr %s199, 36
      %s201 = smul.addr %s200, 8
      %s202 = scalar_lea.vmem %s4, %s201
      %p203 = scmp.lt.s32.totalorder %s15, 1
      %s204 = scalar_select %p203, %s15, 1
      %s205 = smul.addr %s204, 36
      %s206 = smul.addr %s205, 8
      %s207 = scalar_lea.vmem %s0, %s206
      %p208 = scmp.lt.s32.totalorder %s15, 1
      %s209 = scalar_select %p208, %s15, 1
      %s210 = smul.addr %s209, 41
      %s211 = smul.addr %s210, 8
      %s212 = scalar_lea.vmem %s1, %s211
      %p213 = scmp.lt.s32.totalorder %s15, 1
      %s214 = scalar_select %p213, %s15, 1
      %s215 = smul.addr %s214, 36
      %s216 = smul.addr %s215, 8
      %s217 = scalar_lea.vmem %s4, %s216
      %v218 = vld [vmem:[%s212 + $0x13] sm:$0xff]
      %v219 = vld [vmem:[%s212 + $0x1b] sm:$0xff]
      %v220 = vld [vmem:[%s212 + $0x23] sm:$0xff]
      %v221 = vld [vmem:[%s212 + $0x2b] sm:$0xff]
      %v222 = vld [vmem:[%s212 + $0x33] sm:$0xff]
      %v223 = vld [vmem:[%s212 + $0x3b] sm:$0xff]
      %v224 = vld [vmem:[%s212 + $0x43] sm:$0xff]
      %v225 = vld [vmem:[%s212 + $0x4b] sm:$0xff]
      %v226 = vld [vmem:[%s212 + $0x53] sm:$0xff]
      %v227 = vld [vmem:[%s212 + $0x5b] sm:$0xff]
      %v228 = vld [vmem:[%s212 + $0x63] sm:$0xff]
      %v229 = vld [vmem:[%s212 + $0x6b] sm:$0xff]
      %v230 = vld [vmem:[%s212 + $0x73] sm:$0xff]
      %v231 = vld [vmem:[%s212 + $0x7b] sm:$0xff]
      %v232 = vld [vmem:[%s212 + $0x83] sm:$0xff]
      %v233 = vld [vmem:[%s212 + $0x8b] sm:$0xff]
      %v234 = vld [vmem:[%s212 + $0x93] sm:$0xff]
      %v235 = vld [vmem:[%s212 + $0x9b] sm:$0xff]
      %v236 = vld [vmem:[%s212 + $0xa3] sm:$0xff]
      %v237 = vld [vmem:[%s212 + $0xab] sm:$0xff]
      %v238 = vld [vmem:[%s212 + $0xb3] sm:$0xff]
      %v239 = vld [vmem:[%s212 + $0xbb] sm:$0xff]
      %v240 = vld [vmem:[%s212 + $0xc3] sm:$0xff]
      %v241 = vld [vmem:[%s212 + $0xcb] sm:$0xff]
      %v242 = vld [vmem:[%s212 + $0xd3] sm:$0xff]
      %v243 = vld [vmem:[%s212 + $0xdb] sm:$0xff]
      %v244 = vld [vmem:[%s212 + $0xe3] sm:$0xff]
      %v245 = vld [vmem:[%s212 + $0xeb] sm:$0xff]
      %v246 = vld [vmem:[%s212 + $0xf3] sm:$0xff]
      %v247 = vld [vmem:[%s212 + $0xfb] sm:$0xff]
      %v248 = vld [vmem:[%s212 + $0x103] sm:$0xff]
      %v249 = vld [vmem:[%s212 + $0x10b] sm:$0xff]
      %v250 = vld [vmem:[%s212 + $0x113] sm:$0xff]
      %v251 = vld [vmem:[%s212 + $0x11b] sm:$0xff]
      %v252 = vld [vmem:[%s212 + $0x123] sm:$0xff]
      %v253 = vld [vmem:[%s212 + $0x12b] sm:$0xff]
      %v254 = vld [vmem:[%s207] sm:$0xff]
      %v255 = vld [vmem:[%s207 + $0x8] sm:$0xff]
      %v256 = vld [vmem:[%s207 + $0x10] sm:$0xff]
      %v257 = vld [vmem:[%s207 + $0x18] sm:$0xff]
      %v258 = vld [vmem:[%s207 + $0x20] sm:$0xff]
      %v259 = vld [vmem:[%s207 + $0x28] sm:$0xff]
      %v260 = vld [vmem:[%s207 + $0x30] sm:$0xff]
      %v261 = vld [vmem:[%s207 + $0x38] sm:$0xff]
      %v262 = vld [vmem:[%s207 + $0x40] sm:$0xff]
      %v263 = vld [vmem:[%s207 + $0x48] sm:$0xff]
      %v264 = vld [vmem:[%s207 + $0x50] sm:$0xff]
      %v265 = vld [vmem:[%s207 + $0x58] sm:$0xff]
      %v266 = vld [vmem:[%s207 + $0x60] sm:$0xff]
      %v267 = vld [vmem:[%s207 + $0x68] sm:$0xff]
      %v268 = vld [vmem:[%s207 + $0x70] sm:$0xff]
      %v269 = vld [vmem:[%s207 + $0x78] sm:$0xff]
      %v270 = vld [vmem:[%s207 + $0x80] sm:$0xff]
      %v271 = vld [vmem:[%s207 + $0x88] sm:$0xff]
      %v272 = vld [vmem:[%s207 + $0x90] sm:$0xff]
      %v273 = vld [vmem:[%s207 + $0x98] sm:$0xff]
      %v274 = vld [vmem:[%s207 + $0xa0] sm:$0xff]
      %v275 = vld [vmem:[%s207 + $0xa8] sm:$0xff]
      %v276 = vld [vmem:[%s207 + $0xb0] sm:$0xff]
      %v277 = vld [vmem:[%s207 + $0xb8] sm:$0xff]
      %v278 = vld [vmem:[%s207 + $0xc0] sm:$0xff]
      %v279 = vld [vmem:[%s207 + $0xc8] sm:$0xff]
      %v280 = vld [vmem:[%s207 + $0xd0] sm:$0xff]
      %v281 = vld [vmem:[%s207 + $0xd8] sm:$0xff]
      %v282 = vld [vmem:[%s207 + $0xe0] sm:$0xff]
      %v283 = vld [vmem:[%s207 + $0xe8] sm:$0xff]
      %v284 = vld [vmem:[%s207 + $0xf0] sm:$0xff]
      %v285 = vld [vmem:[%s207 + $0xf8] sm:$0xff]
      %v286 = vld [vmem:[%s207 + $0x100] sm:$0xff]
      %v287 = vld [vmem:[%s207 + $0x108] sm:$0xff]
      %v288 = vld [vmem:[%s207 + $0x110] sm:$0xff]
      %v289 = vld [vmem:[%s207 + $0x118] sm:$0xff]
      %v290 = vld [vmem:[%s2] sm:$0x1]
      %v292 = vperm.slane %v290, 0
      %v294 = vmul.f32 %v254, %v292
      %v295 = vmul.f32 %v255, %v292
      %v296 = vmul.f32 %v256, %v292
      %v297 = vmul.f32 %v257, %v292
      %v298 = vmul.f32 %v258, %v292
      %v299 = vmul.f32 %v259, %v292
      %v300 = vmul.f32 %v260, %v292
      %v301 = vmul.f32 %v261, %v292
      %v302 = vmul.f32 %v262, %v292
      %v303 = vmul.f32 %v263, %v292
      %v304 = vmul.f32 %v264, %v292
      %v305 = vmul.f32 %v265, %v292
      %v306 = vmul.f32 %v266, %v292
      %v307 = vmul.f32 %v267, %v292
      %v308 = vmul.f32 %v268, %v292
      %v309 = vmul.f32 %v269, %v292
      %v310 = vmul.f32 %v270, %v292
      %v311 = vmul.f32 %v271, %v292
      %v312 = vmul.f32 %v272, %v292
      %v313 = vmul.f32 %v273, %v292
      %v314 = vmul.f32 %v274, %v292
      %v315 = vmul.f32 %v275, %v292
      %v316 = vmul.f32 %v276, %v292
      %v317 = vmul.f32 %v277, %v292
      %v318 = vmul.f32 %v278, %v292
      %v319 = vmul.f32 %v279, %v292
      %v320 = vmul.f32 %v280, %v292
      %v321 = vmul.f32 %v281, %v292
      %v322 = vmul.f32 %v282, %v292
      %v323 = vmul.f32 %v283, %v292
      %v324 = vmul.f32 %v284, %v292
      %v325 = vmul.f32 %v285, %v292
      %v326 = vmul.f32 %v286, %v292
      %v327 = vmul.f32 %v287, %v292
      %v328 = vmul.f32 %v288, %v292
      %v329 = vmul.f32 %v289, %v292
      %v330 = vld [vmem:[%s3] sm:$0x1]
      %v332 = vperm.slane %v330, 0
      %v334 = vadd.f32 %v294, %v332
      %v335 = vadd.f32 %v295, %v332
      %v336 = vadd.f32 %v296, %v332
      %v337 = vadd.f32 %v297, %v332
      %v338 = vadd.f32 %v298, %v332
      %v339 = vadd.f32 %v299, %v332
      %v340 = vadd.f32 %v300, %v332
      %v341 = vadd.f32 %v301, %v332
      %v342 = vadd.f32 %v302, %v332
      %v343 = vadd.f32 %v303, %v332
      %v344 = vadd.f32 %v304, %v332
      %v345 = vadd.f32 %v305, %v332
      %v346 = vadd.f32 %v306, %v332
      %v347 = vadd.f32 %v307, %v332
      %v348 = vadd.f32 %v308, %v332
      %v349 = vadd.f32 %v309, %v332
      %v350 = vadd.f32 %v310, %v332
      %v351 = vadd.f32 %v311, %v332
      %v352 = vadd.f32 %v312, %v332
      %v353 = vadd.f32 %v313, %v332
      %v354 = vadd.f32 %v314, %v332
      %v355 = vadd.f32 %v315, %v332
      %v356 = vadd.f32 %v316, %v332
      %v357 = vadd.f32 %v317, %v332
      %v358 = vadd.f32 %v318, %v332
      %v359 = vadd.f32 %v319, %v332
      %v360 = vadd.f32 %v320, %v332
      %v361 = vadd.f32 %v321, %v332
      %v362 = vadd.f32 %v322, %v332
      %v363 = vadd.f32 %v323, %v332
      %v364 = vadd.f32 %v324, %v332
      %v365 = vadd.f32 %v325, %v332
      %v366 = vadd.f32 %v326, %v332
      %v367 = vadd.f32 %v327, %v332
      %v368 = vadd.f32 %v328, %v332
      %v369 = vadd.f32 %v329, %v332
      %v370 = vadd.f32 %v334, %v218
      %v371 = vadd.f32 %v335, %v219
      %v372 = vadd.f32 %v336, %v220
      %v373 = vadd.f32 %v337, %v221
      %v374 = vadd.f32 %v338, %v222
      %v375 = vadd.f32 %v339, %v223
      %v376 = vadd.f32 %v340, %v224
      %v377 = vadd.f32 %v341, %v225
      %v378 = vadd.f32 %v342, %v226
      %v379 = vadd.f32 %v343, %v227
      %v380 = vadd.f32 %v344, %v228
      %v381 = vadd.f32 %v345, %v229
      %v382 = vadd.f32 %v346, %v230
      %v383 = vadd.f32 %v347, %v231
      %v384 = vadd.f32 %v348, %v232
      %v385 = vadd.f32 %v349, %v233
      %v386 = vadd.f32 %v350, %v234
      %v387 = vadd.f32 %v351, %v235
      %v388 = vadd.f32 %v352, %v236
      %v389 = vadd.f32 %v353, %v237
      %v390 = vadd.f32 %v354, %v238
      %v391 = vadd.f32 %v355, %v239
      %v392 = vadd.f32 %v356, %v240
      %v393 = vadd.f32 %v357, %v241
      %v394 = vadd.f32 %v358, %v242
      %v395 = vadd.f32 %v359, %v243
      %v396 = vadd.f32 %v360, %v244
      %v397 = vadd.f32 %v361, %v245
      %v398 = vadd.f32 %v362, %v246
      %v399 = vadd.f32 %v363, %v247
      %v400 = vadd.f32 %v364, %v248
      %v401 = vadd.f32 %v365, %v249
      %v402 = vadd.f32 %v366, %v250
      %v403 = vadd.f32 %v367, %v251
      %v404 = vadd.f32 %v368, %v252
      %v405 = vadd.f32 %v369, %v253
      %vm406 = vcmp.gt.f32.partialorder %v370, 0.0
      %vm407 = vcmp.gt.f32.partialorder %v371, 0.0
      %vm408 = vcmp.gt.f32.partialorder %v372, 0.0
      %vm409 = vcmp.gt.f32.partialorder %v373, 0.0
      %vm410 = vcmp.gt.f32.partialorder %v374, 0.0
      %vm411 = vcmp.gt.f32.partialorder %v375, 0.0
      %vm412 = vcmp.gt.f32.partialorder %v376, 0.0
      %vm413 = vcmp.gt.f32.partialorder %v377, 0.0
      %vm414 = vcmp.gt.f32.partialorder %v378, 0.0
      %vm415 = vcmp.gt.f32.partialorder %v379, 0.0
      %vm416 = vcmp.gt.f32.partialorder %v380, 0.0
      %vm417 = vcmp.gt.f32.partialorder %v381, 0.0
      %vm418 = vcmp.gt.f32.partialorder %v382, 0.0
      %vm419 = vcmp.gt.f32.partialorder %v383, 0.0
      %vm420 = vcmp.gt.f32.partialorder %v384, 0.0
      %vm421 = vcmp.gt.f32.partialorder %v385, 0.0
      %vm422 = vcmp.gt.f32.partialorder %v386, 0.0
      %vm423 = vcmp.gt.f32.partialorder %v387, 0.0
      %vm424 = vcmp.gt.f32.partialorder %v388, 0.0
      %vm425 = vcmp.gt.f32.partialorder %v389, 0.0
      %vm426 = vcmp.gt.f32.partialorder %v390, 0.0
      %vm427 = vcmp.gt.f32.partialorder %v391, 0.0
      %vm428 = vcmp.gt.f32.partialorder %v392, 0.0
      %vm429 = vcmp.gt.f32.partialorder %v393, 0.0
      %vm430 = vcmp.gt.f32.partialorder %v394, 0.0
      %vm431 = vcmp.gt.f32.partialorder %v395, 0.0
      %vm432 = vcmp.gt.f32.partialorder %v396, 0.0
      %vm433 = vcmp.gt.f32.partialorder %v397, 0.0
      %vm434 = vcmp.gt.f32.partialorder %v398, 0.0
      %vm435 = vcmp.gt.f32.partialorder %v399, 0.0
      %vm436 = vcmp.gt.f32.partialorder %v400, 0.0
      %vm437 = vcmp.gt.f32.partialorder %v401, 0.0
      %vm438 = vcmp.gt.f32.partialorder %v402, 0.0
      %vm439 = vcmp.gt.f32.partialorder %v403, 0.0
      %vm440 = vcmp.gt.f32.partialorder %v404, 0.0
      %vm441 = vcmp.gt.f32.partialorder %v405, 0.0
      %v442 = vmul.f32 %v370, 0.01
      %v443 = vmul.f32 %v371, 0.01
      %v444 = vmul.f32 %v372, 0.01
      %v445 = vmul.f32 %v373, 0.01
      %v446 = vmul.f32 %v374, 0.01
      %v447 = vmul.f32 %v375, 0.01
      %v448 = vmul.f32 %v376, 0.01
      %v449 = vmul.f32 %v377, 0.01
      %v450 = vmul.f32 %v378, 0.01
      %v451 = vmul.f32 %v379, 0.01
      %v452 = vmul.f32 %v380, 0.01
      %v453 = vmul.f32 %v381, 0.01
      %v454 = vmul.f32 %v382, 0.01
      %v455 = vmul.f32 %v383, 0.01
      %v456 = vmul.f32 %v384, 0.01
      %v457 = vmul.f32 %v385, 0.01
      %v458 = vmul.f32 %v386, 0.01
      %v459 = vmul.f32 %v387, 0.01
      %v460 = vmul.f32 %v388, 0.01
      %v461 = vmul.f32 %v389, 0.01
      %v462 = vmul.f32 %v390, 0.01
      %v463 = vmul.f32 %v391, 0.01
      %v464 = vmul.f32 %v392, 0.01
      %v465 = vmul.f32 %v393, 0.01
      %v466 = vmul.f32 %v394, 0.01
      %v467 = vmul.f32 %v395, 0.01
      %v468 = vmul.f32 %v396, 0.01
      %v469 = vmul.f32 %v397, 0.01
      %v470 = vmul.f32 %v398, 0.01
      %v471 = vmul.f32 %v399, 0.01
      %v472 = vmul.f32 %v400, 0.01
      %v473 = vmul.f32 %v401, 0.01
      %v474 = vmul.f32 %v402, 0.01
      %v475 = vmul.f32 %v403, 0.01
      %v476 = vmul.f32 %v404, 0.01
      %v477 = vmul.f32 %v405, 0.01
      %v478 = vsel %vm406, %v370, %v442
      %v479 = vsel %vm407, %v371, %v443
      %v480 = vsel %vm408, %v372, %v444
      %v481 = vsel %vm409, %v373, %v445
      %v482 = vsel %vm410, %v374, %v446
      %v483 = vsel %vm411, %v375, %v447
      %v484 = vsel %vm412, %v376, %v448
      %v485 = vsel %vm413, %v377, %v449
      %v486 = vsel %vm414, %v378, %v450
      %v487 = vsel %vm415, %v379, %v451
      %v488 = vsel %vm416, %v380, %v452
      %v489 = vsel %vm417, %v381, %v453
      %v490 = vsel %vm418, %v382, %v454
      %v491 = vsel %vm419, %v383, %v455
      %v492 = vsel %vm420, %v384, %v456
      %v493 = vsel %vm421, %v385, %v457
      %v494 = vsel %vm422, %v386, %v458
      %v495 = vsel %vm423, %v387, %v459
      %v496 = vsel %vm424, %v388, %v460
      %v497 = vsel %vm425, %v389, %v461
      %v498 = vsel %vm426, %v390, %v462
      %v499 = vsel %vm427, %v391, %v463
      %v500 = vsel %vm428, %v392, %v464
      %v501 = vsel %vm429, %v393, %v465
      %v502 = vsel %vm430, %v394, %v466
      %v503 = vsel %vm431, %v395, %v467
      %v504 = vsel %vm432, %v396, %v468
      %v505 = vsel %vm433, %v397, %v469
      %v506 = vsel %vm434, %v398, %v470
      %v507 = vsel %vm435, %v399, %v471
      %v508 = vsel %vm436, %v400, %v472
      %v509 = vsel %vm437, %v401, %v473
      %v510 = vsel %vm438, %v402, %v474
      %v511 = vsel %vm439, %v403, %v475
      %v512 = vsel %vm440, %v404, %v476
      %v513 = vsel %vm441, %v405, %v477
      %514 = vst [vmem:[%s217] sm:$0xff] %v478
      %515 = vst [vmem:[%s217 + $0x8] sm:$0xff] %v479
      %516 = vst [vmem:[%s217 + $0x10] sm:$0xff] %v480
      %517 = vst [vmem:[%s217 + $0x18] sm:$0xff] %v481
      %518 = vst [vmem:[%s217 + $0x20] sm:$0xff] %v482
      %519 = vst [vmem:[%s217 + $0x28] sm:$0xff] %v483
      %520 = vst [vmem:[%s217 + $0x30] sm:$0xff] %v484
      %521 = vst [vmem:[%s217 + $0x38] sm:$0xff] %v485
      %522 = vst [vmem:[%s217 + $0x40] sm:$0xff] %v486
      %523 = vst [vmem:[%s217 + $0x48] sm:$0xff] %v487
      %524 = vst [vmem:[%s217 + $0x50] sm:$0xff] %v488
      %525 = vst [vmem:[%s217 + $0x58] sm:$0xff] %v489
      %526 = vst [vmem:[%s217 + $0x60] sm:$0xff] %v490
      %527 = vst [vmem:[%s217 + $0x68] sm:$0xff] %v491
      %528 = vst [vmem:[%s217 + $0x70] sm:$0xff] %v492
      %529 = vst [vmem:[%s217 + $0x78] sm:$0xff] %v493
      %530 = vst [vmem:[%s217 + $0x80] sm:$0xff] %v494
      %531 = vst [vmem:[%s217 + $0x88] sm:$0xff] %v495
      %532 = vst [vmem:[%s217 + $0x90] sm:$0xff] %v496
      %533 = vst [vmem:[%s217 + $0x98] sm:$0xff] %v497
      %534 = vst [vmem:[%s217 + $0xa0] sm:$0xff] %v498
      %535 = vst [vmem:[%s217 + $0xa8] sm:$0xff] %v499
      %536 = vst [vmem:[%s217 + $0xb0] sm:$0xff] %v500
      %537 = vst [vmem:[%s217 + $0xb8] sm:$0xff] %v501
      %538 = vst [vmem:[%s217 + $0xc0] sm:$0xff] %v502
      %539 = vst [vmem:[%s217 + $0xc8] sm:$0xff] %v503
      %540 = vst [vmem:[%s217 + $0xd0] sm:$0xff] %v504
      %541 = vst [vmem:[%s217 + $0xd8] sm:$0xff] %v505
      %542 = vst [vmem:[%s217 + $0xe0] sm:$0xff] %v506
      %543 = vst [vmem:[%s217 + $0xe8] sm:$0xff] %v507
      %544 = vst [vmem:[%s217 + $0xf0] sm:$0xff] %v508
      %545 = vst [vmem:[%s217 + $0xf8] sm:$0xff] %v509
      %546 = vst [vmem:[%s217 + $0x100] sm:$0xff] %v510
      %547 = vst [vmem:[%s217 + $0x108] sm:$0xff] %v511
      %548 = vst [vmem:[%s217 + $0x110] sm:$0xff] %v512
      %549 = vst [vmem:[%s217 + $0x118] sm:$0xff] %v513
      %p550 = scmp.lt.s32.totalorder %s15, 1
      %s551 = scalar_select %p550, %s15, 1
      %s552 = smul.addr %s551, 36
      %s553 = smul.addr %s552, 8
      %s554 = scalar_lea.vmem %s4, %s553
      // Predicated region
      $region37: #{residual_block_pallas.5} parent=35 // pred_check
        %p555 = pneg %p127
      $region38: #{residual_block_pallas.5} parent=35 // pred_check_branch
        %557 = sbr.rel (%p555) target = $region40
      $region39: #{residual_block_pallas.5} parent=35 // pred_region
        _
      $region40: #{residual_block_pallas.5} parent=35 // pred_fallthru
        _
    $region36: #{residual_block_pallas.5} parent=5 // pred_fallthru
      _
    %p558 = scmp.le.s32.totalorder 2, %s10
    // Predicated region
    $region41: #{residual_block_pallas.5} parent=5 // pred_check
      %p559 = pneg %p558
    $region42: #{residual_block_pallas.5} parent=5 // pred_check_branch
      %561 = sbr.rel (%p559) target = $region44
    $region43: #{residual_block_pallas.5} parent=5 // pred_region
      %s562 = ssub.s32 %s10, 2
      // Predicated region
      $region45: #{residual_block_pallas.5} parent=43 // pred_check
        %p563 = pneg %p133
      $region46: #{residual_block_pallas.5} parent=43 // pred_check_branch
        %565 = sbr.rel (%p563) target = $region48
      $region47: #{residual_block_pallas.5} parent=43 // pred_region
        %p566 = scmp.lt.s32.totalorder %s16, 1
        %s567 = scalar_select %p566, %s16, 1
        %s568 = smul.addr %s567, 36
        %s569 = smul.addr %s568, 8
        %s570 = scalar_lea.vmem %s4, %s569
      $region48: #{residual_block_pallas.5} parent=43 // pred_fallthru
        _
    $region44: #{residual_block_pallas.5} parent=5 // pred_fallthru
      _
  $region6: #{residual_block_pallas.5} parent=0 // loop_footer
    %s14 = sadd.s32 1, %s10
  $region7: #{residual_block_pallas.5} parent=0 // loop_footer_branch
    %9 = sbr.rel target = $region3
  $region8: #{residual_block_pallas.5} parent=0 // loop_exit
    _

// kernel: residual_block_pallas.3
$region0: #{residual_block_pallas.3}
  #allocation0 [shape = 'u32[]', space=smem, size = 0x4, offset = 0x4, fixed_abs, tag = 'smem constant byte address 0x4 - core index']
  #allocation1 [shape = 'u32[72,128]{1,0:T(1,128)}', space=vmem, size = 0x9000, scoped, tag = 'internal scratch']
  %s0 = inlined_call_operand.vmem [shape: f32[2,326,128], index: 0, kind: input, shape index: {}]
  %s1 = inlined_call_operand.vmem [shape: f32[1152,128], index: 1, kind: input, shape index: {}]
  %s2 = inlined_call_operand.vmem [shape: f32[288,1], index: 2, kind: input, shape index: {}]
  %s3 = inlined_call_operand.vmem [shape: f32[2,288,128], index: 3, kind: output, shape index: {0}]
  %s4 = inlined_call_operand.vmem [shape: f32[2,2,128], index: 4, kind: output, shape index: {1}]
  %5 = xla_tuple %s3, %s4
  %s6 = sld [smem:[#allocation0]]
  $region53: #{residual_block_pallas.3} parent=0
    _
  %s8 = ssub.s32 1, %s6
  %s9 = scalar_select 0, %s8, %s6
  loop: start=0, step=1, limit=4
  $region2: #{residual_block_pallas.3} parent=0 // loop_pre_header
    _
  $region3: #{residual_block_pallas.3} parent=0 // loop_header
    %s11 = sphi 0, %s15
    %p12 = scmp.ge.s32.totalorder %s11, 4
    %s21 = sphi 0, %s23
    %s24 = sphi 0, %s21
    %s25 = sphi 0, %s24
    %s41 = sphi 0, %s25
    %s45 = sphi 0, %s45
    %s47 = sphi 0, %s45
    %s48 = sphi 0, %s47
    %s62 = sphi 0, %s48
    %s66 = sphi 0, %s66
    %s68 = sphi 0, %s66
    %s69 = sphi 0, %s68
    %s83 = sphi 0, %s69
    %s89 = sphi 0, %s91
    %s92 = sphi 0, %s89
    %s93 = sphi 0, %s92
    %s109 = sphi 0, %s93
    %s115 = sphi 0, %s117
    %s118 = sphi 0, %s115
    %s119 = sphi 0, %s118
    %s135 = sphi 0, %s119
  $region4: #{residual_block_pallas.3} parent=0 // loop_header_branch
    %14 = sbr.rel (%p12) target = $region8
  $region5: #{residual_block_pallas.3} parent=0 // loop_body
    %s16 = ssub.s32 %s11, 1
    %s17 = ssub.s32 %s11, 2
    %s18 = sadd.s32 %s11, 1
    %s19 = ssub.s32 %s11, %s18
    %p20 = scmp.eq.s32.totalorder %s19, 0
    %s22 = sadd.s32 %s21, 1
    %s23 = scalar_select %p20, %s21, %s22
    %p26 = pneg %p20
    %p27 = scmp.eq.s32.totalorder %s11, 1
    %p28 = por %p26, %p27
    %p29 = scmp.ne.s32.totalorder %s21, %s24
    %p30 = scmp.eq.s32.totalorder %s11, 0
    %p31 = por %p29, %p30
    %p32 = scmp.ne.s32.totalorder %s21, %s24
    %p33 = scmp.eq.s32.totalorder %s16, 1
    %p34 = por %p32, %p33
    %p35 = scmp.ne.s32.totalorder %s24, %s25
    %p36 = scmp.eq.s32.totalorder %s16, 0
    %p37 = por %p35, %p36
    %p38 = scmp.ne.s32.totalorder %s24, %s25
    %p39 = scmp.eq.s32.totalorder %s17, 1
    %p40 = por %p38, %p39
    %p42 = scmp.ne.s32.totalorder %s25, %s41
    %p43 = scmp.eq.s32.totalorder %s17, 0
    %p44 = por %p42, %p43
    %s46 = sadd.s32 %s45, 1
    %p49 = scmp.eq.s32.totalorder %s11, 1
    %p50 = scmp.ne.s32.totalorder %s45, %s47
    %p51 = scmp.eq.s32.totalorder %s11, 0
    %p52 = por %p50, %p51
    %p53 = scmp.ne.s32.totalorder %s45, %s47
    %p54 = scmp.eq.s32.totalorder %s16, 1
    %p55 = por %p53, %p54
    %p56 = scmp.ne.s32.totalorder %s47, %s48
    %p57 = scmp.eq.s32.totalorder %s16, 0
    %p58 = por %p56, %p57
    %p59 = scmp.ne.s32.totalorder %s47, %s48
    %p60 = scmp.eq.s32.totalorder %s17, 1
    %p61 = por %p59, %p60
    %p63 = scmp.ne.s32.totalorder %s48, %s62
    %p64 = scmp.eq.s32.totalorder %s17, 0
    %p65 = por %p63, %p64
    %s67 = sadd.s32 %s66, 1
    %p70 = scmp.eq.s32.totalorder %s11, 1
    %p71 = scmp.ne.s32.totalorder %s66, %s68
    %p72 = scmp.eq.s32.totalorder %s11, 0
    %p73 = por %p71, %p72
    %p74 = scmp.ne.s32.totalorder %s66, %s68
    %p75 = scmp.eq.s32.totalorder %s16, 1
    %p76 = por %p74, %p75
    %p77 = scmp.ne.s32.totalorder %s68, %s69
    %p78 = scmp.eq.s32.totalorder %s16, 0
    %p79 = por %p77, %p78
    %p80 = scmp.ne.s32.totalorder %s68, %s69
    %p81 = scmp.eq.s32.totalorder %s17, 1
    %p82 = por %p80, %p81
    %p84 = scmp.ne.s32.totalorder %s69, %s83
    %p85 = scmp.eq.s32.totalorder %s17, 0
    %p86 = por %p84, %p85
    %s87 = ssub.s32 %s11, %s18
    %p88 = scmp.eq.s32.totalorder %s87, 0
    %s90 = sadd.s32 %s89, 1
    %s91 = scalar_select %p88, %s89, %s90
    %p94 = pneg %p88
    %p95 = scmp.eq.s32.totalorder %s11, 1
    %p96 = por %p94, %p95
    %p97 = scmp.ne.s32.totalorder %s89, %s92
    %p98 = scmp.eq.s32.totalorder %s11, 0
    %p99 = por %p97, %p98
    %p100 = scmp.ne.s32.totalorder %s89, %s92
    %p101 = scmp.eq.s32.totalorder %s16, 1
    %p102 = por %p100, %p101
    %p103 = scmp.ne.s32.totalorder %s92, %s93
    %p104 = scmp.eq.s32.totalorder %s16, 0
    %p105 = por %p103, %p104
    %p106 = scmp.ne.s32.totalorder %s92, %s93
    %p107 = scmp.eq.s32.totalorder %s17, 1
    %p108 = por %p106, %p107
    %p110 = scmp.ne.s32.totalorder %s93, %s109
    %p111 = scmp.eq.s32.totalorder %s17, 0
    %p112 = por %p110, %p111
    %s113 = ssub.s32 %s11, %s18
    %p114 = scmp.eq.s32.totalorder %s113, 0
    %s116 = sadd.s32 %s115, 1
    %s117 = scalar_select %p114, %s115, %s116
    %p120 = pneg %p114
    %p121 = scmp.eq.s32.totalorder %s11, 1
    %p122 = por %p120, %p121
    %p123 = scmp.ne.s32.totalorder %s115, %s118
    %p124 = scmp.eq.s32.totalorder %s11, 0
    %p125 = por %p123, %p124
    %p126 = scmp.ne.s32.totalorder %s115, %s118
    %p127 = scmp.eq.s32.totalorder %s16, 1
    %p128 = por %p126, %p127
    %p129 = scmp.ne.s32.totalorder %s118, %s119
    %p130 = scmp.eq.s32.totalorder %s16, 0
    %p131 = por %p129, %p130
    %p132 = scmp.ne.s32.totalorder %s118, %s119
    %p133 = scmp.eq.s32.totalorder %s17, 1
    %p134 = por %p132, %p133
    %p136 = scmp.ne.s32.totalorder %s119, %s135
    %p137 = scmp.eq.s32.totalorder %s17, 0
    %p138 = por %p136, %p137
    %p139 = scmp.le.s32.totalorder 1, %s11
    %p140 = scmp.lt.s32.totalorder %s11, 3
    %p141 = pnand %p139, %p140
    %p142 = pneg %p141
    // Predicated region
    $region9: #{residual_block_pallas.3} parent=5 // pred_check
      _
    $region10: #{residual_block_pallas.3} parent=5 // pred_check_branch
      %144 = sbr.rel (%p141) target = $region12
    $region11: #{residual_block_pallas.3} parent=5 // pred_region
      %s145 = ssub.s32 %s11, 1
      // Predicated region
      $region13: #{residual_block_pallas.3} parent=11 // pred_check
        %p146 = pneg %p58
      $region14: #{residual_block_pallas.3} parent=11 // pred_check_branch
        %148 = sbr.rel (%p146) target = $region16
      $region15: #{residual_block_pallas.3} parent=11 // pred_region
        _
      $region16: #{residual_block_pallas.3} parent=11 // pred_fallthru
        _
      // Predicated region
      $region17: #{residual_block_pallas.3} parent=11 // pred_check
        %p149 = pneg %p79
      $region18: #{residual_block_pallas.3} parent=11 // pred_check_branch
        %151 = sbr.rel (%p149) target = $region20
      $region19: #{residual_block_pallas.3} parent=11 // pred_region
        _
      $region20: #{residual_block_pallas.3} parent=11 // pred_fallthru
        _
    $region12: #{residual_block_pallas.3} parent=5 // pred_fallthru
      _
    %p152 = scmp.lt.s32.totalorder %s11, 2
    // Predicated region
    $region21: #{residual_block_pallas.3} parent=5 // pred_check
      %p153 = pneg %p152
    $region22: #{residual_block_pallas.3} parent=5 // pred_check_branch
      %155 = sbr.rel (%p153) target = $region24
    $region23: #{residual_block_pallas.3} parent=5 // pred_region
      // Predicated region
      $region25: #{residual_block_pallas.3} parent=23 // pred_check
        %p156 = pneg %p31
      $region26: #{residual_block_pallas.3} parent=23 // pred_check_branch
        %158 = sbr.rel (%p156) target = $region28
      $region27: #{residual_block_pallas.3} parent=23 // pred_region
        %p159 = scmp.lt.s32.totalorder %s11, 1
        %s160 = scalar_select %p159, %s11, 1
        %s161 = smul.addr %s160, 41
        %s162 = smul.addr %s161, 8
        %s163 = scalar_lea.vmem %s0, %s162
      $region28: #{residual_block_pallas.3} parent=23 // pred_fallthru
        _
    $region24: #{residual_block_pallas.3} parent=5 // pred_fallthru
      _
    %p164 = scmp.le.s32.totalorder 1, %s11
    %p165 = scmp.lt.s32.totalorder %s11, 3
    %p166 = pnand %p164, %p165
    %p167 = pneg %p166
    // Predicated region
    $region29: #{residual_block_pallas.3} parent=5 // pred_check
      _
    $region30: #{residual_block_pallas.3} parent=5 // pred_check_branch
      %169 = sbr.rel (%p166) target = $region32
    $region31: #{residual_block_pallas.3} parent=5 // pred_region
      %s170 = ssub.s32 %s11, 1
      %p171 = scmp.lt.s32.totalorder %s16, 1
      %s172 = scalar_select %p171, %s16, 1
      %s173 = smul.addr %s172, 41
      %s174 = smul.addr %s173, 8
      %s175 = scalar_lea.vmem %s0, %s174
      %p176 = pneg %p37
      %p177 = pneg %p34
      %p178 = pneg %p58
      %p179 = pneg %p55
      %p180 = pneg %p79
      %p181 = pneg %p76
      %p182 = pneg %p105
      %p183 = pneg %p102
      %p184 = scmp.lt.s32.totalorder %s16, 1
      %s185 = scalar_select %p184, %s16, 1
      %s186 = smul.addr %s185, 36
      %s187 = smul.addr %s186, 8
      %s188 = scalar_lea.vmem %s3, %s187
      %p189 = pneg %p131
      %p190 = pneg %p128
      %p191 = scmp.lt.s32.totalorder %s16, 1
      %s192 = scalar_select %p191, %s16, 1
      %s193 = smul.addr %s192, 2
      %s194 = scalar_lea.vmem %s4, %s193
      %p195 = scmp.lt.s32.totalorder %s16, 1
      %s196 = scalar_select %p195, %s16, 1
      %s197 = smul.addr %s196, 41
      %s198 = smul.addr %s197, 8
      %s199 = scalar_lea.vmem %s0, %s198
      %p200 = scmp.lt.s32.totalorder %s16, 1
      %s201 = scalar_select %p200, %s16, 1
      %s202 = smul.addr %s201, 36
      %s203 = smul.addr %s202, 8
      %s204 = scalar_lea.vmem %s3, %s203
      %p205 = scmp.lt.s32.totalorder %s16, 1
      %s206 = scalar_select %p205, %s16, 1
      %s207 = smul.addr %s206, 2
      %s208 = scalar_lea.vmem %s4, %s207
      %v209 = vld [vmem:[%s199] sm:$0xff]
      %v210 = vld [vmem:[%s199 + $0x8] sm:$0xff]
      %v211 = vld [vmem:[%s199 + $0x10] sm:$0xff]
      %v212 = vld [vmem:[%s199 + $0x18] sm:$0xff]
      %v213 = vld [vmem:[%s199 + $0x20] sm:$0xff]
      %v214 = vld [vmem:[%s199 + $0x28] sm:$0xff]
      %v215 = vld [vmem:[%s199 + $0x30] sm:$0xff]
      %v216 = vld [vmem:[%s199 + $0x38] sm:$0xff]
      %v217 = vld [vmem:[%s199 + $0x40] sm:$0xff]
      %v218 = vld [vmem:[%s199 + $0x48] sm:$0xff]
      %v219 = vld [vmem:[%s199 + $0x50] sm:$0xff]
      %v220 = vld [vmem:[%s199 + $0x58] sm:$0xff]
      %v221 = vld [vmem:[%s199 + $0x60] sm:$0xff]
      %v222 = vld [vmem:[%s199 + $0x68] sm:$0xff]
      %v223 = vld [vmem:[%s199 + $0x70] sm:$0xff]
      %v224 = vld [vmem:[%s199 + $0x78] sm:$0xff]
      %v225 = vld [vmem:[%s199 + $0x80] sm:$0xff]
      %v226 = vld [vmem:[%s199 + $0x88] sm:$0xff]
      %v227 = vld [vmem:[%s199 + $0x90] sm:$0xff]
      %v228 = vld [vmem:[%s199 + $0x98] sm:$0xff]
      %v229 = vld [vmem:[%s199 + $0xa0] sm:$0xff]
      %v230 = vld [vmem:[%s199 + $0xa8] sm:$0xff]
      %v231 = vld [vmem:[%s199 + $0xb0] sm:$0xff]
      %v232 = vld [vmem:[%s199 + $0xb8] sm:$0xff]
      %v233 = vld [vmem:[%s199 + $0xc0] sm:$0xff]
      %v234 = vld [vmem:[%s199 + $0xc8] sm:$0xff]
      %v235 = vld [vmem:[%s199 + $0xd0] sm:$0xff]
      %v236 = vld [vmem:[%s199 + $0xd8] sm:$0xff]
      %v237 = vld [vmem:[%s199 + $0xe0] sm:$0xff]
      %v238 = vld [vmem:[%s199 + $0xe8] sm:$0xff]
      %v239 = vld [vmem:[%s199 + $0xf0] sm:$0xff]
      %v240 = vld [vmem:[%s199 + $0xf8] sm:$0xff]
      %v241 = vld [vmem:[%s199 + $0x100] sm:$0xff]
      %v242 = vld [vmem:[%s199 + $0x108] sm:$0xff]
      %v243 = vld [vmem:[%s199 + $0x110] sm:$0xff]
      %v244 = vld [vmem:[%s199 + $0x118] sm:$0xff]
      %v245 = vld [vmem:[%s1] sm:$0xff]
      %v246 = vld [vmem:[%s1 + $0x8] sm:$0xff]
      %v247 = vld [vmem:[%s1 + $0x10] sm:$0xff]
      %v248 = vld [vmem:[%s1 + $0x18] sm:$0xff]
      %v249 = vld [vmem:[%s1 + $0x20] sm:$0xff]
      %v250 = vld [vmem:[%s1 + $0x28] sm:$0xff]
      %v251 = vld [vmem:[%s1 + $0x30] sm:$0xff]
      %v252 = vld [vmem:[%s1 + $0x38] sm:$0xff]
      %v253 = vld [vmem:[%s1 + $0x40] sm:$0xff]
      %v254 = vld [vmem:[%s1 + $0x48] sm:$0xff]
      %v255 = vld [vmem:[%s1 + $0x50] sm:$0xff]
      %v256 = vld [vmem:[%s1 + $0x58] sm:$0xff]
      %v257 = vld [vmem:[%s1 + $0x60] sm:$0xff]
      %v258 = vld [vmem:[%s1 + $0x68] sm:$0xff]
      %v259 = vld [vmem:[%s1 + $0x70] sm:$0xff]
      %v260 = vld [vmem:[%s1 + $0x78] sm:$0xff]
      %v261 = vld [vmem:[%s199 + $0x1] sm:$0xff]
      %v262 = vld [vmem:[%s199 + $0x9] sm:$0xff]
      %v263 = vld [vmem:[%s199 + $0x11] sm:$0xff]
      %v264 = vld [vmem:[%s199 + $0x19] sm:$0xff]
      %v265 = vld [vmem:[%s199 + $0x21] sm:$0xff]
      %v266 = vld [vmem:[%s199 + $0x29] sm:$0xff]
      %v267 = vld [vmem:[%s199 + $0x31] sm:$0xff]
      %v268 = vld [vmem:[%s199 + $0x39] sm:$0xff]
      %v269 = vld [vmem:[%s199 + $0x41] sm:$0xff]
      %v270 = vld [vmem:[%s199 + $0x49] sm:$0xff]
      %v271 = vld [vmem:[%s199 + $0x51] sm:$0xff]
      %v272 = vld [vmem:[%s199 + $0x59] sm:$0xff]
      %v273 = vld [vmem:[%s199 + $0x61] sm:$0xff]
      %v274 = vld [vmem:[%s199 + $0x69] sm:$0xff]
      %v275 = vld [vmem:[%s199 + $0x71] sm:$0xff]
      %v276 = vld [vmem:[%s199 + $0x79] sm:$0xff]
      %v277 = vld [vmem:[%s199 + $0x81] sm:$0xff]
      %v278 = vld [vmem:[%s199 + $0x89] sm:$0xff]
      %v279 = vld [vmem:[%s199 + $0x91] sm:$0xff]
      %v280 = vld [vmem:[%s199 + $0x99] sm:$0xff]
      %v281 = vld [vmem:[%s199 + $0xa1] sm:$0xff]
      %v282 = vld [vmem:[%s199 + $0xa9] sm:$0xff]
      %v283 = vld [vmem:[%s199 + $0xb1] sm:$0xff]
      %v284 = vld [vmem:[%s199 + $0xb9] sm:$0xff]
      %v285 = vld [vmem:[%s199 + $0xc1] sm:$0xff]
      %v286 = vld [vmem:[%s199 + $0xc9] sm:$0xff]
      %v287 = vld [vmem:[%s199 + $0xd1] sm:$0xff]
      %v288 = vld [vmem:[%s199 + $0xd9] sm:$0xff]
      %v289 = vld [vmem:[%s199 + $0xe1] sm:$0xff]
      %v290 = vld [vmem:[%s199 + $0xe9] sm:$0xff]
      %v291 = vld [vmem:[%s199 + $0xf1] sm:$0xff]
      %v292 = vld [vmem:[%s199 + $0xf9] sm:$0xff]
      %v293 = vld [vmem:[%s199 + $0x101] sm:$0xff]
      %v294 = vld [vmem:[%s199 + $0x109] sm:$0xff]
      %v295 = vld [vmem:[%s199 + $0x111] sm:$0xff]
      %v296 = vld [vmem:[%s199 + $0x119] sm:$0xff]
      %v297 = vld [vmem:[%s1 + $0x80] sm:$0xff]
      %v298 = vld [vmem:[%s1 + $0x88] sm:$0xff]
      %v299 = vld [vmem:[%s1 + $0x90] sm:$0xff]
      %v300 = vld [vmem:[%s1 + $0x98] sm:$0xff]
      %v301 = vld [vmem:[%s1 + $0xa0] sm:$0xff]
      %v302 = vld [vmem:[%s1 + $0xa8] sm:$0xff]
      %v303 = vld [vmem:[%s1 + $0xb0] sm:$0xff]
      %v304 = vld [vmem:[%s1 + $0xb8] sm:$0xff]
      %v305 = vld [vmem:[%s1 + $0xc0] sm:$0xff]
      %v306 = vld [vmem:[%s1 + $0xc8] sm:$0xff]
      %v307 = vld [vmem:[%s1 + $0xd0] sm:$0xff]
      %v308 = vld [vmem:[%s1 + $0xd8] sm:$0xff]
      %v309 = vld [vmem:[%s1 + $0xe0] sm:$0xff]
      %v310 = vld [vmem:[%s1 + $0xe8] sm:$0xff]
      %v311 = vld [vmem:[%s1 + $0xf0] sm:$0xff]
      %v312 = vld [vmem:[%s1 + $0xf8] sm:$0xff]
      %313 = vmatpush.msra.mxu0 %v312
      %314 = vmatpush.msra.mxu0 %v311
      %315 = vmatpush.msra.mxu0 %v310
      %316 = vmatpush.msra.mxu0 %v309
      %317 = vmatpush.msra.mxu0 %v308
      %318 = vmatpush.msra.mxu0 %v307
      %319 = vmatpush.msra.mxu0 %v306
      %320 = vmatpush.msra.mxu0 %v305
      %321 = vmatpush.msra.mxu0 %v304
      %322 = vmatpush.msra.mxu0 %v303
      %323 = vmatpush.msra.mxu0 %v302
      %324 = vmatpush.msra.mxu0 %v301
      %325 = vmatpush.msra.mxu0 %v300
      %326 = vmatpush.msra.mxu0 %v299
      %327 = vmatpush.msra.mxu0 %v298
      %328 = vmatpush.msra.mxu0 %v297
      %329 = vmatmul.f32.gmra.mxu0 %v261
      %v330 = vpop.f32.mrf.mxu0
      %v331 = vadd.f32 0.0, %v330
      %332 = vmatmul.f32.gmra.mxu0 %v262
      %v333 = vpop.f32.mrf.mxu0
      %v334 = vadd.f32 0.0, %v333
      %335 = vmatmul.f32.gmra.mxu0 %v263
      %v336 = vpop.f32.mrf.mxu0
      %v337 = vadd.f32 0.0, %v336
      %338 = vmatmul.f32.gmra.mxu0 %v264
      %v339 = vpop.f32.mrf.mxu0
      %v340 = vadd.f32 0.0, %v339
      %341 = vmatmul.f32.gmra.mxu0 %v265
      %v342 = vpop.f32.mrf.mxu0
      %v343 = vadd.f32 0.0, %v342
      %344 = vmatmul.f32.gmra.mxu0 %v266
      %v345 = vpop.f32.mrf.mxu0
      %v346 = vadd.f32 0.0, %v345
      %347 = vmatmul.f32.gmra.mxu0 %v267
      %v348 = vpop.f32.mrf.mxu0
      %v349 = vadd.f32 0.0, %v348
      %350 = vmatmul.f32.gmra.mxu0 %v268
      %v351 = vpop.f32.mrf.mxu0
      %v352 = vadd.f32 0.0, %v351
      %353 = vmatmul.f32.gmra.mxu0 %v269
      %v354 = vpop.f32.mrf.mxu0
      %v355 = vadd.f32 0.0, %v354
      %356 = vmatmul.f32.gmra.mxu0 %v270
      %v357 = vpop.f32.mrf.mxu0
      %v358 = vadd.f32 0.0, %v357
      %359 = vmatmul.f32.gmra.mxu0 %v271
      %v360 = vpop.f32.mrf.mxu0
      %v361 = vadd.f32 0.0, %v360
      %362 = vmatmul.f32.gmra.mxu0 %v272
      %v363 = vpop.f32.mrf.mxu0
      %v364 = vadd.f32 0.0, %v363
      %365 = vmatmul.f32.gmra.mxu0 %v273
      %v366 = vpop.f32.mrf.mxu0
      %v367 = vadd.f32 0.0, %v366
      %368 = vmatmul.f32.gmra.mxu0 %v274
      %v369 = vpop.f32.mrf.mxu0
      %v370 = vadd.f32 0.0, %v369
      %371 = vmatmul.f32.gmra.mxu0 %v275
      %v372 = vpop.f32.mrf.mxu0
      %v373 = vadd.f32 0.0, %v372
      %374 = vmatmul.f32.gmra.mxu0 %v276
      %v375 = vpop.f32.mrf.mxu0
      %v376 = vadd.f32 0.0, %v375
      %377 = vmatmul.f32.gmra.mxu0 %v277
      %v378 = vpop.f32.mrf.mxu0
      %v379 = vadd.f32 0.0, %v378
      %380 = vmatmul.f32.gmra.mxu0 %v278
      %v381 = vpop.f32.mrf.mxu0
      %v382 = vadd.f32 0.0, %v381
      %383 = vmatmul.f32.gmra.mxu0 %v279
      %v384 = vpop.f32.mrf.mxu0
      %v385 = vadd.f32 0.0, %v384
      %386 = vmatmul.f32.gmra.mxu0 %v280
      %v387 = vpop.f32.mrf.mxu0
      %v388 = vadd.f32 0.0, %v387
      %389 = vmatmul.f32.gmra.mxu0 %v281
      %v390 = vpop.f32.mrf.mxu0
      %v391 = vadd.f32 0.0, %v390
      %392 = vmatmul.f32.gmra.mxu0 %v282
      %v393 = vpop.f32.mrf.mxu0
      %v394 = vadd.f32 0.0, %v393
      %395 = vmatmul.f32.gmra.mxu0 %v283
      %v396 = vpop.f32.mrf.mxu0
      %v397 = vadd.f32 0.0, %v396
      %398 = vmatmul.f32.gmra.mxu0 %v284
      %v399 = vpop.f32.mrf.mxu0
      %v400 = vadd.f32 0.0, %v399
      %401 = vmatmul.f32.gmra.mxu0 %v285
      %v402 = vpop.f32.mrf.mxu0
      %v403 = vadd.f32 0.0, %v402
      %404 = vmatmul.f32.gmra.mxu0 %v286
      %v405 = vpop.f32.mrf.mxu0
      %v406 = vadd.f32 0.0, %v405
      %407 = vmatmul.f32.gmra.mxu0 %v287
      %v408 = vpop.f32.mrf.mxu0
      %v409 = vadd.f32 0.0, %v408
      %410 = vmatmul.f32.gmra.mxu0 %v288
      %v411 = vpop.f32.mrf.mxu0
      %v412 = vadd.f32 0.0, %v411
      %413 = vmatmul.f32.gmra.mxu0 %v289
      %v414 = vpop.f32.mrf.mxu0
      %v415 = vadd.f32 0.0, %v414
      %416 = vmatmul.f32.gmra.mxu0 %v290
      %v417 = vpop.f32.mrf.mxu0
      %v418 = vadd.f32 0.0, %v417
      %419 = vmatmul.f32.gmra.mxu0 %v291
      %v420 = vpop.f32.mrf.mxu0
      %v421 = vadd.f32 0.0, %v420
      %422 = vmatmul.f32.gmra.mxu0 %v292
      %v423 = vpop.f32.mrf.mxu0
      %v424 = vadd.f32 0.0, %v423
      %425 = vmatmul.f32.gmra.mxu0 %v293
      %v426 = vpop.f32.mrf.mxu0
      %v427 = vadd.f32 0.0, %v426
      %428 = vmatmul.f32.gmra.mxu0 %v294
      %v429 = vpop.f32.mrf.mxu0
      %v430 = vadd.f32 0.0, %v429
      %431 = vmatmul.f32.gmra.mxu0 %v295
      %v432 = vpop.f32.mrf.mxu0
      %v433 = vadd.f32 0.0, %v432
      %434 = vmatmul.f32.gmra.mxu0 %v296
      %v435 = vpop.f32.mrf.mxu0
      %v436 = vadd.f32 0.0, %v435
      %437 = vdwg.mxu0
      %438 = vmatpush.msra.mxu0 %v260
      %439 = vmatpush.msra.mxu0 %v259
      %440 = vmatpush.msra.mxu0 %v258
      %441 = vmatpush.msra.mxu0 %v257
      %442 = vmatpush.msra.mxu0 %v256
      %443 = vmatpush.msra.mxu0 %v255
      %444 = vmatpush.msra.mxu0 %v254
      %445 = vmatpush.msra.mxu0 %v253
      %446 = vmatpush.msra.mxu0 %v252
      %447 = vmatpush.msra.mxu0 %v251
      %448 = vmatpush.msra.mxu0 %v250
      %449 = vmatpush.msra.mxu0 %v249
      %450 = vmatpush.msra.mxu0 %v248
      %451 = vmatpush.msra.mxu0 %v247
      %452 = vmatpush.msra.mxu0 %v246
      %453 = vmatpush.msra.mxu0 %v245
      %454 = vmatmul.f32.gmra.mxu0 %v209
      %v455 = vpop.f32.mrf.mxu0
      %v456 = vadd.f32 %v331, %v455
      %457 = vmatmul.f32.gmra.mxu0 %v210
      %v458 = vpop.f32.mrf.mxu0
      %v459 = vadd.f32 %v334, %v458
      %460 = vmatmul.f32.gmra.mxu0 %v211
      %v461 = vpop.f32.mrf.mxu0
      %v462 = vadd.f32 %v337, %v461
      %463 = vmatmul.f32.gmra.mxu0 %v212
      %v464 = vpop.f32.mrf.mxu0
      %v465 = vadd.f32 %v340, %v464
      %466 = vmatmul.f32.gmra.mxu0 %v213
      %v467 = vpop.f32.mrf.mxu0
      %v468 = vadd.f32 %v343, %v467
      %469 = vmatmul.f32.gmra.mxu0 %v214
      %v470 = vpop.f32.mrf.mxu0
      %v471 = vadd.f32 %v346, %v470
      %472 = vmatmul.f32.gmra.mxu0 %v215
      %v473 = vpop.f32.mrf.mxu0
      %v474 = vadd.f32 %v349, %v473
      %475 = vmatmul.f32.gmra.mxu0 %v216
      %v476 = vpop.f32.mrf.mxu0
      %v477 = vadd.f32 %v352, %v476
      %478 = vmatmul.f32.gmra.mxu0 %v217
      %v479 = vpop.f32.mrf.mxu0
      %v480 = vadd.f32 %v355, %v479
      %481 = vmatmul.f32.gmra.mxu0 %v218
      %v482 = vpop.f32.mrf.mxu0
      %v483 = vadd.f32 %v358, %v482
      %484 = vmatmul.f32.gmra.mxu0 %v219
      %v485 = vpop.f32.mrf.mxu0
      %v486 = vadd.f32 %v361, %v485
      %487 = vmatmul.f32.gmra.mxu0 %v220
      %v488 = vpop.f32.mrf.mxu0
      %v489 = vadd.f32 %v364, %v488
      %490 = vmatmul.f32.gmra.mxu0 %v221
      %v491 = vpop.f32.mrf.mxu0
      %v492 = vadd.f32 %v367, %v491
      %493 = vmatmul.f32.gmra.mxu0 %v222
      %v494 = vpop.f32.mrf.mxu0
      %v495 = vadd.f32 %v370, %v494
      %496 = vmatmul.f32.gmra.mxu0 %v223
      %v497 = vpop.f32.mrf.mxu0
      %v498 = vadd.f32 %v373, %v497
      %499 = vmatmul.f32.gmra.mxu0 %v224
      %v500 = vpop.f32.mrf.mxu0
      %v501 = vadd.f32 %v376, %v500
      %502 = vmatmul.f32.gmra.mxu0 %v225
      %v503 = vpop.f32.mrf.mxu0
      %v504 = vadd.f32 %v379, %v503
      %505 = vmatmul.f32.gmra.mxu0 %v226
      %v506 = vpop.f32.mrf.mxu0
      %v507 = vadd.f32 %v382, %v506
      %508 = vmatmul.f32.gmra.mxu0 %v227
      %v509 = vpop.f32.mrf.mxu0
      %v510 = vadd.f32 %v385, %v509
      %511 = vmatmul.f32.gmra.mxu0 %v228
      %v512 = vpop.f32.mrf.mxu0
      %v513 = vadd.f32 %v388, %v512
      %514 = vmatmul.f32.gmra.mxu0 %v229
      %v515 = vpop.f32.mrf.mxu0
      %v516 = vadd.f32 %v391, %v515
      %517 = vmatmul.f32.gmra.mxu0 %v230
      %v518 = vpop.f32.mrf.mxu0
      %v519 = vadd.f32 %v394, %v518
      %520 = vmatmul.f32.gmra.mxu0 %v231
      %v521 = vpop.f32.mrf.mxu0
      %v522 = vadd.f32 %v397, %v521
      %523 = vmatmul.f32.gmra.mxu0 %v232
      %v524 = vpop.f32.mrf.mxu0
      %v525 = vadd.f32 %v400, %v524
      %526 = vmatmul.f32.gmra.mxu0 %v233
      %v527 = vpop.f32.mrf.mxu0
      %v528 = vadd.f32 %v403, %v527
      %529 = vmatmul.f32.gmra.mxu0 %v234
      %v530 = vpop.f32.mrf.mxu0
      %v531 = vadd.f32 %v406, %v530
      %532 = vmatmul.f32.gmra.mxu0 %v235
      %v533 = vpop.f32.mrf.mxu0
      %v534 = vadd.f32 %v409, %v533
      %535 = vmatmul.f32.gmra.mxu0 %v236
      %v536 = vpop.f32.mrf.mxu0
      %v537 = vadd.f32 %v412, %v536
      %538 = vmatmul.f32.gmra.mxu0 %v237
      %v539 = vpop.f32.mrf.mxu0
      %v540 = vadd.f32 %v415, %v539
      %541 = vmatmul.f32.gmra.mxu0 %v238
      %v542 = vpop.f32.mrf.mxu0
      %v543 = vadd.f32 %v418, %v542
      %544 = vmatmul.f32.gmra.mxu0 %v239
      %v545 = vpop.f32.mrf.mxu0
      %v546 = vadd.f32 %v421, %v545
      %547 = vmatmul.f32.gmra.mxu0 %v240
      %v548 = vpop.f32.mrf.mxu0
      %v549 = vadd.f32 %v424, %v548
      %550 = vmatmul.f32.gmra.mxu0 %v241
      %v551 = vpop.f32.mrf.mxu0
      %v552 = vadd.f32 %v427, %v551
      %553 = vmatmul.f32.gmra.mxu0 %v242
      %v554 = vpop.f32.mrf.mxu0
      %v555 = vadd.f32 %v430, %v554
      %556 = vmatmul.f32.gmra.mxu0 %v243
      %v557 = vpop.f32.mrf.mxu0
      %v558 = vadd.f32 %v433, %v557
      %559 = vmatmul.f32.gmra.mxu0 %v244
      %v560 = vpop.f32.mrf.mxu0
      %v561 = vadd.f32 %v436, %v560
      %562 = vdwg.mxu0
      %v563 = vld [vmem:[%s199 + $0x2] sm:$0xff]
      %v564 = vld [vmem:[%s199 + $0xa] sm:$0xff]
      %v565 = vld [vmem:[%s199 + $0x12] sm:$0xff]
      %v566 = vld [vmem:[%s199 + $0x1a] sm:$0xff]
      %v567 = vld [vmem:[%s199 + $0x22] sm:$0xff]
      %v568 = vld [vmem:[%s199 + $0x2a] sm:$0xff]
      %v569 = vld [vmem:[%s199 + $0x32] sm:$0xff]
      %v570 = vld [vmem:[%s199 + $0x3a] sm:$0xff]
      %v571 = vld [vmem:[%s199 + $0x42] sm:$0xff]
      %v572 = vld [vmem:[%s199 + $0x4a] sm:$0xff]
      %v573 = vld [vmem:[%s199 + $0x52] sm:$0xff]
      %v574 = vld [vmem:[%s199 + $0x5a] sm:$0xff]
      %v575 = vld [vmem:[%s199 + $0x62] sm:$0xff]
      %v576 = vld [vmem:[%s199 + $0x6a] sm:$0xff]
      %v577 = vld [vmem:[%s199 + $0x72] sm:$0xff]
      %v578 = vld [vmem:[%s199 + $0x7a] sm:$0xff]
      %v579 = vld [vmem:[%s199 + $0x82] sm:$0xff]
      %v580 = vld [vmem:[%s199 + $0x8a] sm:$0xff]
      %v581 = vld [vmem:[%s199 + $0x92] sm:$0xff]
      %v582 = vld [vmem:[%s199 + $0x9a] sm:$0xff]
      %v583 = vld [vmem:[%s199 + $0xa2] sm:$0xff]
      %v584 = vld [vmem:[%s199 + $0xaa] sm:$0xff]
      %v585 = vld [vmem:[%s199 + $0xb2] sm:$0xff]
      %v586 = vld [vmem:[%s199 + $0xba] sm:$0xff]
      %v587 = vld [vmem:[%s199 + $0xc2] sm:$0xff]
      %v588 = vld [vmem:[%s199 + $0xca] sm:$0xff]
      %v589 = vld [vmem:[%s199 + $0xd2] sm:$0xff]
      %v590 = vld [vmem:[%s199 + $0xda] sm:$0xff]
      %v591 = vld [vmem:[%s199 + $0xe2] sm:$0xff]
      %v592 = vld [vmem:[%s199 + $0xea] sm:$0xff]
      %v593 = vld [vmem:[%s199 + $0xf2] sm:$0xff]
      %v594 = vld [vmem:[%s199 + $0xfa] sm:$0xff]
      %v595 = vld [vmem:[%s199 + $0x102] sm:$0xff]
      %v596 = vld [vmem:[%s199 + $0x10a] sm:$0xff]
      %v597 = vld [vmem:[%s199 + $0x112] sm:$0xff]
      %v598 = vld [vmem:[%s199 + $0x11a] sm:$0xff]
      %v599 = vld [vmem:[%s1 + $0x100] sm:$0xff]
      %v600 = vld [vmem:[%s1 + $0x108] sm:$0xff]
      %v601 = vld [vmem:[%s1 + $0x110] sm:$0xff]
      %v602 = vld [vmem:[%s1 + $0x118] sm:$0xff]
      %v603 = vld [vmem:[%s1 + $0x120] sm:$0xff]
      %v604 = vld [vmem:[%s1 + $0x128] sm:$0xff]
      %v605 = vld [vmem:[%s1 + $0x130] sm:$0xff]
      %v606 = vld [vmem:[%s1 + $0x138] sm:$0xff]
      %v607 = vld [vmem:[%s1 + $0x140] sm:$0xff]
      %v608 = vld [vmem:[%s1 + $0x148] sm:$0xff]
      %v609 = vld [vmem:[%s1 + $0x150] sm:$0xff]
      %v610 = vld [vmem:[%s1 + $0x158] sm:$0xff]
      %v611 = vld [vmem:[%s1 + $0x160] sm:$0xff]
      %v612 = vld [vmem:[%s1 + $0x168] sm:$0xff]
      %v613 = vld [vmem:[%s1 + $0x170] sm:$0xff]
      %v614 = vld [vmem:[%s1 + $0x178] sm:$0xff]
      %615 = vmatpush.msra.mxu0 %v614
      %616 = vmatpush.msra.mxu0 %v613
      %617 = vmatpush.msra.mxu0 %v612
      %618 = vmatpush.msra.mxu0 %v611
      %619 = vmatpush.msra.mxu0 %v610
      %620 = vmatpush.msra.mxu0 %v609
      %621 = vmatpush.msra.mxu0 %v608
      %622 = vmatpush.msra.mxu0 %v607
      %623 = vmatpush.msra.mxu0 %v606
      %624 = vmatpush.msra.mxu0 %v605
      %625 = vmatpush.msra.mxu0 %v604
      %626 = vmatpush.msra.mxu0 %v603
      %627 = vmatpush.msra.mxu0 %v602
      %628 = vmatpush.msra.mxu0 %v601
      %629 = vmatpush.msra.mxu0 %v600
      %630 = vmatpush.msra.mxu0 %v599
      %631 = vmatmul.f32.gmra.mxu0 %v563
      %v632 = vpop.f32.mrf.mxu0
      %v633 = vadd.f32 0.0, %v632
      %634 = vmatmul.f32.gmra.mxu0 %v564
      %v635 = vpop.f32.mrf.mxu0
      %v636 = vadd.f32 0.0, %v635
      %637 = vmatmul.f32.gmra.mxu0 %v565
      %v638 = vpop.f32.mrf.mxu0
      %v639 = vadd.f32 0.0, %v638
      %640 = vmatmul.f32.gmra.mxu0 %v566
      %v641 = vpop.f32.mrf.mxu0
      %v642 = vadd.f32 0.0, %v641
      %643 = vmatmul.f32.gmra.mxu0 %v567
      %v644 = vpop.f32.mrf.mxu0
      %v645 = vadd.f32 0.0, %v644
      %646 = vmatmul.f32.gmra.mxu0 %v568
      %v647 = vpop.f32.mrf.mxu0
      %v648 = vadd.f32 0.0, %v647
      %649 = vmatmul.f32.gmra.mxu0 %v569
      %v650 = vpop.f32.mrf.mxu0
      %v651 = vadd.f32 0.0, %v650
      %652 = vmatmul.f32.gmra.mxu0 %v570
      %v653 = vpop.f32.mrf.mxu0
      %v654 = vadd.f32 0.0, %v653
      %655 = vmatmul.f32.gmra.mxu0 %v571
      %v656 = vpop.f32.mrf.mxu0
      %v657 = vadd.f32 0.0, %v656
      %658 = vmatmul.f32.gmra.mxu0 %v572
      %v659 = vpop.f32.mrf.mxu0
      %v660 = vadd.f32 0.0, %v659
      %661 = vmatmul.f32.gmra.mxu0 %v573
      %v662 = vpop.f32.mrf.mxu0
      %v663 = vadd.f32 0.0, %v662
      %664 = vmatmul.f32.gmra.mxu0 %v574
      %v665 = vpop.f32.mrf.mxu0
      %v666 = vadd.f32 0.0, %v665
      %667 = vmatmul.f32.gmra.mxu0 %v575
      %v668 = vpop.f32.mrf.mxu0
      %v669 = vadd.f32 0.0, %v668
      %670 = vmatmul.f32.gmra.mxu0 %v576
      %v671 = vpop.f32.mrf.mxu0
      %v672 = vadd.f32 0.0, %v671
      %673 = vmatmul.f32.gmra.mxu0 %v577
      %v674 = vpop.f32.mrf.mxu0
      %v675 = vadd.f32 0.0, %v674
      %676 = vmatmul.f32.gmra.mxu0 %v578
      %v677 = vpop.f32.mrf.mxu0
      %v678 = vadd.f32 0.0, %v677
      %679 = vmatmul.f32.gmra.mxu0 %v579
      %v680 = vpop.f32.mrf.mxu0
      %v681 = vadd.f32 0.0, %v680
      %682 = vmatmul.f32.gmra.mxu0 %v580
      %v683 = vpop.f32.mrf.mxu0
      %v684 = vadd.f32 0.0, %v683
      %685 = vmatmul.f32.gmra.mxu0 %v581
      %v686 = vpop.f32.mrf.mxu0
      %v687 = vadd.f32 0.0, %v686
      %688 = vmatmul.f32.gmra.mxu0 %v582
      %v689 = vpop.f32.mrf.mxu0
      %v690 = vadd.f32 0.0, %v689
      %691 = vmatmul.f32.gmra.mxu0 %v583
      %v692 = vpop.f32.mrf.mxu0
      %v693 = vadd.f32 0.0, %v692
      %694 = vmatmul.f32.gmra.mxu0 %v584
      %v695 = vpop.f32.mrf.mxu0
      %v696 = vadd.f32 0.0, %v695
      %697 = vmatmul.f32.gmra.mxu0 %v585
      %v698 = vpop.f32.mrf.mxu0
      %v699 = vadd.f32 0.0, %v698
      %700 = vmatmul.f32.gmra.mxu0 %v586
      %v701 = vpop.f32.mrf.mxu0
      %v702 = vadd.f32 0.0, %v701
      %703 = vmatmul.f32.gmra.mxu0 %v587
      %v704 = vpop.f32.mrf.mxu0
      %v705 = vadd.f32 0.0, %v704
      %706 = vmatmul.f32.gmra.mxu0 %v588
      %v707 = vpop.f32.mrf.mxu0
      %v708 = vadd.f32 0.0, %v707
      %709 = vmatmul.f32.gmra.mxu0 %v589
      %v710 = vpop.f32.mrf.mxu0
      %v711 = vadd.f32 0.0, %v710
      %712 = vmatmul.f32.gmra.mxu0 %v590
      %v713 = vpop.f32.mrf.mxu0
      %v714 = vadd.f32 0.0, %v713
      %715 = vmatmul.f32.gmra.mxu0 %v591
      %v716 = vpop.f32.mrf.mxu0
      %v717 = vadd.f32 0.0, %v716
      %718 = vmatmul.f32.gmra.mxu0 %v592
      %v719 = vpop.f32.mrf.mxu0
      %v720 = vadd.f32 0.0, %v719
      %721 = vmatmul.f32.gmra.mxu0 %v593
      %v722 = vpop.f32.mrf.mxu0
      %v723 = vadd.f32 0.0, %v722
      %724 = vmatmul.f32.gmra.mxu0 %v594
      %v725 = vpop.f32.mrf.mxu0
      %v726 = vadd.f32 0.0, %v725
      %727 = vmatmul.f32.gmra.mxu0 %v595
      %v728 = vpop.f32.mrf.mxu0
      %v729 = vadd.f32 0.0, %v728
      %730 = vmatmul.f32.gmra.mxu0 %v596
      %v731 = vpop.f32.mrf.mxu0
      %v732 = vadd.f32 0.0, %v731
      %733 = vmatmul.f32.gmra.mxu0 %v597
      %v734 = vpop.f32.mrf.mxu0
      %v735 = vadd.f32 0.0, %v734
      %736 = vmatmul.f32.gmra.mxu0 %v598
      %v737 = vpop.f32.mrf.mxu0
      %v738 = vadd.f32 0.0, %v737
      %739 = vdwg.mxu0
      %v740 = vadd.f32 %v456, %v633
      %v741 = vadd.f32 %v459, %v636
      %v742 = vadd.f32 %v462, %v639
      %v743 = vadd.f32 %v465, %v642
      %v744 = vadd.f32 %v468, %v645
      %v745 = vadd.f32 %v471, %v648
      %v746 = vadd.f32 %v474, %v651
      %v747 = vadd.f32 %v477, %v654
      %v748 = vadd.f32 %v480, %v657
      %v749 = vadd.f32 %v483, %v660
      %v750 = vadd.f32 %v486, %v663
      %v751 = vadd.f32 %v489, %v666
      %v752 = vadd.f32 %v492, %v669
      %v753 = vadd.f32 %v495, %v672
      %v754 = vadd.f32 %v498, %v675
      %v755 = vadd.f32 %v501, %v678
      %v756 = vadd.f32 %v504, %v681
      %v757 = vadd.f32 %v507, %v684
      %v758 = vadd.f32 %v510, %v687
      %v759 = vadd.f32 %v513, %v690
      %v760 = vadd.f32 %v516, %v693
      %v761 = vadd.f32 %v519, %v696
      %v762 = vadd.f32 %v522, %v699
      %v763 = vadd.f32 %v525, %v702
      %v764 = vadd.f32 %v528, %v705
      %v765 = vadd.f32 %v531, %v708
      %v766 = vadd.f32 %v534, %v711
      %v767 = vadd.f32 %v537, %v714
      %v768 = vadd.f32 %v540, %v717
      %v769 = vadd.f32 %v543, %v720
      %v770 = vadd.f32 %v546, %v723
      %v771 = vadd.f32 %v549, %v726
      %v772 = vadd.f32 %v552, %v729
      %v773 = vadd.f32 %v555, %v732
      %v774 = vadd.f32 %v558, %v735
      %v775 = vadd.f32 %v561, %v738
      %v776 = vld [vmem:[%s199 + $0x12] sm:$0xff]
      %v777 = vld [vmem:[%s199 + $0x1a] sm:$0xff]
      %v778 = vld [vmem:[%s199 + $0x22] sm:$0xff]
      %v779 = vld [vmem:[%s199 + $0x2a] sm:$0xff]
      %v780 = vld [vmem:[%s199 + $0x32] sm:$0xff]
      %v781 = vld [vmem:[%s199 + $0x3a] sm:$0xff]
      %v782 = vld [vmem:[%s199 + $0x42] sm:$0xff]
      %v783 = vld [vmem:[%s199 + $0x4a] sm:$0xff]
      %v784 = vld [vmem:[%s199 + $0x52] sm:$0xff]
      %v785 = vld [vmem:[%s199 + $0x5a] sm:$0xff]
      %v786 = vld [vmem:[%s199 + $0x62] sm:$0xff]
      %v787 = vld [vmem:[%s199 + $0x6a] sm:$0xff]
      %v788 = vld [vmem:[%s199 + $0x72] sm:$0xff]
      %v789 = vld [vmem:[%s199 + $0x7a] sm:$0xff]
      %v790 = vld [vmem:[%s199 + $0x82] sm:$0xff]
      %v791 = vld [vmem:[%s199 + $0x8a] sm:$0xff]
      %v792 = vld [vmem:[%s199 + $0x92] sm:$0xff]
      %v793 = vld [vmem:[%s199 + $0x9a] sm:$0xff]
      %v794 = vld [vmem:[%s199 + $0xa2] sm:$0xff]
      %v795 = vld [vmem:[%s199 + $0xaa] sm:$0xff]
      %v796 = vld [vmem:[%s199 + $0xb2] sm:$0xff]
      %v797 = vld [vmem:[%s199 + $0xba] sm:$0xff]
      %v798 = vld [vmem:[%s199 + $0xc2] sm:$0xff]
      %v799 = vld [vmem:[%s199 + $0xca] sm:$0xff]
      %v800 = vld [vmem:[%s199 + $0xd2] sm:$0xff]
      %v801 = vld [vmem:[%s199 + $0xda] sm:$0xff]
      %v802 = vld [vmem:[%s199 + $0xe2] sm:$0xff]
      %v803 = vld [vmem:[%s199 + $0xea] sm:$0xff]
      %v804 = vld [vmem:[%s199 + $0xf2] sm:$0xff]
      %v805 = vld [vmem:[%s199 + $0xfa] sm:$0xff]
      %v806 = vld [vmem:[%s199 + $0x102] sm:$0xff]
      %v807 = vld [vmem:[%s199 + $0x10a] sm:$0xff]
      %v808 = vld [vmem:[%s199 + $0x112] sm:$0xff]
      %v809 = vld [vmem:[%s199 + $0x11a] sm:$0xff]
      %v810 = vld [vmem:[%s199 + $0x122] sm:$0xff]
      %v811 = vld [vmem:[%s199 + $0x12a] sm:$0xff]
      %v812 = vld [vmem:[%s1 + $0x180] sm:$0xff]
      %v813 = vld [vmem:[%s1 + $0x188] sm:$0xff]
      %v814 = vld [vmem:[%s1 + $0x190] sm:$0xff]
      %v815 = vld [vmem:[%s1 + $0x198] sm:$0xff]
      %v816 = vld [vmem:[%s1 + $0x1a0] sm:$0xff]
      %v817 = vld [vmem:[%s1 + $0x1a8] sm:$0xff]
      %v818 = vld [vmem:[%s1 + $0x1b0] sm:$0xff]
      %v819 = vld [vmem:[%s1 + $0x1b8] sm:$0xff]
      %v820 = vld [vmem:[%s1 + $0x1c0] sm:$0xff]
      %v821 = vld [vmem:[%s1 + $0x1c8] sm:$0xff]
      %v822 = vld [vmem:[%s1 + $0x1d0] sm:$0xff]
      %v823 = vld [vmem:[%s1 + $0x1d8] sm:$0xff]
      %v824 = vld [vmem:[%s1 + $0x1e0] sm:$0xff]
      %v825 = vld [vmem:[%s1 + $0x1e8] sm:$0xff]
      %v826 = vld [vmem:[%s1 + $0x1f0] sm:$0xff]
      %v827 = vld [vmem:[%s1 + $0x1f8] sm:$0xff]
      %828 = vmatpush.msra.mxu0 %v827
      %829 = vmatpush.msra.mxu0 %v826
      %830 = vmatpush.msra.mxu0 %v825
      %831 = vmatpush.msra.mxu0 %v824
      %832 = vmatpush.msra.mxu0 %v823
      %833 = vmatpush.msra.mxu0 %v822
      %834 = vmatpush.msra.mxu0 %v821
      %835 = vmatpush.msra.mxu0 %v820
      %836 = vmatpush.msra.mxu0 %v819
      %837 = vmatpush.msra.mxu0 %v818
      %838 = vmatpush.msra.mxu0 %v817
      %839 = vmatpush.msra.mxu0 %v816
      %840 = vmatpush.msra.mxu0 %v815
      %841 = vmatpush.msra.mxu0 %v814
      %842 = vmatpush.msra.mxu0 %v813
      %843 = vmatpush.msra.mxu0 %v812
      %844 = vmatmul.f32.gmra.mxu0 %v776
      %v845 = vpop.f32.mrf.mxu0
      %v846 = vadd.f32 0.0, %v845
      %847 = vmatmul.f32.gmra.mxu0 %v777
      %v848 = vpop.f32.mrf.mxu0
      %v849 = vadd.f32 0.0, %v848
      %850 = vmatmul.f32.gmra.mxu0 %v778
      %v851 = vpop.f32.mrf.mxu0
      %v852 = vadd.f32 0.0, %v851
      %853 = vmatmul.f32.gmra.mxu0 %v779
      %v854 = vpop.f32.mrf.mxu0
      %v855 = vadd.f32 0.0, %v854
      %856 = vmatmul.f32.gmra.mxu0 %v780
      %v857 = vpop.f32.mrf.mxu0
      %v858 = vadd.f32 0.0, %v857
      %859 = vmatmul.f32.gmra.mxu0 %v781
      %v860 = vpop.f32.mrf.mxu0
      %v861 = vadd.f32 0.0, %v860
      %862 = vmatmul.f32.gmra.mxu0 %v782
      %v863 = vpop.f32.mrf.mxu0
      %v864 = vadd.f32 0.0, %v863
      %865 = vmatmul.f32.gmra.mxu0 %v783
      %v866 = vpop.f32.mrf.mxu0
      %v867 = vadd.f32 0.0, %v866
      %868 = vmatmul.f32.gmra.mxu0 %v784
      %v869 = vpop.f32.mrf.mxu0
      %v870 = vadd.f32 0.0, %v869
      %871 = vmatmul.f32.gmra.mxu0 %v785
      %v872 = vpop.f32.mrf.mxu0
      %v873 = vadd.f32 0.0, %v872
      %874 = vmatmul.f32.gmra.mxu0 %v786
      %v875 = vpop.f32.mrf.mxu0
      %v876 = vadd.f32 0.0, %v875
      %877 = vmatmul.f32.gmra.mxu0 %v787
      %v878 = vpop.f32.mrf.mxu0
      %v879 = vadd.f32 0.0, %v878
      %880 = vmatmul.f32.gmra.mxu0 %v788
      %v881 = vpop.f32.mrf.mxu0
      %v882 = vadd.f32 0.0, %v881
      %883 = vmatmul.f32.gmra.mxu0 %v789
      %v884 = vpop.f32.mrf.mxu0
      %v885 = vadd.f32 0.0, %v884
      %886 = vmatmul.f32.gmra.mxu0 %v790
      %v887 = vpop.f32.mrf.mxu0
      %v888 = vadd.f32 0.0, %v887
      %889 = vmatmul.f32.gmra.mxu0 %v791
      %v890 = vpop.f32.mrf.mxu0
      %v891 = vadd.f32 0.0, %v890
      %892 = vmatmul.f32.gmra.mxu0 %v792
      %v893 = vpop.f32.mrf.mxu0
      %v894 = vadd.f32 0.0, %v893
      %895 = vmatmul.f32.gmra.mxu0 %v793
      %v896 = vpop.f32.mrf.mxu0
      %v897 = vadd.f32 0.0, %v896
      %898 = vmatmul.f32.gmra.mxu0 %v794
      %v899 = vpop.f32.mrf.mxu0
      %v900 = vadd.f32 0.0, %v899
      %901 = vmatmul.f32.gmra.mxu0 %v795
      %v902 = vpop.f32.mrf.mxu0
      %v903 = vadd.f32 0.0, %v902
      %904 = vmatmul.f32.gmra.mxu0 %v796
      %v905 = vpop.f32.mrf.mxu0
      %v906 = vadd.f32 0.0, %v905
      %907 = vmatmul.f32.gmra.mxu0 %v797
      %v908 = vpop.f32.mrf.mxu0
      %v909 = vadd.f32 0.0, %v908
      %910 = vmatmul.f32.gmra.mxu0 %v798
      %v911 = vpop.f32.mrf.mxu0
      %v912 = vadd.f32 0.0, %v911
      %913 = vmatmul.f32.gmra.mxu0 %v799
      %v914 = vpop.f32.mrf.mxu0
      %v915 = vadd.f32 0.0, %v914
      %916 = vmatmul.f32.gmra.mxu0 %v800
      %v917 = vpop.f32.mrf.mxu0
      %v918 = vadd.f32 0.0, %v917
      %919 = vmatmul.f32.gmra.mxu0 %v801
      %v920 = vpop.f32.mrf.mxu0
      %v921 = vadd.f32 0.0, %v920
      %922 = vmatmul.f32.gmra.mxu0 %v802
      %v923 = vpop.f32.mrf.mxu0
      %v924 = vadd.f32 0.0, %v923
      %925 = vmatmul.f32.gmra.mxu0 %v803
      %v926 = vpop.f32.mrf.mxu0
      %v927 = vadd.f32 0.0, %v926
      %928 = vmatmul.f32.gmra.mxu0 %v804
      %v929 = vpop.f32.mrf.mxu0
      %v930 = vadd.f32 0.0, %v929
      %931 = vmatmul.f32.gmra.mxu0 %v805
      %v932 = vpop.f32.mrf.mxu0
      %v933 = vadd.f32 0.0, %v932
      %934 = vmatmul.f32.gmra.mxu0 %v806
      %v935 = vpop.f32.mrf.mxu0
      %v936 = vadd.f32 0.0, %v935
      %937 = vmatmul.f32.gmra.mxu0 %v807
      %v938 = vpop.f32.mrf.mxu0
      %v939 = vadd.f32 0.0, %v938
      %940 = vmatmul.f32.gmra.mxu0 %v808
      %v941 = vpop.f32.mrf.mxu0
      %v942 = vadd.f32 0.0, %v941
      %943 = vmatmul.f32.gmra.mxu0 %v809
      %v944 = vpop.f32.mrf.mxu0
      %v945 = vadd.f32 0.0, %v944
      %946 = vmatmul.f32.gmra.mxu0 %v810
      %v947 = vpop.f32.mrf.mxu0
      %v948 = vadd.f32 0.0, %v947
      %949 = vmatmul.f32.gmra.mxu0 %v811
      %v950 = vpop.f32.mrf.mxu0
      %v951 = vadd.f32 0.0, %v950
      %952 = vdwg.mxu0
      %v953 = vadd.f32 %v740, %v846
      %v954 = vadd.f32 %v741, %v849
      %v955 = vadd.f32 %v742, %v852
      %v956 = vadd.f32 %v743, %v855
      %v957 = vadd.f32 %v744, %v858
      %v958 = vadd.f32 %v745, %v861
      %v959 = vadd.f32 %v746, %v864
      %v960 = vadd.f32 %v747, %v867
      %v961 = vadd.f32 %v748, %v870
      %v962 = vadd.f32 %v749, %v873
      %v963 = vadd.f32 %v750, %v876
      %v964 = vadd.f32 %v751, %v879
      %v965 = vadd.f32 %v752, %v882
      %v966 = vadd.f32 %v753, %v885
      %v967 = vadd.f32 %v754, %v888
      %v968 = vadd.f32 %v755, %v891
      %v969 = vadd.f32 %v756, %v894
      %v970 = vadd.f32 %v757, %v897
      %v971 = vadd.f32 %v758, %v900
      %v972 = vadd.f32 %v759, %v903
      %v973 = vadd.f32 %v760, %v906
      %v974 = vadd.f32 %v761, %v909
      %v975 = vadd.f32 %v762, %v912
      %v976 = vadd.f32 %v763, %v915
      %v977 = vadd.f32 %v764, %v918
      %v978 = vadd.f32 %v765, %v921
      %v979 = vadd.f32 %v766, %v924
      %v980 = vadd.f32 %v767, %v927
      %v981 = vadd.f32 %v768, %v930
      %v982 = vadd.f32 %v769, %v933
      %v983 = vadd.f32 %v770, %v936
      %v984 = vadd.f32 %v771, %v939
      %v985 = vadd.f32 %v772, %v942
      %v986 = vadd.f32 %v773, %v945
      %v987 = vadd.f32 %v774, %v948
      %v988 = vadd.f32 %v775, %v951
      %v989 = vld [vmem:[%s199 + $0x13] sm:$0xff]
      %v990 = vld [vmem:[%s199 + $0x1b] sm:$0xff]
      %v991 = vld [vmem:[%s199 + $0x23] sm:$0xff]
      %v992 = vld [vmem:[%s199 + $0x2b] sm:$0xff]
      %v993 = vld [vmem:[%s199 + $0x33] sm:$0xff]
      %v994 = vld [vmem:[%s199 + $0x3b] sm:$0xff]
      %v995 = vld [vmem:[%s199 + $0x43] sm:$0xff]
      %v996 = vld [vmem:[%s199 + $0x4b] sm:$0xff]
      %v997 = vld [vmem:[%s199 + $0x53] sm:$0xff]
      %v998 = vld [vmem:[%s199 + $0x5b] sm:$0xff]
      %v999 = vld [vmem:[%s199 + $0x63] sm:$0xff]
      %v1000 = vld [vmem:[%s199 + $0x6b] sm:$0xff]
      %v1001 = vld [vmem:[%s199 + $0x73] sm:$0xff]
      %v1002 = vld [vmem:[%s199 + $0x7b] sm:$0xff]
      %v1003 = vld [vmem:[%s199 + $0x83] sm:$0xff]
      %v1004 = vld [vmem:[%s199 + $0x8b] sm:$0xff]
      %v1005 = vld [vmem:[%s199 + $0x93] sm:$0xff]
      %v1006 = vld [vmem:[%s199 + $0x9b] sm:$0xff]
      %v1007 = vld [vmem:[%s199 + $0xa3] sm:$0xff]
      %v1008 = vld [vmem:[%s199 + $0xab] sm:$0xff]
      %v1009 = vld [vmem:[%s199 + $0xb3] sm:$0xff]
      %v1010 = vld [vmem:[%s199 + $0xbb] sm:$0xff]
      %v1011 = vld [vmem:[%s199 + $0xc3] sm:$0xff]
      %v1012 = vld [vmem:[%s199 + $0xcb] sm:$0xff]
      %v1013 = vld [vmem:[%s199 + $0xd3] sm:$0xff]
      %v1014 = vld [vmem:[%s199 + $0xdb] sm:$0xff]
      %v1015 = vld [vmem:[%s199 + $0xe3] sm:$0xff]
      %v1016 = vld [vmem:[%s199 + $0xeb] sm:$0xff]
      %v1017 = vld [vmem:[%s199 + $0xf3] sm:$0xff]
      %v1018 = vld [vmem:[%s199 + $0xfb] sm:$0xff]
      %v1019 = vld [vmem:[%s199 + $0x103] sm:$0xff]
      %v1020 = vld [vmem:[%s199 + $0x10b] sm:$0xff]
      %v1021 = vld [vmem:[%s199 + $0x113] sm:$0xff]
      %v1022 = vld [vmem:[%s199 + $0x11b] sm:$0xff]
      %v1023 = vld [vmem:[%s199 + $0x123] sm:$0xff]
      %v1024 = vld [vmem:[%s199 + $0x12b] sm:$0xff]
      %v1025 = vld [vmem:[%s1 + $0x200] sm:$0xff]
      %v1026 = vld [vmem:[%s1 + $0x208] sm:$0xff]
      %v1027 = vld [vmem:[%s1 + $0x210] sm:$0xff]
      %v1028 = vld [vmem:[%s1 + $0x218] sm:$0xff]
      %v1029 = vld [vmem:[%s1 + $0x220] sm:$0xff]
      %v1030 = vld [vmem:[%s1 + $0x228] sm:$0xff]
      %v1031 = vld [vmem:[%s1 + $0x230] sm:$0xff]
      %v1032 = vld [vmem:[%s1 + $0x238] sm:$0xff]
      %v1033 = vld [vmem:[%s1 + $0x240] sm:$0xff]
      %v1034 = vld [vmem:[%s1 + $0x248] sm:$0xff]
      %v1035 = vld [vmem:[%s1 + $0x250] sm:$0xff]
      %v1036 = vld [vmem:[%s1 + $0x258] sm:$0xff]
      %v1037 = vld [vmem:[%s1 + $0x260] sm:$0xff]
      %v1038 = vld [vmem:[%s1 + $0x268] sm:$0xff]
      %v1039 = vld [vmem:[%s1 + $0x270] sm:$0xff]
      %v1040 = vld [vmem:[%s1 + $0x278] sm:$0xff]
      %1041 = vmatpush.msra.mxu0 %v1040
      %1042 = vmatpush.msra.mxu0 %v1039
      %1043 = vmatpush.msra.mxu0 %v1038
      %1044 = vmatpush.msra.mxu0 %v1037
      %1045 = vmatpush.msra.mxu0 %v1036
      %1046 = vmatpush.msra.mxu0 %v1035
      %1047 = vmatpush.msra.mxu0 %v1034
      %1048 = vmatpush.msra.mxu0 %v1033
      %1049 = vmatpush.msra.mxu0 %v1032
      %1050 = vmatpush.msra.mxu0 %v1031
      %1051 = vmatpush.msra.mxu0 %v1030
      %1052 = vmatpush.msra.mxu0 %v1029
      %1053 = vmatpush.msra.mxu0 %v1028
      %1054 = vmatpush.msra.mxu0 %v1027
      %1055 = vmatpush.msra.mxu0 %v1026
      %1056 = vmatpush.msra.mxu0 %v1025
      %1057 = vmatmul.f32.gmra.mxu0 %v989
      %v1058 = vpop.f32.mrf.mxu0
      %v1059 = vadd.f32 0.0, %v1058
      %1060 = vmatmul.f32.gmra.mxu0 %v990
      %v1061 = vpop.f32.mrf.mxu0
      %v1062 = vadd.f32 0.0, %v1061
      %1063 = vmatmul.f32.gmra.mxu0 %v991
      %v1064 = vpop.f32.mrf.mxu0
      %v1065 = vadd.f32 0.0, %v1064
      %1066 = vmatmul.f32.gmra.mxu0 %v992
      %v1067 = vpop.f32.mrf.mxu0
      %v1068 = vadd.f32 0.0, %v1067
      %1069 = vmatmul.f32.gmra.mxu0 %v993
      %v1070 = vpop.f32.mrf.mxu0
      %v1071 = vadd.f32 0.0, %v1070
      %1072 = vmatmul.f32.gmra.mxu0 %v994
      %v1073 = vpop.f32.mrf.mxu0
      %v1074 = vadd.f32 0.0, %v1073
      %1075 = vmatmul.f32.gmra.mxu0 %v995
      %v1076 = vpop.f32.mrf.mxu0
      %v1077 = vadd.f32 0.0, %v1076
      %1078 = vmatmul.f32.gmra.mxu0 %v996
      %v1079 = vpop.f32.mrf.mxu0
      %v1080 = vadd.f32 0.0, %v1079
      %1081 = vmatmul.f32.gmra.mxu0 %v997
      %v1082 = vpop.f32.mrf.mxu0
      %v1083 = vadd.f32 0.0, %v1082
      %1084 = vmatmul.f32.gmra.mxu0 %v998
      %v1085 = vpop.f32.mrf.mxu0
      %v1086 = vadd.f32 0.0, %v1085
      %1087 = vmatmul.f32.gmra.mxu0 %v999
      %v1088 = vpop.f32.mrf.mxu0
      %v1089 = vadd.f32 0.0, %v1088
      %1090 = vmatmul.f32.gmra.mxu0 %v1000
      %v1091 = vpop.f32.mrf.mxu0
      %v1092 = vadd.f32 0.0, %v1091
      %1093 = vmatmul.f32.gmra.mxu0 %v1001
      %v1094 = vpop.f32.mrf.mxu0
      %v1095 = vadd.f32 0.0, %v1094
      %1096 = vmatmul.f32.gmra.mxu0 %v1002
      %v1097 = vpop.f32.mrf.mxu0
      %v1098 = vadd.f32 0.0, %v1097
      %1099 = vmatmul.f32.gmra.mxu0 %v1003
      %v1100 = vpop.f32.mrf.mxu0
      %v1101 = vadd.f32 0.0, %v1100
      %1102 = vmatmul.f32.gmra.mxu0 %v1004
      %v1103 = vpop.f32.mrf.mxu0
      %v1104 = vadd.f32 0.0, %v1103
      %1105 = vmatmul.f32.gmra.mxu0 %v1005
      %v1106 = vpop.f32.mrf.mxu0
      %v1107 = vadd.f32 0.0, %v1106
      %1108 = vmatmul.f32.gmra.mxu0 %v1006
      %v1109 = vpop.f32.mrf.mxu0
      %v1110 = vadd.f32 0.0, %v1109
      %1111 = vmatmul.f32.gmra.mxu0 %v1007
      %v1112 = vpop.f32.mrf.mxu0
      %v1113 = vadd.f32 0.0, %v1112
      %1114 = vmatmul.f32.gmra.mxu0 %v1008
      %v1115 = vpop.f32.mrf.mxu0
      %v1116 = vadd.f32 0.0, %v1115
      %1117 = vmatmul.f32.gmra.mxu0 %v1009
      %v1118 = vpop.f32.mrf.mxu0
      %v1119 = vadd.f32 0.0, %v1118
      %1120 = vmatmul.f32.gmra.mxu0 %v1010
      %v1121 = vpop.f32.mrf.mxu0
      %v1122 = vadd.f32 0.0, %v1121
      %1123 = vmatmul.f32.gmra.mxu0 %v1011
      %v1124 = vpop.f32.mrf.mxu0
      %v1125 = vadd.f32 0.0, %v1124
      %1126 = vmatmul.f32.gmra.mxu0 %v1012
      %v1127 = vpop.f32.mrf.mxu0
      %v1128 = vadd.f32 0.0, %v1127
      %1129 = vmatmul.f32.gmra.mxu0 %v1013
      %v1130 = vpop.f32.mrf.mxu0
      %v1131 = vadd.f32 0.0, %v1130
      %1132 = vmatmul.f32.gmra.mxu0 %v1014
      %v1133 = vpop.f32.mrf.mxu0
      %v1134 = vadd.f32 0.0, %v1133
      %1135 = vmatmul.f32.gmra.mxu0 %v1015
      %v1136 = vpop.f32.mrf.mxu0
      %v1137 = vadd.f32 0.0, %v1136
      %1138 = vmatmul.f32.gmra.mxu0 %v1016
      %v1139 = vpop.f32.mrf.mxu0
      %v1140 = vadd.f32 0.0, %v1139
      %1141 = vmatmul.f32.gmra.mxu0 %v1017
      %v1142 = vpop.f32.mrf.mxu0
      %v1143 = vadd.f32 0.0, %v1142
      %1144 = vmatmul.f32.gmra.mxu0 %v1018
      %v1145 = vpop.f32.mrf.mxu0
      %v1146 = vadd.f32 0.0, %v1145
      %1147 = vmatmul.f32.gmra.mxu0 %v1019
      %v1148 = vpop.f32.mrf.mxu0
      %v1149 = vadd.f32 0.0, %v1148
      %1150 = vmatmul.f32.gmra.mxu0 %v1020
      %v1151 = vpop.f32.mrf.mxu0
      %v1152 = vadd.f32 0.0, %v1151
      %1153 = vmatmul.f32.gmra.mxu0 %v1021
      %v1154 = vpop.f32.mrf.mxu0
      %v1155 = vadd.f32 0.0, %v1154
      %1156 = vmatmul.f32.gmra.mxu0 %v1022
      %v1157 = vpop.f32.mrf.mxu0
      %v1158 = vadd.f32 0.0, %v1157
      %1159 = vmatmul.f32.gmra.mxu0 %v1023
      %v1160 = vpop.f32.mrf.mxu0
      %v1161 = vadd.f32 0.0, %v1160
      %1162 = vmatmul.f32.gmra.mxu0 %v1024
      %v1163 = vpop.f32.mrf.mxu0
      %v1164 = vadd.f32 0.0, %v1163
      %1165 = vdwg.mxu0
      %v1166 = vadd.f32 %v953, %v1059
      %v1167 = vadd.f32 %v954, %v1062
      %v1168 = vadd.f32 %v955, %v1065
      %v1169 = vadd.f32 %v956, %v1068
      %v1170 = vadd.f32 %v957, %v1071
      %v1171 = vadd.f32 %v958, %v1074
      %v1172 = vadd.f32 %v959, %v1077
      %v1173 = vadd.f32 %v960, %v1080
      %v1174 = vadd.f32 %v961, %v1083
      %v1175 = vadd.f32 %v962, %v1086
      %v1176 = vadd.f32 %v963, %v1089
      %v1177 = vadd.f32 %v964, %v1092
      %v1178 = vadd.f32 %v965, %v1095
      %v1179 = vadd.f32 %v966, %v1098
      %v1180 = vadd.f32 %v967, %v1101
      %v1181 = vadd.f32 %v968, %v1104
      %v1182 = vadd.f32 %v969, %v1107
      %v1183 = vadd.f32 %v970, %v1110
      %v1184 = vadd.f32 %v971, %v1113
      %v1185 = vadd.f32 %v972, %v1116
      %v1186 = vadd.f32 %v973, %v1119
      %v1187 = vadd.f32 %v974, %v1122
      %v1188 = vadd.f32 %v975, %v1125
      %v1189 = vadd.f32 %v976, %v1128
      %v1190 = vadd.f32 %v977, %v1131
      %v1191 = vadd.f32 %v978, %v1134
      %v1192 = vadd.f32 %v979, %v1137
      %v1193 = vadd.f32 %v980, %v1140
      %v1194 = vadd.f32 %v981, %v1143
      %v1195 = vadd.f32 %v982, %v1146
      %v1196 = vadd.f32 %v983, %v1149
      %v1197 = vadd.f32 %v984, %v1152
      %v1198 = vadd.f32 %v985, %v1155
      %v1199 = vadd.f32 %v986, %v1158
      %v1200 = vadd.f32 %v987, %v1161
      %v1201 = vadd.f32 %v988, %v1164
      %v1202 = vld [vmem:[%s199 + $0x14] sm:$0xff]
      %v1203 = vld [vmem:[%s199 + $0x1c] sm:$0xff]
      %v1204 = vld [vmem:[%s199 + $0x24] sm:$0xff]
      %v1205 = vld [vmem:[%s199 + $0x2c] sm:$0xff]
      %v1206 = vld [vmem:[%s199 + $0x34] sm:$0xff]
      %v1207 = vld [vmem:[%s199 + $0x3c] sm:$0xff]
      %v1208 = vld [vmem:[%s199 + $0x44] sm:$0xff]
      %v1209 = vld [vmem:[%s199 + $0x4c] sm:$0xff]
      %v1210 = vld [vmem:[%s199 + $0x54] sm:$0xff]
      %v1211 = vld [vmem:[%s199 + $0x5c] sm:$0xff]
      %v1212 = vld [vmem:[%s199 + $0x64] sm:$0xff]
      %v1213 = vld [vmem:[%s199 + $0x6c] sm:$0xff]
      %v1214 = vld [vmem:[%s199 + $0x74] sm:$0xff]
      %v1215 = vld [vmem:[%s199 + $0x7c] sm:$0xff]
      %v1216 = vld [vmem:[%s199 + $0x84] sm:$0xff]
      %v1217 = vld [vmem:[%s199 + $0x8c] sm:$0xff]
      %v1218 = vld [vmem:[%s199 + $0x94] sm:$0xff]
      %v1219 = vld [vmem:[%s199 + $0x9c] sm:$0xff]
      %v1220 = vld [vmem:[%s199 + $0xa4] sm:$0xff]
      %v1221 = vld [vmem:[%s199 + $0xac] sm:$0xff]
      %v1222 = vld [vmem:[%s199 + $0xb4] sm:$0xff]
      %v1223 = vld [vmem:[%s199 + $0xbc] sm:$0xff]
      %v1224 = vld [vmem:[%s199 + $0xc4] sm:$0xff]
      %v1225 = vld [vmem:[%s199 + $0xcc] sm:$0xff]
      %v1226 = vld [vmem:[%s199 + $0xd4] sm:$0xff]
      %v1227 = vld [vmem:[%s199 + $0xdc] sm:$0xff]
      %v1228 = vld [vmem:[%s199 + $0xe4] sm:$0xff]
      %v1229 = vld [vmem:[%s199 + $0xec] sm:$0xff]
      %v1230 = vld [vmem:[%s199 + $0xf4] sm:$0xff]
      %v1231 = vld [vmem:[%s199 + $0xfc] sm:$0xff]
      %v1232 = vld [vmem:[%s199 + $0x104] sm:$0xff]
      %v1233 = vld [vmem:[%s199 + $0x10c] sm:$0xff]
      %v1234 = vld [vmem:[%s199 + $0x114] sm:$0xff]
      %v1235 = vld [vmem:[%s199 + $0x11c] sm:$0xff]
      %v1236 = vld [vmem:[%s199 + $0x124] sm:$0xff]
      %v1237 = vld [vmem:[%s199 + $0x12c] sm:$0xff]
      %v1238 = vld [vmem:[%s1 + $0x280] sm:$0xff]
      %v1239 = vld [vmem:[%s1 + $0x288] sm:$0xff]
      %v1240 = vld [vmem:[%s1 + $0x290] sm:$0xff]
      %v1241 = vld [vmem:[%s1 + $0x298] sm:$0xff]
      %v1242 = vld [vmem:[%s1 + $0x2a0] sm:$0xff]
      %v1243 = vld [vmem:[%s1 + $0x2a8] sm:$0xff]
      %v1244 = vld [vmem:[%s1 + $0x2b0] sm:$0xff]
      %v1245 = vld [vmem:[%s1 + $0x2b8] sm:$0xff]
      %v1246 = vld [vmem:[%s1 + $0x2c0] sm:$0xff]
      %v1247 = vld [vmem:[%s1 + $0x2c8] sm:$0xff]
      %v1248 = vld [vmem:[%s1 + $0x2d0] sm:$0xff]
      %v1249 = vld [vmem:[%s1 + $0x2d8] sm:$0xff]
      %v1250 = vld [vmem:[%s1 + $0x2e0] sm:$0xff]
      %v1251 = vld [vmem:[%s1 + $0x2e8] sm:$0xff]
      %v1252 = vld [vmem:[%s1 + $0x2f0] sm:$0xff]
      %v1253 = vld [vmem:[%s1 + $0x2f8] sm:$0xff]
      %1254 = vmatpush.msra.mxu0 %v1253
      %1255 = vmatpush.msra.mxu0 %v1252
      %1256 = vmatpush.msra.mxu0 %v1251
      %1257 = vmatpush.msra.mxu0 %v1250
      %1258 = vmatpush.msra.mxu0 %v1249
      %1259 = vmatpush.msra.mxu0 %v1248
      %1260 = vmatpush.msra.mxu0 %v1247
      %1261 = vmatpush.msra.mxu0 %v1246
      %1262 = vmatpush.msra.mxu0 %v1245
      %1263 = vmatpush.msra.mxu0 %v1244
      %1264 = vmatpush.msra.mxu0 %v1243
      %1265 = vmatpush.msra.mxu0 %v1242
      %1266 = vmatpush.msra.mxu0 %v1241
      %1267 = vmatpush.msra.mxu0 %v1240
      %1268 = vmatpush.msra.mxu0 %v1239
      %1269 = vmatpush.msra.mxu0 %v1238
      %1270 = vmatmul.f32.gmra.mxu0 %v1202
      %v1271 = vpop.f32.mrf.mxu0
      %v1272 = vadd.f32 0.0, %v1271
      %1273 = vmatmul.f32.gmra.mxu0 %v1203
      %v1274 = vpop.f32.mrf.mxu0
      %v1275 = vadd.f32 0.0, %v1274
      %1276 = vmatmul.f32.gmra.mxu0 %v1204
      %v1277 = vpop.f32.mrf.mxu0
      %v1278 = vadd.f32 0.0, %v1277
      %1279 = vmatmul.f32.gmra.mxu0 %v1205
      %v1280 = vpop.f32.mrf.mxu0
      %v1281 = vadd.f32 0.0, %v1280
      %1282 = vmatmul.f32.gmra.mxu0 %v1206
      %v1283 = vpop.f32.mrf.mxu0
      %v1284 = vadd.f32 0.0, %v1283
      %1285 = vmatmul.f32.gmra.mxu0 %v1207
      %v1286 = vpop.f32.mrf.mxu0
      %v1287 = vadd.f32 0.0, %v1286
      %1288 = vmatmul.f32.gmra.mxu0 %v1208
      %v1289 = vpop.f32.mrf.mxu0
      %v1290 = vadd.f32 0.0, %v1289
      %1291 = vmatmul.f32.gmra.mxu0 %v1209
      %v1292 = vpop.f32.mrf.mxu0
      %v1293 = vadd.f32 0.0, %v1292
      %1294 = vmatmul.f32.gmra.mxu0 %v1210
      %v1295 = vpop.f32.mrf.mxu0
      %v1296 = vadd.f32 0.0, %v1295
      %1297 = vmatmul.f32.gmra.mxu0 %v1211
      %v1298 = vpop.f32.mrf.mxu0
      %v1299 = vadd.f32 0.0, %v1298
      %1300 = vmatmul.f32.gmra.mxu0 %v1212
      %v1301 = vpop.f32.mrf.mxu0
      %v1302 = vadd.f32 0.0, %v1301
      %1303 = vmatmul.f32.gmra.mxu0 %v1213
      %v1304 = vpop.f32.mrf.mxu0
      %v1305 = vadd.f32 0.0, %v1304
      %1306 = vmatmul.f32.gmra.mxu0 %v1214
      %v1307 = vpop.f32.mrf.mxu0
      %v1308 = vadd.f32 0.0, %v1307
      %1309 = vmatmul.f32.gmra.mxu0 %v1215
      %v1310 = vpop.f32.mrf.mxu0
      %v1311 = vadd.f32 0.0, %v1310
      %1312 = vmatmul.f32.gmra.mxu0 %v1216
      %v1313 = vpop.f32.mrf.mxu0
      %v1314 = vadd.f32 0.0, %v1313
      %1315 = vmatmul.f32.gmra.mxu0 %v1217
      %v1316 = vpop.f32.mrf.mxu0
      %v1317 = vadd.f32 0.0, %v1316
      %1318 = vmatmul.f32.gmra.mxu0 %v1218
      %v1319 = vpop.f32.mrf.mxu0
      %v1320 = vadd.f32 0.0, %v1319
      %1321 = vmatmul.f32.gmra.mxu0 %v1219
      %v1322 = vpop.f32.mrf.mxu0
      %v1323 = vadd.f32 0.0, %v1322
      %1324 = vmatmul.f32.gmra.mxu0 %v1220
      %v1325 = vpop.f32.mrf.mxu0
      %v1326 = vadd.f32 0.0, %v1325
      %1327 = vmatmul.f32.gmra.mxu0 %v1221
      %v1328 = vpop.f32.mrf.mxu0
      %v1329 = vadd.f32 0.0, %v1328
      %1330 = vmatmul.f32.gmra.mxu0 %v1222
      %v1331 = vpop.f32.mrf.mxu0
      %v1332 = vadd.f32 0.0, %v1331
      %1333 = vmatmul.f32.gmra.mxu0 %v1223
      %v1334 = vpop.f32.mrf.mxu0
      %v1335 = vadd.f32 0.0, %v1334
      %1336 = vmatmul.f32.gmra.mxu0 %v1224
      %v1337 = vpop.f32.mrf.mxu0
      %v1338 = vadd.f32 0.0, %v1337
      %1339 = vmatmul.f32.gmra.mxu0 %v1225
      %v1340 = vpop.f32.mrf.mxu0
      %v1341 = vadd.f32 0.0, %v1340
      %1342 = vmatmul.f32.gmra.mxu0 %v1226
      %v1343 = vpop.f32.mrf.mxu0
      %v1344 = vadd.f32 0.0, %v1343
      %1345 = vmatmul.f32.gmra.mxu0 %v1227
      %v1346 = vpop.f32.mrf.mxu0
      %v1347 = vadd.f32 0.0, %v1346
      %1348 = vmatmul.f32.gmra.mxu0 %v1228
      %v1349 = vpop.f32.mrf.mxu0
      %v1350 = vadd.f32 0.0, %v1349
      %1351 = vmatmul.f32.gmra.mxu0 %v1229
      %v1352 = vpop.f32.mrf.mxu0
      %v1353 = vadd.f32 0.0, %v1352
      %1354 = vmatmul.f32.gmra.mxu0 %v1230
      %v1355 = vpop.f32.mrf.mxu0
      %v1356 = vadd.f32 0.0, %v1355
      %1357 = vmatmul.f32.gmra.mxu0 %v1231
      %v1358 = vpop.f32.mrf.mxu0
      %v1359 = vadd.f32 0.0, %v1358
      %1360 = vmatmul.f32.gmra.mxu0 %v1232
      %v1361 = vpop.f32.mrf.mxu0
      %v1362 = vadd.f32 0.0, %v1361
      %1363 = vmatmul.f32.gmra.mxu0 %v1233
      %v1364 = vpop.f32.mrf.mxu0
      %v1365 = vadd.f32 0.0, %v1364
      %1366 = vmatmul.f32.gmra.mxu0 %v1234
      %v1367 = vpop.f32.mrf.mxu0
      %v1368 = vadd.f32 0.0, %v1367
      %1369 = vmatmul.f32.gmra.mxu0 %v1235
      %v1370 = vpop.f32.mrf.mxu0
      %v1371 = vadd.f32 0.0, %v1370
      %1372 = vmatmul.f32.gmra.mxu0 %v1236
      %v1373 = vpop.f32.mrf.mxu0
      %v1374 = vadd.f32 0.0, %v1373
      %1375 = vmatmul.f32.gmra.mxu0 %v1237
      %v1376 = vpop.f32.mrf.mxu0
      %v1377 = vadd.f32 0.0, %v1376
      %1378 = vdwg.mxu0
      %v1379 = vadd.f32 %v1166, %v1272
      %v1380 = vadd.f32 %v1167, %v1275
      %v1381 = vadd.f32 %v1168, %v1278
      %v1382 = vadd.f32 %v1169, %v1281
      %v1383 = vadd.f32 %v1170, %v1284
      %v1384 = vadd.f32 %v1171, %v1287
      %v1385 = vadd.f32 %v1172, %v1290
      %v1386 = vadd.f32 %v1173, %v1293
      %v1387 = vadd.f32 %v1174, %v1296
      %v1388 = vadd.f32 %v1175, %v1299
      %v1389 = vadd.f32 %v1176, %v1302
      %v1390 = vadd.f32 %v1177, %v1305
      %v1391 = vadd.f32 %v1178, %v1308
      %v1392 = vadd.f32 %v1179, %v1311
      %v1393 = vadd.f32 %v1180, %v1314
      %v1394 = vadd.f32 %v1181, %v1317
      %v1395 = vadd.f32 %v1182, %v1320
      %v1396 = vadd.f32 %v1183, %v1323
      %v1397 = vadd.f32 %v1184, %v1326
      %v1398 = vadd.f32 %v1185, %v1329
      %v1399 = vadd.f32 %v1186, %v1332
      %v1400 = vadd.f32 %v1187, %v1335
      %v1401 = vadd.f32 %v1188, %v1338
      %v1402 = vadd.f32 %v1189, %v1341
      %v1403 = vadd.f32 %v1190, %v1344
      %v1404 = vadd.f32 %v1191, %v1347
      %v1405 = vadd.f32 %v1192, %v1350
      %v1406 = vadd.f32 %v1193, %v1353
      %v1407 = vadd.f32 %v1194, %v1356
      %v1408 = vadd.f32 %v1195, %v1359
      %v1409 = vadd.f32 %v1196, %v1362
      %v1410 = vadd.f32 %v1197, %v1365
      %v1411 = vadd.f32 %v1198, %v1368
      %v1412 = vadd.f32 %v1199, %v1371
      %v1413 = vadd.f32 %v1200, %v1374
      %v1414 = vadd.f32 %v1201, %v1377
      %v1415 = vld [vmem:[%s199 + $0x24] sm:$0xff]
      %v1416 = vld [vmem:[%s199 + $0x2c] sm:$0xff]
      %v1417 = vld [vmem:[%s199 + $0x34] sm:$0xff]
      %v1418 = vld [vmem:[%s199 + $0x3c] sm:$0xff]
      %v1419 = vld [vmem:[%s199 + $0x44] sm:$0xff]
      %v1420 = vld [vmem:[%s199 + $0x4c] sm:$0xff]
      %v1421 = vld [vmem:[%s199 + $0x54] sm:$0xff]
      %v1422 = vld [vmem:[%s199 + $0x5c] sm:$0xff]
      %v1423 = vld [vmem:[%s199 + $0x64] sm:$0xff]
      %v1424 = vld [vmem:[%s199 + $0x6c] sm:$0xff]
      %v1425 = vld [vmem:[%s199 + $0x74] sm:$0xff]
      %v1426 = vld [vmem:[%s199 + $0x7c] sm:$0xff]
      %v1427 = vld [vmem:[%s199 + $0x84] sm:$0xff]
      %v1428 = vld [vmem:[%s199 + $0x8c] sm:$0xff]
      %v1429 = vld [vmem:[%s199 + $0x94] sm:$0xff]
      %v1430 = vld [vmem:[%s199 + $0x9c] sm:$0xff]
      %v1431 = vld [vmem:[%s199 + $0xa4] sm:$0xff]
      %v1432 = vld [vmem:[%s199 + $0xac] sm:$0xff]
      %v1433 = vld [vmem:[%s199 + $0xb4] sm:$0xff]
      %v1434 = vld [vmem:[%s199 + $0xbc] sm:$0xff]
      %v1435 = vld [vmem:[%s199 + $0xc4] sm:$0xff]
      %v1436 = vld [vmem:[%s199 + $0xcc] sm:$0xff]
      %v1437 = vld [vmem:[%s199 + $0xd4] sm:$0xff]
      %v1438 = vld [vmem:[%s199 + $0xdc] sm:$0xff]
      %v1439 = vld [vmem:[%s199 + $0xe4] sm:$0xff]
      %v1440 = vld [vmem:[%s199 + $0xec] sm:$0xff]
      %v1441 = vld [vmem:[%s199 + $0xf4] sm:$0xff]
      %v1442 = vld [vmem:[%s199 + $0xfc] sm:$0xff]
      %v1443 = vld [vmem:[%s199 + $0x104] sm:$0xff]
      %v1444 = vld [vmem:[%s199 + $0x10c] sm:$0xff]
      %v1445 = vld [vmem:[%s199 + $0x114] sm:$0xff]
      %v1446 = vld [vmem:[%s199 + $0x11c] sm:$0xff]
      %v1447 = vld [vmem:[%s199 + $0x124] sm:$0xff]
      %v1448 = vld [vmem:[%s199 + $0x12c] sm:$0xff]
      %v1449 = vld [vmem:[%s199 + $0x134] sm:$0xff]
      %v1450 = vld [vmem:[%s199 + $0x13c] sm:$0xff]
      %v1451 = vld [vmem:[%s1 + $0x300] sm:$0xff]
      %v1452 = vld [vmem:[%s1 + $0x308] sm:$0xff]
      %v1453 = vld [vmem:[%s1 + $0x310] sm:$0xff]
      %v1454 = vld [vmem:[%s1 + $0x318] sm:$0xff]
      %v1455 = vld [vmem:[%s1 + $0x320] sm:$0xff]
      %v1456 = vld [vmem:[%s1 + $0x328] sm:$0xff]
      %v1457 = vld [vmem:[%s1 + $0x330] sm:$0xff]
      %v1458 = vld [vmem:[%s1 + $0x338] sm:$0xff]
      %v1459 = vld [vmem:[%s1 + $0x340] sm:$0xff]
      %v1460 = vld [vmem:[%s1 + $0x348] sm:$0xff]
      %v1461 = vld [vmem:[%s1 + $0x350] sm:$0xff]
      %v1462 = vld [vmem:[%s1 + $0x358] sm:$0xff]
      %v1463 = vld [vmem:[%s1 + $0x360] sm:$0xff]
      %v1464 = vld [vmem:[%s1 + $0x368] sm:$0xff]
      %v1465 = vld [vmem:[%s1 + $0x370] sm:$0xff]
      %v1466 = vld [vmem:[%s1 + $0x378] sm:$0xff]
      %1467 = vmatpush.msra.mxu0 %v1466
      %1468 = vmatpush.msra.mxu0 %v1465
      %1469 = vmatpush.msra.mxu0 %v1464
      %1470 = vmatpush.msra.mxu0 %v1463
      %1471 = vmatpush.msra.mxu0 %v1462
      %1472 = vmatpush.msra.mxu0 %v1461
      %1473 = vmatpush.msra.mxu0 %v1460
      %1474 = vmatpush.msra.mxu0 %v1459
      %1475 = vmatpush.msra.mxu0 %v1458
      %1476 = vmatpush.msra.mxu0 %v1457
      %1477 = vmatpush.msra.mxu0 %v1456
      %1478 = vmatpush.msra.mxu0 %v1455
      %1479 = vmatpush.msra.mxu0 %v1454
      %1480 = vmatpush.msra.mxu0 %v1453
      %1481 = vmatpush.msra.mxu0 %v1452
      %1482 = vmatpush.msra.mxu0 %v1451
      %1483 = vmatmul.f32.gmra.mxu0 %v1415
      %v1484 = vpop.f32.mrf.mxu0
      %v1485 = vadd.f32 0.0, %v1484
      %1486 = vmatmul.f32.gmra.mxu0 %v1416
      %v1487 = vpop.f32.mrf.mxu0
      %v1488 = vadd.f32 0.0, %v1487
      %1489 = vmatmul.f32.gmra.mxu0 %v1417
      %v1490 = vpop.f32.mrf.mxu0
      %v1491 = vadd.f32 0.0, %v1490
      %1492 = vmatmul.f32.gmra.mxu0 %v1418
      %v1493 = vpop.f32.mrf.mxu0
      %v1494 = vadd.f32 0.0, %v1493
      %1495 = vmatmul.f32.gmra.mxu0 %v1419
      %v1496 = vpop.f32.mrf.mxu0
      %v1497 = vadd.f32 0.0, %v1496
      %1498 = vmatmul.f32.gmra.mxu0 %v1420
      %v1499 = vpop.f32.mrf.mxu0
      %v1500 = vadd.f32 0.0, %v1499
      %1501 = vmatmul.f32.gmra.mxu0 %v1421
      %v1502 = vpop.f32.mrf.mxu0
      %v1503 = vadd.f32 0.0, %v1502
      %1504 = vmatmul.f32.gmra.mxu0 %v1422
      %v1505 = vpop.f32.mrf.mxu0
      %v1506 = vadd.f32 0.0, %v1505
      %1507 = vmatmul.f32.gmra.mxu0 %v1423
      %v1508 = vpop.f32.mrf.mxu0
      %v1509 = vadd.f32 0.0, %v1508
      %1510 = vmatmul.f32.gmra.mxu0 %v1424
      %v1511 = vpop.f32.mrf.mxu0
      %v1512 = vadd.f32 0.0, %v1511
      %1513 = vmatmul.f32.gmra.mxu0 %v1425
      %v1514 = vpop.f32.mrf.mxu0
      %v1515 = vadd.f32 0.0, %v1514
      %1516 = vmatmul.f32.gmra.mxu0 %v1426
      %v1517 = vpop.f32.mrf.mxu0
      %v1518 = vadd.f32 0.0, %v1517
      %1519 = vmatmul.f32.gmra.mxu0 %v1427
      %v1520 = vpop.f32.mrf.mxu0
      %v1521 = vadd.f32 0.0, %v1520
      %1522 = vmatmul.f32.gmra.mxu0 %v1428
      %v1523 = vpop.f32.mrf.mxu0
      %v1524 = vadd.f32 0.0, %v1523
      %1525 = vmatmul.f32.gmra.mxu0 %v1429
      %v1526 = vpop.f32.mrf.mxu0
      %v1527 = vadd.f32 0.0, %v1526
      %1528 = vmatmul.f32.gmra.mxu0 %v1430
      %v1529 = vpop.f32.mrf.mxu0
      %v1530 = vadd.f32 0.0, %v1529
      %1531 = vmatmul.f32.gmra.mxu0 %v1431
      %v1532 = vpop.f32.mrf.mxu0
      %v1533 = vadd.f32 0.0, %v1532
      %1534 = vmatmul.f32.gmra.mxu0 %v1432
      %v1535 = vpop.f32.mrf.mxu0
      %v1536 = vadd.f32 0.0, %v1535
      %1537 = vmatmul.f32.gmra.mxu0 %v1433
      %v1538 = vpop.f32.mrf.mxu0
      %v1539 = vadd.f32 0.0, %v1538
      %1540 = vmatmul.f32.gmra.mxu0 %v1434
      %v1541 = vpop.f32.mrf.mxu0
      %v1542 = vadd.f32 0.0, %v1541
      %1543 = vmatmul.f32.gmra.mxu0 %v1435
      %v1544 = vpop.f32.mrf.mxu0
      %v1545 = vadd.f32 0.0, %v1544
      %1546 = vmatmul.f32.gmra.mxu0 %v1436
      %v1547 = vpop.f32.mrf.mxu0
      %v1548 = vadd.f32 0.0, %v1547
      %1549 = vmatmul.f32.gmra.mxu0 %v1437
      %v1550 = vpop.f32.mrf.mxu0
      %v1551 = vadd.f32 0.0, %v1550
      %1552 = vmatmul.f32.gmra.mxu0 %v1438
      %v1553 = vpop.f32.mrf.mxu0
      %v1554 = vadd.f32 0.0, %v1553
      %1555 = vmatmul.f32.gmra.mxu0 %v1439
      %v1556 = vpop.f32.mrf.mxu0
      %v1557 = vadd.f32 0.0, %v1556
      %1558 = vmatmul.f32.gmra.mxu0 %v1440
      %v1559 = vpop.f32.mrf.mxu0
      %v1560 = vadd.f32 0.0, %v1559
      %1561 = vmatmul.f32.gmra.mxu0 %v1441
      %v1562 = vpop.f32.mrf.mxu0
      %v1563 = vadd.f32 0.0, %v1562
      %1564 = vmatmul.f32.gmra.mxu0 %v1442
      %v1565 = vpop.f32.mrf.mxu0
      %v1566 = vadd.f32 0.0, %v1565
      %1567 = vmatmul.f32.gmra.mxu0 %v1443
      %v1568 = vpop.f32.mrf.mxu0
      %v1569 = vadd.f32 0.0, %v1568
      %1570 = vmatmul.f32.gmra.mxu0 %v1444
      %v1571 = vpop.f32.mrf.mxu0
      %v1572 = vadd.f32 0.0, %v1571
      %1573 = vmatmul.f32.gmra.mxu0 %v1445
      %v1574 = vpop.f32.mrf.mxu0
      %v1575 = vadd.f32 0.0, %v1574
      %1576 = vmatmul.f32.gmra.mxu0 %v1446
      %v1577 = vpop.f32.mrf.mxu0
      %v1578 = vadd.f32 0.0, %v1577
      %1579 = vmatmul.f32.gmra.mxu0 %v1447
      %v1580 = vpop.f32.mrf.mxu0
      %v1581 = vadd.f32 0.0, %v1580
      %1582 = vmatmul.f32.gmra.mxu0 %v1448
      %v1583 = vpop.f32.mrf.mxu0
      %v1584 = vadd.f32 0.0, %v1583
      %1585 = vmatmul.f32.gmra.mxu0 %v1449
      %v1586 = vpop.f32.mrf.mxu0
      %v1587 = vadd.f32 0.0, %v1586
      %1588 = vmatmul.f32.gmra.mxu0 %v1450
      %v1589 = vpop.f32.mrf.mxu0
      %v1590 = vadd.f32 0.0, %v1589
      %1591 = vdwg.mxu0
      %v1592 = vadd.f32 %v1379, %v1485
      %v1593 = vadd.f32 %v1380, %v1488
      %v1594 = vadd.f32 %v1381, %v1491
      %v1595 = vadd.f32 %v1382, %v1494
      %v1596 = vadd.f32 %v1383, %v1497
      %v1597 = vadd.f32 %v1384, %v1500
      %v1598 = vadd.f32 %v1385, %v1503
      %v1599 = vadd.f32 %v1386, %v1506
      %v1600 = vadd.f32 %v1387, %v1509
      %v1601 = vadd.f32 %v1388, %v1512
      %v1602 = vadd.f32 %v1389, %v1515
      %v1603 = vadd.f32 %v1390, %v1518
      %v1604 = vadd.f32 %v1391, %v1521
      %v1605 = vadd.f32 %v1392, %v1524
      %v1606 = vadd.f32 %v1393, %v1527
      %v1607 = vadd.f32 %v1394, %v1530
      %v1608 = vadd.f32 %v1395, %v1533
      %v1609 = vadd.f32 %v1396, %v1536
      %v1610 = vadd.f32 %v1397, %v1539
      %v1611 = vadd.f32 %v1398, %v1542
      %v1612 = vadd.f32 %v1399, %v1545
      %v1613 = vadd.f32 %v1400, %v1548
      %v1614 = vadd.f32 %v1401, %v1551
      %v1615 = vadd.f32 %v1402, %v1554
      %v1616 = vadd.f32 %v1403, %v1557
      %v1617 = vadd.f32 %v1404, %v1560
      %v1618 = vadd.f32 %v1405, %v1563
      %v1619 = vadd.f32 %v1406, %v1566
      %v1620 = vadd.f32 %v1407, %v1569
      %v1621 = vadd.f32 %v1408, %v1572
      %v1622 = vadd.f32 %v1409, %v1575
      %v1623 = vadd.f32 %v1410, %v1578
      %v1624 = vadd.f32 %v1411, %v1581
      %v1625 = vadd.f32 %v1412, %v1584
      %v1626 = vadd.f32 %v1413, %v1587
      %v1627 = vadd.f32 %v1414, %v1590
      %v1628 = vld [vmem:[%s199 + $0x25] sm:$0xff]
      %v1629 = vld [vmem:[%s199 + $0x2d] sm:$0xff]
      %v1630 = vld [vmem:[%s199 + $0x35] sm:$0xff]
      %v1631 = vld [vmem:[%s199 + $0x3d] sm:$0xff]
      %v1632 = vld [vmem:[%s199 + $0x45] sm:$0xff]
      %v1633 = vld [vmem:[%s199 + $0x4d] sm:$0xff]
      %v1634 = vld [vmem:[%s199 + $0x55] sm:$0xff]
      %v1635 = vld [vmem:[%s199 + $0x5d] sm:$0xff]
      %v1636 = vld [vmem:[%s199 + $0x65] sm:$0xff]
      %v1637 = vld [vmem:[%s199 + $0x6d] sm:$0xff]
      %v1638 = vld [vmem:[%s199 + $0x75] sm:$0xff]
      %v1639 = vld [vmem:[%s199 + $0x7d] sm:$0xff]
      %v1640 = vld [vmem:[%s199 + $0x85] sm:$0xff]
      %v1641 = vld [vmem:[%s199 + $0x8d] sm:$0xff]
      %v1642 = vld [vmem:[%s199 + $0x95] sm:$0xff]
      %v1643 = vld [vmem:[%s199 + $0x9d] sm:$0xff]
      %v1644 = vld [vmem:[%s199 + $0xa5] sm:$0xff]
      %v1645 = vld [vmem:[%s199 + $0xad] sm:$0xff]
      %v1646 = vld [vmem:[%s199 + $0xb5] sm:$0xff]
      %v1647 = vld [vmem:[%s199 + $0xbd] sm:$0xff]
      %v1648 = vld [vmem:[%s199 + $0xc5] sm:$0xff]
      %v1649 = vld [vmem:[%s199 + $0xcd] sm:$0xff]
      %v1650 = vld [vmem:[%s199 + $0xd5] sm:$0xff]
      %v1651 = vld [vmem:[%s199 + $0xdd] sm:$0xff]
      %v1652 = vld [vmem:[%s199 + $0xe5] sm:$0xff]
      %v1653 = vld [vmem:[%s199 + $0xed] sm:$0xff]
      %v1654 = vld [vmem:[%s199 + $0xf5] sm:$0xff]
      %v1655 = vld [vmem:[%s199 + $0xfd] sm:$0xff]
      %v1656 = vld [vmem:[%s199 + $0x105] sm:$0xff]
      %v1657 = vld [vmem:[%s199 + $0x10d] sm:$0xff]
      %v1658 = vld [vmem:[%s199 + $0x115] sm:$0xff]
      %v1659 = vld [vmem:[%s199 + $0x11d] sm:$0xff]
      %v1660 = vld [vmem:[%s199 + $0x125] sm:$0xff]
      %v1661 = vld [vmem:[%s199 + $0x12d] sm:$0xff]
      %v1662 = vld [vmem:[%s199 + $0x135] sm:$0xff]
      %v1663 = vld [vmem:[%s199 + $0x13d] sm:$0xff]
      %v1664 = vld [vmem:[%s1 + $0x380] sm:$0xff]
      %v1665 = vld [vmem:[%s1 + $0x388] sm:$0xff]
      %v1666 = vld [vmem:[%s1 + $0x390] sm:$0xff]
      %v1667 = vld [vmem:[%s1 + $0x398] sm:$0xff]
      %v1668 = vld [vmem:[%s1 + $0x3a0] sm:$0xff]
      %v1669 = vld [vmem:[%s1 + $0x3a8] sm:$0xff]
      %v1670 = vld [vmem:[%s1 + $0x3b0] sm:$0xff]
      %v1671 = vld [vmem:[%s1 + $0x3b8] sm:$0xff]
      %v1672 = vld [vmem:[%s1 + $0x3c0] sm:$0xff]
      %v1673 = vld [vmem:[%s1 + $0x3c8] sm:$0xff]
      %v1674 = vld [vmem:[%s1 + $0x3d0] sm:$0xff]
      %v1675 = vld [vmem:[%s1 + $0x3d8] sm:$0xff]
      %v1676 = vld [vmem:[%s1 + $0x3e0] sm:$0xff]
      %v1677 = vld [vmem:[%s1 + $0x3e8] sm:$0xff]
      %v1678 = vld [vmem:[%s1 + $0x3f0] sm:$0xff]
      %v1679 = vld [vmem:[%s1 + $0x3f8] sm:$0xff]
      %1680 = vmatpush.msra.mxu0 %v1679
      %1681 = vmatpush.msra.mxu0 %v1678
      %1682 = vmatpush.msra.mxu0 %v1677
      %1683 = vmatpush.msra.mxu0 %v1676
      %1684 = vmatpush.msra.mxu0 %v1675
      %1685 = vmatpush.msra.mxu0 %v1674
      %1686 = vmatpush.msra.mxu0 %v1673
      %1687 = vmatpush.msra.mxu0 %v1672
      %1688 = vmatpush.msra.mxu0 %v1671
      %1689 = vmatpush.msra.mxu0 %v1670
      %1690 = vmatpush.msra.mxu0 %v1669
      %1691 = vmatpush.msra.mxu0 %v1668
      %1692 = vmatpush.msra.mxu0 %v1667
      %1693 = vmatpush.msra.mxu0 %v1666
      %1694 = vmatpush.msra.mxu0 %v1665
      %1695 = vmatpush.msra.mxu0 %v1664
      %1696 = vmatmul.f32.gmra.mxu0 %v1628
      %v1697 = vpop.f32.mrf.mxu0
      %v1698 = vadd.f32 0.0, %v1697
      %1699 = vmatmul.f32.gmra.mxu0 %v1629
      %v1700 = vpop.f32.mrf.mxu0
      %v1701 = vadd.f32 0.0, %v1700
      %1702 = vmatmul.f32.gmra.mxu0 %v1630
      %v1703 = vpop.f32.mrf.mxu0
      %v1704 = vadd.f32 0.0, %v1703
      %1705 = vmatmul.f32.gmra.mxu0 %v1631
      %v1706 = vpop.f32.mrf.mxu0
      %v1707 = vadd.f32 0.0, %v1706
      %1708 = vmatmul.f32.gmra.mxu0 %v1632
      %v1709 = vpop.f32.mrf.mxu0
      %v1710 = vadd.f32 0.0, %v1709
      %1711 = vmatmul.f32.gmra.mxu0 %v1633
      %v1712 = vpop.f32.mrf.mxu0
      %v1713 = vadd.f32 0.0, %v1712
      %1714 = vmatmul.f32.gmra.mxu0 %v1634
      %v1715 = vpop.f32.mrf.mxu0
      %v1716 = vadd.f32 0.0, %v1715
      %1717 = vmatmul.f32.gmra.mxu0 %v1635
      %v1718 = vpop.f32.mrf.mxu0
      %v1719 = vadd.f32 0.0, %v1718
      %1720 = vmatmul.f32.gmra.mxu0 %v1636
      %v1721 = vpop.f32.mrf.mxu0
      %v1722 = vadd.f32 0.0, %v1721
      %1723 = vmatmul.f32.gmra.mxu0 %v1637
      %v1724 = vpop.f32.mrf.mxu0
      %v1725 = vadd.f32 0.0, %v1724
      %1726 = vmatmul.f32.gmra.mxu0 %v1638
      %v1727 = vpop.f32.mrf.mxu0
      %v1728 = vadd.f32 0.0, %v1727
      %1729 = vmatmul.f32.gmra.mxu0 %v1639
      %v1730 = vpop.f32.mrf.mxu0
      %v1731 = vadd.f32 0.0, %v1730
      %1732 = vmatmul.f32.gmra.mxu0 %v1640
      %v1733 = vpop.f32.mrf.mxu0
      %v1734 = vadd.f32 0.0, %v1733
      %1735 = vmatmul.f32.gmra.mxu0 %v1641
      %v1736 = vpop.f32.mrf.mxu0
      %v1737 = vadd.f32 0.0, %v1736
      %1738 = vmatmul.f32.gmra.mxu0 %v1642
      %v1739 = vpop.f32.mrf.mxu0
      %v1740 = vadd.f32 0.0, %v1739
      %1741 = vmatmul.f32.gmra.mxu0 %v1643
      %v1742 = vpop.f32.mrf.mxu0
      %v1743 = vadd.f32 0.0, %v1742
      %1744 = vmatmul.f32.gmra.mxu0 %v1644
      %v1745 = vpop.f32.mrf.mxu0
      %v1746 = vadd.f32 0.0, %v1745
      %1747 = vmatmul.f32.gmra.mxu0 %v1645
      %v1748 = vpop.f32.mrf.mxu0
      %v1749 = vadd.f32 0.0, %v1748
      %1750 = vmatmul.f32.gmra.mxu0 %v1646
      %v1751 = vpop.f32.mrf.mxu0
      %v1752 = vadd.f32 0.0, %v1751
      %1753 = vmatmul.f32.gmra.mxu0 %v1647
      %v1754 = vpop.f32.mrf.mxu0
      %v1755 = vadd.f32 0.0, %v1754
      %1756 = vmatmul.f32.gmra.mxu0 %v1648
      %v1757 = vpop.f32.mrf.mxu0
      %v1758 = vadd.f32 0.0, %v1757
      %1759 = vmatmul.f32.gmra.mxu0 %v1649
      %v1760 = vpop.f32.mrf.mxu0
      %v1761 = vadd.f32 0.0, %v1760
      %1762 = vmatmul.f32.gmra.mxu0 %v1650
      %v1763 = vpop.f32.mrf.mxu0
      %v1764 = vadd.f32 0.0, %v1763
      %1765 = vmatmul.f32.gmra.mxu0 %v1651
      %v1766 = vpop.f32.mrf.mxu0
      %v1767 = vadd.f32 0.0, %v1766
      %1768 = vmatmul.f32.gmra.mxu0 %v1652
      %v1769 = vpop.f32.mrf.mxu0
      %v1770 = vadd.f32 0.0, %v1769
      %1771 = vmatmul.f32.gmra.mxu0 %v1653
      %v1772 = vpop.f32.mrf.mxu0
      %v1773 = vadd.f32 0.0, %v1772
      %1774 = vmatmul.f32.gmra.mxu0 %v1654
      %v1775 = vpop.f32.mrf.mxu0
      %v1776 = vadd.f32 0.0, %v1775
      %1777 = vmatmul.f32.gmra.mxu0 %v1655
      %v1778 = vpop.f32.mrf.mxu0
      %v1779 = vadd.f32 0.0, %v1778
      %1780 = vmatmul.f32.gmra.mxu0 %v1656
      %v1781 = vpop.f32.mrf.mxu0
      %v1782 = vadd.f32 0.0, %v1781
      %1783 = vmatmul.f32.gmra.mxu0 %v1657
      %v1784 = vpop.f32.mrf.mxu0
      %v1785 = vadd.f32 0.0, %v1784
      %1786 = vmatmul.f32.gmra.mxu0 %v1658
      %v1787 = vpop.f32.mrf.mxu0
      %v1788 = vadd.f32 0.0, %v1787
      %1789 = vmatmul.f32.gmra.mxu0 %v1659
      %v1790 = vpop.f32.mrf.mxu0
      %v1791 = vadd.f32 0.0, %v1790
      %1792 = vmatmul.f32.gmra.mxu0 %v1660
      %v1793 = vpop.f32.mrf.mxu0
      %v1794 = vadd.f32 0.0, %v1793
      %1795 = vmatmul.f32.gmra.mxu0 %v1661
      %v1796 = vpop.f32.mrf.mxu0
      %v1797 = vadd.f32 0.0, %v1796
      %1798 = vmatmul.f32.gmra.mxu0 %v1662
      %v1799 = vpop.f32.mrf.mxu0
      %v1800 = vadd.f32 0.0, %v1799
      %1801 = vmatmul.f32.gmra.mxu0 %v1663
      %v1802 = vpop.f32.mrf.mxu0
      %v1803 = vadd.f32 0.0, %v1802
      %1804 = vdwg.mxu0
      %v1805 = vadd.f32 %v1592, %v1698
      %v1806 = vadd.f32 %v1593, %v1701
      %v1807 = vadd.f32 %v1594, %v1704
      %v1808 = vadd.f32 %v1595, %v1707
      %v1809 = vadd.f32 %v1596, %v1710
      %v1810 = vadd.f32 %v1597, %v1713
      %v1811 = vadd.f32 %v1598, %v1716
      %v1812 = vadd.f32 %v1599, %v1719
      %v1813 = vadd.f32 %v1600, %v1722
      %v1814 = vadd.f32 %v1601, %v1725
      %v1815 = vadd.f32 %v1602, %v1728
      %v1816 = vadd.f32 %v1603, %v1731
      %v1817 = vadd.f32 %v1604, %v1734
      %v1818 = vadd.f32 %v1605, %v1737
      %v1819 = vadd.f32 %v1606, %v1740
      %v1820 = vadd.f32 %v1607, %v1743
      %v1821 = vadd.f32 %v1608, %v1746
      %v1822 = vadd.f32 %v1609, %v1749
      %v1823 = vadd.f32 %v1610, %v1752
      %v1824 = vadd.f32 %v1611, %v1755
      %v1825 = vadd.f32 %v1612, %v1758
      %v1826 = vadd.f32 %v1613, %v1761
      %v1827 = vadd.f32 %v1614, %v1764
      %v1828 = vadd.f32 %v1615, %v1767
      %v1829 = vadd.f32 %v1616, %v1770
      %v1830 = vadd.f32 %v1617, %v1773
      %v1831 = vadd.f32 %v1618, %v1776
      %v1832 = vadd.f32 %v1619, %v1779
      %v1833 = vadd.f32 %v1620, %v1782
      %v1834 = vadd.f32 %v1621, %v1785
      %v1835 = vadd.f32 %v1622, %v1788
      %v1836 = vadd.f32 %v1623, %v1791
      %v1837 = vadd.f32 %v1624, %v1794
      %v1838 = vadd.f32 %v1625, %v1797
      %v1839 = vadd.f32 %v1626, %v1800
      %v1840 = vadd.f32 %v1627, %v1803
      %v1841 = vld [vmem:[%s199 + $0x26] sm:$0xff]
      %v1842 = vld [vmem:[%s199 + $0x2e] sm:$0xff]
      %v1843 = vld [vmem:[%s199 + $0x36] sm:$0xff]
      %v1844 = vld [vmem:[%s199 + $0x3e] sm:$0xff]
      %v1845 = vld [vmem:[%s199 + $0x46] sm:$0xff]
      %v1846 = vld [vmem:[%s199 + $0x4e] sm:$0xff]
      %v1847 = vld [vmem:[%s199 + $0x56] sm:$0xff]
      %v1848 = vld [vmem:[%s199 + $0x5e] sm:$0xff]
      %v1849 = vld [vmem:[%s199 + $0x66] sm:$0xff]
      %v1850 = vld [vmem:[%s199 + $0x6e] sm:$0xff]
      %v1851 = vld [vmem:[%s199 + $0x76] sm:$0xff]
      %v1852 = vld [vmem:[%s199 + $0x7e] sm:$0xff]
      %v1853 = vld [vmem:[%s199 + $0x86] sm:$0xff]
      %v1854 = vld [vmem:[%s199 + $0x8e] sm:$0xff]
      %v1855 = vld [vmem:[%s199 + $0x96] sm:$0xff]
      %v1856 = vld [vmem:[%s199 + $0x9e] sm:$0xff]
      %v1857 = vld [vmem:[%s199 + $0xa6] sm:$0xff]
      %v1858 = vld [vmem:[%s199 + $0xae] sm:$0xff]
      %v1859 = vld [vmem:[%s199 + $0xb6] sm:$0xff]
      %v1860 = vld [vmem:[%s199 + $0xbe] sm:$0xff]
      %v1861 = vld [vmem:[%s199 + $0xc6] sm:$0xff]
      %v1862 = vld [vmem:[%s199 + $0xce] sm:$0xff]
      %v1863 = vld [vmem:[%s199 + $0xd6] sm:$0xff]
      %v1864 = vld [vmem:[%s199 + $0xde] sm:$0xff]
      %v1865 = vld [vmem:[%s199 + $0xe6] sm:$0xff]
      %v1866 = vld [vmem:[%s199 + $0xee] sm:$0xff]
      %v1867 = vld [vmem:[%s199 + $0xf6] sm:$0xff]
      %v1868 = vld [vmem:[%s199 + $0xfe] sm:$0xff]
      %v1869 = vld [vmem:[%s199 + $0x106] sm:$0xff]
      %v1870 = vld [vmem:[%s199 + $0x10e] sm:$0xff]
      %v1871 = vld [vmem:[%s199 + $0x116] sm:$0xff]
      %v1872 = vld [vmem:[%s199 + $0x11e] sm:$0xff]
      %v1873 = vld [vmem:[%s199 + $0x126] sm:$0xff]
      %v1874 = vld [vmem:[%s199 + $0x12e] sm:$0xff]
      %v1875 = vld [vmem:[%s199 + $0x136] sm:$0xff]
      %v1876 = vld [vmem:[%s199 + $0x13e] sm:$0xff]
      %v1877 = vld [vmem:[%s1 + $0x400] sm:$0xff]
      %v1878 = vld [vmem:[%s1 + $0x408] sm:$0xff]
      %v1879 = vld [vmem:[%s1 + $0x410] sm:$0xff]
      %v1880 = vld [vmem:[%s1 + $0x418] sm:$0xff]
      %v1881 = vld [vmem:[%s1 + $0x420] sm:$0xff]
      %v1882 = vld [vmem:[%s1 + $0x428] sm:$0xff]
      %v1883 = vld [vmem:[%s1 + $0x430] sm:$0xff]
      %v1884 = vld [vmem:[%s1 + $0x438] sm:$0xff]
      %v1885 = vld [vmem:[%s1 + $0x440] sm:$0xff]
      %v1886 = vld [vmem:[%s1 + $0x448] sm:$0xff]
      %v1887 = vld [vmem:[%s1 + $0x450] sm:$0xff]
      %v1888 = vld [vmem:[%s1 + $0x458] sm:$0xff]
      %v1889 = vld [vmem:[%s1 + $0x460] sm:$0xff]
      %v1890 = vld [vmem:[%s1 + $0x468] sm:$0xff]
      %v1891 = vld [vmem:[%s1 + $0x470] sm:$0xff]
      %v1892 = vld [vmem:[%s1 + $0x478] sm:$0xff]
      %1893 = vmatpush.msra.mxu0 %v1892
      %1894 = vmatpush.msra.mxu0 %v1891
      %1895 = vmatpush.msra.mxu0 %v1890
      %1896 = vmatpush.msra.mxu0 %v1889
      %1897 = vmatpush.msra.mxu0 %v1888
      %1898 = vmatpush.msra.mxu0 %v1887
      %1899 = vmatpush.msra.mxu0 %v1886
      %1900 = vmatpush.msra.mxu0 %v1885
      %1901 = vmatpush.msra.mxu0 %v1884
      %1902 = vmatpush.msra.mxu0 %v1883
      %1903 = vmatpush.msra.mxu0 %v1882
      %1904 = vmatpush.msra.mxu0 %v1881
      %1905 = vmatpush.msra.mxu0 %v1880
      %1906 = vmatpush.msra.mxu0 %v1879
      %1907 = vmatpush.msra.mxu0 %v1878
      %1908 = vmatpush.msra.mxu0 %v1877
      %1909 = vmatmul.f32.gmra.mxu0 %v1841
      %v1910 = vpop.f32.mrf.mxu0
      %v1911 = vadd.f32 0.0, %v1910
      %1912 = vmatmul.f32.gmra.mxu0 %v1842
      %v1913 = vpop.f32.mrf.mxu0
      %v1914 = vadd.f32 0.0, %v1913
      %1915 = vmatmul.f32.gmra.mxu0 %v1843
      %v1916 = vpop.f32.mrf.mxu0
      %v1917 = vadd.f32 0.0, %v1916
      %1918 = vmatmul.f32.gmra.mxu0 %v1844
      %v1919 = vpop.f32.mrf.mxu0
      %v1920 = vadd.f32 0.0, %v1919
      %1921 = vmatmul.f32.gmra.mxu0 %v1845
      %v1922 = vpop.f32.mrf.mxu0
      %v1923 = vadd.f32 0.0, %v1922
      %1924 = vmatmul.f32.gmra.mxu0 %v1846
      %v1925 = vpop.f32.mrf.mxu0
      %v1926 = vadd.f32 0.0, %v1925
      %1927 = vmatmul.f32.gmra.mxu0 %v1847
      %v1928 = vpop.f32.mrf.mxu0
      %v1929 = vadd.f32 0.0, %v1928
      %1930 = vmatmul.f32.gmra.mxu0 %v1848
      %v1931 = vpop.f32.mrf.mxu0
      %v1932 = vadd.f32 0.0, %v1931
      %1933 = vmatmul.f32.gmra.mxu0 %v1849
      %v1934 = vpop.f32.mrf.mxu0
      %v1935 = vadd.f32 0.0, %v1934
      %1936 = vmatmul.f32.gmra.mxu0 %v1850
      %v1937 = vpop.f32.mrf.mxu0
      %v1938 = vadd.f32 0.0, %v1937
      %1939 = vmatmul.f32.gmra.mxu0 %v1851
      %v1940 = vpop.f32.mrf.mxu0
      %v1941 = vadd.f32 0.0, %v1940
      %1942 = vmatmul.f32.gmra.mxu0 %v1852
      %v1943 = vpop.f32.mrf.mxu0
      %v1944 = vadd.f32 0.0, %v1943
      %1945 = vmatmul.f32.gmra.mxu0 %v1853
      %v1946 = vpop.f32.mrf.mxu0
      %v1947 = vadd.f32 0.0, %v1946
      %1948 = vmatmul.f32.gmra.mxu0 %v1854
      %v1949 = vpop.f32.mrf.mxu0
      %v1950 = vadd.f32 0.0, %v1949
      %1951 = vmatmul.f32.gmra.mxu0 %v1855
      %v1952 = vpop.f32.mrf.mxu0
      %v1953 = vadd.f32 0.0, %v1952
      %1954 = vmatmul.f32.gmra.mxu0 %v1856
      %v1955 = vpop.f32.mrf.mxu0
      %v1956 = vadd.f32 0.0, %v1955
      %1957 = vmatmul.f32.gmra.mxu0 %v1857
      %v1958 = vpop.f32.mrf.mxu0
      %v1959 = vadd.f32 0.0, %v1958
      %1960 = vmatmul.f32.gmra.mxu0 %v1858
      %v1961 = vpop.f32.mrf.mxu0
      %v1962 = vadd.f32 0.0, %v1961
      %1963 = vmatmul.f32.gmra.mxu0 %v1859
      %v1964 = vpop.f32.mrf.mxu0
      %v1965 = vadd.f32 0.0, %v1964
      %1966 = vmatmul.f32.gmra.mxu0 %v1860
      %v1967 = vpop.f32.mrf.mxu0
      %v1968 = vadd.f32 0.0, %v1967
      %1969 = vmatmul.f32.gmra.mxu0 %v1861
      %v1970 = vpop.f32.mrf.mxu0
      %v1971 = vadd.f32 0.0, %v1970
      %1972 = vmatmul.f32.gmra.mxu0 %v1862
      %v1973 = vpop.f32.mrf.mxu0
      %v1974 = vadd.f32 0.0, %v1973
      %1975 = vmatmul.f32.gmra.mxu0 %v1863
      %v1976 = vpop.f32.mrf.mxu0
      %v1977 = vadd.f32 0.0, %v1976
      %1978 = vmatmul.f32.gmra.mxu0 %v1864
      %v1979 = vpop.f32.mrf.mxu0
      %v1980 = vadd.f32 0.0, %v1979
      %1981 = vmatmul.f32.gmra.mxu0 %v1865
      %v1982 = vpop.f32.mrf.mxu0
      %v1983 = vadd.f32 0.0, %v1982
      %1984 = vmatmul.f32.gmra.mxu0 %v1866
      %v1985 = vpop.f32.mrf.mxu0
      %v1986 = vadd.f32 0.0, %v1985
      %1987 = vmatmul.f32.gmra.mxu0 %v1867
      %v1988 = vpop.f32.mrf.mxu0
      %v1989 = vadd.f32 0.0, %v1988
      %1990 = vmatmul.f32.gmra.mxu0 %v1868
      %v1991 = vpop.f32.mrf.mxu0
      %v1992 = vadd.f32 0.0, %v1991
      %1993 = vmatmul.f32.gmra.mxu0 %v1869
      %v1994 = vpop.f32.mrf.mxu0
      %v1995 = vadd.f32 0.0, %v1994
      %1996 = vmatmul.f32.gmra.mxu0 %v1870
      %v1997 = vpop.f32.mrf.mxu0
      %v1998 = vadd.f32 0.0, %v1997
      %1999 = vmatmul.f32.gmra.mxu0 %v1871
      %v2000 = vpop.f32.mrf.mxu0
      %v2001 = vadd.f32 0.0, %v2000
      %2002 = vmatmul.f32.gmra.mxu0 %v1872
      %v2003 = vpop.f32.mrf.mxu0
      %v2004 = vadd.f32 0.0, %v2003
      %2005 = vmatmul.f32.gmra.mxu0 %v1873
      %v2006 = vpop.f32.mrf.mxu0
      %v2007 = vadd.f32 0.0, %v2006
      %2008 = vmatmul.f32.gmra.mxu0 %v1874
      %v2009 = vpop.f32.mrf.mxu0
      %v2010 = vadd.f32 0.0, %v2009
      %2011 = vmatmul.f32.gmra.mxu0 %v1875
      %v2012 = vpop.f32.mrf.mxu0
      %v2013 = vadd.f32 0.0, %v2012
      %2014 = vmatmul.f32.gmra.mxu0 %v1876
      %v2015 = vpop.f32.mrf.mxu0
      %v2016 = vadd.f32 0.0, %v2015
      %2017 = vdwg.mxu0
      %v2018 = vadd.f32 %v1805, %v1911
      %v2019 = vadd.f32 %v1806, %v1914
      %v2020 = vadd.f32 %v1807, %v1917
      %v2021 = vadd.f32 %v1808, %v1920
      %v2022 = vadd.f32 %v1809, %v1923
      %v2023 = vadd.f32 %v1810, %v1926
      %v2024 = vadd.f32 %v1811, %v1929
      %v2025 = vadd.f32 %v1812, %v1932
      %v2026 = vadd.f32 %v1813, %v1935
      %v2027 = vadd.f32 %v1814, %v1938
      %v2028 = vadd.f32 %v1815, %v1941
      %v2029 = vadd.f32 %v1816, %v1944
      %v2030 = vadd.f32 %v1817, %v1947
      %v2031 = vadd.f32 %v1818, %v1950
      %v2032 = vadd.f32 %v1819, %v1953
      %v2033 = vadd.f32 %v1820, %v1956
      %v2034 = vadd.f32 %v1821, %v1959
      %v2035 = vadd.f32 %v1822, %v1962
      %v2036 = vadd.f32 %v1823, %v1965
      %v2037 = vadd.f32 %v1824, %v1968
      %v2038 = vadd.f32 %v1825, %v1971
      %v2039 = vadd.f32 %v1826, %v1974
      %v2040 = vadd.f32 %v1827, %v1977
      %v2041 = vadd.f32 %v1828, %v1980
      %v2042 = vadd.f32 %v1829, %v1983
      %v2043 = vadd.f32 %v1830, %v1986
      %v2044 = vadd.f32 %v1831, %v1989
      %v2045 = vadd.f32 %v1832, %v1992
      %v2046 = vadd.f32 %v1833, %v1995
      %v2047 = vadd.f32 %v1834, %v1998
      %v2048 = vadd.f32 %v1835, %v2001
      %v2049 = vadd.f32 %v1836, %v2004
      %v2050 = vadd.f32 %v1837, %v2007
      %v2051 = vadd.f32 %v1838, %v2010
      %v2052 = vadd.f32 %v1839, %v2013
      %v2053 = vadd.f32 %v1840, %v2016
      %v2054 = vld [vmem:[%s2] sm:$0xff]
      %v2055 = vld [vmem:[%s2 + $0x8] sm:$0xff]
      %v2056 = vld [vmem:[%s2 + $0x10] sm:$0xff]
      %v2057 = vld [vmem:[%s2 + $0x18] sm:$0xff]
      %v2058 = vld [vmem:[%s2 + $0x20] sm:$0xff]
      %v2059 = vld [vmem:[%s2 + $0x28] sm:$0xff]
      %v2060 = vld [vmem:[%s2 + $0x30] sm:$0xff]
      %v2061 = vld [vmem:[%s2 + $0x38] sm:$0xff]
      %v2062 = vld [vmem:[%s2 + $0x40] sm:$0xff]
      %v2063 = vld [vmem:[%s2 + $0x48] sm:$0xff]
      %v2064 = vld [vmem:[%s2 + $0x50] sm:$0xff]
      %v2065 = vld [vmem:[%s2 + $0x58] sm:$0xff]
      %v2066 = vld [vmem:[%s2 + $0x60] sm:$0xff]
      %v2067 = vld [vmem:[%s2 + $0x68] sm:$0xff]
      %v2068 = vld [vmem:[%s2 + $0x70] sm:$0xff]
      %v2069 = vld [vmem:[%s2 + $0x78] sm:$0xff]
      %v2070 = vld [vmem:[%s2 + $0x80] sm:$0xff]
      %v2071 = vld [vmem:[%s2 + $0x88] sm:$0xff]
      %v2072 = vld [vmem:[%s2 + $0x90] sm:$0xff]
      %v2073 = vld [vmem:[%s2 + $0x98] sm:$0xff]
      %v2074 = vld [vmem:[%s2 + $0xa0] sm:$0xff]
      %v2075 = vld [vmem:[%s2 + $0xa8] sm:$0xff]
      %v2076 = vld [vmem:[%s2 + $0xb0] sm:$0xff]
      %v2077 = vld [vmem:[%s2 + $0xb8] sm:$0xff]
      %v2078 = vld [vmem:[%s2 + $0xc0] sm:$0xff]
      %v2079 = vld [vmem:[%s2 + $0xc8] sm:$0xff]
      %v2080 = vld [vmem:[%s2 + $0xd0] sm:$0xff]
      %v2081 = vld [vmem:[%s2 + $0xd8] sm:$0xff]
      %v2082 = vld [vmem:[%s2 + $0xe0] sm:$0xff]
      %v2083 = vld [vmem:[%s2 + $0xe8] sm:$0xff]
      %v2084 = vld [vmem:[%s2 + $0xf0] sm:$0xff]
      %v2085 = vld [vmem:[%s2 + $0xf8] sm:$0xff]
      %v2086 = vld [vmem:[%s2 + $0x100] sm:$0xff]
      %v2087 = vld [vmem:[%s2 + $0x108] sm:$0xff]
      %v2088 = vld [vmem:[%s2 + $0x110] sm:$0xff]
      %v2089 = vld [vmem:[%s2 + $0x118] sm:$0xff]
      %2091 = vset.pattern.permute.xlu0 0
      %2092 = vperm.xlu0 %2091, %v2054
      %v2093 = vpop.permute.xlu0 %2092
      %2096 = vset.pattern.permute.xlu0 0
      %2097 = vperm.xlu0 %2096, %v2055
      %v2098 = vpop.permute.xlu0 %2097
      %2101 = vset.pattern.permute.xlu0 0
      %2102 = vperm.xlu0 %2101, %v2056
      %v2103 = vpop.permute.xlu0 %2102
      %2106 = vset.pattern.permute.xlu0 0
      %2107 = vperm.xlu0 %2106, %v2057
      %v2108 = vpop.permute.xlu0 %2107
      %2111 = vset.pattern.permute.xlu0 0
      %2112 = vperm.xlu0 %2111, %v2058
      %v2113 = vpop.permute.xlu0 %2112
      %2116 = vset.pattern.permute.xlu0 0
      %2117 = vperm.xlu0 %2116, %v2059
      %v2118 = vpop.permute.xlu0 %2117
      %2121 = vset.pattern.permute.xlu0 0
      %2122 = vperm.xlu0 %2121, %v2060
      %v2123 = vpop.permute.xlu0 %2122
      %2126 = vset.pattern.permute.xlu0 0
      %2127 = vperm.xlu0 %2126, %v2061
      %v2128 = vpop.permute.xlu0 %2127
      %2131 = vset.pattern.permute.xlu0 0
      %2132 = vperm.xlu0 %2131, %v2062
      %v2133 = vpop.permute.xlu0 %2132
      %2136 = vset.pattern.permute.xlu0 0
      %2137 = vperm.xlu0 %2136, %v2063
      %v2138 = vpop.permute.xlu0 %2137
      %2141 = vset.pattern.permute.xlu0 0
      %2142 = vperm.xlu0 %2141, %v2064
      %v2143 = vpop.permute.xlu0 %2142
      %2146 = vset.pattern.permute.xlu0 0
      %2147 = vperm.xlu0 %2146, %v2065
      %v2148 = vpop.permute.xlu0 %2147
      %2151 = vset.pattern.permute.xlu0 0
      %2152 = vperm.xlu0 %2151, %v2066
      %v2153 = vpop.permute.xlu0 %2152
      %2156 = vset.pattern.permute.xlu0 0
      %2157 = vperm.xlu0 %2156, %v2067
      %v2158 = vpop.permute.xlu0 %2157
      %2161 = vset.pattern.permute.xlu0 0
      %2162 = vperm.xlu0 %2161, %v2068
      %v2163 = vpop.permute.xlu0 %2162
      %2166 = vset.pattern.permute.xlu0 0
      %2167 = vperm.xlu0 %2166, %v2069
      %v2168 = vpop.permute.xlu0 %2167
      %2171 = vset.pattern.permute.xlu0 0
      %2172 = vperm.xlu0 %2171, %v2070
      %v2173 = vpop.permute.xlu0 %2172
      %2176 = vset.pattern.permute.xlu0 0
      %2177 = vperm.xlu0 %2176, %v2071
      %v2178 = vpop.permute.xlu0 %2177
      %2181 = vset.pattern.permute.xlu0 0
      %2182 = vperm.xlu0 %2181, %v2072
      %v2183 = vpop.permute.xlu0 %2182
      %2186 = vset.pattern.permute.xlu0 0
      %2187 = vperm.xlu0 %2186, %v2073
      %v2188 = vpop.permute.xlu0 %2187
      %2191 = vset.pattern.permute.xlu0 0
      %2192 = vperm.xlu0 %2191, %v2074
      %v2193 = vpop.permute.xlu0 %2192
      %2196 = vset.pattern.permute.xlu0 0
      %2197 = vperm.xlu0 %2196, %v2075
      %v2198 = vpop.permute.xlu0 %2197
      %2201 = vset.pattern.permute.xlu0 0
      %2202 = vperm.xlu0 %2201, %v2076
      %v2203 = vpop.permute.xlu0 %2202
      %2206 = vset.pattern.permute.xlu0 0
      %2207 = vperm.xlu0 %2206, %v2077
      %v2208 = vpop.permute.xlu0 %2207
      %2211 = vset.pattern.permute.xlu0 0
      %2212 = vperm.xlu0 %2211, %v2078
      %v2213 = vpop.permute.xlu0 %2212
      %2216 = vset.pattern.permute.xlu0 0
      %2217 = vperm.xlu0 %2216, %v2079
      %v2218 = vpop.permute.xlu0 %2217
      %2221 = vset.pattern.permute.xlu0 0
      %2222 = vperm.xlu0 %2221, %v2080
      %v2223 = vpop.permute.xlu0 %2222
      %2226 = vset.pattern.permute.xlu0 0
      %2227 = vperm.xlu0 %2226, %v2081
      %v2228 = vpop.permute.xlu0 %2227
      %2231 = vset.pattern.permute.xlu0 0
      %2232 = vperm.xlu0 %2231, %v2082
      %v2233 = vpop.permute.xlu0 %2232
      %2236 = vset.pattern.permute.xlu0 0
      %2237 = vperm.xlu0 %2236, %v2083
      %v2238 = vpop.permute.xlu0 %2237
      %2241 = vset.pattern.permute.xlu0 0
      %2242 = vperm.xlu0 %2241, %v2084
      %v2243 = vpop.permute.xlu0 %2242
      %2246 = vset.pattern.permute.xlu0 0
      %2247 = vperm.xlu0 %2246, %v2085
      %v2248 = vpop.permute.xlu0 %2247
      %2251 = vset.pattern.permute.xlu0 0
      %2252 = vperm.xlu0 %2251, %v2086
      %v2253 = vpop.permute.xlu0 %2252
      %2256 = vset.pattern.permute.xlu0 0
      %2257 = vperm.xlu0 %2256, %v2087
      %v2258 = vpop.permute.xlu0 %2257
      %2261 = vset.pattern.permute.xlu0 0
      %2262 = vperm.xlu0 %2261, %v2088
      %v2263 = vpop.permute.xlu0 %2262
      %2266 = vset.pattern.permute.xlu0 0
      %2267 = vperm.xlu0 %2266, %v2089
      %v2268 = vpop.permute.xlu0 %2267
      %v2270 = vmul.f32 %v2018, %v2093
      %v2271 = vmul.f32 %v2019, %v2098
      %v2272 = vmul.f32 %v2020, %v2103
      %v2273 = vmul.f32 %v2021, %v2108
      %v2274 = vmul.f32 %v2022, %v2113
      %v2275 = vmul.f32 %v2023, %v2118
      %v2276 = vmul.f32 %v2024, %v2123
      %v2277 = vmul.f32 %v2025, %v2128
      %v2278 = vmul.f32 %v2026, %v2133
      %v2279 = vmul.f32 %v2027, %v2138
      %v2280 = vmul.f32 %v2028, %v2143
      %v2281 = vmul.f32 %v2029, %v2148
      %v2282 = vmul.f32 %v2030, %v2153
      %v2283 = vmul.f32 %v2031, %v2158
      %v2284 = vmul.f32 %v2032, %v2163
      %v2285 = vmul.f32 %v2033, %v2168
      %v2286 = vmul.f32 %v2034, %v2173
      %v2287 = vmul.f32 %v2035, %v2178
      %v2288 = vmul.f32 %v2036, %v2183
      %v2289 = vmul.f32 %v2037, %v2188
      %v2290 = vmul.f32 %v2038, %v2193
      %v2291 = vmul.f32 %v2039, %v2198
      %v2292 = vmul.f32 %v2040, %v2203
      %v2293 = vmul.f32 %v2041, %v2208
      %v2294 = vmul.f32 %v2042, %v2213
      %v2295 = vmul.f32 %v2043, %v2218
      %v2296 = vmul.f32 %v2044, %v2223
      %v2297 = vmul.f32 %v2045, %v2228
      %v2298 = vmul.f32 %v2046, %v2233
      %v2299 = vmul.f32 %v2047, %v2238
      %v2300 = vmul.f32 %v2048, %v2243
      %v2301 = vmul.f32 %v2049, %v2248
      %v2302 = vmul.f32 %v2050, %v2253
      %v2303 = vmul.f32 %v2051, %v2258
      %v2304 = vmul.f32 %v2052, %v2263
      %v2305 = vmul.f32 %v2053, %v2268
      %v2306 = vadd.f32 %v2270, %v2271
      %v2307 = vadd.f32 %v2306, %v2272
      %v2308 = vadd.f32 %v2307, %v2273
      %v2309 = vadd.f32 %v2308, %v2274
      %v2310 = vadd.f32 %v2309, %v2275
      %v2311 = vadd.f32 %v2310, %v2276
      %v2312 = vadd.f32 %v2311, %v2277
      %v2313 = vadd.f32 %v2312, %v2278
      %v2314 = vadd.f32 %v2313, %v2279
      %v2315 = vadd.f32 %v2314, %v2280
      %v2316 = vadd.f32 %v2315, %v2281
      %v2317 = vadd.f32 %v2316, %v2282
      %v2318 = vadd.f32 %v2317, %v2283
      %v2319 = vadd.f32 %v2318, %v2284
      %v2320 = vadd.f32 %v2319, %v2285
      %v2321 = vadd.f32 %v2320, %v2286
      %v2322 = vadd.f32 %v2321, %v2287
      %v2323 = vadd.f32 %v2322, %v2288
      %v2324 = vadd.f32 %v2323, %v2289
      %v2325 = vadd.f32 %v2324, %v2290
      %v2326 = vadd.f32 %v2325, %v2291
      %v2327 = vadd.f32 %v2326, %v2292
      %v2328 = vadd.f32 %v2327, %v2293
      %v2329 = vadd.f32 %v2328, %v2294
      %v2330 = vadd.f32 %v2329, %v2295
      %v2331 = vadd.f32 %v2330, %v2296
      %v2332 = vadd.f32 %v2331, %v2297
      %v2333 = vadd.f32 %v2332, %v2298
      %v2334 = vadd.f32 %v2333, %v2299
      %v2335 = vadd.f32 %v2334, %v2300
      %v2336 = vadd.f32 %v2335, %v2301
      %v2337 = vadd.f32 %v2336, %v2302
      %v2338 = vadd.f32 %v2337, %v2303
      %v2339 = vadd.f32 %v2338, %v2304
      %v2340 = vadd.f32 %v2339, %v2305
      %v2341 = vrot.slane %v2340, 4
      %v2342 = vadd.f32 %v2340, %v2341
      %v2343 = vrot.slane %v2342, 2
      %v2344 = vadd.f32 %v2342, %v2343
      %v2345 = vrot.slane %v2344, 1
      %v2346 = vadd.f32 %v2344, %v2345
      %v2347 = vmul.f32 %v2270, %v2018
      %v2348 = vmul.f32 %v2271, %v2019
      %v2349 = vmul.f32 %v2272, %v2020
      %v2350 = vmul.f32 %v2273, %v2021
      %v2351 = vmul.f32 %v2274, %v2022
      %v2352 = vmul.f32 %v2275, %v2023
      %v2353 = vmul.f32 %v2276, %v2024
      %v2354 = vmul.f32 %v2277, %v2025
      %v2355 = vmul.f32 %v2278, %v2026
      %v2356 = vmul.f32 %v2279, %v2027
      %v2357 = vmul.f32 %v2280, %v2028
      %v2358 = vmul.f32 %v2281, %v2029
      %v2359 = vmul.f32 %v2282, %v2030
      %v2360 = vmul.f32 %v2283, %v2031
      %v2361 = vmul.f32 %v2284, %v2032
      %v2362 = vmul.f32 %v2285, %v2033
      %v2363 = vmul.f32 %v2286, %v2034
      %v2364 = vmul.f32 %v2287, %v2035
      %v2365 = vmul.f32 %v2288, %v2036
      %v2366 = vmul.f32 %v2289, %v2037
      %v2367 = vmul.f32 %v2290, %v2038
      %v2368 = vmul.f32 %v2291, %v2039
      %v2369 = vmul.f32 %v2292, %v2040
      %v2370 = vmul.f32 %v2293, %v2041
      %v2371 = vmul.f32 %v2294, %v2042
      %v2372 = vmul.f32 %v2295, %v2043
      %v2373 = vmul.f32 %v2296, %v2044
      %v2374 = vmul.f32 %v2297, %v2045
      %v2375 = vmul.f32 %v2298, %v2046
      %v2376 = vmul.f32 %v2299, %v2047
      %v2377 = vmul.f32 %v2300, %v2048
      %v2378 = vmul.f32 %v2301, %v2049
      %v2379 = vmul.f32 %v2302, %v2050
      %v2380 = vmul.f32 %v2303, %v2051
      %v2381 = vmul.f32 %v2304, %v2052
      %v2382 = vmul.f32 %v2305, %v2053
      %v2383 = vadd.f32 %v2347, %v2348
      %v2384 = vadd.f32 %v2383, %v2349
      %v2385 = vadd.f32 %v2384, %v2350
      %v2386 = vadd.f32 %v2385, %v2351
      %v2387 = vadd.f32 %v2386, %v2352
      %v2388 = vadd.f32 %v2387, %v2353
      %v2389 = vadd.f32 %v2388, %v2354
      %v2390 = vadd.f32 %v2389, %v2355
      %v2391 = vadd.f32 %v2390, %v2356
      %v2392 = vadd.f32 %v2391, %v2357
      %v2393 = vadd.f32 %v2392, %v2358
      %v2394 = vadd.f32 %v2393, %v2359
      %v2395 = vadd.f32 %v2394, %v2360
      %v2396 = vadd.f32 %v2395, %v2361
      %v2397 = vadd.f32 %v2396, %v2362
      %v2398 = vadd.f32 %v2397, %v2363
      %v2399 = vadd.f32 %v2398, %v2364
      %v2400 = vadd.f32 %v2399, %v2365
      %v2401 = vadd.f32 %v2400, %v2366
      %v2402 = vadd.f32 %v2401, %v2367
      %v2403 = vadd.f32 %v2402, %v2368
      %v2404 = vadd.f32 %v2403, %v2369
      %v2405 = vadd.f32 %v2404, %v2370
      %v2406 = vadd.f32 %v2405, %v2371
      %v2407 = vadd.f32 %v2406, %v2372
      %v2408 = vadd.f32 %v2407, %v2373
      %v2409 = vadd.f32 %v2408, %v2374
      %v2410 = vadd.f32 %v2409, %v2375
      %v2411 = vadd.f32 %v2410, %v2376
      %v2412 = vadd.f32 %v2411, %v2377
      %v2413 = vadd.f32 %v2412, %v2378
      %v2414 = vadd.f32 %v2413, %v2379
      %v2415 = vadd.f32 %v2414, %v2380
      %v2416 = vadd.f32 %v2415, %v2381
      %v2417 = vadd.f32 %v2416, %v2382
      %v2418 = vrot.slane %v2417, 4
      %v2419 = vadd.f32 %v2417, %v2418
      %v2420 = vrot.slane %v2419, 2
      %v2421 = vadd.f32 %v2419, %v2420
      %v2422 = vrot.slane %v2421, 1
      %v2423 = vadd.f32 %v2421, %v2422
      %vm2424 = vcmask 1040384
      %v2425 = vsel %vm2424, %v2346, %v2423
      %2426 = vst [vmem:[%s208] sm:$0x3] %v2425
      %2427 = vst [vmem:[%s204] sm:$0xff] %v2018
      %2428 = vst [vmem:[%s204 + $0x8] sm:$0xff] %v2019
      %2429 = vst [vmem:[%s204 + $0x10] sm:$0xff] %v2020
      %2430 = vst [vmem:[%s204 + $0x18] sm:$0xff] %v2021
      %2431 = vst [vmem:[%s204 + $0x20] sm:$0xff] %v2022
      %2432 = vst [vmem:[%s204 + $0x28] sm:$0xff] %v2023
      %2433 = vst [vmem:[%s204 + $0x30] sm:$0xff] %v2024
      %2434 = vst [vmem:[%s204 + $0x38] sm:$0xff] %v2025
      %2435 = vst [vmem:[%s204 + $0x40] sm:$0xff] %v2026
      %2436 = vst [vmem:[%s204 + $0x48] sm:$0xff] %v2027
      %2437 = vst [vmem:[%s204 + $0x50] sm:$0xff] %v2028
      %2438 = vst [vmem:[%s204 + $0x58] sm:$0xff] %v2029
      %2439 = vst [vmem:[%s204 + $0x60] sm:$0xff] %v2030
      %2440 = vst [vmem:[%s204 + $0x68] sm:$0xff] %v2031
      %2441 = vst [vmem:[%s204 + $0x70] sm:$0xff] %v2032
      %2442 = vst [vmem:[%s204 + $0x78] sm:$0xff] %v2033
      %2443 = vst [vmem:[%s204 + $0x80] sm:$0xff] %v2034
      %2444 = vst [vmem:[%s204 + $0x88] sm:$0xff] %v2035
      %2445 = vst [vmem:[%s204 + $0x90] sm:$0xff] %v2036
      %2446 = vst [vmem:[%s204 + $0x98] sm:$0xff] %v2037
      %2447 = vst [vmem:[%s204 + $0xa0] sm:$0xff] %v2038
      %2448 = vst [vmem:[%s204 + $0xa8] sm:$0xff] %v2039
      %2449 = vst [vmem:[%s204 + $0xb0] sm:$0xff] %v2040
      %2450 = vst [vmem:[%s204 + $0xb8] sm:$0xff] %v2041
      %2451 = vst [vmem:[%s204 + $0xc0] sm:$0xff] %v2042
      %2452 = vst [vmem:[%s204 + $0xc8] sm:$0xff] %v2043
      %2453 = vst [vmem:[%s204 + $0xd0] sm:$0xff] %v2044
      %2454 = vst [vmem:[%s204 + $0xd8] sm:$0xff] %v2045
      %2455 = vst [vmem:[%s204 + $0xe0] sm:$0xff] %v2046
      %2456 = vst [vmem:[%s204 + $0xe8] sm:$0xff] %v2047
      %2457 = vst [vmem:[%s204 + $0xf0] sm:$0xff] %v2048
      %2458 = vst [vmem:[%s204 + $0xf8] sm:$0xff] %v2049
      %2459 = vst [vmem:[%s204 + $0x100] sm:$0xff] %v2050
      %2460 = vst [vmem:[%s204 + $0x108] sm:$0xff] %v2051
      %2461 = vst [vmem:[%s204 + $0x110] sm:$0xff] %v2052
      %2462 = vst [vmem:[%s204 + $0x118] sm:$0xff] %v2053
      %p2463 = scmp.lt.s32.totalorder %s16, 1
      %s2464 = scalar_select %p2463, %s16, 1
      %s2465 = smul.addr %s2464, 36
      %s2466 = smul.addr %s2465, 8
      %s2467 = scalar_lea.vmem %s3, %s2466
      %p2468 = scmp.lt.s32.totalorder %s16, 1
      %s2469 = scalar_select %p2468, %s16, 1
      %s2470 = smul.addr %s2469, 2
      %s2471 = scalar_lea.vmem %s4, %s2470
      // Predicated region
      $region33: #{residual_block_pallas.3} parent=31 // pred_check
        %p2472 = pneg %p102
      $region34: #{residual_block_pallas.3} parent=31 // pred_check_branch
        %2474 = sbr.rel (%p2472) target = $region36
      $region35: #{residual_block_pallas.3} parent=31 // pred_region
        _
      $region36: #{residual_block_pallas.3} parent=31 // pred_fallthru
        _
      // Predicated region
      $region37: #{residual_block_pallas.3} parent=31 // pred_check
        %p2475 = pneg %p128
      $region38: #{residual_block_pallas.3} parent=31 // pred_check_branch
        %2477 = sbr.rel (%p2475) target = $region40
      $region39: #{residual_block_pallas.3} parent=31 // pred_region
        _
      $region40: #{residual_block_pallas.3} parent=31 // pred_fallthru
        _
    $region32: #{residual_block_pallas.3} parent=5 // pred_fallthru
      _
    %p2478 = scmp.le.s32.totalorder 2, %s11
    // Predicated region
    $region41: #{residual_block_pallas.3} parent=5 // pred_check
      %p2479 = pneg %p2478
    $region42: #{residual_block_pallas.3} parent=5 // pred_check_branch
      %2481 = sbr.rel (%p2479) target = $region44
    $region43: #{residual_block_pallas.3} parent=5 // pred_region
      %s2482 = ssub.s32 %s11, 2
      // Predicated region
      $region45: #{residual_block_pallas.3} parent=43 // pred_check
        %p2483 = pneg %p108
      $region46: #{residual_block_pallas.3} parent=43 // pred_check_branch
        %2485 = sbr.rel (%p2483) target = $region48
      $region47: #{residual_block_pallas.3} parent=43 // pred_region
        %p2486 = scmp.lt.s32.totalorder %s17, 1
        %s2487 = scalar_select %p2486, %s17, 1
        %s2488 = smul.addr %s2487, 36
        %s2489 = smul.addr %s2488, 8
        %s2490 = scalar_lea.vmem %s3, %s2489
      $region48: #{residual_block_pallas.3} parent=43 // pred_fallthru
        _
      // Predicated region
      $region49: #{residual_block_pallas.3} parent=43 // pred_check
        %p2491 = pneg %p134
      $region50: #{residual_block_pallas.3} parent=43 // pred_check_branch
        %2493 = sbr.rel (%p2491) target = $region52
      $region51: #{residual_block_pallas.3} parent=43 // pred_region
        %p2494 = scmp.lt.s32.totalorder %s17, 1
        %s2495 = scalar_select %p2494, %s17, 1
        %s2496 = smul.addr %s2495, 2
        %s2497 = scalar_lea.vmem %s4, %s2496
      $region52: #{residual_block_pallas.3} parent=43 // pred_fallthru
        _
    $region44: #{residual_block_pallas.3} parent=5 // pred_fallthru
      _
  $region6: #{residual_block_pallas.3} parent=0 // loop_footer
    %s15 = sadd.s32 1, %s11
  $region7: #{residual_block_pallas.3} parent=0 // loop_footer_branch
    %10 = sbr.rel target = $region3
  $region8: #{residual_block_pallas.3} parent=0 // loop_exit
    _

// kernel: residual_block_pallas.4
$region0: #{residual_block_pallas.4}
  #allocation0 [shape = 'u32[]', space=smem, size = 0x4, offset = 0x4, fixed_abs, tag = 'smem constant byte address 0x4 - core index']
  #allocation1 [shape = 'u32[72,128]{1,0:T(1,128)}', space=vmem, size = 0x9000, scoped, tag = 'internal scratch']
  #allocation2 [shape = 'f32[331,128]{1,0:T(8,128)}', space=vmem, size = 0x2a000, scoped, tag = 'scratch operand']
  %s0 = inlined_call_operand.vmem [shape: f32[2,288,128], index: 0, kind: input, shape index: {}]
  %s1 = inlined_call_operand.vmem [shape: f32[1152,128], index: 1, kind: input, shape index: {}]
  %s2 = inlined_call_operand.vmem [shape: f32[1,128], index: 2, kind: input, shape index: {}]
  %s3 = inlined_call_operand.vmem [shape: f32[1,128], index: 3, kind: input, shape index: {}]
  %s4 = inlined_call_operand.vmem [shape: f32[288,1], index: 4, kind: input, shape index: {}]
  %s5 = inlined_call_operand.vmem [shape: f32[2,288,128], index: 5, kind: output, shape index: {0}]
  %s6 = inlined_call_operand.vmem [shape: f32[2,2,128], index: 6, kind: output, shape index: {1}]
  %7 = xla_tuple %s5, %s6
  %s8 = sld [smem:[#allocation0]]
  $region61: #{residual_block_pallas.4} parent=0
    _
  %s10 = ssub.s32 1, %s8
  %s11 = scalar_select 0, %s10, %s8
  loop: start=0, step=1, limit=4
  $region2: #{residual_block_pallas.4} parent=0 // loop_pre_header
    _
  $region3: #{residual_block_pallas.4} parent=0 // loop_header
    %s13 = sphi 0, %s17
    %p14 = scmp.ge.s32.totalorder %s13, 4
    %s23 = sphi 0, %s25
    %s26 = sphi 0, %s23
    %s27 = sphi 0, %s26
    %s43 = sphi 0, %s27
    %s47 = sphi 0, %s47
    %s49 = sphi 0, %s47
    %s50 = sphi 0, %s49
    %s64 = sphi 0, %s50
    %s68 = sphi 0, %s68
    %s70 = sphi 0, %s68
    %s71 = sphi 0, %s70
    %s85 = sphi 0, %s71
    %s89 = sphi 0, %s89
    %s91 = sphi 0, %s89
    %s92 = sphi 0, %s91
    %s106 = sphi 0, %s92
    %s110 = sphi 0, %s110
    %s112 = sphi 0, %s110
    %s113 = sphi 0, %s112
    %s127 = sphi 0, %s113
    %s133 = sphi 0, %s135
    %s136 = sphi 0, %s133
    %s137 = sphi 0, %s136
    %s153 = sphi 0, %s137
    %s159 = sphi 0, %s161
    %s162 = sphi 0, %s159
    %s163 = sphi 0, %s162
    %s179 = sphi 0, %s163
  $region4: #{residual_block_pallas.4} parent=0 // loop_header_branch
    %16 = sbr.rel (%p14) target = $region8
  $region5: #{residual_block_pallas.4} parent=0 // loop_body
    %s18 = ssub.s32 %s13, 1
    %s19 = ssub.s32 %s13, 2
    %s20 = sadd.s32 %s13, 1
    %s21 = ssub.s32 %s13, %s20
    %p22 = scmp.eq.s32.totalorder %s21, 0
    %s24 = sadd.s32 %s23, 1
    %s25 = scalar_select %p22, %s23, %s24
    %p28 = pneg %p22
    %p29 = scmp.eq.s32.totalorder %s13, 1
    %p30 = por %p28, %p29
    %p31 = scmp.ne.s32.totalorder %s23, %s26
    %p32 = scmp.eq.s32.totalorder %s13, 0
    %p33 = por %p31, %p32
    %p34 = scmp.ne.s32.totalorder %s23, %s26
    %p35 = scmp.eq.s32.totalorder %s18, 1
    %p36 = por %p34, %p35
    %p37 = scmp.ne.s32.totalorder %s26, %s27
    %p38 = scmp.eq.s32.totalorder %s18, 0
    %p39 = por %p37, %p38
    %p40 = scmp.ne.s32.totalorder %s26, %s27
    %p41 = scmp.eq.s32.totalorder %s19, 1
    %p42 = por %p40, %p41
    %p44 = scmp.ne.s32.totalorder %s27, %s43
    %p45 = scmp.eq.s32.totalorder %s19, 0
    %p46 = por %p44, %p45
    %s48 = sadd.s32 %s47, 1
    %p51 = scmp.eq.s32.totalorder %s13, 1
    %p52 = scmp.ne.s32.totalorder %s47, %s49
    %p53 = scmp.eq.s32.totalorder %s13, 0
    %p54 = por %p52, %p53
    %p55 = scmp.ne.s32.totalorder %s47, %s49
    %p56 = scmp.eq.s32.totalorder %s18, 1
    %p57 = por %p55, %p56
    %p58 = scmp.ne.s32.totalorder %s49, %s50
    %p59 = scmp.eq.s32.totalorder %s18, 0
    %p60 = por %p58, %p59
    %p61 = scmp.ne.s32.totalorder %s49, %s50
    %p62 = scmp.eq.s32.totalorder %s19, 1
    %p63 = por %p61, %p62
    %p65 = scmp.ne.s32.totalorder %s50, %s64
    %p66 = scmp.eq.s32.totalorder %s19, 0
    %p67 = por %p65, %p66
    %s69 = sadd.s32 %s68, 1
    %p72 = scmp.eq.s32.totalorder %s13, 1
    %p73 = scmp.ne.s32.totalorder %s68, %s70
    %p74 = scmp.eq.s32.totalorder %s13, 0
    %p75 = por %p73, %p74
    %p76 = scmp.ne.s32.totalorder %s68, %s70
    %p77 = scmp.eq.s32.totalorder %s18, 1
    %p78 = por %p76, %p77
    %p79 = scmp.ne.s32.totalorder %s70, %s71
    %p80 = scmp.eq.s32.totalorder %s18, 0
    %p81 = por %p79, %p80
    %p82 = scmp.ne.s32.totalorder %s70, %s71
    %p83 = scmp.eq.s32.totalorder %s19, 1
    %p84 = por %p82, %p83
    %p86 = scmp.ne.s32.totalorder %s71, %s85
    %p87 = scmp.eq.s32.totalorder %s19, 0
    %p88 = por %p86, %p87
    %s90 = sadd.s32 %s89, 1
    %p93 = scmp.eq.s32.totalorder %s13, 1
    %p94 = scmp.ne.s32.totalorder %s89, %s91
    %p95 = scmp.eq.s32.totalorder %s13, 0
    %p96 = por %p94, %p95
    %p97 = scmp.ne.s32.totalorder %s89, %s91
    %p98 = scmp.eq.s32.totalorder %s18, 1
    %p99 = por %p97, %p98
    %p100 = scmp.ne.s32.totalorder %s91, %s92
    %p101 = scmp.eq.s32.totalorder %s18, 0
    %p102 = por %p100, %p101
    %p103 = scmp.ne.s32.totalorder %s91, %s92
    %p104 = scmp.eq.s32.totalorder %s19, 1
    %p105 = por %p103, %p104
    %p107 = scmp.ne.s32.totalorder %s92, %s106
    %p108 = scmp.eq.s32.totalorder %s19, 0
    %p109 = por %p107, %p108
    %s111 = sadd.s32 %s110, 1
    %p114 = scmp.eq.s32.totalorder %s13, 1
    %p115 = scmp.ne.s32.totalorder %s110, %s112
    %p116 = scmp.eq.s32.totalorder %s13, 0
    %p117 = por %p115, %p116
    %p118 = scmp.ne.s32.totalorder %s110, %s112
    %p119 = scmp.eq.s32.totalorder %s18, 1
    %p120 = por %p118, %p119
    %p121 = scmp.ne.s32.totalorder %s112, %s113
    %p122 = scmp.eq.s32.totalorder %s18, 0
    %p123 = por %p121, %p122
    %p124 = scmp.ne.s32.totalorder %s112, %s113
    %p125 = scmp.eq.s32.totalorder %s19, 1
    %p126 = por %p124, %p125
    %p128 = scmp.ne.s32.totalorder %s113, %s127
    %p129 = scmp.eq.s32.totalorder %s19, 0
    %p130 = por %p128, %p129
    %s131 = ssub.s32 %s13, %s20
    %p132 = scmp.eq.s32.totalorder %s131, 0
    %s134 = sadd.s32 %s133, 1
    %s135 = scalar_select %p132, %s133, %s134
    %p138 = pneg %p132
    %p139 = scmp.eq.s32.totalorder %s13, 1
    %p140 = por %p138, %p139
    %p141 = scmp.ne.s32.totalorder %s133, %s136
    %p142 = scmp.eq.s32.totalorder %s13, 0
    %p143 = por %p141, %p142
    %p144 = scmp.ne.s32.totalorder %s133, %s136
    %p145 = scmp.eq.s32.totalorder %s18, 1
    %p146 = por %p144, %p145
    %p147 = scmp.ne.s32.totalorder %s136, %s137
    %p148 = scmp.eq.s32.totalorder %s18, 0
    %p149 = por %p147, %p148
    %p150 = scmp.ne.s32.totalorder %s136, %s137
    %p151 = scmp.eq.s32.totalorder %s19, 1
    %p152 = por %p150, %p151
    %p154 = scmp.ne.s32.totalorder %s137, %s153
    %p155 = scmp.eq.s32.totalorder %s19, 0
    %p156 = por %p154, %p155
    %s157 = ssub.s32 %s13, %s20
    %p158 = scmp.eq.s32.totalorder %s157, 0
    %s160 = sadd.s32 %s159, 1
    %s161 = scalar_select %p158, %s159, %s160
    %p164 = pneg %p158
    %p165 = scmp.eq.s32.totalorder %s13, 1
    %p166 = por %p164, %p165
    %p167 = scmp.ne.s32.totalorder %s159, %s162
    %p168 = scmp.eq.s32.totalorder %s13, 0
    %p169 = por %p167, %p168
    %p170 = scmp.ne.s32.totalorder %s159, %s162
    %p171 = scmp.eq.s32.totalorder %s18, 1
    %p172 = por %p170, %p171
    %p173 = scmp.ne.s32.totalorder %s162, %s163
    %p174 = scmp.eq.s32.totalorder %s18, 0
    %p175 = por %p173, %p174
    %p176 = scmp.ne.s32.totalorder %s162, %s163
    %p177 = scmp.eq.s32.totalorder %s19, 1
    %p178 = por %p176, %p177
    %p180 = scmp.ne.s32.totalorder %s163, %s179
    %p181 = scmp.eq.s32.totalorder %s19, 0
    %p182 = por %p180, %p181
    %p183 = scmp.le.s32.totalorder 1, %s13
    %p184 = scmp.lt.s32.totalorder %s13, 3
    %p185 = pnand %p183, %p184
    %p186 = pneg %p185
    // Predicated region
    $region9: #{residual_block_pallas.4} parent=5 // pred_check
      _
    $region10: #{residual_block_pallas.4} parent=5 // pred_check_branch
      %188 = sbr.rel (%p185) target = $region12
    $region11: #{residual_block_pallas.4} parent=5 // pred_region
      %s189 = ssub.s32 %s13, 1
      // Predicated region
      $region13: #{residual_block_pallas.4} parent=11 // pred_check
        %p190 = pneg %p60
      $region14: #{residual_block_pallas.4} parent=11 // pred_check_branch
        %192 = sbr.rel (%p190) target = $region16
      $region15: #{residual_block_pallas.4} parent=11 // pred_region
        _
      $region16: #{residual_block_pallas.4} parent=11 // pred_fallthru
        _
      // Predicated region
      $region17: #{residual_block_pallas.4} parent=11 // pred_check
        %p193 = pneg %p81
      $region18: #{residual_block_pallas.4} parent=11 // pred_check_branch
        %195 = sbr.rel (%p193) target = $region20
      $region19: #{residual_block_pallas.4} parent=11 // pred_region
        _
      $region20: #{residual_block_pallas.4} parent=11 // pred_fallthru
        _
      // Predicated region
      $region21: #{residual_block_pallas.4} parent=11 // pred_check
        %p196 = pneg %p102
      $region22: #{residual_block_pallas.4} parent=11 // pred_check_branch
        %198 = sbr.rel (%p196) target = $region24
      $region23: #{residual_block_pallas.4} parent=11 // pred_region
        _
      $region24: #{residual_block_pallas.4} parent=11 // pred_fallthru
        _
      // Predicated region
      $region25: #{residual_block_pallas.4} parent=11 // pred_check
        %p199 = pneg %p123
      $region26: #{residual_block_pallas.4} parent=11 // pred_check_branch
        %201 = sbr.rel (%p199) target = $region28
      $region27: #{residual_block_pallas.4} parent=11 // pred_region
        _
      $region28: #{residual_block_pallas.4} parent=11 // pred_fallthru
        _
    $region12: #{residual_block_pallas.4} parent=5 // pred_fallthru
      _
    %p202 = scmp.lt.s32.totalorder %s13, 2
    // Predicated region
    $region29: #{residual_block_pallas.4} parent=5 // pred_check
      %p203 = pneg %p202
    $region30: #{residual_block_pallas.4} parent=5 // pred_check_branch
      %205 = sbr.rel (%p203) target = $region32
    $region31: #{residual_block_pallas.4} parent=5 // pred_region
      // Predicated region
      $region33: #{residual_block_pallas.4} parent=31 // pred_check
        %p206 = pneg %p33
      $region34: #{residual_block_pallas.4} parent=31 // pred_check_branch
        %208 = sbr.rel (%p206) target = $region36
      $region35: #{residual_block_pallas.4} parent=31 // pred_region
        %p209 = scmp.lt.s32.totalorder %s13, 1
        %s210 = scalar_select %p209, %s13, 1
        %s211 = smul.addr %s210, 36
        %s212 = smul.addr %s211, 8
        %s213 = scalar_lea.vmem %s0, %s212
      $region36: #{residual_block_pallas.4} parent=31 // pred_fallthru
        _
    $region32: #{residual_block_pallas.4} parent=5 // pred_fallthru
      _
    %p214 = scmp.le.s32.totalorder 1, %s13
    %p215 = scmp.lt.s32.totalorder %s13, 3
    %p216 = pnand %p214, %p215
    %p217 = pneg %p216
    // Predicated region
    $region37: #{residual_block_pallas.4} parent=5 // pred_check
      _
    $region38: #{residual_block_pallas.4} parent=5 // pred_check_branch
      %219 = sbr.rel (%p216) target = $region40
    $region39: #{residual_block_pallas.4} parent=5 // pred_region
      %s220 = ssub.s32 %s13, 1
      %p221 = scmp.lt.s32.totalorder %s18, 1
      %s222 = scalar_select %p221, %s18, 1
      %s223 = smul.addr %s222, 36
      %s224 = smul.addr %s223, 8
      %s225 = scalar_lea.vmem %s0, %s224
      %p226 = pneg %p39
      %p227 = pneg %p36
      %p228 = pneg %p60
      %p229 = pneg %p57
      %p230 = pneg %p81
      %p231 = pneg %p78
      %p232 = pneg %p102
      %p233 = pneg %p99
      %p234 = pneg %p123
      %p235 = pneg %p120
      %p236 = pneg %p149
      %p237 = pneg %p146
      %p238 = scmp.lt.s32.totalorder %s18, 1
      %s239 = scalar_select %p238, %s18, 1
      %s240 = smul.addr %s239, 36
      %s241 = smul.addr %s240, 8
      %s242 = scalar_lea.vmem %s5, %s241
      %p243 = pneg %p175
      %p244 = pneg %p172
      %p245 = scmp.lt.s32.totalorder %s18, 1
      %s246 = scalar_select %p245, %s18, 1
      %s247 = smul.addr %s246, 2
      %s248 = scalar_lea.vmem %s6, %s247
      %p249 = scmp.lt.s32.totalorder %s18, 1
      %s250 = scalar_select %p249, %s18, 1
      %s251 = smul.addr %s250, 36
      %s252 = smul.addr %s251, 8
      %s253 = scalar_lea.vmem %s0, %s252
      %p254 = scmp.lt.s32.totalorder %s18, 1
      %s255 = scalar_select %p254, %s18, 1
      %s256 = smul.addr %s255, 36
      %s257 = smul.addr %s256, 8
      %s258 = scalar_lea.vmem %s5, %s257
      %p259 = scmp.lt.s32.totalorder %s18, 1
      %s260 = scalar_select %p259, %s18, 1
      %s261 = smul.addr %s260, 2
      %s262 = scalar_lea.vmem %s6, %s261
      %v263 = vld [vmem:[%s4] sm:$0xff]
      %v264 = vld [vmem:[%s4 + $0x8] sm:$0xff]
      %v265 = vld [vmem:[%s4 + $0x10] sm:$0xff]
      %v266 = vld [vmem:[%s4 + $0x18] sm:$0xff]
      %v267 = vld [vmem:[%s4 + $0x20] sm:$0xff]
      %v268 = vld [vmem:[%s4 + $0x28] sm:$0xff]
      %v269 = vld [vmem:[%s4 + $0x30] sm:$0xff]
      %v270 = vld [vmem:[%s4 + $0x38] sm:$0xff]
      %v271 = vld [vmem:[%s4 + $0x40] sm:$0xff]
      %v272 = vld [vmem:[%s4 + $0x48] sm:$0xff]
      %v273 = vld [vmem:[%s4 + $0x50] sm:$0xff]
      %v274 = vld [vmem:[%s4 + $0x58] sm:$0xff]
      %v275 = vld [vmem:[%s4 + $0x60] sm:$0xff]
      %v276 = vld [vmem:[%s4 + $0x68] sm:$0xff]
      %v277 = vld [vmem:[%s4 + $0x70] sm:$0xff]
      %v278 = vld [vmem:[%s4 + $0x78] sm:$0xff]
      %v279 = vld [vmem:[%s4 + $0x80] sm:$0xff]
      %v280 = vld [vmem:[%s4 + $0x88] sm:$0xff]
      %v281 = vld [vmem:[%s4 + $0x90] sm:$0xff]
      %v282 = vld [vmem:[%s4 + $0x98] sm:$0xff]
      %v283 = vld [vmem:[%s4 + $0xa0] sm:$0xff]
      %v284 = vld [vmem:[%s4 + $0xa8] sm:$0xff]
      %v285 = vld [vmem:[%s4 + $0xb0] sm:$0xff]
      %v286 = vld [vmem:[%s4 + $0xb8] sm:$0xff]
      %v287 = vld [vmem:[%s4 + $0xc0] sm:$0xff]
      %v288 = vld [vmem:[%s4 + $0xc8] sm:$0xff]
      %v289 = vld [vmem:[%s4 + $0xd0] sm:$0xff]
      %v290 = vld [vmem:[%s4 + $0xd8] sm:$0xff]
      %v291 = vld [vmem:[%s4 + $0xe0] sm:$0xff]
      %v292 = vld [vmem:[%s4 + $0xe8] sm:$0xff]
      %v293 = vld [vmem:[%s4 + $0xf0] sm:$0xff]
      %v294 = vld [vmem:[%s4 + $0xf8] sm:$0xff]
      %v295 = vld [vmem:[%s4 + $0x100] sm:$0xff]
      %v296 = vld [vmem:[%s4 + $0x108] sm:$0xff]
      %v297 = vld [vmem:[%s4 + $0x110] sm:$0xff]
      %v298 = vld [vmem:[%s4 + $0x118] sm:$0xff]
      %v299 = vld [vmem:[%s253] sm:$0xff]
      %v300 = vld [vmem:[%s253 + $0x8] sm:$0xff]
      %v301 = vld [vmem:[%s253 + $0x10] sm:$0xff]
      %v302 = vld [vmem:[%s253 + $0x18] sm:$0xff]
      %v303 = vld [vmem:[%s253 + $0x20] sm:$0xff]
      %v304 = vld [vmem:[%s253 + $0x28] sm:$0xff]
      %v305 = vld [vmem:[%s253 + $0x30] sm:$0xff]
      %v306 = vld [vmem:[%s253 + $0x38] sm:$0xff]
      %v307 = vld [vmem:[%s253 + $0x40] sm:$0xff]
      %v308 = vld [vmem:[%s253 + $0x48] sm:$0xff]
      %v309 = vld [vmem:[%s253 + $0x50] sm:$0xff]
      %v310 = vld [vmem:[%s253 + $0x58] sm:$0xff]
      %v311 = vld [vmem:[%s253 + $0x60] sm:$0xff]
      %v312 = vld [vmem:[%s253 + $0x68] sm:$0xff]
      %v313 = vld [vmem:[%s253 + $0x70] sm:$0xff]
      %v314 = vld [vmem:[%s253 + $0x78] sm:$0xff]
      %v315 = vld [vmem:[%s253 + $0x80] sm:$0xff]
      %v316 = vld [vmem:[%s253 + $0x88] sm:$0xff]
      %v317 = vld [vmem:[%s253 + $0x90] sm:$0xff]
      %v318 = vld [vmem:[%s253 + $0x98] sm:$0xff]
      %v319 = vld [vmem:[%s253 + $0xa0] sm:$0xff]
      %v320 = vld [vmem:[%s253 + $0xa8] sm:$0xff]
      %v321 = vld [vmem:[%s253 + $0xb0] sm:$0xff]
      %v322 = vld [vmem:[%s253 + $0xb8] sm:$0xff]
      %v323 = vld [vmem:[%s253 + $0xc0] sm:$0xff]
      %v324 = vld [vmem:[%s253 + $0xc8] sm:$0xff]
      %v325 = vld [vmem:[%s253 + $0xd0] sm:$0xff]
      %v326 = vld [vmem:[%s253 + $0xd8] sm:$0xff]
      %v327 = vld [vmem:[%s253 + $0xe0] sm:$0xff]
      %v328 = vld [vmem:[%s253 + $0xe8] sm:$0xff]
      %v329 = vld [vmem:[%s253 + $0xf0] sm:$0xff]
      %v330 = vld [vmem:[%s253 + $0xf8] sm:$0xff]
      %v331 = vld [vmem:[%s253 + $0x100] sm:$0xff]
      %v332 = vld [vmem:[%s253 + $0x108] sm:$0xff]
      %v333 = vld [vmem:[%s253 + $0x110] sm:$0xff]
      %v334 = vld [vmem:[%s253 + $0x118] sm:$0xff]
      %v335 = vld [vmem:[%s2] sm:$0x1]
      %v337 = vperm.slane %v335, 0
      %v339 = vmul.f32 %v299, %v337
      %v340 = vmul.f32 %v300, %v337
      %v341 = vmul.f32 %v301, %v337
      %v342 = vmul.f32 %v302, %v337
      %v343 = vmul.f32 %v303, %v337
      %v344 = vmul.f32 %v304, %v337
      %v345 = vmul.f32 %v305, %v337
      %v346 = vmul.f32 %v306, %v337
      %v347 = vmul.f32 %v307, %v337
      %v348 = vmul.f32 %v308, %v337
      %v349 = vmul.f32 %v309, %v337
      %v350 = vmul.f32 %v310, %v337
      %v351 = vmul.f32 %v311, %v337
      %v352 = vmul.f32 %v312, %v337
      %v353 = vmul.f32 %v313, %v337
      %v354 = vmul.f32 %v314, %v337
      %v355 = vmul.f32 %v315, %v337
      %v356 = vmul.f32 %v316, %v337
      %v357 = vmul.f32 %v317, %v337
      %v358 = vmul.f32 %v318, %v337
      %v359 = vmul.f32 %v319, %v337
      %v360 = vmul.f32 %v320, %v337
      %v361 = vmul.f32 %v321, %v337
      %v362 = vmul.f32 %v322, %v337
      %v363 = vmul.f32 %v323, %v337
      %v364 = vmul.f32 %v324, %v337
      %v365 = vmul.f32 %v325, %v337
      %v366 = vmul.f32 %v326, %v337
      %v367 = vmul.f32 %v327, %v337
      %v368 = vmul.f32 %v328, %v337
      %v369 = vmul.f32 %v329, %v337
      %v370 = vmul.f32 %v330, %v337
      %v371 = vmul.f32 %v331, %v337
      %v372 = vmul.f32 %v332, %v337
      %v373 = vmul.f32 %v333, %v337
      %v374 = vmul.f32 %v334, %v337
      %v375 = vld [vmem:[%s3] sm:$0x1]
      %v377 = vperm.slane %v375, 0
      %v379 = vadd.f32 %v339, %v377
      %v380 = vadd.f32 %v340, %v377
      %v381 = vadd.f32 %v341, %v377
      %v382 = vadd.f32 %v342, %v377
      %v383 = vadd.f32 %v343, %v377
      %v384 = vadd.f32 %v344, %v377
      %v385 = vadd.f32 %v345, %v377
      %v386 = vadd.f32 %v346, %v377
      %v387 = vadd.f32 %v347, %v377
      %v388 = vadd.f32 %v348, %v377
      %v389 = vadd.f32 %v349, %v377
      %v390 = vadd.f32 %v350, %v377
      %v391 = vadd.f32 %v351, %v377
      %v392 = vadd.f32 %v352, %v377
      %v393 = vadd.f32 %v353, %v377
      %v394 = vadd.f32 %v354, %v377
      %v395 = vadd.f32 %v355, %v377
      %v396 = vadd.f32 %v356, %v377
      %v397 = vadd.f32 %v357, %v377
      %v398 = vadd.f32 %v358, %v377
      %v399 = vadd.f32 %v359, %v377
      %v400 = vadd.f32 %v360, %v377
      %v401 = vadd.f32 %v361, %v377
      %v402 = vadd.f32 %v362, %v377
      %v403 = vadd.f32 %v363, %v377
      %v404 = vadd.f32 %v364, %v377
      %v405 = vadd.f32 %v365, %v377
      %v406 = vadd.f32 %v366, %v377
      %v407 = vadd.f32 %v367, %v377
      %v408 = vadd.f32 %v368, %v377
      %v409 = vadd.f32 %v369, %v377
      %v410 = vadd.f32 %v370, %v377
      %v411 = vadd.f32 %v371, %v377
      %v412 = vadd.f32 %v372, %v377
      %v413 = vadd.f32 %v373, %v377
      %v414 = vadd.f32 %v374, %v377
      %vm415 = vcmp.gt.f32.partialorder %v379, 0.0
      %vm416 = vcmp.gt.f32.partialorder %v380, 0.0
      %vm417 = vcmp.gt.f32.partialorder %v381, 0.0
      %vm418 = vcmp.gt.f32.partialorder %v382, 0.0
      %vm419 = vcmp.gt.f32.partialorder %v383, 0.0
      %vm420 = vcmp.gt.f32.partialorder %v384, 0.0
      %vm421 = vcmp.gt.f32.partialorder %v385, 0.0
      %vm422 = vcmp.gt.f32.partialorder %v386, 0.0
      %vm423 = vcmp.gt.f32.partialorder %v387, 0.0
      %vm424 = vcmp.gt.f32.partialorder %v388, 0.0
      %vm425 = vcmp.gt.f32.partialorder %v389, 0.0
      %vm426 = vcmp.gt.f32.partialorder %v390, 0.0
      %vm427 = vcmp.gt.f32.partialorder %v391, 0.0
      %vm428 = vcmp.gt.f32.partialorder %v392, 0.0
      %vm429 = vcmp.gt.f32.partialorder %v393, 0.0
      %vm430 = vcmp.gt.f32.partialorder %v394, 0.0
      %vm431 = vcmp.gt.f32.partialorder %v395, 0.0
      %vm432 = vcmp.gt.f32.partialorder %v396, 0.0
      %vm433 = vcmp.gt.f32.partialorder %v397, 0.0
      %vm434 = vcmp.gt.f32.partialorder %v398, 0.0
      %vm435 = vcmp.gt.f32.partialorder %v399, 0.0
      %vm436 = vcmp.gt.f32.partialorder %v400, 0.0
      %vm437 = vcmp.gt.f32.partialorder %v401, 0.0
      %vm438 = vcmp.gt.f32.partialorder %v402, 0.0
      %vm439 = vcmp.gt.f32.partialorder %v403, 0.0
      %vm440 = vcmp.gt.f32.partialorder %v404, 0.0
      %vm441 = vcmp.gt.f32.partialorder %v405, 0.0
      %vm442 = vcmp.gt.f32.partialorder %v406, 0.0
      %vm443 = vcmp.gt.f32.partialorder %v407, 0.0
      %vm444 = vcmp.gt.f32.partialorder %v408, 0.0
      %vm445 = vcmp.gt.f32.partialorder %v409, 0.0
      %vm446 = vcmp.gt.f32.partialorder %v410, 0.0
      %vm447 = vcmp.gt.f32.partialorder %v411, 0.0
      %vm448 = vcmp.gt.f32.partialorder %v412, 0.0
      %vm449 = vcmp.gt.f32.partialorder %v413, 0.0
      %vm450 = vcmp.gt.f32.partialorder %v414, 0.0
      %v451 = vmul.f32 %v379, 0.01
      %v452 = vmul.f32 %v380, 0.01
      %v453 = vmul.f32 %v381, 0.01
      %v454 = vmul.f32 %v382, 0.01
      %v455 = vmul.f32 %v383, 0.01
      %v456 = vmul.f32 %v384, 0.01
      %v457 = vmul.f32 %v385, 0.01
      %v458 = vmul.f32 %v386, 0.01
      %v459 = vmul.f32 %v387, 0.01
      %v460 = vmul.f32 %v388, 0.01
      %v461 = vmul.f32 %v389, 0.01
      %v462 = vmul.f32 %v390, 0.01
      %v463 = vmul.f32 %v391, 0.01
      %v464 = vmul.f32 %v392, 0.01
      %v465 = vmul.f32 %v393, 0.01
      %v466 = vmul.f32 %v394, 0.01
      %v467 = vmul.f32 %v395, 0.01
      %v468 = vmul.f32 %v396, 0.01
      %v469 = vmul.f32 %v397, 0.01
      %v470 = vmul.f32 %v398, 0.01
      %v471 = vmul.f32 %v399, 0.01
      %v472 = vmul.f32 %v400, 0.01
      %v473 = vmul.f32 %v401, 0.01
      %v474 = vmul.f32 %v402, 0.01
      %v475 = vmul.f32 %v403, 0.01
      %v476 = vmul.f32 %v404, 0.01
      %v477 = vmul.f32 %v405, 0.01
      %v478 = vmul.f32 %v406, 0.01
      %v479 = vmul.f32 %v407, 0.01
      %v480 = vmul.f32 %v408, 0.01
      %v481 = vmul.f32 %v409, 0.01
      %v482 = vmul.f32 %v410, 0.01
      %v483 = vmul.f32 %v411, 0.01
      %v484 = vmul.f32 %v412, 0.01
      %v485 = vmul.f32 %v413, 0.01
      %v486 = vmul.f32 %v414, 0.01
      %v487 = vsel %vm415, %v379, %v451
      %v488 = vsel %vm416, %v380, %v452
      %v489 = vsel %vm417, %v381, %v453
      %v490 = vsel %vm418, %v382, %v454
      %v491 = vsel %vm419, %v383, %v455
      %v492 = vsel %vm420, %v384, %v456
      %v493 = vsel %vm421, %v385, %v457
      %v494 = vsel %vm422, %v386, %v458
      %v495 = vsel %vm423, %v387, %v459
      %v496 = vsel %vm424, %v388, %v460
      %v497 = vsel %vm425, %v389, %v461
      %v498 = vsel %vm426, %v390, %v462
      %v499 = vsel %vm427, %v391, %v463
      %v500 = vsel %vm428, %v392, %v464
      %v501 = vsel %vm429, %v393, %v465
      %v502 = vsel %vm430, %v394, %v466
      %v503 = vsel %vm431, %v395, %v467
      %v504 = vsel %vm432, %v396, %v468
      %v505 = vsel %vm433, %v397, %v469
      %v506 = vsel %vm434, %v398, %v470
      %v507 = vsel %vm435, %v399, %v471
      %v508 = vsel %vm436, %v400, %v472
      %v509 = vsel %vm437, %v401, %v473
      %v510 = vsel %vm438, %v402, %v474
      %v511 = vsel %vm439, %v403, %v475
      %v512 = vsel %vm440, %v404, %v476
      %v513 = vsel %vm441, %v405, %v477
      %v514 = vsel %vm442, %v406, %v478
      %v515 = vsel %vm443, %v407, %v479
      %v516 = vsel %vm444, %v408, %v480
      %v517 = vsel %vm445, %v409, %v481
      %v518 = vsel %vm446, %v410, %v482
      %v519 = vsel %vm447, %v411, %v483
      %v520 = vsel %vm448, %v412, %v484
      %v521 = vsel %vm449, %v413, %v485
      %v522 = vsel %vm450, %v414, %v486
      %524 = vset.pattern.permute.xlu0 0
      %525 = vperm.xlu0 %524, %v263
      %v526 = vpop.permute.xlu0 %525
      %529 = vset.pattern.permute.xlu0 0
      %530 = vperm.xlu0 %529, %v264
      %v531 = vpop.permute.xlu0 %530
      %534 = vset.pattern.permute.xlu0 0
      %535 = vperm.xlu0 %534, %v265
      %v536 = vpop.permute.xlu0 %535
      %539 = vset.pattern.permute.xlu0 0
      %540 = vperm.xlu0 %539, %v266
      %v541 = vpop.permute.xlu0 %540
      %544 = vset.pattern.permute.xlu0 0
      %545 = vperm.xlu0 %544, %v267
      %v546 = vpop.permute.xlu0 %545
      %549 = vset.pattern.permute.xlu0 0
      %550 = vperm.xlu0 %549, %v268
      %v551 = vpop.permute.xlu0 %550
      %554 = vset.pattern.permute.xlu0 0
      %555 = vperm.xlu0 %554, %v269
      %v556 = vpop.permute.xlu0 %555
      %559 = vset.pattern.permute.xlu0 0
      %560 = vperm.xlu0 %559, %v270
      %v561 = vpop.permute.xlu0 %560
      %564 = vset.pattern.permute.xlu0 0
      %565 = vperm.xlu0 %564, %v271
      %v566 = vpop.permute.xlu0 %565
      %569 = vset.pattern.permute.xlu0 0
      %570 = vperm.xlu0 %569, %v272
      %v571 = vpop.permute.xlu0 %570
      %574 = vset.pattern.permute.xlu0 0
      %575 = vperm.xlu0 %574, %v273
      %v576 = vpop.permute.xlu0 %575
      %579 = vset.pattern.permute.xlu0 0
      %580 = vperm.xlu0 %579, %v274
      %v581 = vpop.permute.xlu0 %580
      %584 = vset.pattern.permute.xlu0 0
      %585 = vperm.xlu0 %584, %v275
      %v586 = vpop.permute.xlu0 %585
      %589 = vset.pattern.permute.xlu0 0
      %590 = vperm.xlu0 %589, %v276
      %v591 = vpop.permute.xlu0 %590
      %594 = vset.pattern.permute.xlu0 0
      %595 = vperm.xlu0 %594, %v277
      %v596 = vpop.permute.xlu0 %595
      %599 = vset.pattern.permute.xlu0 0
      %600 = vperm.xlu0 %599, %v278
      %v601 = vpop.permute.xlu0 %600
      %604 = vset.pattern.permute.xlu0 0
      %605 = vperm.xlu0 %604, %v279
      %v606 = vpop.permute.xlu0 %605
      %609 = vset.pattern.permute.xlu0 0
      %610 = vperm.xlu0 %609, %v280
      %v611 = vpop.permute.xlu0 %610
      %614 = vset.pattern.permute.xlu0 0
      %615 = vperm.xlu0 %614, %v281
      %v616 = vpop.permute.xlu0 %615
      %619 = vset.pattern.permute.xlu0 0
      %620 = vperm.xlu0 %619, %v282
      %v621 = vpop.permute.xlu0 %620
      %624 = vset.pattern.permute.xlu0 0
      %625 = vperm.xlu0 %624, %v283
      %v626 = vpop.permute.xlu0 %625
      %629 = vset.pattern.permute.xlu0 0
      %630 = vperm.xlu0 %629, %v284
      %v631 = vpop.permute.xlu0 %630
      %634 = vset.pattern.permute.xlu0 0
      %635 = vperm.xlu0 %634, %v285
      %v636 = vpop.permute.xlu0 %635
      %639 = vset.pattern.permute.xlu0 0
      %640 = vperm.xlu0 %639, %v286
      %v641 = vpop.permute.xlu0 %640
      %644 = vset.pattern.permute.xlu0 0
      %645 = vperm.xlu0 %644, %v287
      %v646 = vpop.permute.xlu0 %645
      %649 = vset.pattern.permute.xlu0 0
      %650 = vperm.xlu0 %649, %v288
      %v651 = vpop.permute.xlu0 %650
      %654 = vset.pattern.permute.xlu0 0
      %655 = vperm.xlu0 %654, %v289
      %v656 = vpop.permute.xlu0 %655
      %659 = vset.pattern.permute.xlu0 0
      %660 = vperm.xlu0 %659, %v290
      %v661 = vpop.permute.xlu0 %660
      %664 = vset.pattern.permute.xlu0 0
      %665 = vperm.xlu0 %664, %v291
      %v666 = vpop.permute.xlu0 %665
      %669 = vset.pattern.permute.xlu0 0
      %670 = vperm.xlu0 %669, %v292
      %v671 = vpop.permute.xlu0 %670
      %674 = vset.pattern.permute.xlu0 0
      %675 = vperm.xlu0 %674, %v293
      %v676 = vpop.permute.xlu0 %675
      %679 = vset.pattern.permute.xlu0 0
      %680 = vperm.xlu0 %679, %v294
      %v681 = vpop.permute.xlu0 %680
      %684 = vset.pattern.permute.xlu0 0
      %685 = vperm.xlu0 %684, %v295
      %v686 = vpop.permute.xlu0 %685
      %689 = vset.pattern.permute.xlu0 0
      %690 = vperm.xlu0 %689, %v296
      %v691 = vpop.permute.xlu0 %690
      %694 = vset.pattern.permute.xlu0 0
      %695 = vperm.xlu0 %694, %v297
      %v696 = vpop.permute.xlu0 %695
      %699 = vset.pattern.permute.xlu0 0
      %700 = vperm.xlu0 %699, %v298
      %v701 = vpop.permute.xlu0 %700
      %v703 = vmul.f32 %v487, %v526
      %v704 = vmul.f32 %v488, %v531
      %v705 = vmul.f32 %v489, %v536
      %v706 = vmul.f32 %v490, %v541
      %v707 = vmul.f32 %v491, %v546
      %v708 = vmul.f32 %v492, %v551
      %v709 = vmul.f32 %v493, %v556
      %v710 = vmul.f32 %v494, %v561
      %v711 = vmul.f32 %v495, %v566
      %v712 = vmul.f32 %v496, %v571
      %v713 = vmul.f32 %v497, %v576
      %v714 = vmul.f32 %v498, %v581
      %v715 = vmul.f32 %v499, %v586
      %v716 = vmul.f32 %v500, %v591
      %v717 = vmul.f32 %v501, %v596
      %v718 = vmul.f32 %v502, %v601
      %v719 = vmul.f32 %v503, %v606
      %v720 = vmul.f32 %v504, %v611
      %v721 = vmul.f32 %v505, %v616
      %v722 = vmul.f32 %v506, %v621
      %v723 = vmul.f32 %v507, %v626
      %v724 = vmul.f32 %v508, %v631
      %v725 = vmul.f32 %v509, %v636
      %v726 = vmul.f32 %v510, %v641
      %v727 = vmul.f32 %v511, %v646
      %v728 = vmul.f32 %v512, %v651
      %v729 = vmul.f32 %v513, %v656
      %v730 = vmul.f32 %v514, %v661
      %v731 = vmul.f32 %v515, %v666
      %v732 = vmul.f32 %v516, %v671
      %v733 = vmul.f32 %v517, %v676
      %v734 = vmul.f32 %v518, %v681
      %v735 = vmul.f32 %v519, %v686
      %v736 = vmul.f32 %v520, %v691
      %v737 = vmul.f32 %v521, %v696
      %v738 = vmul.f32 %v522, %v701
      %739 = vst [vmem:[#allocation2] sm:$0xff] 0.0
      %740 = vst [vmem:[#allocation2 + $0x8] sm:$0xff] 0.0
      %741 = vst [vmem:[#allocation2 + $0x10] sm:$0xff] 0.0
      %742 = vst [vmem:[#allocation2 + $0x18] sm:$0xff] %v703
      %743 = vst [vmem:[#allocation2 + $0x20] sm:$0xff] %v704
      %744 = vst [vmem:[#allocation2 + $0x28] sm:$0xff] %v705
      %745 = vst [vmem:[#allocation2 + $0x30] sm:$0xff] %v706
      %746 = vst [vmem:[#allocation2 + $0x38] sm:$0xff] %v707
      %747 = vst [vmem:[#allocation2 + $0x40] sm:$0xff] %v708
      %748 = vst [vmem:[#allocation2 + $0x48] sm:$0xff] %v709
      %749 = vst [vmem:[#allocation2 + $0x50] sm:$0xff] %v710
      %750 = vst [vmem:[#allocation2 + $0x58] sm:$0xff] %v711
      %751 = vst [vmem:[#allocation2 + $0x60] sm:$0xff] %v712
      %752 = vst [vmem:[#allocation2 + $0x68] sm:$0xff] %v713
      %753 = vst [vmem:[#allocation2 + $0x70] sm:$0xff] %v714
      %754 = vst [vmem:[#allocation2 + $0x78] sm:$0xff] %v715
      %755 = vst [vmem:[#allocation2 + $0x80] sm:$0xff] %v716
      %756 = vst [vmem:[#allocation2 + $0x88] sm:$0xff] %v717
      %757 = vst [vmem:[#allocation2 + $0x90] sm:$0xff] %v718
      %758 = vst [vmem:[#allocation2 + $0x98] sm:$0xff] %v719
      %759 = vst [vmem:[#allocation2 + $0xa0] sm:$0xff] %v720
      %760 = vst [vmem:[#allocation2 + $0xa8] sm:$0xff] %v721
      %761 = vst [vmem:[#allocation2 + $0xb0] sm:$0xff] %v722
      %762 = vst [vmem:[#allocation2 + $0xb8] sm:$0xff] %v723
      %763 = vst [vmem:[#allocation2 + $0xc0] sm:$0xff] %v724
      %764 = vst [vmem:[#allocation2 + $0xc8] sm:$0xff] %v725
      %765 = vst [vmem:[#allocation2 + $0xd0] sm:$0xff] %v726
      %766 = vst [vmem:[#allocation2 + $0xd8] sm:$0xff] %v727
      %767 = vst [vmem:[#allocation2 + $0xe0] sm:$0xff] %v728
      %768 = vst [vmem:[#allocation2 + $0xe8] sm:$0xff] %v729
      %769 = vst [vmem:[#allocation2 + $0xf0] sm:$0xff] %v730
      %770 = vst [vmem:[#allocation2 + $0xf8] sm:$0xff] %v731
      %771 = vst [vmem:[#allocation2 + $0x100] sm:$0xff] %v732
      %772 = vst [vmem:[#allocation2 + $0x108] sm:$0xff] %v733
      %773 = vst [vmem:[#allocation2 + $0x110] sm:$0xff] %v734
      %774 = vst [vmem:[#allocation2 + $0x118] sm:$0xff] %v735
      %775 = vst [vmem:[#allocation2 + $0x120] sm:$0xff] %v736
      %776 = vst [vmem:[#allocation2 + $0x128] sm:$0xff] %v737
      %777 = vst [vmem:[#allocation2 + $0x130] sm:$0xff] %v738
      %778 = vst [vmem:[#allocation2 + $0x138] sm:$0xff] 0.0
      %779 = vst [vmem:[#allocation2 + $0x140] sm:$0xff] 0.0
      %780 = vst [vmem:[#allocation2 + $0x148] sm:$0x7] 0.0
      %v781 = vld [vmem:[#allocation2 + $0x5] sm:$0xff]
      %v782 = vld [vmem:[#allocation2 + $0xd] sm:$0xff]
      %v783 = vld [vmem:[#allocation2 + $0x15] sm:$0xff]
      %v784 = vld [vmem:[#allocation2 + $0x1d] sm:$0xff]
      %v785 = vld [vmem:[#allocation2 + $0x25] sm:$0xff]
      %v786 = vld [vmem:[#allocation2 + $0x2d] sm:$0xff]
      %v787 = vld [vmem:[#allocation2 + $0x35] sm:$0xff]
      %v788 = vld [vmem:[#allocation2 + $0x3d] sm:$0xff]
      %v789 = vld [vmem:[#allocation2 + $0x45] sm:$0xff]
      %v790 = vld [vmem:[#allocation2 + $0x4d] sm:$0xff]
      %v791 = vld [vmem:[#allocation2 + $0x55] sm:$0xff]
      %v792 = vld [vmem:[#allocation2 + $0x5d] sm:$0xff]
      %v793 = vld [vmem:[#allocation2 + $0x65] sm:$0xff]
      %v794 = vld [vmem:[#allocation2 + $0x6d] sm:$0xff]
      %v795 = vld [vmem:[#allocation2 + $0x75] sm:$0xff]
      %v796 = vld [vmem:[#allocation2 + $0x7d] sm:$0xff]
      %v797 = vld [vmem:[#allocation2 + $0x85] sm:$0xff]
      %v798 = vld [vmem:[#allocation2 + $0x8d] sm:$0xff]
      %v799 = vld [vmem:[#allocation2 + $0x95] sm:$0xff]
      %v800 = vld [vmem:[#allocation2 + $0x9d] sm:$0xff]
      %v801 = vld [vmem:[#allocation2 + $0xa5] sm:$0xff]
      %v802 = vld [vmem:[#allocation2 + $0xad] sm:$0xff]
      %v803 = vld [vmem:[#allocation2 + $0xb5] sm:$0xff]
      %v804 = vld [vmem:[#allocation2 + $0xbd] sm:$0xff]
      %v805 = vld [vmem:[#allocation2 + $0xc5] sm:$0xff]
      %v806 = vld [vmem:[#allocation2 + $0xcd] sm:$0xff]
      %v807 = vld [vmem:[#allocation2 + $0xd5] sm:$0xff]
      %v808 = vld [vmem:[#allocation2 + $0xdd] sm:$0xff]
      %v809 = vld [vmem:[#allocation2 + $0xe5] sm:$0xff]
      %v810 = vld [vmem:[#allocation2 + $0xed] sm:$0xff]
      %v811 = vld [vmem:[#allocation2 + $0xf5] sm:$0xff]
      %v812 = vld [vmem:[#allocation2 + $0xfd] sm:$0xff]
      %v813 = vld [vmem:[#allocation2 + $0x105] sm:$0xff]
      %v814 = vld [vmem:[#allocation2 + $0x10d] sm:$0xff]
      %v815 = vld [vmem:[#allocation2 + $0x115] sm:$0xff]
      %v816 = vld [vmem:[#allocation2 + $0x11d] sm:$0xff]
      %v817 = vld [vmem:[%s1] sm:$0xff]
      %v818 = vld [vmem:[%s1 + $0x8] sm:$0xff]
      %v819 = vld [vmem:[%s1 + $0x10] sm:$0xff]
      %v820 = vld [vmem:[%s1 + $0x18] sm:$0xff]
      %v821 = vld [vmem:[%s1 + $0x20] sm:$0xff]
      %v822 = vld [vmem:[%s1 + $0x28] sm:$0xff]
      %v823 = vld [vmem:[%s1 + $0x30] sm:$0xff]
      %v824 = vld [vmem:[%s1 + $0x38] sm:$0xff]
      %v825 = vld [vmem:[%s1 + $0x40] sm:$0xff]
      %v826 = vld [vmem:[%s1 + $0x48] sm:$0xff]
      %v827 = vld [vmem:[%s1 + $0x50] sm:$0xff]
      %v828 = vld [vmem:[%s1 + $0x58] sm:$0xff]
      %v829 = vld [vmem:[%s1 + $0x60] sm:$0xff]
      %v830 = vld [vmem:[%s1 + $0x68] sm:$0xff]
      %v831 = vld [vmem:[%s1 + $0x70] sm:$0xff]
      %v832 = vld [vmem:[%s1 + $0x78] sm:$0xff]
      %v833 = vld [vmem:[#allocation2 + $0x6] sm:$0xff]
      %v834 = vld [vmem:[#allocation2 + $0xe] sm:$0xff]
      %v835 = vld [vmem:[#allocation2 + $0x16] sm:$0xff]
      %v836 = vld [vmem:[#allocation2 + $0x1e] sm:$0xff]
      %v837 = vld [vmem:[#allocation2 + $0x26] sm:$0xff]
      %v838 = vld [vmem:[#allocation2 + $0x2e] sm:$0xff]
      %v839 = vld [vmem:[#allocation2 + $0x36] sm:$0xff]
      %v840 = vld [vmem:[#allocation2 + $0x3e] sm:$0xff]
      %v841 = vld [vmem:[#allocation2 + $0x46] sm:$0xff]
      %v842 = vld [vmem:[#allocation2 + $0x4e] sm:$0xff]
      %v843 = vld [vmem:[#allocation2 + $0x56] sm:$0xff]
      %v844 = vld [vmem:[#allocation2 + $0x5e] sm:$0xff]
      %v845 = vld [vmem:[#allocation2 + $0x66] sm:$0xff]
      %v846 = vld [vmem:[#allocation2 + $0x6e] sm:$0xff]
      %v847 = vld [vmem:[#allocation2 + $0x76] sm:$0xff]
      %v848 = vld [vmem:[#allocation2 + $0x7e] sm:$0xff]
      %v849 = vld [vmem:[#allocation2 + $0x86] sm:$0xff]
      %v850 = vld [vmem:[#allocation2 + $0x8e] sm:$0xff]
      %v851 = vld [vmem:[#allocation2 + $0x96] sm:$0xff]
      %v852 = vld [vmem:[#allocation2 + $0x9e] sm:$0xff]
      %v853 = vld [vmem:[#allocation2 + $0xa6] sm:$0xff]
      %v854 = vld [vmem:[#allocation2 + $0xae] sm:$0xff]
      %v855 = vld [vmem:[#allocation2 + $0xb6] sm:$0xff]
      %v856 = vld [vmem:[#allocation2 + $0xbe] sm:$0xff]
      %v857 = vld [vmem:[#allocation2 + $0xc6] sm:$0xff]
      %v858 = vld [vmem:[#allocation2 + $0xce] sm:$0xff]
      %v859 = vld [vmem:[#allocation2 + $0xd6] sm:$0xff]
      %v860 = vld [vmem:[#allocation2 + $0xde] sm:$0xff]
      %v861 = vld [vmem:[#allocation2 + $0xe6] sm:$0xff]
      %v862 = vld [vmem:[#allocation2 + $0xee] sm:$0xff]
      %v863 = vld [vmem:[#allocation2 + $0xf6] sm:$0xff]
      %v864 = vld [vmem:[#allocation2 + $0xfe] sm:$0xff]
      %v865 = vld [vmem:[#allocation2 + $0x106] sm:$0xff]
      %v866 = vld [vmem:[#allocation2 + $0x10e] sm:$0xff]
      %v867 = vld [vmem:[#allocation2 + $0x116] sm:$0xff]
      %v868 = vld [vmem:[#allocation2 + $0x11e] sm:$0xff]
      %v869 = vld [vmem:[%s1 + $0x80] sm:$0xff]
      %v870 = vld [vmem:[%s1 + $0x88] sm:$0xff]
      %v871 = vld [vmem:[%s1 + $0x90] sm:$0xff]
      %v872 = vld [vmem:[%s1 + $0x98] sm:$0xff]
      %v873 = vld [vmem:[%s1 + $0xa0] sm:$0xff]
      %v874 = vld [vmem:[%s1 + $0xa8] sm:$0xff]
      %v875 = vld [vmem:[%s1 + $0xb0] sm:$0xff]
      %v876 = vld [vmem:[%s1 + $0xb8] sm:$0xff]
      %v877 = vld [vmem:[%s1 + $0xc0] sm:$0xff]
      %v878 = vld [vmem:[%s1 + $0xc8] sm:$0xff]
      %v879 = vld [vmem:[%s1 + $0xd0] sm:$0xff]
      %v880 = vld [vmem:[%s1 + $0xd8] sm:$0xff]
      %v881 = vld [vmem:[%s1 + $0xe0] sm:$0xff]
      %v882 = vld [vmem:[%s1 + $0xe8] sm:$0xff]
      %v883 = vld [vmem:[%s1 + $0xf0] sm:$0xff]
      %v884 = vld [vmem:[%s1 + $0xf8] sm:$0xff]
      %885 = vmatpush.msra.mxu0 %v884
      %886 = vmatpush.msra.mxu0 %v883
      %887 = vmatpush.msra.mxu0 %v882
      %888 = vmatpush.msra.mxu0 %v881
      %889 = vmatpush.msra.mxu0 %v880
      %890 = vmatpush.msra.mxu0 %v879
      %891 = vmatpush.msra.mxu0 %v878
      %892 = vmatpush.msra.mxu0 %v877
      %893 = vmatpush.msra.mxu0 %v876
      %894 = vmatpush.msra.mxu0 %v875
      %895 = vmatpush.msra.mxu0 %v874
      %896 = vmatpush.msra.mxu0 %v873
      %897 = vmatpush.msra.mxu0 %v872
      %898 = vmatpush.msra.mxu0 %v871
      %899 = vmatpush.msra.mxu0 %v870
      %900 = vmatpush.msra.mxu0 %v869
      %901 = vmatmul.f32.gmra.mxu0 %v833
      %v902 = vpop.f32.mrf.mxu0
      %v903 = vadd.f32 0.0, %v902
      %904 = vmatmul.f32.gmra.mxu0 %v834
      %v905 = vpop.f32.mrf.mxu0
      %v906 = vadd.f32 0.0, %v905
      %907 = vmatmul.f32.gmra.mxu0 %v835
      %v908 = vpop.f32.mrf.mxu0
      %v909 = vadd.f32 0.0, %v908
      %910 = vmatmul.f32.gmra.mxu0 %v836
      %v911 = vpop.f32.mrf.mxu0
      %v912 = vadd.f32 0.0, %v911
      %913 = vmatmul.f32.gmra.mxu0 %v837
      %v914 = vpop.f32.mrf.mxu0
      %v915 = vadd.f32 0.0, %v914
      %916 = vmatmul.f32.gmra.mxu0 %v838
      %v917 = vpop.f32.mrf.mxu0
      %v918 = vadd.f32 0.0, %v917
      %919 = vmatmul.f32.gmra.mxu0 %v839
      %v920 = vpop.f32.mrf.mxu0
      %v921 = vadd.f32 0.0, %v920
      %922 = vmatmul.f32.gmra.mxu0 %v840
      %v923 = vpop.f32.mrf.mxu0
      %v924 = vadd.f32 0.0, %v923
      %925 = vmatmul.f32.gmra.mxu0 %v841
      %v926 = vpop.f32.mrf.mxu0
      %v927 = vadd.f32 0.0, %v926
      %928 = vmatmul.f32.gmra.mxu0 %v842
      %v929 = vpop.f32.mrf.mxu0
      %v930 = vadd.f32 0.0, %v929
      %931 = vmatmul.f32.gmra.mxu0 %v843
      %v932 = vpop.f32.mrf.mxu0
      %v933 = vadd.f32 0.0, %v932
      %934 = vmatmul.f32.gmra.mxu0 %v844
      %v935 = vpop.f32.mrf.mxu0
      %v936 = vadd.f32 0.0, %v935
      %937 = vmatmul.f32.gmra.mxu0 %v845
      %v938 = vpop.f32.mrf.mxu0
      %v939 = vadd.f32 0.0, %v938
      %940 = vmatmul.f32.gmra.mxu0 %v846
      %v941 = vpop.f32.mrf.mxu0
      %v942 = vadd.f32 0.0, %v941
      %943 = vmatmul.f32.gmra.mxu0 %v847
      %v944 = vpop.f32.mrf.mxu0
      %v945 = vadd.f32 0.0, %v944
      %946 = vmatmul.f32.gmra.mxu0 %v848
      %v947 = vpop.f32.mrf.mxu0
      %v948 = vadd.f32 0.0, %v947
      %949 = vmatmul.f32.gmra.mxu0 %v849
      %v950 = vpop.f32.mrf.mxu0
      %v951 = vadd.f32 0.0, %v950
      %952 = vmatmul.f32.gmra.mxu0 %v850
      %v953 = vpop.f32.mrf.mxu0
      %v954 = vadd.f32 0.0, %v953
      %955 = vmatmul.f32.gmra.mxu0 %v851
      %v956 = vpop.f32.mrf.mxu0
      %v957 = vadd.f32 0.0, %v956
      %958 = vmatmul.f32.gmra.mxu0 %v852
      %v959 = vpop.f32.mrf.mxu0
      %v960 = vadd.f32 0.0, %v959
      %961 = vmatmul.f32.gmra.mxu0 %v853
      %v962 = vpop.f32.mrf.mxu0
      %v963 = vadd.f32 0.0, %v962
      %964 = vmatmul.f32.gmra.mxu0 %v854
      %v965 = vpop.f32.mrf.mxu0
      %v966 = vadd.f32 0.0, %v965
      %967 = vmatmul.f32.gmra.mxu0 %v855
      %v968 = vpop.f32.mrf.mxu0
      %v969 = vadd.f32 0.0, %v968
      %970 = vmatmul.f32.gmra.mxu0 %v856
      %v971 = vpop.f32.mrf.mxu0
      %v972 = vadd.f32 0.0, %v971
      %973 = vmatmul.f32.gmra.mxu0 %v857
      %v974 = vpop.f32.mrf.mxu0
      %v975 = vadd.f32 0.0, %v974
      %976 = vmatmul.f32.gmra.mxu0 %v858
      %v977 = vpop.f32.mrf.mxu0
      %v978 = vadd.f32 0.0, %v977
      %979 = vmatmul.f32.gmra.mxu0 %v859
      %v980 = vpop.f32.mrf.mxu0
      %v981 = vadd.f32 0.0, %v980
      %982 = vmatmul.f32.gmra.mxu0 %v860
      %v983 = vpop.f32.mrf.mxu0
      %v984 = vadd.f32 0.0, %v983
      %985 = vmatmul.f32.gmra.mxu0 %v861
      %v986 = vpop.f32.mrf.mxu0
      %v987 = vadd.f32 0.0, %v986
      %988 = vmatmul.f32.gmra.mxu0 %v862
      %v989 = vpop.f32.mrf.mxu0
      %v990 = vadd.f32 0.0, %v989
      %991 = vmatmul.f32.gmra.mxu0 %v863
      %v992 = vpop.f32.mrf.mxu0
      %v993 = vadd.f32 0.0, %v992
      %994 = vmatmul.f32.gmra.mxu0 %v864
      %v995 = vpop.f32.mrf.mxu0
      %v996 = vadd.f32 0.0, %v995
      %997 = vmatmul.f32.gmra.mxu0 %v865
      %v998 = vpop.f32.mrf.mxu0
      %v999 = vadd.f32 0.0, %v998
      %1000 = vmatmul.f32.gmra.mxu0 %v866
      %v1001 = vpop.f32.mrf.mxu0
      %v1002 = vadd.f32 0.0, %v1001
      %1003 = vmatmul.f32.gmra.mxu0 %v867
      %v1004 = vpop.f32.mrf.mxu0
      %v1005 = vadd.f32 0.0, %v1004
      %1006 = vmatmul.f32.gmra.mxu0 %v868
      %v1007 = vpop.f32.mrf.mxu0
      %v1008 = vadd.f32 0.0, %v1007
      %1009 = vdwg.mxu0
      %1010 = vmatpush.msra.mxu0 %v832
      %1011 = vmatpush.msra.mxu0 %v831
      %1012 = vmatpush.msra.mxu0 %v830
      %1013 = vmatpush.msra.mxu0 %v829
      %1014 = vmatpush.msra.mxu0 %v828
      %1015 = vmatpush.msra.mxu0 %v827
      %1016 = vmatpush.msra.mxu0 %v826
      %1017 = vmatpush.msra.mxu0 %v825
      %1018 = vmatpush.msra.mxu0 %v824
      %1019 = vmatpush.msra.mxu0 %v823
      %1020 = vmatpush.msra.mxu0 %v822
      %1021 = vmatpush.msra.mxu0 %v821
      %1022 = vmatpush.msra.mxu0 %v820
      %1023 = vmatpush.msra.mxu0 %v819
      %1024 = vmatpush.msra.mxu0 %v818
      %1025 = vmatpush.msra.mxu0 %v817
      %1026 = vmatmul.f32.gmra.mxu0 %v781
      %v1027 = vpop.f32.mrf.mxu0
      %v1028 = vadd.f32 %v903, %v1027
      %1029 = vmatmul.f32.gmra.mxu0 %v782
      %v1030 = vpop.f32.mrf.mxu0
      %v1031 = vadd.f32 %v906, %v1030
      %1032 = vmatmul.f32.gmra.mxu0 %v783
      %v1033 = vpop.f32.mrf.mxu0
      %v1034 = vadd.f32 %v909, %v1033
      %1035 = vmatmul.f32.gmra.mxu0 %v784
      %v1036 = vpop.f32.mrf.mxu0
      %v1037 = vadd.f32 %v912, %v1036
      %1038 = vmatmul.f32.gmra.mxu0 %v785
      %v1039 = vpop.f32.mrf.mxu0
      %v1040 = vadd.f32 %v915, %v1039
      %1041 = vmatmul.f32.gmra.mxu0 %v786
      %v1042 = vpop.f32.mrf.mxu0
      %v1043 = vadd.f32 %v918, %v1042
      %1044 = vmatmul.f32.gmra.mxu0 %v787
      %v1045 = vpop.f32.mrf.mxu0
      %v1046 = vadd.f32 %v921, %v1045
      %1047 = vmatmul.f32.gmra.mxu0 %v788
      %v1048 = vpop.f32.mrf.mxu0
      %v1049 = vadd.f32 %v924, %v1048
      %1050 = vmatmul.f32.gmra.mxu0 %v789
      %v1051 = vpop.f32.mrf.mxu0
      %v1052 = vadd.f32 %v927, %v1051
      %1053 = vmatmul.f32.gmra.mxu0 %v790
      %v1054 = vpop.f32.mrf.mxu0
      %v1055 = vadd.f32 %v930, %v1054
      %1056 = vmatmul.f32.gmra.mxu0 %v791
      %v1057 = vpop.f32.mrf.mxu0
      %v1058 = vadd.f32 %v933, %v1057
      %1059 = vmatmul.f32.gmra.mxu0 %v792
      %v1060 = vpop.f32.mrf.mxu0
      %v1061 = vadd.f32 %v936, %v1060
      %1062 = vmatmul.f32.gmra.mxu0 %v793
      %v1063 = vpop.f32.mrf.mxu0
      %v1064 = vadd.f32 %v939, %v1063
      %1065 = vmatmul.f32.gmra.mxu0 %v794
      %v1066 = vpop.f32.mrf.mxu0
      %v1067 = vadd.f32 %v942, %v1066
      %1068 = vmatmul.f32.gmra.mxu0 %v795
      %v1069 = vpop.f32.mrf.mxu0
      %v1070 = vadd.f32 %v945, %v1069
      %1071 = vmatmul.f32.gmra.mxu0 %v796
      %v1072 = vpop.f32.mrf.mxu0
      %v1073 = vadd.f32 %v948, %v1072
      %1074 = vmatmul.f32.gmra.mxu0 %v797
      %v1075 = vpop.f32.mrf.mxu0
      %v1076 = vadd.f32 %v951, %v1075
      %1077 = vmatmul.f32.gmra.mxu0 %v798
      %v1078 = vpop.f32.mrf.mxu0
      %v1079 = vadd.f32 %v954, %v1078
      %1080 = vmatmul.f32.gmra.mxu0 %v799
      %v1081 = vpop.f32.mrf.mxu0
      %v1082 = vadd.f32 %v957, %v1081
      %1083 = vmatmul.f32.gmra.mxu0 %v800
      %v1084 = vpop.f32.mrf.mxu0
      %v1085 = vadd.f32 %v960, %v1084
      %1086 = vmatmul.f32.gmra.mxu0 %v801
      %v1087 = vpop.f32.mrf.mxu0
      %v1088 = vadd.f32 %v963, %v1087
      %1089 = vmatmul.f32.gmra.mxu0 %v802
      %v1090 = vpop.f32.mrf.mxu0
      %v1091 = vadd.f32 %v966, %v1090
      %1092 = vmatmul.f32.gmra.mxu0 %v803
      %v1093 = vpop.f32.mrf.mxu0
      %v1094 = vadd.f32 %v969, %v1093
      %1095 = vmatmul.f32.gmra.mxu0 %v804
      %v1096 = vpop.f32.mrf.mxu0
      %v1097 = vadd.f32 %v972, %v1096
      %1098 = vmatmul.f32.gmra.mxu0 %v805
      %v1099 = vpop.f32.mrf.mxu0
      %v1100 = vadd.f32 %v975, %v1099
      %1101 = vmatmul.f32.gmra.mxu0 %v806
      %v1102 = vpop.f32.mrf.mxu0
      %v1103 = vadd.f32 %v978, %v1102
      %1104 = vmatmul.f32.gmra.mxu0 %v807
      %v1105 = vpop.f32.mrf.mxu0
      %v1106 = vadd.f32 %v981, %v1105
      %1107 = vmatmul.f32.gmra.mxu0 %v808
      %v1108 = vpop.f32.mrf.mxu0
      %v1109 = vadd.f32 %v984, %v1108
      %1110 = vmatmul.f32.gmra.mxu0 %v809
      %v1111 = vpop.f32.mrf.mxu0
      %v1112 = vadd.f32 %v987, %v1111
      %1113 = vmatmul.f32.gmra.mxu0 %v810
      %v1114 = vpop.f32.mrf.mxu0
      %v1115 = vadd.f32 %v990, %v1114
      %1116 = vmatmul.f32.gmra.mxu0 %v811
      %v1117 = vpop.f32.mrf.mxu0
      %v1118 = vadd.f32 %v993, %v1117
      %1119 = vmatmul.f32.gmra.mxu0 %v812
      %v1120 = vpop.f32.mrf.mxu0
      %v1121 = vadd.f32 %v996, %v1120
      %1122 = vmatmul.f32.gmra.mxu0 %v813
      %v1123 = vpop.f32.mrf.mxu0
      %v1124 = vadd.f32 %v999, %v1123
      %1125 = vmatmul.f32.gmra.mxu0 %v814
      %v1126 = vpop.f32.mrf.mxu0
      %v1127 = vadd.f32 %v1002, %v1126
      %1128 = vmatmul.f32.gmra.mxu0 %v815
      %v1129 = vpop.f32.mrf.mxu0
      %v1130 = vadd.f32 %v1005, %v1129
      %1131 = vmatmul.f32.gmra.mxu0 %v816
      %v1132 = vpop.f32.mrf.mxu0
      %v1133 = vadd.f32 %v1008, %v1132
      %1134 = vdwg.mxu0
      %v1135 = vld [vmem:[#allocation2 + $0x7] sm:$0xff]
      %v1136 = vld [vmem:[#allocation2 + $0xf] sm:$0xff]
      %v1137 = vld [vmem:[#allocation2 + $0x17] sm:$0xff]
      %v1138 = vld [vmem:[#allocation2 + $0x1f] sm:$0xff]
      %v1139 = vld [vmem:[#allocation2 + $0x27] sm:$0xff]
      %v1140 = vld [vmem:[#allocation2 + $0x2f] sm:$0xff]
      %v1141 = vld [vmem:[#allocation2 + $0x37] sm:$0xff]
      %v1142 = vld [vmem:[#allocation2 + $0x3f] sm:$0xff]
      %v1143 = vld [vmem:[#allocation2 + $0x47] sm:$0xff]
      %v1144 = vld [vmem:[#allocation2 + $0x4f] sm:$0xff]
      %v1145 = vld [vmem:[#allocation2 + $0x57] sm:$0xff]
      %v1146 = vld [vmem:[#allocation2 + $0x5f] sm:$0xff]
      %v1147 = vld [vmem:[#allocation2 + $0x67] sm:$0xff]
      %v1148 = vld [vmem:[#allocation2 + $0x6f] sm:$0xff]
      %v1149 = vld [vmem:[#allocation2 + $0x77] sm:$0xff]
      %v1150 = vld [vmem:[#allocation2 + $0x7f] sm:$0xff]
      %v1151 = vld [vmem:[#allocation2 + $0x87] sm:$0xff]
      %v1152 = vld [vmem:[#allocation2 + $0x8f] sm:$0xff]
      %v1153 = vld [vmem:[#allocation2 + $0x97] sm:$0xff]
      %v1154 = vld [vmem:[#allocation2 + $0x9f] sm:$0xff]
      %v1155 = vld [vmem:[#allocation2 + $0xa7] sm:$0xff]
      %v1156 = vld [vmem:[#allocation2 + $0xaf] sm:$0xff]
      %v1157 = vld [vmem:[#allocation2 + $0xb7] sm:$0xff]
      %v1158 = vld [vmem:[#allocation2 + $0xbf] sm:$0xff]
      %v1159 = vld [vmem:[#allocation2 + $0xc7] sm:$0xff]
      %v1160 = vld [vmem:[#allocation2 + $0xcf] sm:$0xff]
      %v1161 = vld [vmem:[#allocation2 + $0xd7] sm:$0xff]
      %v1162 = vld [vmem:[#allocation2 + $0xdf] sm:$0xff]
      %v1163 = vld [vmem:[#allocation2 + $0xe7] sm:$0xff]
      %v1164 = vld [vmem:[#allocation2 + $0xef] sm:$0xff]
      %v1165 = vld [vmem:[#allocation2 + $0xf7] sm:$0xff]
      %v1166 = vld [vmem:[#allocation2 + $0xff] sm:$0xff]
      %v1167 = vld [vmem:[#allocation2 + $0x107] sm:$0xff]
      %v1168 = vld [vmem:[#allocation2 + $0x10f] sm:$0xff]
      %v1169 = vld [vmem:[#allocation2 + $0x117] sm:$0xff]
      %v1170 = vld [vmem:[#allocation2 + $0x11f] sm:$0xff]
      %v1171 = vld [vmem:[%s1 + $0x100] sm:$0xff]
      %v1172 = vld [vmem:[%s1 + $0x108] sm:$0xff]
      %v1173 = vld [vmem:[%s1 + $0x110] sm:$0xff]
      %v1174 = vld [vmem:[%s1 + $0x118] sm:$0xff]
      %v1175 = vld [vmem:[%s1 + $0x120] sm:$0xff]
      %v1176 = vld [vmem:[%s1 + $0x128] sm:$0xff]
      %v1177 = vld [vmem:[%s1 + $0x130] sm:$0xff]
      %v1178 = vld [vmem:[%s1 + $0x138] sm:$0xff]
      %v1179 = vld [vmem:[%s1 + $0x140] sm:$0xff]
      %v1180 = vld [vmem:[%s1 + $0x148] sm:$0xff]
      %v1181 = vld [vmem:[%s1 + $0x150] sm:$0xff]
      %v1182 = vld [vmem:[%s1 + $0x158] sm:$0xff]
      %v1183 = vld [vmem:[%s1 + $0x160] sm:$0xff]
      %v1184 = vld [vmem:[%s1 + $0x168] sm:$0xff]
      %v1185 = vld [vmem:[%s1 + $0x170] sm:$0xff]
      %v1186 = vld [vmem:[%s1 + $0x178] sm:$0xff]
      %1187 = vmatpush.msra.mxu0 %v1186
      %1188 = vmatpush.msra.mxu0 %v1185
      %1189 = vmatpush.msra.mxu0 %v1184
      %1190 = vmatpush.msra.mxu0 %v1183
      %1191 = vmatpush.msra.mxu0 %v1182
      %1192 = vmatpush.msra.mxu0 %v1181
      %1193 = vmatpush.msra.mxu0 %v1180
      %1194 = vmatpush.msra.mxu0 %v1179
      %1195 = vmatpush.msra.mxu0 %v1178
      %1196 = vmatpush.msra.mxu0 %v1177
      %1197 = vmatpush.msra.mxu0 %v1176
      %1198 = vmatpush.msra.mxu0 %v1175
      %1199 = vmatpush.msra.mxu0 %v1174
      %1200 = vmatpush.msra.mxu0 %v1173
      %1201 = vmatpush.msra.mxu0 %v1172
      %1202 = vmatpush.msra.mxu0 %v1171
      %1203 = vmatmul.f32.gmra.mxu0 %v1135
      %v1204 = vpop.f32.mrf.mxu0
      %v1205 = vadd.f32 0.0, %v1204
      %1206 = vmatmul.f32.gmra.mxu0 %v1136
      %v1207 = vpop.f32.mrf.mxu0
      %v1208 = vadd.f32 0.0, %v1207
      %1209 = vmatmul.f32.gmra.mxu0 %v1137
      %v1210 = vpop.f32.mrf.mxu0
      %v1211 = vadd.f32 0.0, %v1210
      %1212 = vmatmul.f32.gmra.mxu0 %v1138
      %v1213 = vpop.f32.mrf.mxu0
      %v1214 = vadd.f32 0.0, %v1213
      %1215 = vmatmul.f32.gmra.mxu0 %v1139
      %v1216 = vpop.f32.mrf.mxu0
      %v1217 = vadd.f32 0.0, %v1216
      %1218 = vmatmul.f32.gmra.mxu0 %v1140
      %v1219 = vpop.f32.mrf.mxu0
      %v1220 = vadd.f32 0.0, %v1219
      %1221 = vmatmul.f32.gmra.mxu0 %v1141
      %v1222 = vpop.f32.mrf.mxu0
      %v1223 = vadd.f32 0.0, %v1222
      %1224 = vmatmul.f32.gmra.mxu0 %v1142
      %v1225 = vpop.f32.mrf.mxu0
      %v1226 = vadd.f32 0.0, %v1225
      %1227 = vmatmul.f32.gmra.mxu0 %v1143
      %v1228 = vpop.f32.mrf.mxu0
      %v1229 = vadd.f32 0.0, %v1228
      %1230 = vmatmul.f32.gmra.mxu0 %v1144
      %v1231 = vpop.f32.mrf.mxu0
      %v1232 = vadd.f32 0.0, %v1231
      %1233 = vmatmul.f32.gmra.mxu0 %v1145
      %v1234 = vpop.f32.mrf.mxu0
      %v1235 = vadd.f32 0.0, %v1234
      %1236 = vmatmul.f32.gmra.mxu0 %v1146
      %v1237 = vpop.f32.mrf.mxu0
      %v1238 = vadd.f32 0.0, %v1237
      %1239 = vmatmul.f32.gmra.mxu0 %v1147
      %v1240 = vpop.f32.mrf.mxu0
      %v1241 = vadd.f32 0.0, %v1240
      %1242 = vmatmul.f32.gmra.mxu0 %v1148
      %v1243 = vpop.f32.mrf.mxu0
      %v1244 = vadd.f32 0.0, %v1243
      %1245 = vmatmul.f32.gmra.mxu0 %v1149
      %v1246 = vpop.f32.mrf.mxu0
      %v1247 = vadd.f32 0.0, %v1246
      %1248 = vmatmul.f32.gmra.mxu0 %v1150
      %v1249 = vpop.f32.mrf.mxu0
      %v1250 = vadd.f32 0.0, %v1249
      %1251 = vmatmul.f32.gmra.mxu0 %v1151
      %v1252 = vpop.f32.mrf.mxu0
      %v1253 = vadd.f32 0.0, %v1252
      %1254 = vmatmul.f32.gmra.mxu0 %v1152
      %v1255 = vpop.f32.mrf.mxu0
      %v1256 = vadd.f32 0.0, %v1255
      %1257 = vmatmul.f32.gmra.mxu0 %v1153
      %v1258 = vpop.f32.mrf.mxu0
      %v1259 = vadd.f32 0.0, %v1258
      %1260 = vmatmul.f32.gmra.mxu0 %v1154
      %v1261 = vpop.f32.mrf.mxu0
      %v1262 = vadd.f32 0.0, %v1261
      %1263 = vmatmul.f32.gmra.mxu0 %v1155
      %v1264 = vpop.f32.mrf.mxu0
      %v1265 = vadd.f32 0.0, %v1264
      %1266 = vmatmul.f32.gmra.mxu0 %v1156
      %v1267 = vpop.f32.mrf.mxu0
      %v1268 = vadd.f32 0.0, %v1267
      %1269 = vmatmul.f32.gmra.mxu0 %v1157
      %v1270 = vpop.f32.mrf.mxu0
      %v1271 = vadd.f32 0.0, %v1270
      %1272 = vmatmul.f32.gmra.mxu0 %v1158
      %v1273 = vpop.f32.mrf.mxu0
      %v1274 = vadd.f32 0.0, %v1273
      %1275 = vmatmul.f32.gmra.mxu0 %v1159
      %v1276 = vpop.f32.mrf.mxu0
      %v1277 = vadd.f32 0.0, %v1276
      %1278 = vmatmul.f32.gmra.mxu0 %v1160
      %v1279 = vpop.f32.mrf.mxu0
      %v1280 = vadd.f32 0.0, %v1279
      %1281 = vmatmul.f32.gmra.mxu0 %v1161
      %v1282 = vpop.f32.mrf.mxu0
      %v1283 = vadd.f32 0.0, %v1282
      %1284 = vmatmul.f32.gmra.mxu0 %v1162
      %v1285 = vpop.f32.mrf.mxu0
      %v1286 = vadd.f32 0.0, %v1285
      %1287 = vmatmul.f32.gmra.mxu0 %v1163
      %v1288 = vpop.f32.mrf.mxu0
      %v1289 = vadd.f32 0.0, %v1288
      %1290 = vmatmul.f32.gmra.mxu0 %v1164
      %v1291 = vpop.f32.mrf.mxu0
      %v1292 = vadd.f32 0.0, %v1291
      %1293 = vmatmul.f32.gmra.mxu0 %v1165
      %v1294 = vpop.f32.mrf.mxu0
      %v1295 = vadd.f32 0.0, %v1294
      %1296 = vmatmul.f32.gmra.mxu0 %v1166
      %v1297 = vpop.f32.mrf.mxu0
      %v1298 = vadd.f32 0.0, %v1297
      %1299 = vmatmul.f32.gmra.mxu0 %v1167
      %v1300 = vpop.f32.mrf.mxu0
      %v1301 = vadd.f32 0.0, %v1300
      %1302 = vmatmul.f32.gmra.mxu0 %v1168
      %v1303 = vpop.f32.mrf.mxu0
      %v1304 = vadd.f32 0.0, %v1303
      %1305 = vmatmul.f32.gmra.mxu0 %v1169
      %v1306 = vpop.f32.mrf.mxu0
      %v1307 = vadd.f32 0.0, %v1306
      %1308 = vmatmul.f32.gmra.mxu0 %v1170
      %v1309 = vpop.f32.mrf.mxu0
      %v1310 = vadd.f32 0.0, %v1309
      %1311 = vdwg.mxu0
      %v1312 = vadd.f32 %v1028, %v1205
      %v1313 = vadd.f32 %v1031, %v1208
      %v1314 = vadd.f32 %v1034, %v1211
      %v1315 = vadd.f32 %v1037, %v1214
      %v1316 = vadd.f32 %v1040, %v1217
      %v1317 = vadd.f32 %v1043, %v1220
      %v1318 = vadd.f32 %v1046, %v1223
      %v1319 = vadd.f32 %v1049, %v1226
      %v1320 = vadd.f32 %v1052, %v1229
      %v1321 = vadd.f32 %v1055, %v1232
      %v1322 = vadd.f32 %v1058, %v1235
      %v1323 = vadd.f32 %v1061, %v1238
      %v1324 = vadd.f32 %v1064, %v1241
      %v1325 = vadd.f32 %v1067, %v1244
      %v1326 = vadd.f32 %v1070, %v1247
      %v1327 = vadd.f32 %v1073, %v1250
      %v1328 = vadd.f32 %v1076, %v1253
      %v1329 = vadd.f32 %v1079, %v1256
      %v1330 = vadd.f32 %v1082, %v1259
      %v1331 = vadd.f32 %v1085, %v1262
      %v1332 = vadd.f32 %v1088, %v1265
      %v1333 = vadd.f32 %v1091, %v1268
      %v1334 = vadd.f32 %v1094, %v1271
      %v1335 = vadd.f32 %v1097, %v1274
      %v1336 = vadd.f32 %v1100, %v1277
      %v1337 = vadd.f32 %v1103, %v1280
      %v1338 = vadd.f32 %v1106, %v1283
      %v1339 = vadd.f32 %v1109, %v1286
      %v1340 = vadd.f32 %v1112, %v1289
      %v1341 = vadd.f32 %v1115, %v1292
      %v1342 = vadd.f32 %v1118, %v1295
      %v1343 = vadd.f32 %v1121, %v1298
      %v1344 = vadd.f32 %v1124, %v1301
      %v1345 = vadd.f32 %v1127, %v1304
      %v1346 = vadd.f32 %v1130, %v1307
      %v1347 = vadd.f32 %v1133, %v1310
      %v1348 = vld [vmem:[#allocation2 + $0x17] sm:$0xff]
      %v1349 = vld [vmem:[#allocation2 + $0x1f] sm:$0xff]
      %v1350 = vld [vmem:[#allocation2 + $0x27] sm:$0xff]
      %v1351 = vld [vmem:[#allocation2 + $0x2f] sm:$0xff]
      %v1352 = vld [vmem:[#allocation2 + $0x37] sm:$0xff]
      %v1353 = vld [vmem:[#allocation2 + $0x3f] sm:$0xff]
      %v1354 = vld [vmem:[#allocation2 + $0x47] sm:$0xff]
      %v1355 = vld [vmem:[#allocation2 + $0x4f] sm:$0xff]
      %v1356 = vld [vmem:[#allocation2 + $0x57] sm:$0xff]
      %v1357 = vld [vmem:[#allocation2 + $0x5f] sm:$0xff]
      %v1358 = vld [vmem:[#allocation2 + $0x67] sm:$0xff]
      %v1359 = vld [vmem:[#allocation2 + $0x6f] sm:$0xff]
      %v1360 = vld [vmem:[#allocation2 + $0x77] sm:$0xff]
      %v1361 = vld [vmem:[#allocation2 + $0x7f] sm:$0xff]
      %v1362 = vld [vmem:[#allocation2 + $0x87] sm:$0xff]
      %v1363 = vld [vmem:[#allocation2 + $0x8f] sm:$0xff]
      %v1364 = vld [vmem:[#allocation2 + $0x97] sm:$0xff]
      %v1365 = vld [vmem:[#allocation2 + $0x9f] sm:$0xff]
      %v1366 = vld [vmem:[#allocation2 + $0xa7] sm:$0xff]
      %v1367 = vld [vmem:[#allocation2 + $0xaf] sm:$0xff]
      %v1368 = vld [vmem:[#allocation2 + $0xb7] sm:$0xff]
      %v1369 = vld [vmem:[#allocation2 + $0xbf] sm:$0xff]
      %v1370 = vld [vmem:[#allocation2 + $0xc7] sm:$0xff]
      %v1371 = vld [vmem:[#allocation2 + $0xcf] sm:$0xff]
      %v1372 = vld [vmem:[#allocation2 + $0xd7] sm:$0xff]
      %v1373 = vld [vmem:[#allocation2 + $0xdf] sm:$0xff]
      %v1374 = vld [vmem:[#allocation2 + $0xe7] sm:$0xff]
      %v1375 = vld [vmem:[#allocation2 + $0xef] sm:$0xff]
      %v1376 = vld [vmem:[#allocation2 + $0xf7] sm:$0xff]
      %v1377 = vld [vmem:[#allocation2 + $0xff] sm:$0xff]
      %v1378 = vld [vmem:[#allocation2 + $0x107] sm:$0xff]
      %v1379 = vld [vmem:[#allocation2 + $0x10f] sm:$0xff]
      %v1380 = vld [vmem:[#allocation2 + $0x117] sm:$0xff]
      %v1381 = vld [vmem:[#allocation2 + $0x11f] sm:$0xff]
      %v1382 = vld [vmem:[#allocation2 + $0x127] sm:$0xff]
      %v1383 = vld [vmem:[#allocation2 + $0x12f] sm:$0xff]
      %v1384 = vld [vmem:[%s1 + $0x180] sm:$0xff]
      %v1385 = vld [vmem:[%s1 + $0x188] sm:$0xff]
      %v1386 = vld [vmem:[%s1 + $0x190] sm:$0xff]
      %v1387 = vld [vmem:[%s1 + $0x198] sm:$0xff]
      %v1388 = vld [vmem:[%s1 + $0x1a0] sm:$0xff]
      %v1389 = vld [vmem:[%s1 + $0x1a8] sm:$0xff]
      %v1390 = vld [vmem:[%s1 + $0x1b0] sm:$0xff]
      %v1391 = vld [vmem:[%s1 + $0x1b8] sm:$0xff]
      %v1392 = vld [vmem:[%s1 + $0x1c0] sm:$0xff]
      %v1393 = vld [vmem:[%s1 + $0x1c8] sm:$0xff]
      %v1394 = vld [vmem:[%s1 + $0x1d0] sm:$0xff]
      %v1395 = vld [vmem:[%s1 + $0x1d8] sm:$0xff]
      %v1396 = vld [vmem:[%s1 + $0x1e0] sm:$0xff]
      %v1397 = vld [vmem:[%s1 + $0x1e8] sm:$0xff]
      %v1398 = vld [vmem:[%s1 + $0x1f0] sm:$0xff]
      %v1399 = vld [vmem:[%s1 + $0x1f8] sm:$0xff]
      %1400 = vmatpush.msra.mxu0 %v1399
      %1401 = vmatpush.msra.mxu0 %v1398
      %1402 = vmatpush.msra.mxu0 %v1397
      %1403 = vmatpush.msra.mxu0 %v1396
      %1404 = vmatpush.msra.mxu0 %v1395
      %1405 = vmatpush.msra.mxu0 %v1394
      %1406 = vmatpush.msra.mxu0 %v1393
      %1407 = vmatpush.msra.mxu0 %v1392
      %1408 = vmatpush.msra.mxu0 %v1391
      %1409 = vmatpush.msra.mxu0 %v1390
      %1410 = vmatpush.msra.mxu0 %v1389
      %1411 = vmatpush.msra.mxu0 %v1388
      %1412 = vmatpush.msra.mxu0 %v1387
      %1413 = vmatpush.msra.mxu0 %v1386
      %1414 = vmatpush.msra.mxu0 %v1385
      %1415 = vmatpush.msra.mxu0 %v1384
      %1416 = vmatmul.f32.gmra.mxu0 %v1348
      %v1417 = vpop.f32.mrf.mxu0
      %v1418 = vadd.f32 0.0, %v1417
      %1419 = vmatmul.f32.gmra.mxu0 %v1349
      %v1420 = vpop.f32.mrf.mxu0
      %v1421 = vadd.f32 0.0, %v1420
      %1422 = vmatmul.f32.gmra.mxu0 %v1350
      %v1423 = vpop.f32.mrf.mxu0
      %v1424 = vadd.f32 0.0, %v1423
      %1425 = vmatmul.f32.gmra.mxu0 %v1351
      %v1426 = vpop.f32.mrf.mxu0
      %v1427 = vadd.f32 0.0, %v1426
      %1428 = vmatmul.f32.gmra.mxu0 %v1352
      %v1429 = vpop.f32.mrf.mxu0
      %v1430 = vadd.f32 0.0, %v1429
      %1431 = vmatmul.f32.gmra.mxu0 %v1353
      %v1432 = vpop.f32.mrf.mxu0
      %v1433 = vadd.f32 0.0, %v1432
      %1434 = vmatmul.f32.gmra.mxu0 %v1354
      %v1435 = vpop.f32.mrf.mxu0
      %v1436 = vadd.f32 0.0, %v1435
      %1437 = vmatmul.f32.gmra.mxu0 %v1355
      %v1438 = vpop.f32.mrf.mxu0
      %v1439 = vadd.f32 0.0, %v1438
      %1440 = vmatmul.f32.gmra.mxu0 %v1356
      %v1441 = vpop.f32.mrf.mxu0
      %v1442 = vadd.f32 0.0, %v1441
      %1443 = vmatmul.f32.gmra.mxu0 %v1357
      %v1444 = vpop.f32.mrf.mxu0
      %v1445 = vadd.f32 0.0, %v1444
      %1446 = vmatmul.f32.gmra.mxu0 %v1358
      %v1447 = vpop.f32.mrf.mxu0
      %v1448 = vadd.f32 0.0, %v1447
      %1449 = vmatmul.f32.gmra.mxu0 %v1359
      %v1450 = vpop.f32.mrf.mxu0
      %v1451 = vadd.f32 0.0, %v1450
      %1452 = vmatmul.f32.gmra.mxu0 %v1360
      %v1453 = vpop.f32.mrf.mxu0
      %v1454 = vadd.f32 0.0, %v1453
      %1455 = vmatmul.f32.gmra.mxu0 %v1361
      %v1456 = vpop.f32.mrf.mxu0
      %v1457 = vadd.f32 0.0, %v1456
      %1458 = vmatmul.f32.gmra.mxu0 %v1362
      %v1459 = vpop.f32.mrf.mxu0
      %v1460 = vadd.f32 0.0, %v1459
      %1461 = vmatmul.f32.gmra.mxu0 %v1363
      %v1462 = vpop.f32.mrf.mxu0
      %v1463 = vadd.f32 0.0, %v1462
      %1464 = vmatmul.f32.gmra.mxu0 %v1364
      %v1465 = vpop.f32.mrf.mxu0
      %v1466 = vadd.f32 0.0, %v1465
      %1467 = vmatmul.f32.gmra.mxu0 %v1365
      %v1468 = vpop.f32.mrf.mxu0
      %v1469 = vadd.f32 0.0, %v1468
      %1470 = vmatmul.f32.gmra.mxu0 %v1366
      %v1471 = vpop.f32.mrf.mxu0
      %v1472 = vadd.f32 0.0, %v1471
      %1473 = vmatmul.f32.gmra.mxu0 %v1367
      %v1474 = vpop.f32.mrf.mxu0
      %v1475 = vadd.f32 0.0, %v1474
      %1476 = vmatmul.f32.gmra.mxu0 %v1368
      %v1477 = vpop.f32.mrf.mxu0
      %v1478 = vadd.f32 0.0, %v1477
      %1479 = vmatmul.f32.gmra.mxu0 %v1369
      %v1480 = vpop.f32.mrf.mxu0
      %v1481 = vadd.f32 0.0, %v1480
      %1482 = vmatmul.f32.gmra.mxu0 %v1370
      %v1483 = vpop.f32.mrf.mxu0
      %v1484 = vadd.f32 0.0, %v1483
      %1485 = vmatmul.f32.gmra.mxu0 %v1371
      %v1486 = vpop.f32.mrf.mxu0
      %v1487 = vadd.f32 0.0, %v1486
      %1488 = vmatmul.f32.gmra.mxu0 %v1372
      %v1489 = vpop.f32.mrf.mxu0
      %v1490 = vadd.f32 0.0, %v1489
      %1491 = vmatmul.f32.gmra.mxu0 %v1373
      %v1492 = vpop.f32.mrf.mxu0
      %v1493 = vadd.f32 0.0, %v1492
      %1494 = vmatmul.f32.gmra.mxu0 %v1374
      %v1495 = vpop.f32.mrf.mxu0
      %v1496 = vadd.f32 0.0, %v1495
      %1497 = vmatmul.f32.gmra.mxu0 %v1375
      %v1498 = vpop.f32.mrf.mxu0
      %v1499 = vadd.f32 0.0, %v1498
      %1500 = vmatmul.f32.gmra.mxu0 %v1376
      %v1501 = vpop.f32.mrf.mxu0
      %v1502 = vadd.f32 0.0, %v1501
      %1503 = vmatmul.f32.gmra.mxu0 %v1377
      %v1504 = vpop.f32.mrf.mxu0
      %v1505 = vadd.f32 0.0, %v1504
      %1506 = vmatmul.f32.gmra.mxu0 %v1378
      %v1507 = vpop.f32.mrf.mxu0
      %v1508 = vadd.f32 0.0, %v1507
      %1509 = vmatmul.f32.gmra.mxu0 %v1379
      %v1510 = vpop.f32.mrf.mxu0
      %v1511 = vadd.f32 0.0, %v1510
      %1512 = vmatmul.f32.gmra.mxu0 %v1380
      %v1513 = vpop.f32.mrf.mxu0
      %v1514 = vadd.f32 0.0, %v1513
      %1515 = vmatmul.f32.gmra.mxu0 %v1381
      %v1516 = vpop.f32.mrf.mxu0
      %v1517 = vadd.f32 0.0, %v1516
      %1518 = vmatmul.f32.gmra.mxu0 %v1382
      %v1519 = vpop.f32.mrf.mxu0
      %v1520 = vadd.f32 0.0, %v1519
      %1521 = vmatmul.f32.gmra.mxu0 %v1383
      %v1522 = vpop.f32.mrf.mxu0
      %v1523 = vadd.f32 0.0, %v1522
      %1524 = vdwg.mxu0
      %v1525 = vadd.f32 %v1312, %v1418
      %v1526 = vadd.f32 %v1313, %v1421
      %v1527 = vadd.f32 %v1314, %v1424
      %v1528 = vadd.f32 %v1315, %v1427
      %v1529 = vadd.f32 %v1316, %v1430
      %v1530 = vadd.f32 %v1317, %v1433
      %v1531 = vadd.f32 %v1318, %v1436
      %v1532 = vadd.f32 %v1319, %v1439
      %v1533 = vadd.f32 %v1320, %v1442
      %v1534 = vadd.f32 %v1321, %v1445
      %v1535 = vadd.f32 %v1322, %v1448
      %v1536 = vadd.f32 %v1323, %v1451
      %v1537 = vadd.f32 %v1324, %v1454
      %v1538 = vadd.f32 %v1325, %v1457
      %v1539 = vadd.f32 %v1326, %v1460
      %v1540 = vadd.f32 %v1327, %v1463
      %v1541 = vadd.f32 %v1328, %v1466
      %v1542 = vadd.f32 %v1329, %v1469
      %v1543 = vadd.f32 %v1330, %v1472
      %v1544 = vadd.f32 %v1331, %v1475
      %v1545 = vadd.f32 %v1332, %v1478
      %v1546 = vadd.f32 %v1333, %v1481
      %v1547 = vadd.f32 %v1334, %v1484
      %v1548 = vadd.f32 %v1335, %v1487
      %v1549 = vadd.f32 %v1336, %v1490
      %v1550 = vadd.f32 %v1337, %v1493
      %v1551 = vadd.f32 %v1338, %v1496
      %v1552 = vadd.f32 %v1339, %v1499
      %v1553 = vadd.f32 %v1340, %v1502
      %v1554 = vadd.f32 %v1341, %v1505
      %v1555 = vadd.f32 %v1342, %v1508
      %v1556 = vadd.f32 %v1343, %v1511
      %v1557 = vadd.f32 %v1344, %v1514
      %v1558 = vadd.f32 %v1345, %v1517
      %v1559 = vadd.f32 %v1346, %v1520
      %v1560 = vadd.f32 %v1347, %v1523
      %v1561 = vld [vmem:[#allocation2 + $0x18] sm:$0xff]
      %v1562 = vld [vmem:[#allocation2 + $0x20] sm:$0xff]
      %v1563 = vld [vmem:[#allocation2 + $0x28] sm:$0xff]
      %v1564 = vld [vmem:[#allocation2 + $0x30] sm:$0xff]
      %v1565 = vld [vmem:[#allocation2 + $0x38] sm:$0xff]
      %v1566 = vld [vmem:[#allocation2 + $0x40] sm:$0xff]
      %v1567 = vld [vmem:[#allocation2 + $0x48] sm:$0xff]
      %v1568 = vld [vmem:[#allocation2 + $0x50] sm:$0xff]
      %v1569 = vld [vmem:[#allocation2 + $0x58] sm:$0xff]
      %v1570 = vld [vmem:[#allocation2 + $0x60] sm:$0xff]
      %v1571 = vld [vmem:[#allocation2 + $0x68] sm:$0xff]
      %v1572 = vld [vmem:[#allocation2 + $0x70] sm:$0xff]
      %v1573 = vld [vmem:[#allocation2 + $0x78] sm:$0xff]
      %v1574 = vld [vmem:[#allocation2 + $0x80] sm:$0xff]
      %v1575 = vld [vmem:[#allocation2 + $0x88] sm:$0xff]
      %v1576 = vld [vmem:[#allocation2 + $0x90] sm:$0xff]
      %v1577 = vld [vmem:[#allocation2 + $0x98] sm:$0xff]
      %v1578 = vld [vmem:[#allocation2 + $0xa0] sm:$0xff]
      %v1579 = vld [vmem:[#allocation2 + $0xa8] sm:$0xff]
      %v1580 = vld [vmem:[#allocation2 + $0xb0] sm:$0xff]
      %v1581 = vld [vmem:[#allocation2 + $0xb8] sm:$0xff]
      %v1582 = vld [vmem:[#allocation2 + $0xc0] sm:$0xff]
      %v1583 = vld [vmem:[#allocation2 + $0xc8] sm:$0xff]
      %v1584 = vld [vmem:[#allocation2 + $0xd0] sm:$0xff]
      %v1585 = vld [vmem:[#allocation2 + $0xd8] sm:$0xff]
      %v1586 = vld [vmem:[#allocation2 + $0xe0] sm:$0xff]
      %v1587 = vld [vmem:[#allocation2 + $0xe8] sm:$0xff]
      %v1588 = vld [vmem:[#allocation2 + $0xf0] sm:$0xff]
      %v1589 = vld [vmem:[#allocation2 + $0xf8] sm:$0xff]
      %v1590 = vld [vmem:[#allocation2 + $0x100] sm:$0xff]
      %v1591 = vld [vmem:[#allocation2 + $0x108] sm:$0xff]
      %v1592 = vld [vmem:[#allocation2 + $0x110] sm:$0xff]
      %v1593 = vld [vmem:[#allocation2 + $0x118] sm:$0xff]
      %v1594 = vld [vmem:[#allocation2 + $0x120] sm:$0xff]
      %v1595 = vld [vmem:[#allocation2 + $0x128] sm:$0xff]
      %v1596 = vld [vmem:[#allocation2 + $0x130] sm:$0xff]
      %v1597 = vld [vmem:[%s1 + $0x200] sm:$0xff]
      %v1598 = vld [vmem:[%s1 + $0x208] sm:$0xff]
      %v1599 = vld [vmem:[%s1 + $0x210] sm:$0xff]
      %v1600 = vld [vmem:[%s1 + $0x218] sm:$0xff]
      %v1601 = vld [vmem:[%s1 + $0x220] sm:$0xff]
      %v1602 = vld [vmem:[%s1 + $0x228] sm:$0xff]
      %v1603 = vld [vmem:[%s1 + $0x230] sm:$0xff]
      %v1604 = vld [vmem:[%s1 + $0x238] sm:$0xff]
      %v1605 = vld [vmem:[%s1 + $0x240] sm:$0xff]
      %v1606 = vld [vmem:[%s1 + $0x248] sm:$0xff]
      %v1607 = vld [vmem:[%s1 + $0x250] sm:$0xff]
      %v1608 = vld [vmem:[%s1 + $0x258] sm:$0xff]
      %v1609 = vld [vmem:[%s1 + $0x260] sm:$0xff]
      %v1610 = vld [vmem:[%s1 + $0x268] sm:$0xff]
      %v1611 = vld [vmem:[%s1 + $0x270] sm:$0xff]
      %v1612 = vld [vmem:[%s1 + $0x278] sm:$0xff]
      %1613 = vmatpush.msra.mxu0 %v1612
      %1614 = vmatpush.msra.mxu0 %v1611
      %1615 = vmatpush.msra.mxu0 %v1610
      %1616 = vmatpush.msra.mxu0 %v1609
      %1617 = vmatpush.msra.mxu0 %v1608
      %1618 = vmatpush.msra.mxu0 %v1607
      %1619 = vmatpush.msra.mxu0 %v1606
      %1620 = vmatpush.msra.mxu0 %v1605
      %1621 = vmatpush.msra.mxu0 %v1604
      %1622 = vmatpush.msra.mxu0 %v1603
      %1623 = vmatpush.msra.mxu0 %v1602
      %1624 = vmatpush.msra.mxu0 %v1601
      %1625 = vmatpush.msra.mxu0 %v1600
      %1626 = vmatpush.msra.mxu0 %v1599
      %1627 = vmatpush.msra.mxu0 %v1598
      %1628 = vmatpush.msra.mxu0 %v1597
      %1629 = vmatmul.f32.gmra.mxu0 %v1561
      %v1630 = vpop.f32.mrf.mxu0
      %v1631 = vadd.f32 0.0, %v1630
      %1632 = vmatmul.f32.gmra.mxu0 %v1562
      %v1633 = vpop.f32.mrf.mxu0
      %v1634 = vadd.f32 0.0, %v1633
      %1635 = vmatmul.f32.gmra.mxu0 %v1563
      %v1636 = vpop.f32.mrf.mxu0
      %v1637 = vadd.f32 0.0, %v1636
      %1638 = vmatmul.f32.gmra.mxu0 %v1564
      %v1639 = vpop.f32.mrf.mxu0
      %v1640 = vadd.f32 0.0, %v1639
      %1641 = vmatmul.f32.gmra.mxu0 %v1565
      %v1642 = vpop.f32.mrf.mxu0
      %v1643 = vadd.f32 0.0, %v1642
      %1644 = vmatmul.f32.gmra.mxu0 %v1566
      %v1645 = vpop.f32.mrf.mxu0
      %v1646 = vadd.f32 0.0, %v1645
      %1647 = vmatmul.f32.gmra.mxu0 %v1567
      %v1648 = vpop.f32.mrf.mxu0
      %v1649 = vadd.f32 0.0, %v1648
      %1650 = vmatmul.f32.gmra.mxu0 %v1568
      %v1651 = vpop.f32.mrf.mxu0
      %v1652 = vadd.f32 0.0, %v1651
      %1653 = vmatmul.f32.gmra.mxu0 %v1569
      %v1654 = vpop.f32.mrf.mxu0
      %v1655 = vadd.f32 0.0, %v1654
      %1656 = vmatmul.f32.gmra.mxu0 %v1570
      %v1657 = vpop.f32.mrf.mxu0
      %v1658 = vadd.f32 0.0, %v1657
      %1659 = vmatmul.f32.gmra.mxu0 %v1571
      %v1660 = vpop.f32.mrf.mxu0
      %v1661 = vadd.f32 0.0, %v1660
      %1662 = vmatmul.f32.gmra.mxu0 %v1572
      %v1663 = vpop.f32.mrf.mxu0
      %v1664 = vadd.f32 0.0, %v1663
      %1665 = vmatmul.f32.gmra.mxu0 %v1573
      %v1666 = vpop.f32.mrf.mxu0
      %v1667 = vadd.f32 0.0, %v1666
      %1668 = vmatmul.f32.gmra.mxu0 %v1574
      %v1669 = vpop.f32.mrf.mxu0
      %v1670 = vadd.f32 0.0, %v1669
      %1671 = vmatmul.f32.gmra.mxu0 %v1575
      %v1672 = vpop.f32.mrf.mxu0
      %v1673 = vadd.f32 0.0, %v1672
      %1674 = vmatmul.f32.gmra.mxu0 %v1576
      %v1675 = vpop.f32.mrf.mxu0
      %v1676 = vadd.f32 0.0, %v1675
      %1677 = vmatmul.f32.gmra.mxu0 %v1577
      %v1678 = vpop.f32.mrf.mxu0
      %v1679 = vadd.f32 0.0, %v1678
      %1680 = vmatmul.f32.gmra.mxu0 %v1578
      %v1681 = vpop.f32.mrf.mxu0
      %v1682 = vadd.f32 0.0, %v1681
      %1683 = vmatmul.f32.gmra.mxu0 %v1579
      %v1684 = vpop.f32.mrf.mxu0
      %v1685 = vadd.f32 0.0, %v1684
      %1686 = vmatmul.f32.gmra.mxu0 %v1580
      %v1687 = vpop.f32.mrf.mxu0
      %v1688 = vadd.f32 0.0, %v1687
      %1689 = vmatmul.f32.gmra.mxu0 %v1581
      %v1690 = vpop.f32.mrf.mxu0
      %v1691 = vadd.f32 0.0, %v1690
      %1692 = vmatmul.f32.gmra.mxu0 %v1582
      %v1693 = vpop.f32.mrf.mxu0
      %v1694 = vadd.f32 0.0, %v1693
      %1695 = vmatmul.f32.gmra.mxu0 %v1583
      %v1696 = vpop.f32.mrf.mxu0
      %v1697 = vadd.f32 0.0, %v1696
      %1698 = vmatmul.f32.gmra.mxu0 %v1584
      %v1699 = vpop.f32.mrf.mxu0
      %v1700 = vadd.f32 0.0, %v1699
      %1701 = vmatmul.f32.gmra.mxu0 %v1585
      %v1702 = vpop.f32.mrf.mxu0
      %v1703 = vadd.f32 0.0, %v1702
      %1704 = vmatmul.f32.gmra.mxu0 %v1586
      %v1705 = vpop.f32.mrf.mxu0
      %v1706 = vadd.f32 0.0, %v1705
      %1707 = vmatmul.f32.gmra.mxu0 %v1587
      %v1708 = vpop.f32.mrf.mxu0
      %v1709 = vadd.f32 0.0, %v1708
      %1710 = vmatmul.f32.gmra.mxu0 %v1588
      %v1711 = vpop.f32.mrf.mxu0
      %v1712 = vadd.f32 0.0, %v1711
      %1713 = vmatmul.f32.gmra.mxu0 %v1589
      %v1714 = vpop.f32.mrf.mxu0
      %v1715 = vadd.f32 0.0, %v1714
      %1716 = vmatmul.f32.gmra.mxu0 %v1590
      %v1717 = vpop.f32.mrf.mxu0
      %v1718 = vadd.f32 0.0, %v1717
      %1719 = vmatmul.f32.gmra.mxu0 %v1591
      %v1720 = vpop.f32.mrf.mxu0
      %v1721 = vadd.f32 0.0, %v1720
      %1722 = vmatmul.f32.gmra.mxu0 %v1592
      %v1723 = vpop.f32.mrf.mxu0
      %v1724 = vadd.f32 0.0, %v1723
      %1725 = vmatmul.f32.gmra.mxu0 %v1593
      %v1726 = vpop.f32.mrf.mxu0
      %v1727 = vadd.f32 0.0, %v1726
      %1728 = vmatmul.f32.gmra.mxu0 %v1594
      %v1729 = vpop.f32.mrf.mxu0
      %v1730 = vadd.f32 0.0, %v1729
      %1731 = vmatmul.f32.gmra.mxu0 %v1595
      %v1732 = vpop.f32.mrf.mxu0
      %v1733 = vadd.f32 0.0, %v1732
      %1734 = vmatmul.f32.gmra.mxu0 %v1596
      %v1735 = vpop.f32.mrf.mxu0
      %v1736 = vadd.f32 0.0, %v1735
      %1737 = vdwg.mxu0
      %v1738 = vadd.f32 %v1525, %v1631
      %v1739 = vadd.f32 %v1526, %v1634
      %v1740 = vadd.f32 %v1527, %v1637
      %v1741 = vadd.f32 %v1528, %v1640
      %v1742 = vadd.f32 %v1529, %v1643
      %v1743 = vadd.f32 %v1530, %v1646
      %v1744 = vadd.f32 %v1531, %v1649
      %v1745 = vadd.f32 %v1532, %v1652
      %v1746 = vadd.f32 %v1533, %v1655
      %v1747 = vadd.f32 %v1534, %v1658
      %v1748 = vadd.f32 %v1535, %v1661
      %v1749 = vadd.f32 %v1536, %v1664
      %v1750 = vadd.f32 %v1537, %v1667
      %v1751 = vadd.f32 %v1538, %v1670
      %v1752 = vadd.f32 %v1539, %v1673
      %v1753 = vadd.f32 %v1540, %v1676
      %v1754 = vadd.f32 %v1541, %v1679
      %v1755 = vadd.f32 %v1542, %v1682
      %v1756 = vadd.f32 %v1543, %v1685
      %v1757 = vadd.f32 %v1544, %v1688
      %v1758 = vadd.f32 %v1545, %v1691
      %v1759 = vadd.f32 %v1546, %v1694
      %v1760 = vadd.f32 %v1547, %v1697
      %v1761 = vadd.f32 %v1548, %v1700
      %v1762 = vadd.f32 %v1549, %v1703
      %v1763 = vadd.f32 %v1550, %v1706
      %v1764 = vadd.f32 %v1551, %v1709
      %v1765 = vadd.f32 %v1552, %v1712
      %v1766 = vadd.f32 %v1553, %v1715
      %v1767 = vadd.f32 %v1554, %v1718
      %v1768 = vadd.f32 %v1555, %v1721
      %v1769 = vadd.f32 %v1556, %v1724
      %v1770 = vadd.f32 %v1557, %v1727
      %v1771 = vadd.f32 %v1558, %v1730
      %v1772 = vadd.f32 %v1559, %v1733
      %v1773 = vadd.f32 %v1560, %v1736
      %v1774 = vld [vmem:[#allocation2 + $0x19] sm:$0xff]
      %v1775 = vld [vmem:[#allocation2 + $0x21] sm:$0xff]
      %v1776 = vld [vmem:[#allocation2 + $0x29] sm:$0xff]
      %v1777 = vld [vmem:[#allocation2 + $0x31] sm:$0xff]
      %v1778 = vld [vmem:[#allocation2 + $0x39] sm:$0xff]
      %v1779 = vld [vmem:[#allocation2 + $0x41] sm:$0xff]
      %v1780 = vld [vmem:[#allocation2 + $0x49] sm:$0xff]
      %v1781 = vld [vmem:[#allocation2 + $0x51] sm:$0xff]
      %v1782 = vld [vmem:[#allocation2 + $0x59] sm:$0xff]
      %v1783 = vld [vmem:[#allocation2 + $0x61] sm:$0xff]
      %v1784 = vld [vmem:[#allocation2 + $0x69] sm:$0xff]
      %v1785 = vld [vmem:[#allocation2 + $0x71] sm:$0xff]
      %v1786 = vld [vmem:[#allocation2 + $0x79] sm:$0xff]
      %v1787 = vld [vmem:[#allocation2 + $0x81] sm:$0xff]
      %v1788 = vld [vmem:[#allocation2 + $0x89] sm:$0xff]
      %v1789 = vld [vmem:[#allocation2 + $0x91] sm:$0xff]
      %v1790 = vld [vmem:[#allocation2 + $0x99] sm:$0xff]
      %v1791 = vld [vmem:[#allocation2 + $0xa1] sm:$0xff]
      %v1792 = vld [vmem:[#allocation2 + $0xa9] sm:$0xff]
      %v1793 = vld [vmem:[#allocation2 + $0xb1] sm:$0xff]
      %v1794 = vld [vmem:[#allocation2 + $0xb9] sm:$0xff]
      %v1795 = vld [vmem:[#allocation2 + $0xc1] sm:$0xff]
      %v1796 = vld [vmem:[#allocation2 + $0xc9] sm:$0xff]
      %v1797 = vld [vmem:[#allocation2 + $0xd1] sm:$0xff]
      %v1798 = vld [vmem:[#allocation2 + $0xd9] sm:$0xff]
      %v1799 = vld [vmem:[#allocation2 + $0xe1] sm:$0xff]
      %v1800 = vld [vmem:[#allocation2 + $0xe9] sm:$0xff]
      %v1801 = vld [vmem:[#allocation2 + $0xf1] sm:$0xff]
      %v1802 = vld [vmem:[#allocation2 + $0xf9] sm:$0xff]
      %v1803 = vld [vmem:[#allocation2 + $0x101] sm:$0xff]
      %v1804 = vld [vmem:[#allocation2 + $0x109] sm:$0xff]
      %v1805 = vld [vmem:[#allocation2 + $0x111] sm:$0xff]
      %v1806 = vld [vmem:[#allocation2 + $0x119] sm:$0xff]
      %v1807 = vld [vmem:[#allocation2 + $0x121] sm:$0xff]
      %v1808 = vld [vmem:[#allocation2 + $0x129] sm:$0xff]
      %v1809 = vld [vmem:[#allocation2 + $0x131] sm:$0xff]
      %v1810 = vld [vmem:[%s1 + $0x280] sm:$0xff]
      %v1811 = vld [vmem:[%s1 + $0x288] sm:$0xff]
      %v1812 = vld [vmem:[%s1 + $0x290] sm:$0xff]
      %v1813 = vld [vmem:[%s1 + $0x298] sm:$0xff]
      %v1814 = vld [vmem:[%s1 + $0x2a0] sm:$0xff]
      %v1815 = vld [vmem:[%s1 + $0x2a8] sm:$0xff]
      %v1816 = vld [vmem:[%s1 + $0x2b0] sm:$0xff]
      %v1817 = vld [vmem:[%s1 + $0x2b8] sm:$0xff]
      %v1818 = vld [vmem:[%s1 + $0x2c0] sm:$0xff]
      %v1819 = vld [vmem:[%s1 + $0x2c8] sm:$0xff]
      %v1820 = vld [vmem:[%s1 + $0x2d0] sm:$0xff]
      %v1821 = vld [vmem:[%s1 + $0x2d8] sm:$0xff]
      %v1822 = vld [vmem:[%s1 + $0x2e0] sm:$0xff]
      %v1823 = vld [vmem:[%s1 + $0x2e8] sm:$0xff]
      %v1824 = vld [vmem:[%s1 + $0x2f0] sm:$0xff]
      %v1825 = vld [vmem:[%s1 + $0x2f8] sm:$0xff]
      %1826 = vmatpush.msra.mxu0 %v1825
      %1827 = vmatpush.msra.mxu0 %v1824
      %1828 = vmatpush.msra.mxu0 %v1823
      %1829 = vmatpush.msra.mxu0 %v1822
      %1830 = vmatpush.msra.mxu0 %v1821
      %1831 = vmatpush.msra.mxu0 %v1820
      %1832 = vmatpush.msra.mxu0 %v1819
      %1833 = vmatpush.msra.mxu0 %v1818
      %1834 = vmatpush.msra.mxu0 %v1817
      %1835 = vmatpush.msra.mxu0 %v1816
      %1836 = vmatpush.msra.mxu0 %v1815
      %1837 = vmatpush.msra.mxu0 %v1814
      %1838 = vmatpush.msra.mxu0 %v1813
      %1839 = vmatpush.msra.mxu0 %v1812
      %1840 = vmatpush.msra.mxu0 %v1811
      %1841 = vmatpush.msra.mxu0 %v1810
      %1842 = vmatmul.f32.gmra.mxu0 %v1774
      %v1843 = vpop.f32.mrf.mxu0
      %v1844 = vadd.f32 0.0, %v1843
      %1845 = vmatmul.f32.gmra.mxu0 %v1775
      %v1846 = vpop.f32.mrf.mxu0
      %v1847 = vadd.f32 0.0, %v1846
      %1848 = vmatmul.f32.gmra.mxu0 %v1776
      %v1849 = vpop.f32.mrf.mxu0
      %v1850 = vadd.f32 0.0, %v1849
      %1851 = vmatmul.f32.gmra.mxu0 %v1777
      %v1852 = vpop.f32.mrf.mxu0
      %v1853 = vadd.f32 0.0, %v1852
      %1854 = vmatmul.f32.gmra.mxu0 %v1778
      %v1855 = vpop.f32.mrf.mxu0
      %v1856 = vadd.f32 0.0, %v1855
      %1857 = vmatmul.f32.gmra.mxu0 %v1779
      %v1858 = vpop.f32.mrf.mxu0
      %v1859 = vadd.f32 0.0, %v1858
      %1860 = vmatmul.f32.gmra.mxu0 %v1780
      %v1861 = vpop.f32.mrf.mxu0
      %v1862 = vadd.f32 0.0, %v1861
      %1863 = vmatmul.f32.gmra.mxu0 %v1781
      %v1864 = vpop.f32.mrf.mxu0
      %v1865 = vadd.f32 0.0, %v1864
      %1866 = vmatmul.f32.gmra.mxu0 %v1782
      %v1867 = vpop.f32.mrf.mxu0
      %v1868 = vadd.f32 0.0, %v1867
      %1869 = vmatmul.f32.gmra.mxu0 %v1783
      %v1870 = vpop.f32.mrf.mxu0
      %v1871 = vadd.f32 0.0, %v1870
      %1872 = vmatmul.f32.gmra.mxu0 %v1784
      %v1873 = vpop.f32.mrf.mxu0
      %v1874 = vadd.f32 0.0, %v1873
      %1875 = vmatmul.f32.gmra.mxu0 %v1785
      %v1876 = vpop.f32.mrf.mxu0
      %v1877 = vadd.f32 0.0, %v1876
      %1878 = vmatmul.f32.gmra.mxu0 %v1786
      %v1879 = vpop.f32.mrf.mxu0
      %v1880 = vadd.f32 0.0, %v1879
      %1881 = vmatmul.f32.gmra.mxu0 %v1787
      %v1882 = vpop.f32.mrf.mxu0
      %v1883 = vadd.f32 0.0, %v1882
      %1884 = vmatmul.f32.gmra.mxu0 %v1788
      %v1885 = vpop.f32.mrf.mxu0
      %v1886 = vadd.f32 0.0, %v1885
      %1887 = vmatmul.f32.gmra.mxu0 %v1789
      %v1888 = vpop.f32.mrf.mxu0
      %v1889 = vadd.f32 0.0, %v1888
      %1890 = vmatmul.f32.gmra.mxu0 %v1790
      %v1891 = vpop.f32.mrf.mxu0
      %v1892 = vadd.f32 0.0, %v1891
      %1893 = vmatmul.f32.gmra.mxu0 %v1791
      %v1894 = vpop.f32.mrf.mxu0
      %v1895 = vadd.f32 0.0, %v1894
      %1896 = vmatmul.f32.gmra.mxu0 %v1792
      %v1897 = vpop.f32.mrf.mxu0
      %v1898 = vadd.f32 0.0, %v1897
      %1899 = vmatmul.f32.gmra.mxu0 %v1793
      %v1900 = vpop.f32.mrf.mxu0
      %v1901 = vadd.f32 0.0, %v1900
      %1902 = vmatmul.f32.gmra.mxu0 %v1794
      %v1903 = vpop.f32.mrf.mxu0
      %v1904 = vadd.f32 0.0, %v1903
      %1905 = vmatmul.f32.gmra.mxu0 %v1795
      %v1906 = vpop.f32.mrf.mxu0
      %v1907 = vadd.f32 0.0, %v1906
      %1908 = vmatmul.f32.gmra.mxu0 %v1796
      %v1909 = vpop.f32.mrf.mxu0
      %v1910 = vadd.f32 0.0, %v1909
      %1911 = vmatmul.f32.gmra.mxu0 %v1797
      %v1912 = vpop.f32.mrf.mxu0
      %v1913 = vadd.f32 0.0, %v1912
      %1914 = vmatmul.f32.gmra.mxu0 %v1798
      %v1915 = vpop.f32.mrf.mxu0
      %v1916 = vadd.f32 0.0, %v1915
      %1917 = vmatmul.f32.gmra.mxu0 %v1799
      %v1918 = vpop.f32.mrf.mxu0
      %v1919 = vadd.f32 0.0, %v1918
      %1920 = vmatmul.f32.gmra.mxu0 %v1800
      %v1921 = vpop.f32.mrf.mxu0
      %v1922 = vadd.f32 0.0, %v1921
      %1923 = vmatmul.f32.gmra.mxu0 %v1801
      %v1924 = vpop.f32.mrf.mxu0
      %v1925 = vadd.f32 0.0, %v1924
      %1926 = vmatmul.f32.gmra.mxu0 %v1802
      %v1927 = vpop.f32.mrf.mxu0
      %v1928 = vadd.f32 0.0, %v1927
      %1929 = vmatmul.f32.gmra.mxu0 %v1803
      %v1930 = vpop.f32.mrf.mxu0
      %v1931 = vadd.f32 0.0, %v1930
      %1932 = vmatmul.f32.gmra.mxu0 %v1804
      %v1933 = vpop.f32.mrf.mxu0
      %v1934 = vadd.f32 0.0, %v1933
      %1935 = vmatmul.f32.gmra.mxu0 %v1805
      %v1936 = vpop.f32.mrf.mxu0
      %v1937 = vadd.f32 0.0, %v1936
      %1938 = vmatmul.f32.gmra.mxu0 %v1806
      %v1939 = vpop.f32.mrf.mxu0
      %v1940 = vadd.f32 0.0, %v1939
      %1941 = vmatmul.f32.gmra.mxu0 %v1807
      %v1942 = vpop.f32.mrf.mxu0
      %v1943 = vadd.f32 0.0, %v1942
      %1944 = vmatmul.f32.gmra.mxu0 %v1808
      %v1945 = vpop.f32.mrf.mxu0
      %v1946 = vadd.f32 0.0, %v1945
      %1947 = vmatmul.f32.gmra.mxu0 %v1809
      %v1948 = vpop.f32.mrf.mxu0
      %v1949 = vadd.f32 0.0, %v1948
      %1950 = vdwg.mxu0
      %v1951 = vadd.f32 %v1738, %v1844
      %v1952 = vadd.f32 %v1739, %v1847
      %v1953 = vadd.f32 %v1740, %v1850
      %v1954 = vadd.f32 %v1741, %v1853
      %v1955 = vadd.f32 %v1742, %v1856
      %v1956 = vadd.f32 %v1743, %v1859
      %v1957 = vadd.f32 %v1744, %v1862
      %v1958 = vadd.f32 %v1745, %v1865
      %v1959 = vadd.f32 %v1746, %v1868
      %v1960 = vadd.f32 %v1747, %v1871
      %v1961 = vadd.f32 %v1748, %v1874
      %v1962 = vadd.f32 %v1749, %v1877
      %v1963 = vadd.f32 %v1750, %v1880
      %v1964 = vadd.f32 %v1751, %v1883
      %v1965 = vadd.f32 %v1752, %v1886
      %v1966 = vadd.f32 %v1753, %v1889
      %v1967 = vadd.f32 %v1754, %v1892
      %v1968 = vadd.f32 %v1755, %v1895
      %v1969 = vadd.f32 %v1756, %v1898
      %v1970 = vadd.f32 %v1757, %v1901
      %v1971 = vadd.f32 %v1758, %v1904
      %v1972 = vadd.f32 %v1759, %v1907
      %v1973 = vadd.f32 %v1760, %v1910
      %v1974 = vadd.f32 %v1761, %v1913
      %v1975 = vadd.f32 %v1762, %v1916
      %v1976 = vadd.f32 %v1763, %v1919
      %v1977 = vadd.f32 %v1764, %v1922
      %v1978 = vadd.f32 %v1765, %v1925
      %v1979 = vadd.f32 %v1766, %v1928
      %v1980 = vadd.f32 %v1767, %v1931
      %v1981 = vadd.f32 %v1768, %v1934
      %v1982 = vadd.f32 %v1769, %v1937
      %v1983 = vadd.f32 %v1770, %v1940
      %v1984 = vadd.f32 %v1771, %v1943
      %v1985 = vadd.f32 %v1772, %v1946
      %v1986 = vadd.f32 %v1773, %v1949
      %v1987 = vld [vmem:[#allocation2 + $0x29] sm:$0xff]
      %v1988 = vld [vmem:[#allocation2 + $0x31] sm:$0xff]
      %v1989 = vld [vmem:[#allocation2 + $0x39] sm:$0xff]
      %v1990 = vld [vmem:[#allocation2 + $0x41] sm:$0xff]
      %v1991 = vld [vmem:[#allocation2 + $0x49] sm:$0xff]
      %v1992 = vld [vmem:[#allocation2 + $0x51] sm:$0xff]
      %v1993 = vld [vmem:[#allocation2 + $0x59] sm:$0xff]
      %v1994 = vld [vmem:[#allocation2 + $0x61] sm:$0xff]
      %v1995 = vld [vmem:[#allocation2 + $0x69] sm:$0xff]
      %v1996 = vld [vmem:[#allocation2 + $0x71] sm:$0xff]
      %v1997 = vld [vmem:[#allocation2 + $0x79] sm:$0xff]
      %v1998 = vld [vmem:[#allocation2 + $0x81] sm:$0xff]
      %v1999 = vld [vmem:[#allocation2 + $0x89] sm:$0xff]
      %v2000 = vld [vmem:[#allocation2 + $0x91] sm:$0xff]
      %v2001 = vld [vmem:[#allocation2 + $0x99] sm:$0xff]
      %v2002 = vld [vmem:[#allocation2 + $0xa1] sm:$0xff]
      %v2003 = vld [vmem:[#allocation2 + $0xa9] sm:$0xff]
      %v2004 = vld [vmem:[#allocation2 + $0xb1] sm:$0xff]
      %v2005 = vld [vmem:[#allocation2 + $0xb9] sm:$0xff]
      %v2006 = vld [vmem:[#allocation2 + $0xc1] sm:$0xff]
      %v2007 = vld [vmem:[#allocation2 + $0xc9] sm:$0xff]
      %v2008 = vld [vmem:[#allocation2 + $0xd1] sm:$0xff]
      %v2009 = vld [vmem:[#allocation2 + $0xd9] sm:$0xff]
      %v2010 = vld [vmem:[#allocation2 + $0xe1] sm:$0xff]
      %v2011 = vld [vmem:[#allocation2 + $0xe9] sm:$0xff]
      %v2012 = vld [vmem:[#allocation2 + $0xf1] sm:$0xff]
      %v2013 = vld [vmem:[#allocation2 + $0xf9] sm:$0xff]
      %v2014 = vld [vmem:[#allocation2 + $0x101] sm:$0xff]
      %v2015 = vld [vmem:[#allocation2 + $0x109] sm:$0xff]
      %v2016 = vld [vmem:[#allocation2 + $0x111] sm:$0xff]
      %v2017 = vld [vmem:[#allocation2 + $0x119] sm:$0xff]
      %v2018 = vld [vmem:[#allocation2 + $0x121] sm:$0xff]
      %v2019 = vld [vmem:[#allocation2 + $0x129] sm:$0xff]
      %v2020 = vld [vmem:[#allocation2 + $0x131] sm:$0xff]
      %v2021 = vld [vmem:[#allocation2 + $0x139] sm:$0xff]
      %v2022 = vld [vmem:[#allocation2 + $0x141] sm:$0xff]
      %v2023 = vld [vmem:[%s1 + $0x300] sm:$0xff]
      %v2024 = vld [vmem:[%s1 + $0x308] sm:$0xff]
      %v2025 = vld [vmem:[%s1 + $0x310] sm:$0xff]
      %v2026 = vld [vmem:[%s1 + $0x318] sm:$0xff]
      %v2027 = vld [vmem:[%s1 + $0x320] sm:$0xff]
      %v2028 = vld [vmem:[%s1 + $0x328] sm:$0xff]
      %v2029 = vld [vmem:[%s1 + $0x330] sm:$0xff]
      %v2030 = vld [vmem:[%s1 + $0x338] sm:$0xff]
      %v2031 = vld [vmem:[%s1 + $0x340] sm:$0xff]
      %v2032 = vld [vmem:[%s1 + $0x348] sm:$0xff]
      %v2033 = vld [vmem:[%s1 + $0x350] sm:$0xff]
      %v2034 = vld [vmem:[%s1 + $0x358] sm:$0xff]
      %v2035 = vld [vmem:[%s1 + $0x360] sm:$0xff]
      %v2036 = vld [vmem:[%s1 + $0x368] sm:$0xff]
      %v2037 = vld [vmem:[%s1 + $0x370] sm:$0xff]
      %v2038 = vld [vmem:[%s1 + $0x378] sm:$0xff]
      %2039 = vmatpush.msra.mxu0 %v2038
      %2040 = vmatpush.msra.mxu0 %v2037
      %2041 = vmatpush.msra.mxu0 %v2036
      %2042 = vmatpush.msra.mxu0 %v2035
      %2043 = vmatpush.msra.mxu0 %v2034
      %2044 = vmatpush.msra.mxu0 %v2033
      %2045 = vmatpush.msra.mxu0 %v2032
      %2046 = vmatpush.msra.mxu0 %v2031
      %2047 = vmatpush.msra.mxu0 %v2030
      %2048 = vmatpush.msra.mxu0 %v2029
      %2049 = vmatpush.msra.mxu0 %v2028
      %2050 = vmatpush.msra.mxu0 %v2027
      %2051 = vmatpush.msra.mxu0 %v2026
      %2052 = vmatpush.msra.mxu0 %v2025
      %2053 = vmatpush.msra.mxu0 %v2024
      %2054 = vmatpush.msra.mxu0 %v2023
      %2055 = vmatmul.f32.gmra.mxu0 %v1987
      %v2056 = vpop.f32.mrf.mxu0
      %v2057 = vadd.f32 0.0, %v2056
      %2058 = vmatmul.f32.gmra.mxu0 %v1988
      %v2059 = vpop.f32.mrf.mxu0
      %v2060 = vadd.f32 0.0, %v2059
      %2061 = vmatmul.f32.gmra.mxu0 %v1989
      %v2062 = vpop.f32.mrf.mxu0
      %v2063 = vadd.f32 0.0, %v2062
      %2064 = vmatmul.f32.gmra.mxu0 %v1990
      %v2065 = vpop.f32.mrf.mxu0
      %v2066 = vadd.f32 0.0, %v2065
      %2067 = vmatmul.f32.gmra.mxu0 %v1991
      %v2068 = vpop.f32.mrf.mxu0
      %v2069 = vadd.f32 0.0, %v2068
      %2070 = vmatmul.f32.gmra.mxu0 %v1992
      %v2071 = vpop.f32.mrf.mxu0
      %v2072 = vadd.f32 0.0, %v2071
      %2073 = vmatmul.f32.gmra.mxu0 %v1993
      %v2074 = vpop.f32.mrf.mxu0
      %v2075 = vadd.f32 0.0, %v2074
      %2076 = vmatmul.f32.gmra.mxu0 %v1994
      %v2077 = vpop.f32.mrf.mxu0
      %v2078 = vadd.f32 0.0, %v2077
      %2079 = vmatmul.f32.gmra.mxu0 %v1995
      %v2080 = vpop.f32.mrf.mxu0
      %v2081 = vadd.f32 0.0, %v2080
      %2082 = vmatmul.f32.gmra.mxu0 %v1996
      %v2083 = vpop.f32.mrf.mxu0
      %v2084 = vadd.f32 0.0, %v2083
      %2085 = vmatmul.f32.gmra.mxu0 %v1997
      %v2086 = vpop.f32.mrf.mxu0
      %v2087 = vadd.f32 0.0, %v2086
      %2088 = vmatmul.f32.gmra.mxu0 %v1998
      %v2089 = vpop.f32.mrf.mxu0
      %v2090 = vadd.f32 0.0, %v2089
      %2091 = vmatmul.f32.gmra.mxu0 %v1999
      %v2092 = vpop.f32.mrf.mxu0
      %v2093 = vadd.f32 0.0, %v2092
      %2094 = vmatmul.f32.gmra.mxu0 %v2000
      %v2095 = vpop.f32.mrf.mxu0
      %v2096 = vadd.f32 0.0, %v2095
      %2097 = vmatmul.f32.gmra.mxu0 %v2001
      %v2098 = vpop.f32.mrf.mxu0
      %v2099 = vadd.f32 0.0, %v2098
      %2100 = vmatmul.f32.gmra.mxu0 %v2002
      %v2101 = vpop.f32.mrf.mxu0
      %v2102 = vadd.f32 0.0, %v2101
      %2103 = vmatmul.f32.gmra.mxu0 %v2003
      %v2104 = vpop.f32.mrf.mxu0
      %v2105 = vadd.f32 0.0, %v2104
      %2106 = vmatmul.f32.gmra.mxu0 %v2004
      %v2107 = vpop.f32.mrf.mxu0
      %v2108 = vadd.f32 0.0, %v2107
      %2109 = vmatmul.f32.gmra.mxu0 %v2005
      %v2110 = vpop.f32.mrf.mxu0
      %v2111 = vadd.f32 0.0, %v2110
      %2112 = vmatmul.f32.gmra.mxu0 %v2006
      %v2113 = vpop.f32.mrf.mxu0
      %v2114 = vadd.f32 0.0, %v2113
      %2115 = vmatmul.f32.gmra.mxu0 %v2007
      %v2116 = vpop.f32.mrf.mxu0
      %v2117 = vadd.f32 0.0, %v2116
      %2118 = vmatmul.f32.gmra.mxu0 %v2008
      %v2119 = vpop.f32.mrf.mxu0
      %v2120 = vadd.f32 0.0, %v2119
      %2121 = vmatmul.f32.gmra.mxu0 %v2009
      %v2122 = vpop.f32.mrf.mxu0
      %v2123 = vadd.f32 0.0, %v2122
      %2124 = vmatmul.f32.gmra.mxu0 %v2010
      %v2125 = vpop.f32.mrf.mxu0
      %v2126 = vadd.f32 0.0, %v2125
      %2127 = vmatmul.f32.gmra.mxu0 %v2011
      %v2128 = vpop.f32.mrf.mxu0
      %v2129 = vadd.f32 0.0, %v2128
      %2130 = vmatmul.f32.gmra.mxu0 %v2012
      %v2131 = vpop.f32.mrf.mxu0
      %v2132 = vadd.f32 0.0, %v2131
      %2133 = vmatmul.f32.gmra.mxu0 %v2013
      %v2134 = vpop.f32.mrf.mxu0
      %v2135 = vadd.f32 0.0, %v2134
      %2136 = vmatmul.f32.gmra.mxu0 %v2014
      %v2137 = vpop.f32.mrf.mxu0
      %v2138 = vadd.f32 0.0, %v2137
      %2139 = vmatmul.f32.gmra.mxu0 %v2015
      %v2140 = vpop.f32.mrf.mxu0
      %v2141 = vadd.f32 0.0, %v2140
      %2142 = vmatmul.f32.gmra.mxu0 %v2016
      %v2143 = vpop.f32.mrf.mxu0
      %v2144 = vadd.f32 0.0, %v2143
      %2145 = vmatmul.f32.gmra.mxu0 %v2017
      %v2146 = vpop.f32.mrf.mxu0
      %v2147 = vadd.f32 0.0, %v2146
      %2148 = vmatmul.f32.gmra.mxu0 %v2018
      %v2149 = vpop.f32.mrf.mxu0
      %v2150 = vadd.f32 0.0, %v2149
      %2151 = vmatmul.f32.gmra.mxu0 %v2019
      %v2152 = vpop.f32.mrf.mxu0
      %v2153 = vadd.f32 0.0, %v2152
      %2154 = vmatmul.f32.gmra.mxu0 %v2020
      %v2155 = vpop.f32.mrf.mxu0
      %v2156 = vadd.f32 0.0, %v2155
      %2157 = vmatmul.f32.gmra.mxu0 %v2021
      %v2158 = vpop.f32.mrf.mxu0
      %v2159 = vadd.f32 0.0, %v2158
      %2160 = vmatmul.f32.gmra.mxu0 %v2022
      %v2161 = vpop.f32.mrf.mxu0
      %v2162 = vadd.f32 0.0, %v2161
      %2163 = vdwg.mxu0
      %v2164 = vadd.f32 %v1951, %v2057
      %v2165 = vadd.f32 %v1952, %v2060
      %v2166 = vadd.f32 %v1953, %v2063
      %v2167 = vadd.f32 %v1954, %v2066
      %v2168 = vadd.f32 %v1955, %v2069
      %v2169 = vadd.f32 %v1956, %v2072
      %v2170 = vadd.f32 %v1957, %v2075
      %v2171 = vadd.f32 %v1958, %v2078
      %v2172 = vadd.f32 %v1959, %v2081
      %v2173 = vadd.f32 %v1960, %v2084
      %v2174 = vadd.f32 %v1961, %v2087
      %v2175 = vadd.f32 %v1962, %v2090
      %v2176 = vadd.f32 %v1963, %v2093
      %v2177 = vadd.f32 %v1964, %v2096
      %v2178 = vadd.f32 %v1965, %v2099
      %v2179 = vadd.f32 %v1966, %v2102
      %v2180 = vadd.f32 %v1967, %v2105
      %v2181 = vadd.f32 %v1968, %v2108
      %v2182 = vadd.f32 %v1969, %v2111
      %v2183 = vadd.f32 %v1970, %v2114
      %v2184 = vadd.f32 %v1971, %v2117
      %v2185 = vadd.f32 %v1972, %v2120
      %v2186 = vadd.f32 %v1973, %v2123
      %v2187 = vadd.f32 %v1974, %v2126
      %v2188 = vadd.f32 %v1975, %v2129
      %v2189 = vadd.f32 %v1976, %v2132
      %v2190 = vadd.f32 %v1977, %v2135
      %v2191 = vadd.f32 %v1978, %v2138
      %v2192 = vadd.f32 %v1979, %v2141
      %v2193 = vadd.f32 %v1980, %v2144
      %v2194 = vadd.f32 %v1981, %v2147
      %v2195 = vadd.f32 %v1982, %v2150
      %v2196 = vadd.f32 %v1983, %v2153
      %v2197 = vadd.f32 %v1984, %v2156
      %v2198 = vadd.f32 %v1985, %v2159
      %v2199 = vadd.f32 %v1986, %v2162
      %v2200 = vld [vmem:[#allocation2 + $0x2a] sm:$0xff]
      %v2201 = vld [vmem:[#allocation2 + $0x32] sm:$0xff]
      %v2202 = vld [vmem:[#allocation2 + $0x3a] sm:$0xff]
      %v2203 = vld [vmem:[#allocation2 + $0x42] sm:$0xff]
      %v2204 = vld [vmem:[#allocation2 + $0x4a] sm:$0xff]
      %v2205 = vld [vmem:[#allocation2 + $0x52] sm:$0xff]
      %v2206 = vld [vmem:[#allocation2 + $0x5a] sm:$0xff]
      %v2207 = vld [vmem:[#allocation2 + $0x62] sm:$0xff]
      %v2208 = vld [vmem:[#allocation2 + $0x6a] sm:$0xff]
      %v2209 = vld [vmem:[#allocation2 + $0x72] sm:$0xff]
      %v2210 = vld [vmem:[#allocation2 + $0x7a] sm:$0xff]
      %v2211 = vld [vmem:[#allocation2 + $0x82] sm:$0xff]
      %v2212 = vld [vmem:[#allocation2 + $0x8a] sm:$0xff]
      %v2213 = vld [vmem:[#allocation2 + $0x92] sm:$0xff]
      %v2214 = vld [vmem:[#allocation2 + $0x9a] sm:$0xff]
      %v2215 = vld [vmem:[#allocation2 + $0xa2] sm:$0xff]
      %v2216 = vld [vmem:[#allocation2 + $0xaa] sm:$0xff]
      %v2217 = vld [vmem:[#allocation2 + $0xb2] sm:$0xff]
      %v2218 = vld [vmem:[#allocation2 + $0xba] sm:$0xff]
      %v2219 = vld [vmem:[#allocation2 + $0xc2] sm:$0xff]
      %v2220 = vld [vmem:[#allocation2 + $0xca] sm:$0xff]
      %v2221 = vld [vmem:[#allocation2 + $0xd2] sm:$0xff]
      %v2222 = vld [vmem:[#allocation2 + $0xda] sm:$0xff]
      %v2223 = vld [vmem:[#allocation2 + $0xe2] sm:$0xff]
      %v2224 = vld [vmem:[#allocation2 + $0xea] sm:$0xff]
      %v2225 = vld [vmem:[#allocation2 + $0xf2] sm:$0xff]
      %v2226 = vld [vmem:[#allocation2 + $0xfa] sm:$0xff]
      %v2227 = vld [vmem:[#allocation2 + $0x102] sm:$0xff]
      %v2228 = vld [vmem:[#allocation2 + $0x10a] sm:$0xff]
      %v2229 = vld [vmem:[#allocation2 + $0x112] sm:$0xff]
      %v2230 = vld [vmem:[#allocation2 + $0x11a] sm:$0xff]
      %v2231 = vld [vmem:[#allocation2 + $0x122] sm:$0xff]
      %v2232 = vld [vmem:[#allocation2 + $0x12a] sm:$0xff]
      %v2233 = vld [vmem:[#allocation2 + $0x132] sm:$0xff]
      %v2234 = vld [vmem:[#allocation2 + $0x13a] sm:$0xff]
      %v2235 = vld [vmem:[#allocation2 + $0x142] sm:$0xff]
      %v2236 = vld [vmem:[%s1 + $0x380] sm:$0xff]
      %v2237 = vld [vmem:[%s1 + $0x388] sm:$0xff]
      %v2238 = vld [vmem:[%s1 + $0x390] sm:$0xff]
      %v2239 = vld [vmem:[%s1 + $0x398] sm:$0xff]
      %v2240 = vld [vmem:[%s1 + $0x3a0] sm:$0xff]
      %v2241 = vld [vmem:[%s1 + $0x3a8] sm:$0xff]
      %v2242 = vld [vmem:[%s1 + $0x3b0] sm:$0xff]
      %v2243 = vld [vmem:[%s1 + $0x3b8] sm:$0xff]
      %v2244 = vld [vmem:[%s1 + $0x3c0] sm:$0xff]
      %v2245 = vld [vmem:[%s1 + $0x3c8] sm:$0xff]
      %v2246 = vld [vmem:[%s1 + $0x3d0] sm:$0xff]
      %v2247 = vld [vmem:[%s1 + $0x3d8] sm:$0xff]
      %v2248 = vld [vmem:[%s1 + $0x3e0] sm:$0xff]
      %v2249 = vld [vmem:[%s1 + $0x3e8] sm:$0xff]
      %v2250 = vld [vmem:[%s1 + $0x3f0] sm:$0xff]
      %v2251 = vld [vmem:[%s1 + $0x3f8] sm:$0xff]
      %2252 = vmatpush.msra.mxu0 %v2251
      %2253 = vmatpush.msra.mxu0 %v2250
      %2254 = vmatpush.msra.mxu0 %v2249
      %2255 = vmatpush.msra.mxu0 %v2248
      %2256 = vmatpush.msra.mxu0 %v2247
      %2257 = vmatpush.msra.mxu0 %v2246
      %2258 = vmatpush.msra.mxu0 %v2245
      %2259 = vmatpush.msra.mxu0 %v2244
      %2260 = vmatpush.msra.mxu0 %v2243
      %2261 = vmatpush.msra.mxu0 %v2242
      %2262 = vmatpush.msra.mxu0 %v2241
      %2263 = vmatpush.msra.mxu0 %v2240
      %2264 = vmatpush.msra.mxu0 %v2239
      %2265 = vmatpush.msra.mxu0 %v2238
      %2266 = vmatpush.msra.mxu0 %v2237
      %2267 = vmatpush.msra.mxu0 %v2236
      %2268 = vmatmul.f32.gmra.mxu0 %v2200
      %v2269 = vpop.f32.mrf.mxu0
      %v2270 = vadd.f32 0.0, %v2269
      %2271 = vmatmul.f32.gmra.mxu0 %v2201
      %v2272 = vpop.f32.mrf.mxu0
      %v2273 = vadd.f32 0.0, %v2272
      %2274 = vmatmul.f32.gmra.mxu0 %v2202
      %v2275 = vpop.f32.mrf.mxu0
      %v2276 = vadd.f32 0.0, %v2275
      %2277 = vmatmul.f32.gmra.mxu0 %v2203
      %v2278 = vpop.f32.mrf.mxu0
      %v2279 = vadd.f32 0.0, %v2278
      %2280 = vmatmul.f32.gmra.mxu0 %v2204
      %v2281 = vpop.f32.mrf.mxu0
      %v2282 = vadd.f32 0.0, %v2281
      %2283 = vmatmul.f32.gmra.mxu0 %v2205
      %v2284 = vpop.f32.mrf.mxu0
      %v2285 = vadd.f32 0.0, %v2284
      %2286 = vmatmul.f32.gmra.mxu0 %v2206
      %v2287 = vpop.f32.mrf.mxu0
      %v2288 = vadd.f32 0.0, %v2287
      %2289 = vmatmul.f32.gmra.mxu0 %v2207
      %v2290 = vpop.f32.mrf.mxu0
      %v2291 = vadd.f32 0.0, %v2290
      %2292 = vmatmul.f32.gmra.mxu0 %v2208
      %v2293 = vpop.f32.mrf.mxu0
      %v2294 = vadd.f32 0.0, %v2293
      %2295 = vmatmul.f32.gmra.mxu0 %v2209
      %v2296 = vpop.f32.mrf.mxu0
      %v2297 = vadd.f32 0.0, %v2296
      %2298 = vmatmul.f32.gmra.mxu0 %v2210
      %v2299 = vpop.f32.mrf.mxu0
      %v2300 = vadd.f32 0.0, %v2299
      %2301 = vmatmul.f32.gmra.mxu0 %v2211
      %v2302 = vpop.f32.mrf.mxu0
      %v2303 = vadd.f32 0.0, %v2302
      %2304 = vmatmul.f32.gmra.mxu0 %v2212
      %v2305 = vpop.f32.mrf.mxu0
      %v2306 = vadd.f32 0.0, %v2305
      %2307 = vmatmul.f32.gmra.mxu0 %v2213
      %v2308 = vpop.f32.mrf.mxu0
      %v2309 = vadd.f32 0.0, %v2308
      %2310 = vmatmul.f32.gmra.mxu0 %v2214
      %v2311 = vpop.f32.mrf.mxu0
      %v2312 = vadd.f32 0.0, %v2311
      %2313 = vmatmul.f32.gmra.mxu0 %v2215
      %v2314 = vpop.f32.mrf.mxu0
      %v2315 = vadd.f32 0.0, %v2314
      %2316 = vmatmul.f32.gmra.mxu0 %v2216
      %v2317 = vpop.f32.mrf.mxu0
      %v2318 = vadd.f32 0.0, %v2317
      %2319 = vmatmul.f32.gmra.mxu0 %v2217
      %v2320 = vpop.f32.mrf.mxu0
      %v2321 = vadd.f32 0.0, %v2320
      %2322 = vmatmul.f32.gmra.mxu0 %v2218
      %v2323 = vpop.f32.mrf.mxu0
      %v2324 = vadd.f32 0.0, %v2323
      %2325 = vmatmul.f32.gmra.mxu0 %v2219
      %v2326 = vpop.f32.mrf.mxu0
      %v2327 = vadd.f32 0.0, %v2326
      %2328 = vmatmul.f32.gmra.mxu0 %v2220
      %v2329 = vpop.f32.mrf.mxu0
      %v2330 = vadd.f32 0.0, %v2329
      %2331 = vmatmul.f32.gmra.mxu0 %v2221
      %v2332 = vpop.f32.mrf.mxu0
      %v2333 = vadd.f32 0.0, %v2332
      %2334 = vmatmul.f32.gmra.mxu0 %v2222
      %v2335 = vpop.f32.mrf.mxu0
      %v2336 = vadd.f32 0.0, %v2335
      %2337 = vmatmul.f32.gmra.mxu0 %v2223
      %v2338 = vpop.f32.mrf.mxu0
      %v2339 = vadd.f32 0.0, %v2338
      %2340 = vmatmul.f32.gmra.mxu0 %v2224
      %v2341 = vpop.f32.mrf.mxu0
      %v2342 = vadd.f32 0.0, %v2341
      %2343 = vmatmul.f32.gmra.mxu0 %v2225
      %v2344 = vpop.f32.mrf.mxu0
      %v2345 = vadd.f32 0.0, %v2344
      %2346 = vmatmul.f32.gmra.mxu0 %v2226
      %v2347 = vpop.f32.mrf.mxu0
      %v2348 = vadd.f32 0.0, %v2347
      %2349 = vmatmul.f32.gmra.mxu0 %v2227
      %v2350 = vpop.f32.mrf.mxu0
      %v2351 = vadd.f32 0.0, %v2350
      %2352 = vmatmul.f32.gmra.mxu0 %v2228
      %v2353 = vpop.f32.mrf.mxu0
      %v2354 = vadd.f32 0.0, %v2353
      %2355 = vmatmul.f32.gmra.mxu0 %v2229
      %v2356 = vpop.f32.mrf.mxu0
      %v2357 = vadd.f32 0.0, %v2356
      %2358 = vmatmul.f32.gmra.mxu0 %v2230
      %v2359 = vpop.f32.mrf.mxu0
      %v2360 = vadd.f32 0.0, %v2359
      %2361 = vmatmul.f32.gmra.mxu0 %v2231
      %v2362 = vpop.f32.mrf.mxu0
      %v2363 = vadd.f32 0.0, %v2362
      %2364 = vmatmul.f32.gmra.mxu0 %v2232
      %v2365 = vpop.f32.mrf.mxu0
      %v2366 = vadd.f32 0.0, %v2365
      %2367 = vmatmul.f32.gmra.mxu0 %v2233
      %v2368 = vpop.f32.mrf.mxu0
      %v2369 = vadd.f32 0.0, %v2368
      %2370 = vmatmul.f32.gmra.mxu0 %v2234
      %v2371 = vpop.f32.mrf.mxu0
      %v2372 = vadd.f32 0.0, %v2371
      %2373 = vmatmul.f32.gmra.mxu0 %v2235
      %v2374 = vpop.f32.mrf.mxu0
      %v2375 = vadd.f32 0.0, %v2374
      %2376 = vdwg.mxu0
      %v2377 = vadd.f32 %v2164, %v2270
      %v2378 = vadd.f32 %v2165, %v2273
      %v2379 = vadd.f32 %v2166, %v2276
      %v2380 = vadd.f32 %v2167, %v2279
      %v2381 = vadd.f32 %v2168, %v2282
      %v2382 = vadd.f32 %v2169, %v2285
      %v2383 = vadd.f32 %v2170, %v2288
      %v2384 = vadd.f32 %v2171, %v2291
      %v2385 = vadd.f32 %v2172, %v2294
      %v2386 = vadd.f32 %v2173, %v2297
      %v2387 = vadd.f32 %v2174, %v2300
      %v2388 = vadd.f32 %v2175, %v2303
      %v2389 = vadd.f32 %v2176, %v2306
      %v2390 = vadd.f32 %v2177, %v2309
      %v2391 = vadd.f32 %v2178, %v2312
      %v2392 = vadd.f32 %v2179, %v2315
      %v2393 = vadd.f32 %v2180, %v2318
      %v2394 = vadd.f32 %v2181, %v2321
      %v2395 = vadd.f32 %v2182, %v2324
      %v2396 = vadd.f32 %v2183, %v2327
      %v2397 = vadd.f32 %v2184, %v2330
      %v2398 = vadd.f32 %v2185, %v2333
      %v2399 = vadd.f32 %v2186, %v2336
      %v2400 = vadd.f32 %v2187, %v2339
      %v2401 = vadd.f32 %v2188, %v2342
      %v2402 = vadd.f32 %v2189, %v2345
      %v2403 = vadd.f32 %v2190, %v2348
      %v2404 = vadd.f32 %v2191, %v2351
      %v2405 = vadd.f32 %v2192, %v2354
      %v2406 = vadd.f32 %v2193, %v2357
      %v2407 = vadd.f32 %v2194, %v2360
      %v2408 = vadd.f32 %v2195, %v2363
      %v2409 = vadd.f32 %v2196, %v2366
      %v2410 = vadd.f32 %v2197, %v2369
      %v2411 = vadd.f32 %v2198, %v2372
      %v2412 = vadd.f32 %v2199, %v2375
      %v2413 = vld [vmem:[#allocation2 + $0x2b] sm:$0xff]
      %v2414 = vld [vmem:[#allocation2 + $0x33] sm:$0xff]
      %v2415 = vld [vmem:[#allocation2 + $0x3b] sm:$0xff]
      %v2416 = vld [vmem:[#allocation2 + $0x43] sm:$0xff]
      %v2417 = vld [vmem:[#allocation2 + $0x4b] sm:$0xff]
      %v2418 = vld [vmem:[#allocation2 + $0x53] sm:$0xff]
      %v2419 = vld [vmem:[#allocation2 + $0x5b] sm:$0xff]
      %v2420 = vld [vmem:[#allocation2 + $0x63] sm:$0xff]
      %v2421 = vld [vmem:[#allocation2 + $0x6b] sm:$0xff]
      %v2422 = vld [vmem:[#allocation2 + $0x73] sm:$0xff]
      %v2423 = vld [vmem:[#allocation2 + $0x7b] sm:$0xff]
      %v2424 = vld [vmem:[#allocation2 + $0x83] sm:$0xff]
      %v2425 = vld [vmem:[#allocation2 + $0x8b] sm:$0xff]
      %v2426 = vld [vmem:[#allocation2 + $0x93] sm:$0xff]
      %v2427 = vld [vmem:[#allocation2 + $0x9b] sm:$0xff]
      %v2428 = vld [vmem:[#allocation2 + $0xa3] sm:$0xff]
      %v2429 = vld [vmem:[#allocation2 + $0xab] sm:$0xff]
      %v2430 = vld [vmem:[#allocation2 + $0xb3] sm:$0xff]
      %v2431 = vld [vmem:[#allocation2 + $0xbb] sm:$0xff]
      %v2432 = vld [vmem:[#allocation2 + $0xc3] sm:$0xff]
      %v2433 = vld [vmem:[#allocation2 + $0xcb] sm:$0xff]
      %v2434 = vld [vmem:[#allocation2 + $0xd3] sm:$0xff]
      %v2435 = vld [vmem:[#allocation2 + $0xdb] sm:$0xff]
      %v2436 = vld [vmem:[#allocation2 + $0xe3] sm:$0xff]
      %v2437 = vld [vmem:[#allocation2 + $0xeb] sm:$0xff]
      %v2438 = vld [vmem:[#allocation2 + $0xf3] sm:$0xff]
      %v2439 = vld [vmem:[#allocation2 + $0xfb] sm:$0xff]
      %v2440 = vld [vmem:[#allocation2 + $0x103] sm:$0xff]
      %v2441 = vld [vmem:[#allocation2 + $0x10b] sm:$0xff]
      %v2442 = vld [vmem:[#allocation2 + $0x113] sm:$0xff]
      %v2443 = vld [vmem:[#allocation2 + $0x11b] sm:$0xff]
      %v2444 = vld [vmem:[#allocation2 + $0x123] sm:$0xff]
      %v2445 = vld [vmem:[#allocation2 + $0x12b] sm:$0xff]
      %v2446 = vld [vmem:[#allocation2 + $0x133] sm:$0xff]
      %v2447 = vld [vmem:[#allocation2 + $0x13b] sm:$0xff]
      %v2448 = vld [vmem:[#allocation2 + $0x143] sm:$0xff]
      %v2449 = vld [vmem:[%s1 + $0x400] sm:$0xff]
      %v2450 = vld [vmem:[%s1 + $0x408] sm:$0xff]
      %v2451 = vld [vmem:[%s1 + $0x410] sm:$0xff]
      %v2452 = vld [vmem:[%s1 + $0x418] sm:$0xff]
      %v2453 = vld [vmem:[%s1 + $0x420] sm:$0xff]
      %v2454 = vld [vmem:[%s1 + $0x428] sm:$0xff]
      %v2455 = vld [vmem:[%s1 + $0x430] sm:$0xff]
      %v2456 = vld [vmem:[%s1 + $0x438] sm:$0xff]
      %v2457 = vld [vmem:[%s1 + $0x440] sm:$0xff]
      %v2458 = vld [vmem:[%s1 + $0x448] sm:$0xff]
      %v2459 = vld [vmem:[%s1 + $0x450] sm:$0xff]
      %v2460 = vld [vmem:[%s1 + $0x458] sm:$0xff]
      %v2461 = vld [vmem:[%s1 + $0x460] sm:$0xff]
      %v2462 = vld [vmem:[%s1 + $0x468] sm:$0xff]
      %v2463 = vld [vmem:[%s1 + $0x470] sm:$0xff]
      %v2464 = vld [vmem:[%s1 + $0x478] sm:$0xff]
      %2465 = vmatpush.msra.mxu0 %v2464
      %2466 = vmatpush.msra.mxu0 %v2463
      %2467 = vmatpush.msra.mxu0 %v2462
      %2468 = vmatpush.msra.mxu0 %v2461
      %2469 = vmatpush.msra.mxu0 %v2460
      %2470 = vmatpush.msra.mxu0 %v2459
      %2471 = vmatpush.msra.mxu0 %v2458
      %2472 = vmatpush.msra.mxu0 %v2457
      %2473 = vmatpush.msra.mxu0 %v2456
      %2474 = vmatpush.msra.mxu0 %v2455
      %2475 = vmatpush.msra.mxu0 %v2454
      %2476 = vmatpush.msra.mxu0 %v2453
      %2477 = vmatpush.msra.mxu0 %v2452
      %2478 = vmatpush.msra.mxu0 %v2451
      %2479 = vmatpush.msra.mxu0 %v2450
      %2480 = vmatpush.msra.mxu0 %v2449
      %2481 = vmatmul.f32.gmra.mxu0 %v2413
      %v2482 = vpop.f32.mrf.mxu0
      %v2483 = vadd.f32 0.0, %v2482
      %2484 = vmatmul.f32.gmra.mxu0 %v2414
      %v2485 = vpop.f32.mrf.mxu0
      %v2486 = vadd.f32 0.0, %v2485
      %2487 = vmatmul.f32.gmra.mxu0 %v2415
      %v2488 = vpop.f32.mrf.mxu0
      %v2489 = vadd.f32 0.0, %v2488
      %2490 = vmatmul.f32.gmra.mxu0 %v2416
      %v2491 = vpop.f32.mrf.mxu0
      %v2492 = vadd.f32 0.0, %v2491
      %2493 = vmatmul.f32.gmra.mxu0 %v2417
      %v2494 = vpop.f32.mrf.mxu0
      %v2495 = vadd.f32 0.0, %v2494
      %2496 = vmatmul.f32.gmra.mxu0 %v2418
      %v2497 = vpop.f32.mrf.mxu0
      %v2498 = vadd.f32 0.0, %v2497
      %2499 = vmatmul.f32.gmra.mxu0 %v2419
      %v2500 = vpop.f32.mrf.mxu0
      %v2501 = vadd.f32 0.0, %v2500
      %2502 = vmatmul.f32.gmra.mxu0 %v2420
      %v2503 = vpop.f32.mrf.mxu0
      %v2504 = vadd.f32 0.0, %v2503
      %2505 = vmatmul.f32.gmra.mxu0 %v2421
      %v2506 = vpop.f32.mrf.mxu0
      %v2507 = vadd.f32 0.0, %v2506
      %2508 = vmatmul.f32.gmra.mxu0 %v2422
      %v2509 = vpop.f32.mrf.mxu0
      %v2510 = vadd.f32 0.0, %v2509
      %2511 = vmatmul.f32.gmra.mxu0 %v2423
      %v2512 = vpop.f32.mrf.mxu0
      %v2513 = vadd.f32 0.0, %v2512
      %2514 = vmatmul.f32.gmra.mxu0 %v2424
      %v2515 = vpop.f32.mrf.mxu0
      %v2516 = vadd.f32 0.0, %v2515
      %2517 = vmatmul.f32.gmra.mxu0 %v2425
      %v2518 = vpop.f32.mrf.mxu0
      %v2519 = vadd.f32 0.0, %v2518
      %2520 = vmatmul.f32.gmra.mxu0 %v2426
      %v2521 = vpop.f32.mrf.mxu0
      %v2522 = vadd.f32 0.0, %v2521
      %2523 = vmatmul.f32.gmra.mxu0 %v2427
      %v2524 = vpop.f32.mrf.mxu0
      %v2525 = vadd.f32 0.0, %v2524
      %2526 = vmatmul.f32.gmra.mxu0 %v2428
      %v2527 = vpop.f32.mrf.mxu0
      %v2528 = vadd.f32 0.0, %v2527
      %2529 = vmatmul.f32.gmra.mxu0 %v2429
      %v2530 = vpop.f32.mrf.mxu0
      %v2531 = vadd.f32 0.0, %v2530
      %2532 = vmatmul.f32.gmra.mxu0 %v2430
      %v2533 = vpop.f32.mrf.mxu0
      %v2534 = vadd.f32 0.0, %v2533
      %2535 = vmatmul.f32.gmra.mxu0 %v2431
      %v2536 = vpop.f32.mrf.mxu0
      %v2537 = vadd.f32 0.0, %v2536
      %2538 = vmatmul.f32.gmra.mxu0 %v2432
      %v2539 = vpop.f32.mrf.mxu0
      %v2540 = vadd.f32 0.0, %v2539
      %2541 = vmatmul.f32.gmra.mxu0 %v2433
      %v2542 = vpop.f32.mrf.mxu0
      %v2543 = vadd.f32 0.0, %v2542
      %2544 = vmatmul.f32.gmra.mxu0 %v2434
      %v2545 = vpop.f32.mrf.mxu0
      %v2546 = vadd.f32 0.0, %v2545
      %2547 = vmatmul.f32.gmra.mxu0 %v2435
      %v2548 = vpop.f32.mrf.mxu0
      %v2549 = vadd.f32 0.0, %v2548
      %2550 = vmatmul.f32.gmra.mxu0 %v2436
      %v2551 = vpop.f32.mrf.mxu0
      %v2552 = vadd.f32 0.0, %v2551
      %2553 = vmatmul.f32.gmra.mxu0 %v2437
      %v2554 = vpop.f32.mrf.mxu0
      %v2555 = vadd.f32 0.0, %v2554
      %2556 = vmatmul.f32.gmra.mxu0 %v2438
      %v2557 = vpop.f32.mrf.mxu0
      %v2558 = vadd.f32 0.0, %v2557
      %2559 = vmatmul.f32.gmra.mxu0 %v2439
      %v2560 = vpop.f32.mrf.mxu0
      %v2561 = vadd.f32 0.0, %v2560
      %2562 = vmatmul.f32.gmra.mxu0 %v2440
      %v2563 = vpop.f32.mrf.mxu0
      %v2564 = vadd.f32 0.0, %v2563
      %2565 = vmatmul.f32.gmra.mxu0 %v2441
      %v2566 = vpop.f32.mrf.mxu0
      %v2567 = vadd.f32 0.0, %v2566
      %2568 = vmatmul.f32.gmra.mxu0 %v2442
      %v2569 = vpop.f32.mrf.mxu0
      %v2570 = vadd.f32 0.0, %v2569
      %2571 = vmatmul.f32.gmra.mxu0 %v2443
      %v2572 = vpop.f32.mrf.mxu0
      %v2573 = vadd.f32 0.0, %v2572
      %2574 = vmatmul.f32.gmra.mxu0 %v2444
      %v2575 = vpop.f32.mrf.mxu0
      %v2576 = vadd.f32 0.0, %v2575
      %2577 = vmatmul.f32.gmra.mxu0 %v2445
      %v2578 = vpop.f32.mrf.mxu0
      %v2579 = vadd.f32 0.0, %v2578
      %2580 = vmatmul.f32.gmra.mxu0 %v2446
      %v2581 = vpop.f32.mrf.mxu0
      %v2582 = vadd.f32 0.0, %v2581
      %2583 = vmatmul.f32.gmra.mxu0 %v2447
      %v2584 = vpop.f32.mrf.mxu0
      %v2585 = vadd.f32 0.0, %v2584
      %2586 = vmatmul.f32.gmra.mxu0 %v2448
      %v2587 = vpop.f32.mrf.mxu0
      %v2588 = vadd.f32 0.0, %v2587
      %2589 = vdwg.mxu0
      %v2590 = vadd.f32 %v2377, %v2483
      %v2591 = vadd.f32 %v2378, %v2486
      %v2592 = vadd.f32 %v2379, %v2489
      %v2593 = vadd.f32 %v2380, %v2492
      %v2594 = vadd.f32 %v2381, %v2495
      %v2595 = vadd.f32 %v2382, %v2498
      %v2596 = vadd.f32 %v2383, %v2501
      %v2597 = vadd.f32 %v2384, %v2504
      %v2598 = vadd.f32 %v2385, %v2507
      %v2599 = vadd.f32 %v2386, %v2510
      %v2600 = vadd.f32 %v2387, %v2513
      %v2601 = vadd.f32 %v2388, %v2516
      %v2602 = vadd.f32 %v2389, %v2519
      %v2603 = vadd.f32 %v2390, %v2522
      %v2604 = vadd.f32 %v2391, %v2525
      %v2605 = vadd.f32 %v2392, %v2528
      %v2606 = vadd.f32 %v2393, %v2531
      %v2607 = vadd.f32 %v2394, %v2534
      %v2608 = vadd.f32 %v2395, %v2537
      %v2609 = vadd.f32 %v2396, %v2540
      %v2610 = vadd.f32 %v2397, %v2543
      %v2611 = vadd.f32 %v2398, %v2546
      %v2612 = vadd.f32 %v2399, %v2549
      %v2613 = vadd.f32 %v2400, %v2552
      %v2614 = vadd.f32 %v2401, %v2555
      %v2615 = vadd.f32 %v2402, %v2558
      %v2616 = vadd.f32 %v2403, %v2561
      %v2617 = vadd.f32 %v2404, %v2564
      %v2618 = vadd.f32 %v2405, %v2567
      %v2619 = vadd.f32 %v2406, %v2570
      %v2620 = vadd.f32 %v2407, %v2573
      %v2621 = vadd.f32 %v2408, %v2576
      %v2622 = vadd.f32 %v2409, %v2579
      %v2623 = vadd.f32 %v2410, %v2582
      %v2624 = vadd.f32 %v2411, %v2585
      %v2625 = vadd.f32 %v2412, %v2588
      %v2626 = vmul.f32 %v2590, %v526
      %v2627 = vmul.f32 %v2591, %v531
      %v2628 = vmul.f32 %v2592, %v536
      %v2629 = vmul.f32 %v2593, %v541
      %v2630 = vmul.f32 %v2594, %v546
      %v2631 = vmul.f32 %v2595, %v551
      %v2632 = vmul.f32 %v2596, %v556
      %v2633 = vmul.f32 %v2597, %v561
      %v2634 = vmul.f32 %v2598, %v566
      %v2635 = vmul.f32 %v2599, %v571
      %v2636 = vmul.f32 %v2600, %v576
      %v2637 = vmul.f32 %v2601, %v581
      %v2638 = vmul.f32 %v2602, %v586
      %v2639 = vmul.f32 %v2603, %v591
      %v2640 = vmul.f32 %v2604, %v596
      %v2641 = vmul.f32 %v2605, %v601
      %v2642 = vmul.f32 %v2606, %v606
      %v2643 = vmul.f32 %v2607, %v611
      %v2644 = vmul.f32 %v2608, %v616
      %v2645 = vmul.f32 %v2609, %v621
      %v2646 = vmul.f32 %v2610, %v626
      %v2647 = vmul.f32 %v2611, %v631
      %v2648 = vmul.f32 %v2612, %v636
      %v2649 = vmul.f32 %v2613, %v641
      %v2650 = vmul.f32 %v2614, %v646
      %v2651 = vmul.f32 %v2615, %v651
      %v2652 = vmul.f32 %v2616, %v656
      %v2653 = vmul.f32 %v2617, %v661
      %v2654 = vmul.f32 %v2618, %v666
      %v2655 = vmul.f32 %v2619, %v671
      %v2656 = vmul.f32 %v2620, %v676
      %v2657 = vmul.f32 %v2621, %v681
      %v2658 = vmul.f32 %v2622, %v686
      %v2659 = vmul.f32 %v2623, %v691
      %v2660 = vmul.f32 %v2624, %v696
      %v2661 = vmul.f32 %v2625, %v701
      %v2662 = vadd.f32 %v2626, %v2627
      %v2663 = vadd.f32 %v2662, %v2628
      %v2664 = vadd.f32 %v2663, %v2629
      %v2665 = vadd.f32 %v2664, %v2630
      %v2666 = vadd.f32 %v2665, %v2631
      %v2667 = vadd.f32 %v2666, %v2632
      %v2668 = vadd.f32 %v2667, %v2633
      %v2669 = vadd.f32 %v2668, %v2634
      %v2670 = vadd.f32 %v2669, %v2635
      %v2671 = vadd.f32 %v2670, %v2636
      %v2672 = vadd.f32 %v2671, %v2637
      %v2673 = vadd.f32 %v2672, %v2638
      %v2674 = vadd.f32 %v2673, %v2639
      %v2675 = vadd.f32 %v2674, %v2640
      %v2676 = vadd.f32 %v2675, %v2641
      %v2677 = vadd.f32 %v2676, %v2642
      %v2678 = vadd.f32 %v2677, %v2643
      %v2679 = vadd.f32 %v2678, %v2644
      %v2680 = vadd.f32 %v2679, %v2645
      %v2681 = vadd.f32 %v2680, %v2646
      %v2682 = vadd.f32 %v2681, %v2647
      %v2683 = vadd.f32 %v2682, %v2648
      %v2684 = vadd.f32 %v2683, %v2649
      %v2685 = vadd.f32 %v2684, %v2650
      %v2686 = vadd.f32 %v2685, %v2651
      %v2687 = vadd.f32 %v2686, %v2652
      %v2688 = vadd.f32 %v2687, %v2653
      %v2689 = vadd.f32 %v2688, %v2654
      %v2690 = vadd.f32 %v2689, %v2655
      %v2691 = vadd.f32 %v2690, %v2656
      %v2692 = vadd.f32 %v2691, %v2657
      %v2693 = vadd.f32 %v2692, %v2658
      %v2694 = vadd.f32 %v2693, %v2659
      %v2695 = vadd.f32 %v2694, %v2660
      %v2696 = vadd.f32 %v2695, %v2661
      %v2697 = vrot.slane %v2696, 4
      %v2698 = vadd.f32 %v2696, %v2697
      %v2699 = vrot.slane %v2698, 2
      %v2700 = vadd.f32 %v2698, %v2699
      %v2701 = vrot.slane %v2700, 1
      %v2702 = vadd.f32 %v2700, %v2701
      %v2703 = vmul.f32 %v2626, %v2590
      %v2704 = vmul.f32 %v2627, %v2591
      %v2705 = vmul.f32 %v2628, %v2592
      %v2706 = vmul.f32 %v2629, %v2593
      %v2707 = vmul.f32 %v2630, %v2594
      %v2708 = vmul.f32 %v2631, %v2595
      %v2709 = vmul.f32 %v2632, %v2596
      %v2710 = vmul.f32 %v2633, %v2597
      %v2711 = vmul.f32 %v2634, %v2598
      %v2712 = vmul.f32 %v2635, %v2599
      %v2713 = vmul.f32 %v2636, %v2600
      %v2714 = vmul.f32 %v2637, %v2601
      %v2715 = vmul.f32 %v2638, %v2602
      %v2716 = vmul.f32 %v2639, %v2603
      %v2717 = vmul.f32 %v2640, %v2604
      %v2718 = vmul.f32 %v2641, %v2605
      %v2719 = vmul.f32 %v2642, %v2606
      %v2720 = vmul.f32 %v2643, %v2607
      %v2721 = vmul.f32 %v2644, %v2608
      %v2722 = vmul.f32 %v2645, %v2609
      %v2723 = vmul.f32 %v2646, %v2610
      %v2724 = vmul.f32 %v2647, %v2611
      %v2725 = vmul.f32 %v2648, %v2612
      %v2726 = vmul.f32 %v2649, %v2613
      %v2727 = vmul.f32 %v2650, %v2614
      %v2728 = vmul.f32 %v2651, %v2615
      %v2729 = vmul.f32 %v2652, %v2616
      %v2730 = vmul.f32 %v2653, %v2617
      %v2731 = vmul.f32 %v2654, %v2618
      %v2732 = vmul.f32 %v2655, %v2619
      %v2733 = vmul.f32 %v2656, %v2620
      %v2734 = vmul.f32 %v2657, %v2621
      %v2735 = vmul.f32 %v2658, %v2622
      %v2736 = vmul.f32 %v2659, %v2623
      %v2737 = vmul.f32 %v2660, %v2624
      %v2738 = vmul.f32 %v2661, %v2625
      %v2739 = vadd.f32 %v2703, %v2704
      %v2740 = vadd.f32 %v2739, %v2705
      %v2741 = vadd.f32 %v2740, %v2706
      %v2742 = vadd.f32 %v2741, %v2707
      %v2743 = vadd.f32 %v2742, %v2708
      %v2744 = vadd.f32 %v2743, %v2709
      %v2745 = vadd.f32 %v2744, %v2710
      %v2746 = vadd.f32 %v2745, %v2711
      %v2747 = vadd.f32 %v2746, %v2712
      %v2748 = vadd.f32 %v2747, %v2713
      %v2749 = vadd.f32 %v2748, %v2714
      %v2750 = vadd.f32 %v2749, %v2715
      %v2751 = vadd.f32 %v2750, %v2716
      %v2752 = vadd.f32 %v2751, %v2717
      %v2753 = vadd.f32 %v2752, %v2718
      %v2754 = vadd.f32 %v2753, %v2719
      %v2755 = vadd.f32 %v2754, %v2720
      %v2756 = vadd.f32 %v2755, %v2721
      %v2757 = vadd.f32 %v2756, %v2722
      %v2758 = vadd.f32 %v2757, %v2723
      %v2759 = vadd.f32 %v2758, %v2724
      %v2760 = vadd.f32 %v2759, %v2725
      %v2761 = vadd.f32 %v2760, %v2726
      %v2762 = vadd.f32 %v2761, %v2727
      %v2763 = vadd.f32 %v2762, %v2728
      %v2764 = vadd.f32 %v2763, %v2729
      %v2765 = vadd.f32 %v2764, %v2730
      %v2766 = vadd.f32 %v2765, %v2731
      %v2767 = vadd.f32 %v2766, %v2732
      %v2768 = vadd.f32 %v2767, %v2733
      %v2769 = vadd.f32 %v2768, %v2734
      %v2770 = vadd.f32 %v2769, %v2735
      %v2771 = vadd.f32 %v2770, %v2736
      %v2772 = vadd.f32 %v2771, %v2737
      %v2773 = vadd.f32 %v2772, %v2738
      %v2774 = vrot.slane %v2773, 4
      %v2775 = vadd.f32 %v2773, %v2774
      %v2776 = vrot.slane %v2775, 2
      %v2777 = vadd.f32 %v2775, %v2776
      %v2778 = vrot.slane %v2777, 1
      %v2779 = vadd.f32 %v2777, %v2778
      %vm2780 = vcmask 1040384
      %v2781 = vsel %vm2780, %v2702, %v2779
      %2782 = vst [vmem:[%s262] sm:$0x3] %v2781
      %2783 = vst [vmem:[%s258] sm:$0xff] %v2590
      %2784 = vst [vmem:[%s258 + $0x8] sm:$0xff] %v2591
      %2785 = vst [vmem:[%s258 + $0x10] sm:$0xff] %v2592
      %2786 = vst [vmem:[%s258 + $0x18] sm:$0xff] %v2593
      %2787 = vst [vmem:[%s258 + $0x20] sm:$0xff] %v2594
      %2788 = vst [vmem:[%s258 + $0x28] sm:$0xff] %v2595
      %2789 = vst [vmem:[%s258 + $0x30] sm:$0xff] %v2596
      %2790 = vst [vmem:[%s258 + $0x38] sm:$0xff] %v2597
      %2791 = vst [vmem:[%s258 + $0x40] sm:$0xff] %v2598
      %2792 = vst [vmem:[%s258 + $0x48] sm:$0xff] %v2599
      %2793 = vst [vmem:[%s258 + $0x50] sm:$0xff] %v2600
      %2794 = vst [vmem:[%s258 + $0x58] sm:$0xff] %v2601
      %2795 = vst [vmem:[%s258 + $0x60] sm:$0xff] %v2602
      %2796 = vst [vmem:[%s258 + $0x68] sm:$0xff] %v2603
      %2797 = vst [vmem:[%s258 + $0x70] sm:$0xff] %v2604
      %2798 = vst [vmem:[%s258 + $0x78] sm:$0xff] %v2605
      %2799 = vst [vmem:[%s258 + $0x80] sm:$0xff] %v2606
      %2800 = vst [vmem:[%s258 + $0x88] sm:$0xff] %v2607
      %2801 = vst [vmem:[%s258 + $0x90] sm:$0xff] %v2608
      %2802 = vst [vmem:[%s258 + $0x98] sm:$0xff] %v2609
      %2803 = vst [vmem:[%s258 + $0xa0] sm:$0xff] %v2610
      %2804 = vst [vmem:[%s258 + $0xa8] sm:$0xff] %v2611
      %2805 = vst [vmem:[%s258 + $0xb0] sm:$0xff] %v2612
      %2806 = vst [vmem:[%s258 + $0xb8] sm:$0xff] %v2613
      %2807 = vst [vmem:[%s258 + $0xc0] sm:$0xff] %v2614
      %2808 = vst [vmem:[%s258 + $0xc8] sm:$0xff] %v2615
      %2809 = vst [vmem:[%s258 + $0xd0] sm:$0xff] %v2616
      %2810 = vst [vmem:[%s258 + $0xd8] sm:$0xff] %v2617
      %2811 = vst [vmem:[%s258 + $0xe0] sm:$0xff] %v2618
      %2812 = vst [vmem:[%s258 + $0xe8] sm:$0xff] %v2619
      %2813 = vst [vmem:[%s258 + $0xf0] sm:$0xff] %v2620
      %2814 = vst [vmem:[%s258 + $0xf8] sm:$0xff] %v2621
      %2815 = vst [vmem:[%s258 + $0x100] sm:$0xff] %v2622
      %2816 = vst [vmem:[%s258 + $0x108] sm:$0xff] %v2623
      %2817 = vst [vmem:[%s258 + $0x110] sm:$0xff] %v2624
      %2818 = vst [vmem:[%s258 + $0x118] sm:$0xff] %v2625
      %p2819 = scmp.lt.s32.totalorder %s18, 1
      %s2820 = scalar_select %p2819, %s18, 1
      %s2821 = smul.addr %s2820, 36
      %s2822 = smul.addr %s2821, 8
      %s2823 = scalar_lea.vmem %s5, %s2822
      %p2824 = scmp.lt.s32.totalorder %s18, 1
      %s2825 = scalar_select %p2824, %s18, 1
      %s2826 = smul.addr %s2825, 2
      %s2827 = scalar_lea.vmem %s6, %s2826
      // Predicated region
      $region41: #{residual_block_pallas.4} parent=39 // pred_check
        %p2828 = pneg %p146
      $region42: #{residual_block_pallas.4} parent=39 // pred_check_branch
        %2830 = sbr.rel (%p2828) target = $region44
      $region43: #{residual_block_pallas.4} parent=39 // pred_region
        _
      $region44: #{residual_block_pallas.4} parent=39 // pred_fallthru
        _
      // Predicated region
      $region45: #{residual_block_pallas.4} parent=39 // pred_check
        %p2831 = pneg %p172
      $region46: #{residual_block_pallas.4} parent=39 // pred_check_branch
        %2833 = sbr.rel (%p2831) target = $region48
      $region47: #{residual_block_pallas.4} parent=39 // pred_region
        _
      $region48: #{residual_block_pallas.4} parent=39 // pred_fallthru
        _
    $region40: #{residual_block_pallas.4} parent=5 // pred_fallthru
      _
    %p2834 = scmp.le.s32.totalorder 2, %s13
    // Predicated region
    $region49: #{residual_block_pallas.4} parent=5 // pred_check
      %p2835 = pneg %p2834
    $region50: #{residual_block_pallas.4} parent=5 // pred_check_branch
      %2837 = sbr.rel (%p2835) target = $region52
    $region51: #{residual_block_pallas.4} parent=5 // pred_region
      %s2838 = ssub.s32 %s13, 2
      // Predicated region
      $region53: #{residual_block_pallas.4} parent=51 // pred_check
        %p2839 = pneg %p152
      $region54: #{residual_block_pallas.4} parent=51 // pred_check_branch
        %2841 = sbr.rel (%p2839) target = $region56
      $region55: #{residual_block_pallas.4} parent=51 // pred_region
        %p2842 = scmp.lt.s32.totalorder %s19, 1
        %s2843 = scalar_select %p2842, %s19, 1
        %s2844 = smul.addr %s2843, 36
        %s2845 = smul.addr %s2844, 8
        %s2846 = scalar_lea.vmem %s5, %s2845
      $region56: #{residual_block_pallas.4} parent=51 // pred_fallthru
        _
      // Predicated region
      $region57: #{residual_block_pallas.4} parent=51 // pred_check
        %p2847 = pneg %p178
      $region58: #{residual_block_pallas.4} parent=51 // pred_check_branch
        %2849 = sbr.rel (%p2847) target = $region60
      $region59: #{residual_block_pallas.4} parent=51 // pred_region
        %p2850 = scmp.lt.s32.totalorder %s19, 1
        %s2851 = scalar_select %p2850, %s19, 1
        %s2852 = smul.addr %s2851, 2
        %s2853 = scalar_lea.vmem %s6, %s2852
      $region60: #{residual_block_pallas.4} parent=51 // pred_fallthru
        _
    $region52: #{residual_block_pallas.4} parent=5 // pred_fallthru
      _
  $region6: #{residual_block_pallas.4} parent=0 // loop_footer
    %s17 = sadd.s32 1, %s13
  $region7: #{residual_block_pallas.4} parent=0 // loop_footer_branch
    %12 = sbr.rel target = $region3
  $region8: #{residual_block_pallas.4} parent=0 // loop_exit
    _

</llo_original>
